<compile_context>
chip_gen: v7x
topology: tpu7x:2x2x1
jax: 0.10.0
libtpu: 0.0.40
codegen_flags: <defaults>
</compile_context>

<pallas_src>
import functools

import jax
import jax.numpy as jnp
from jax import lax
from jax.experimental import pallas as pl
from jax.experimental.pallas import tpu as pltpu


_TAPS = tuple((dy, dx) for dy in (-1, 0, 1) for dx in (-1, 0, 1))


# ------------------------------ in-kernel helpers ------------------------------

def _im2col(x, W, masks):
    """Build the (9*Cx, HW) im2col stack of a flat (Cx, HW) activation slab.

    Shifted taps come from pltpu.roll (lane rotations in the XLU slot) of the one
    aligned load `x`; wrapped rows/columns are zeroed with the precomputed per-tap
    masks (masks: (9, HW) f32, row t = validity mask of tap t).
    """
    HW = x.shape[-1]
    parts = []
    for t, (dy, dx) in enumerate(_TAPS):
        d = dy * W + dx
        xs = x if d == 0 else pltpu.roll(x, (-d) % HW, axis=1)
        if d != 0:
            xs = xs * masks[t:t + 1, :]
        parts.append(xs)
    return jnp.concatenate(parts, axis=0)


def _conv(w_ref, b_ref, stack):
    """Folded-BN 3x3 conv as a single MXU GEMM over an im2col stack."""
    return (jnp.dot(w_ref[...], stack, preferred_element_type=jnp.float32)
            + b_ref[...])


# -------------------------------- kernel body ----------------------------------

def _aggregation_kernel(x1_ref, x2_ref, x3_ref,
                        u1t_ref, u12t_ref, u2t_ref,
                        m2_ref, m3_ref,
                        wu14_ref, bu14_ref,
                        wu2_ref, bu2_ref,
                        wu3_ref, bu3_ref,
                        wc2_ref, bc2_ref,
                        wu5_ref, bu5_ref,
                        wc3_ref, bc3_ref,
                        w45_ref, b45_ref,
                        o_ref, *, C, W2, W3):
    f32 = jnp.float32
    x1 = x1_ref[0]                                  # (C, HW1)
    x2 = x2_ref[0]                                  # (C, HW2)
    x3 = x3_ref[0]                                  # (C, HW3)
    m2 = m2_ref[...]                                # (9, HW2)
    m3 = m3_ref[...]                                # (9, HW3)

    # Bilinear 2x upsamples (align_corners=True) as dense MXU GEMMs.
    x1u = jnp.dot(x1, u1t_ref[...], preferred_element_type=f32)      # (C, HW2)
    x1uu = jnp.dot(x1, u12t_ref[...], preferred_element_type=f32)    # (C, HW3)
    x2u = jnp.dot(x2, u2t_ref[...], preferred_element_type=f32)      # (C, HW3)

    # conv_upsample1 & conv_upsample4 share input x1u: one GEMM, Cout stacked.
    y14 = _conv(wu14_ref, bu14_ref, _im2col(x1u, W2, m2))            # (2C, HW2)
    x2_1 = y14[:C] * x2
    y_u4 = y14[C:]

    # x3_1 = conv_upsample2(up(up(x1))) * conv_upsample3(up(x2)) * x3
    y_u2 = _conv(wu2_ref, bu2_ref, _im2col(x1uu, W3, m3))            # (C, HW3)
    y_u3 = _conv(wu3_ref, bu3_ref, _im2col(x2u, W3, m3))             # (C, HW3)
    x3_1 = y_u2 * y_u3 * x3

    # x2_2 = conv_concat2(cat(x2_1, y_u4))        (concat lives only in VMEM)
    cat2 = jnp.concatenate([x2_1, y_u4], axis=0)                     # (2C, HW2)
    x2_2 = _conv(wc2_ref, bc2_ref, _im2col(cat2, W2, m2))            # (2C, HW2)

    # x3_2 = conv_concat3(cat(x3_1, conv_upsample5(up(x2_2))))
    x2_2u = jnp.dot(x2_2, u2t_ref[...], preferred_element_type=f32)  # (2C, HW3)
    y_u5 = _conv(wu5_ref, bu5_ref, _im2col(x2_2u, W3, m3))           # (2C, HW3)
    cat3 = jnp.concatenate([x3_1, y_u5], axis=0)                     # (3C, HW3)
    x3_2 = _conv(wc3_ref, bc3_ref, _im2col(cat3, W3, m3))            # (3C, HW3)

    # out = conv5(conv4(x3_2)), folded into a single 3x3 conv with 4 outputs.
    o_ref[0] = _conv(w45_ref, b45_ref, _im2col(x3_2, W3, m3))        # (4, HW3)


# ------------------------------ host-side helpers -------------------------------

def _interp_matrix(n_in):
    """1-D bilinear 2x upsample matrix (align_corners=True): (2*n_in, n_in)."""
    n_out = 2 * n_in
    if n_in == 1:
        return jnp.ones((n_out, 1), jnp.float32)
    src = jnp.arange(n_out, dtype=jnp.float32) * (n_in - 1) / (n_out - 1)
    i0 = jnp.clip(jnp.floor(src).astype(jnp.int32), 0, n_in - 2)
    frac = src - i0.astype(jnp.float32)
    rows = jnp.arange(n_out)
    M = jnp.zeros((n_out, n_in), jnp.float32)
    M = M.at[rows, i0].add(1.0 - frac)
    M = M.at[rows, i0 + 1].add(frac)
    return M


def _upsample_matrix(H, W):
    """(4HW, HW) flat bilinear 2x upsample operator (align_corners=True)."""
    return jnp.kron(_interp_matrix(H), _interp_matrix(W))


def _tap_mask_table(H, W):
    """(9, H*W) f32 validity masks (zero where a rolled tap wraps around an edge)."""
    idx = jnp.arange(H * W, dtype=jnp.int32)
    row, col = idx // W, idx % W
    ones = row >= 0
    rmask = {-1: row > 0, 0: ones, 1: row < H - 1}
    cmask = {-1: col > 0, 0: ones, 1: col < W - 1}
    return jnp.stack([(rmask[dy] & cmask[dx]).astype(jnp.float32)
                      for dy, dx in _TAPS], axis=0)


def _pack_conv_bn(conv_params):
    """HWIO conv + folded eval-mode BN -> ((Cout, 9*Cin) weight, (Cout, 1) bias).

    Column order is tap-major / cin-minor (matching _im2col); the BN scale is
    folded into the weight so the kernel epilogue is a bias add only.
    """
    w_hwio, scale, shift = conv_params
    kh, kw, cin, cout = w_hwio.shape
    w = jnp.transpose(w_hwio, (3, 0, 1, 2)).reshape(cout, kh * kw * cin)
    w = w * scale.reshape(-1, 1)
    return w.astype(jnp.float32), shift.reshape(-1, 1).astype(jnp.float32)


def _batch_spec(shape):
    nd = len(shape)
    return pl.BlockSpec((1,) + tuple(shape[1:]),
                        lambda n, _nd=nd: (n,) + (0,) * (_nd - 1))


def _const_spec(shape):
    nd = len(shape)
    return pl.BlockSpec(tuple(shape), lambda n, _nd=nd: (0,) * _nd)


# --------------------------------- forward pass ---------------------------------

def aggregation_forward(params, x1, x2, x3):
    """Mirrors aggregation.forward (eval-mode BN).  NCHW in, (N, 4, 4H, 4W) out."""
    N, C, H1, W1 = x1.shape
    H2, W2, H3, W3 = 2 * H1, 2 * W1, 4 * H1, 4 * W1
    assert x2.shape == (N, C, H2, W2) and x3.shape == (N, C, H3, W3)
    HW1, HW2, HW3 = H1 * W1, H2 * W2, H3 * W3

    x1f = x1.reshape(N, C, HW1).astype(jnp.float32)
    x2f = x2.reshape(N, C, HW2).astype(jnp.float32)
    x3f = x3.reshape(N, C, HW3).astype(jnp.float32)

    # Upsample operators (transposed for right-multiplication inside the kernel).
    U1 = _upsample_matrix(H1, W1)                 # (HW2, HW1)
    U2 = _upsample_matrix(H2, W2)                 # (HW3, HW2)
    u1t = U1.T                                    # (HW1, HW2)
    u2t = U2.T                                    # (HW2, HW3)
    u12t = (U2 @ U1).T                            # (HW1, HW3)  == up(up(.)) exactly

    # Per-tap roll-wraparound masks for the two conv resolutions.
    m2 = _tap_mask_table(H2, W2)                  # (9, HW2)
    m3 = _tap_mask_table(H3, W3)                  # (9, HW3)

    # Packed, BN-folded weights.
    wu1, bu1 = _pack_conv_bn(params['conv_upsample1'])
    wu4, bu4 = _pack_conv_bn(params['conv_upsample4'])
    wu14 = jnp.concatenate([wu1, wu4], axis=0)
    bu14 = jnp.concatenate([bu1, bu4], axis=0)
    wu2, bu2 = _pack_conv_bn(params['conv_upsample2'])
    wu3, bu3 = _pack_conv_bn(params['conv_upsample3'])
    wc2, bc2 = _pack_conv_bn(params['conv_concat2'])
    wu5, bu5 = _pack_conv_bn(params['conv_upsample5'])
    wc3, bc3 = _pack_conv_bn(params['conv_concat3'])
    # conv5 (1x1 + bias) folded into conv4 (+BN):  W5 @ (s4*W4),  W5 @ b4 + b5.
    w4p, b4p = _pack_conv_bn(params['conv4'])                 # (3C, 27C), (3C, 1)
    w5 = params['conv5_w'].astype(jnp.float32)                # (4, 3C)
    b5 = params['conv5_b'].astype(jnp.float32)                # (4,)
    w45 = w5 @ w4p                                            # (4, 27C)
    b45 = (w5 @ b4p.reshape(-1) + b5).reshape(-1, 1)          # (4, 1)

    consts = (u1t, u12t, u2t, m2, m3,
              wu14, bu14, wu2, bu2, wu3, bu3,
              wc2, bc2, wu5, bu5, wc3, bc3, w45, b45)

    out = pl.pallas_call(
        functools.partial(_aggregation_kernel, C=C, W2=W2, W3=W3),
        out_shape=jax.ShapeDtypeStruct((N, 4, HW3), jnp.float32),
        grid=(N,),
        in_specs=[_batch_spec(x1f.shape), _batch_spec(x2f.shape),
                  _batch_spec(x3f.shape)]
                 + [_const_spec(c.shape) for c in consts],
        out_specs=_batch_spec((N, 4, HW3)),
        compiler_params=pltpu.CompilerParams(
            dimension_semantics=("parallel",),
            vmem_limit_bytes=48 * 1024 * 1024),
    )(x1f, x2f, x3f, *consts)
    return out.reshape(N, 4, H3, W3)


# ------------------------------ parameter creation -------------------------------

def make_basic_conv_params(key, cin, cout, k=3):
    """Deterministic weights for BasicConv2d: conv (HWIO) + folded eval-mode BN."""
    kw, kg, kb, km, kv = jax.random.split(key, 5)
    w = 0.1 * jax.random.normal(kw, (k, k, cin, cout), jnp.float32)
    gamma = 1.0 + 0.1 * jax.random.normal(kg, (cout,), jnp.float32)
    beta = 0.1 * jax.random.normal(kb, (cout,), jnp.float32)
    run_mean = 0.1 * jax.random.normal(km, (cout,), jnp.float32)
    run_var = 0.5 + jax.random.uniform(kv, (cout,), jnp.float32)
    eps = 1e-5
    scale = gamma / jnp.sqrt(run_var + eps)
    shift = beta - run_mean * scale
    return (w, scale, shift)


def make_aggregation_params(key, channel):
    keys = jax.random.split(key, 10)
    return {
        'conv_upsample1': make_basic_conv_params(keys[0], channel, channel),
        'conv_upsample2': make_basic_conv_params(keys[1], channel, channel),
        'conv_upsample3': make_basic_conv_params(keys[2], channel, channel),
        'conv_upsample4': make_basic_conv_params(keys[3], channel, channel),
        'conv_upsample5': make_basic_conv_params(keys[4], 2 * channel, 2 * channel),
        'conv_concat2': make_basic_conv_params(keys[5], 2 * channel, 2 * channel),
        'conv_concat3': make_basic_conv_params(keys[6], 3 * channel, 3 * channel),
        'conv4': make_basic_conv_params(keys[7], 3 * channel, 3 * channel),
        'conv5_w': 0.1 * jax.random.normal(keys[8], (4, 3 * channel), jnp.float32),
        'conv5_b': 0.1 * jax.random.normal(keys[9], (4,), jnp.float32),
    }


# -------------------------------- reference (JAX) --------------------------------

def _upsample2x_ref(x):
    N, C, H, W = x.shape
    Mh = _interp_matrix(H)
    Mw = _interp_matrix(W)
    x = jnp.einsum('oh,nchw->ncow', Mh, x)
    x = jnp.einsum('pw,nchw->nchp', Mw, x)
    return x


def _conv_ref(x, conv_params):
    w_hwio, scale, shift = conv_params
    y = lax.conv_general_dilated(x, w_hwio, (1, 1), 'SAME',
                                 dimension_numbers=('NCHW', 'HWIO', 'NCHW'))
    return y * scale[None, :, None, None] + shift[None, :, None, None]


def aggregation_reference(params, x1, x2, x3):
    x1 = x1.astype(jnp.float32)
    x2 = x2.astype(jnp.float32)
    x3 = x3.astype(jnp.float32)
    up = _upsample2x_ref
    x2_1 = _conv_ref(up(x1), params['conv_upsample1']) * x2
    x3_1 = (_conv_ref(up(up(x1)), params['conv_upsample2'])
            * _conv_ref(up(x2), params['conv_upsample3']) * x3)
    x2_2 = jnp.concatenate([x2_1, _conv_ref(up(x1), params['conv_upsample4'])], axis=1)
    x2_2 = _conv_ref(x2_2, params['conv_concat2'])
    x3_2 = jnp.concatenate([x3_1, _conv_ref(up(x2_2), params['conv_upsample5'])], axis=1)
    x3_2 = _conv_ref(x3_2, params['conv_concat3'])
    x = _conv_ref(x3_2, params['conv4'])
    x = (jnp.einsum('oc,nchw->nohw', params['conv5_w'], x)
         + params['conv5_b'][None, :, None, None])
    return x


# ------------------------------------- main --------------------------------------

if __name__ == "__main__":
    key = jax.random.PRNGKey(0)
    k_p, k1, k2, k3 = jax.random.split(key, 4)

    channel = 8
    N, H, W = 2, 8, 8                       # x1 spatial; x2 = 2x, x3 = 4x
    params = make_aggregation_params(k_p, channel)

    x1 = jax.random.normal(k1, (N, channel, H, W), jnp.float32)            # NCHW
    x2 = jax.random.normal(k2, (N, channel, 2 * H, 2 * W), jnp.float32)
    x3 = jax.random.normal(k3, (N, channel, 4 * H, 4 * W), jnp.float32)

    fwd = jax.jit(aggregation_forward)
    out = jax.block_until_ready(fwd(params, x1, x2, x3))
    assert out.shape == (N, 4, 4 * H, 4 * W), out.shape

    ref = jax.block_until_ready(aggregation_reference(params, x1, x2, x3))
    max_err = float(jnp.max(jnp.abs(out - ref)))
    assert jnp.allclose(out, ref, rtol=2e-3, atol=2e-3), max_err

    print("KERNEL_OK")
</pallas_src>

<mosaic_0001>
module attributes {stable_mosaic.version = 11 : i64} {
  func.func private @main(%arg0: i32) attributes {dimension_semantics = [#tpu.dimension_semantics<core_parallel>], iteration_bounds = array<i64: 2>, tpu.core_type = #tpu.core_type<sc_scalar_subcore>, window_params = []} {
    return
  }
}

module attributes {stable_mosaic.version = 11 : i64} {
  func.func private @main(%arg0: i32) attributes {dimension_semantics = [#tpu.dimension_semantics<core_parallel>], iteration_bounds = array<i64: 2>, tpu.core_type = #tpu.core_type<sc_scalar_subcore>, window_params = []} {
    return
  }
}

module attributes {stable_mosaic.version = 11 : i64} {
  func.func @_aggregation_kernel(%arg0: i32, %arg1: memref<1x8x64xf32, #tpu.memory_space<vmem>>, %arg2: memref<1x8x256xf32, #tpu.memory_space<vmem>>, %arg3: memref<1x8x1024xf32, #tpu.memory_space<vmem>>, %arg4: memref<64x256xf32, #tpu.memory_space<vmem>>, %arg5: memref<64x1024xf32, #tpu.memory_space<vmem>>, %arg6: memref<256x1024xf32, #tpu.memory_space<vmem>>, %arg7: memref<9x256xf32, #tpu.memory_space<vmem>>, %arg8: memref<9x1024xf32, #tpu.memory_space<vmem>>, %arg9: memref<16x72xf32, #tpu.memory_space<vmem>>, %arg10: memref<16x1xf32, #tpu.memory_space<vmem>>, %arg11: memref<8x72xf32, #tpu.memory_space<vmem>>, %arg12: memref<8x1xf32, #tpu.memory_space<vmem>>, %arg13: memref<8x72xf32, #tpu.memory_space<vmem>>, %arg14: memref<8x1xf32, #tpu.memory_space<vmem>>, %arg15: memref<16x144xf32, #tpu.memory_space<vmem>>, %arg16: memref<16x1xf32, #tpu.memory_space<vmem>>, %arg17: memref<16x144xf32, #tpu.memory_space<vmem>>, %arg18: memref<16x1xf32, #tpu.memory_space<vmem>>, %arg19: memref<24x216xf32, #tpu.memory_space<vmem>>, %arg20: memref<24x1xf32, #tpu.memory_space<vmem>>, %arg21: memref<4x216xf32, #tpu.memory_space<vmem>>, %arg22: memref<4x1xf32, #tpu.memory_space<vmem>>, %arg23: memref<1x4x1024xf32, #tpu.memory_space<vmem>>) attributes {dimension_semantics = [#tpu.dimension_semantics<parallel>], iteration_bounds = array<i64: 2>, scalar_prefetch = 0 : i64, scratch_operands = 0 : i64, tpu.core_type = #tpu.core_type<tc>, window_params = [{transform_indices = @transform_0, window_bounds = array<i64: 1, 8, 64>}, {transform_indices = @transform_1, window_bounds = array<i64: 1, 8, 256>}, {transform_indices = @transform_2, window_bounds = array<i64: 1, 8, 1024>}, {pipeline_mode = #tpu.pipeline_mode<synchronous>, transform_indices = @transform_3, window_bounds = array<i64: 64, 256>}, {pipeline_mode = #tpu.pipeline_mode<synchronous>, transform_indices = @transform_4, window_bounds = array<i64: 64, 1024>}, {pipeline_mode = #tpu.pipeline_mode<synchronous>, transform_indices = @transform_5, window_bounds = array<i64: 256, 1024>}, {pipeline_mode = #tpu.pipeline_mode<synchronous>, transform_indices = @transform_6, window_bounds = array<i64: 9, 256>}, {pipeline_mode = #tpu.pipeline_mode<synchronous>, transform_indices = @transform_7, window_bounds = array<i64: 9, 1024>}, {pipeline_mode = #tpu.pipeline_mode<synchronous>, transform_indices = @transform_8, window_bounds = array<i64: 16, 72>}, {pipeline_mode = #tpu.pipeline_mode<synchronous>, transform_indices = @transform_9, window_bounds = array<i64: 16, 1>}, {pipeline_mode = #tpu.pipeline_mode<synchronous>, transform_indices = @transform_10, window_bounds = array<i64: 8, 72>}, {pipeline_mode = #tpu.pipeline_mode<synchronous>, transform_indices = @transform_11, window_bounds = array<i64: 8, 1>}, {pipeline_mode = #tpu.pipeline_mode<synchronous>, transform_indices = @transform_12, window_bounds = array<i64: 8, 72>}, {pipeline_mode = #tpu.pipeline_mode<synchronous>, transform_indices = @transform_13, window_bounds = array<i64: 8, 1>}, {pipeline_mode = #tpu.pipeline_mode<synchronous>, transform_indices = @transform_14, window_bounds = array<i64: 16, 144>}, {pipeline_mode = #tpu.pipeline_mode<synchronous>, transform_indices = @transform_15, window_bounds = array<i64: 16, 1>}, {pipeline_mode = #tpu.pipeline_mode<synchronous>, transform_indices = @transform_16, window_bounds = array<i64: 16, 144>}, {pipeline_mode = #tpu.pipeline_mode<synchronous>, transform_indices = @transform_17, window_bounds = array<i64: 16, 1>}, {pipeline_mode = #tpu.pipeline_mode<synchronous>, transform_indices = @transform_18, window_bounds = array<i64: 24, 216>}, {pipeline_mode = #tpu.pipeline_mode<synchronous>, transform_indices = @transform_19, window_bounds = array<i64: 24, 1>}, {pipeline_mode = #tpu.pipeline_mode<synchronous>, transform_indices = @transform_20, window_bounds = array<i64: 4, 216>}, {pipeline_mode = #tpu.pipeline_mode<synchronous>, transform_indices = @transform_21, window_bounds = array<i64: 4, 1>}, {transform_indices = @transform_22, window_bounds = array<i64: 1, 4, 1024>}]} {
    %c0 = arith.constant 0 : index
    %c0_0 = arith.constant 0 : index
    %c0_1 = arith.constant 0 : index
    %0 = vector.load %arg1[%c0, %c0_0, %c0_1] : memref<1x8x64xf32, #tpu.memory_space<vmem>>, vector<1x8x64xf32>
    %1 = vector.shape_cast %0 : vector<1x8x64xf32> to vector<8x64xf32>
    %c0_2 = arith.constant 0 : index
    %c0_3 = arith.constant 0 : index
    %c0_4 = arith.constant 0 : index
    %2 = vector.load %arg2[%c0_2, %c0_3, %c0_4] : memref<1x8x256xf32, #tpu.memory_space<vmem>>, vector<1x8x256xf32>
    %3 = vector.shape_cast %2 : vector<1x8x256xf32> to vector<8x256xf32>
    %c0_5 = arith.constant 0 : index
    %c0_6 = arith.constant 0 : index
    %c0_7 = arith.constant 0 : index
    %4 = vector.load %arg3[%c0_5, %c0_6, %c0_7] : memref<1x8x1024xf32, #tpu.memory_space<vmem>>, vector<1x8x1024xf32>
    %5 = vector.shape_cast %4 : vector<1x8x1024xf32> to vector<8x1024xf32>
    %c0_8 = arith.constant 0 : index
    %c0_9 = arith.constant 0 : index
    %6 = vector.load %arg7[%c0_8, %c0_9] : memref<9x256xf32, #tpu.memory_space<vmem>>, vector<9x256xf32>
    %c0_10 = arith.constant 0 : index
    %c0_11 = arith.constant 0 : index
    %7 = vector.load %arg8[%c0_10, %c0_11] : memref<9x1024xf32, #tpu.memory_space<vmem>>, vector<9x1024xf32>
    %c0_12 = arith.constant 0 : index
    %c0_13 = arith.constant 0 : index
    %8 = vector.load %arg4[%c0_12, %c0_13] : memref<64x256xf32, #tpu.memory_space<vmem>>, vector<64x256xf32>
    %cst = arith.constant dense<0.000000e+00> : vector<8x256xf32>
    %9 = tpu.matmul %1, %8, %cst {dimension_numbers = #tpu.dot_dimension_numbers<[1], [0], [0], [1], [0, 0, 1, 1], [], []>} : vector<8x64xf32>, vector<64x256xf32>, vector<8x256xf32> -> vector<8x256xf32>
    %c0_14 = arith.constant 0 : index
    %c0_15 = arith.constant 0 : index
    %10 = vector.load %arg5[%c0_14, %c0_15] : memref<64x1024xf32, #tpu.memory_space<vmem>>, vector<64x1024xf32>
    %cst_16 = arith.constant dense<0.000000e+00> : vector<8x1024xf32>
    %11 = tpu.matmul %1, %10, %cst_16 {dimension_numbers = #tpu.dot_dimension_numbers<[1], [0], [0], [1], [0, 0, 1, 1], [], []>} : vector<8x64xf32>, vector<64x1024xf32>, vector<8x1024xf32> -> vector<8x1024xf32>
    %c0_17 = arith.constant 0 : index
    %c0_18 = arith.constant 0 : index
    %12 = vector.load %arg6[%c0_17, %c0_18] : memref<256x1024xf32, #tpu.memory_space<vmem>>, vector<256x1024xf32>
    %cst_19 = arith.constant dense<0.000000e+00> : vector<8x1024xf32>
    %13 = tpu.matmul %3, %12, %cst_19 {dimension_numbers = #tpu.dot_dimension_numbers<[1], [0], [0], [1], [0, 0, 1, 1], [], []>} : vector<8x256xf32>, vector<256x1024xf32>, vector<8x1024xf32> -> vector<8x1024xf32>
    %c17_i32 = arith.constant 17 : i32
    %14 = tpu.dynamic_rotate %9 by %c17_i32 dim 1 : vector<8x256xf32>, i32 -> vector<8x256xf32>
    %15 = vector.extract_strided_slice %6 {offsets = [0, 0], sizes = [1, 256], strides = [1, 1]} : vector<9x256xf32> to vector<1x256xf32>
    %16 = vector.broadcast %15 : vector<1x256xf32> to vector<8x256xf32>
    %17 = arith.mulf %14, %16 : vector<8x256xf32>
    %c16_i32 = arith.constant 16 : i32
    %18 = tpu.dynamic_rotate %9 by %c16_i32 dim 1 : vector<8x256xf32>, i32 -> vector<8x256xf32>
    %19 = vector.extract_strided_slice %6 {offsets = [1, 0], sizes = [1, 256], strides = [1, 1]} : vector<9x256xf32> to vector<1x256xf32>
    %20 = vector.broadcast %19 : vector<1x256xf32> to vector<8x256xf32>
    %21 = arith.mulf %18, %20 : vector<8x256xf32>
    %c15_i32 = arith.constant 15 : i32
    %22 = tpu.dynamic_rotate %9 by %c15_i32 dim 1 : vector<8x256xf32>, i32 -> vector<8x256xf32>
    %23 = vector.extract_strided_slice %6 {offsets = [2, 0], sizes = [1, 256], strides = [1, 1]} : vector<9x256xf32> to vector<1x256xf32>
    %24 = vector.broadcast %23 : vector<1x256xf32> to vector<8x256xf32>
    %25 = arith.mulf %22, %24 : vector<8x256xf32>
    %c1_i32 = arith.constant 1 : i32
    %26 = tpu.dynamic_rotate %9 by %c1_i32 dim 1 : vector<8x256xf32>, i32 -> vector<8x256xf32>
    %27 = vector.extract_strided_slice %6 {offsets = [3, 0], sizes = [1, 256], strides = [1, 1]} : vector<9x256xf32> to vector<1x256xf32>
    %28 = vector.broadcast %27 : vector<1x256xf32> to vector<8x256xf32>
    %29 = arith.mulf %26, %28 : vector<8x256xf32>
    %c255_i32 = arith.constant 255 : i32
    %30 = tpu.dynamic_rotate %9 by %c255_i32 dim 1 : vector<8x256xf32>, i32 -> vector<8x256xf32>
    %31 = vector.extract_strided_slice %6 {offsets = [5, 0], sizes = [1, 256], strides = [1, 1]} : vector<9x256xf32> to vector<1x256xf32>
    %32 = vector.broadcast %31 : vector<1x256xf32> to vector<8x256xf32>
    %33 = arith.mulf %30, %32 : vector<8x256xf32>
    %c241_i32 = arith.constant 241 : i32
    %34 = tpu.dynamic_rotate %9 by %c241_i32 dim 1 : vector<8x256xf32>, i32 -> vector<8x256xf32>
    %35 = vector.extract_strided_slice %6 {offsets = [6, 0], sizes = [1, 256], strides = [1, 1]} : vector<9x256xf32> to vector<1x256xf32>
    %36 = vector.broadcast %35 : vector<1x256xf32> to vector<8x256xf32>
    %37 = arith.mulf %34, %36 : vector<8x256xf32>
    %c240_i32 = arith.constant 240 : i32
    %38 = tpu.dynamic_rotate %9 by %c240_i32 dim 1 : vector<8x256xf32>, i32 -> vector<8x256xf32>
    %39 = vector.extract_strided_slice %6 {offsets = [7, 0], sizes = [1, 256], strides = [1, 1]} : vector<9x256xf32> to vector<1x256xf32>
    %40 = vector.broadcast %39 : vector<1x256xf32> to vector<8x256xf32>
    %41 = arith.mulf %38, %40 : vector<8x256xf32>
    %c239_i32 = arith.constant 239 : i32
    %42 = tpu.dynamic_rotate %9 by %c239_i32 dim 1 : vector<8x256xf32>, i32 -> vector<8x256xf32>
    %43 = vector.extract_strided_slice %6 {offsets = [8, 0], sizes = [1, 256], strides = [1, 1]} : vector<9x256xf32> to vector<1x256xf32>
    %44 = vector.broadcast %43 : vector<1x256xf32> to vector<8x256xf32>
    %45 = arith.mulf %42, %44 : vector<8x256xf32>
    %46 = tpu.concatenate %17, %21, %25, %29, %9, %33, %37, %41, %45 in 0 : vector<8x256xf32>, vector<8x256xf32>, vector<8x256xf32>, vector<8x256xf32>, vector<8x256xf32>, vector<8x256xf32>, vector<8x256xf32>, vector<8x256xf32>, vector<8x256xf32> -> vector<72x256xf32>
    %c0_20 = arith.constant 0 : index
    %c0_21 = arith.constant 0 : index
    %47 = vector.load %arg9[%c0_20, %c0_21] : memref<16x72xf32, #tpu.memory_space<vmem>>, vector<16x72xf32>
    %cst_22 = arith.constant dense<0.000000e+00> : vector<16x256xf32>
    %48 = tpu.matmul %47, %46, %cst_22 {dimension_numbers = #tpu.dot_dimension_numbers<[1], [0], [0], [1], [0, 0, 1, 1], [], []>} : vector<16x72xf32>, vector<72x256xf32>, vector<16x256xf32> -> vector<16x256xf32>
    %c0_23 = arith.constant 0 : index
    %c0_24 = arith.constant 0 : index
    %49 = vector.load %arg10[%c0_23, %c0_24] : memref<16x1xf32, #tpu.memory_space<vmem>>, vector<16x1xf32>
    %50 = vector.broadcast %49 : vector<16x1xf32> to vector<16x256xf32>
    %51 = arith.addf %48, %50 : vector<16x256xf32>
    %52 = vector.extract_strided_slice %51 {offsets = [0, 0], sizes = [8, 256], strides = [1, 1]} : vector<16x256xf32> to vector<8x256xf32>
    %53 = arith.mulf %52, %3 : vector<8x256xf32>
    %54 = vector.extract_strided_slice %51 {offsets = [8, 0], sizes = [8, 256], strides = [1, 1]} : vector<16x256xf32> to vector<8x256xf32>
    %c33_i32 = arith.constant 33 : i32
    %55 = tpu.dynamic_rotate %11 by %c33_i32 dim 1 : vector<8x1024xf32>, i32 -> vector<8x1024xf32>
    %56 = vector.extract_strided_slice %7 {offsets = [0, 0], sizes = [1, 1024], strides = [1, 1]} : vector<9x1024xf32> to vector<1x1024xf32>
    %57 = vector.broadcast %56 : vector<1x1024xf32> to vector<8x1024xf32>
    %58 = arith.mulf %55, %57 : vector<8x1024xf32>
    %c32_i32 = arith.constant 32 : i32
    %59 = tpu.dynamic_rotate %11 by %c32_i32 dim 1 : vector<8x1024xf32>, i32 -> vector<8x1024xf32>
    %60 = vector.extract_strided_slice %7 {offsets = [1, 0], sizes = [1, 1024], strides = [1, 1]} : vector<9x1024xf32> to vector<1x1024xf32>
    %61 = vector.broadcast %60 : vector<1x1024xf32> to vector<8x1024xf32>
    %62 = arith.mulf %59, %61 : vector<8x1024xf32>
    %c31_i32 = arith.constant 31 : i32
    %63 = tpu.dynamic_rotate %11 by %c31_i32 dim 1 : vector<8x1024xf32>, i32 -> vector<8x1024xf32>
    %64 = vector.extract_strided_slice %7 {offsets = [2, 0], sizes = [1, 1024], strides = [1, 1]} : vector<9x1024xf32> to vector<1x1024xf32>
    %65 = vector.broadcast %64 : vector<1x1024xf32> to vector<8x1024xf32>
    %66 = arith.mulf %63, %65 : vector<8x1024xf32>
    %c1_i32_25 = arith.constant 1 : i32
    %67 = tpu.dynamic_rotate %11 by %c1_i32_25 dim 1 : vector<8x1024xf32>, i32 -> vector<8x1024xf32>
    %68 = vector.extract_strided_slice %7 {offsets = [3, 0], sizes = [1, 1024], strides = [1, 1]} : vector<9x1024xf32> to vector<1x1024xf32>
    %69 = vector.broadcast %68 : vector<1x1024xf32> to vector<8x1024xf32>
    %70 = arith.mulf %67, %69 : vector<8x1024xf32>
    %c1023_i32 = arith.constant 1023 : i32
    %71 = tpu.dynamic_rotate %11 by %c1023_i32 dim 1 : vector<8x1024xf32>, i32 -> vector<8x1024xf32>
    %72 = vector.extract_strided_slice %7 {offsets = [5, 0], sizes = [1, 1024], strides = [1, 1]} : vector<9x1024xf32> to vector<1x1024xf32>
    %73 = vector.broadcast %72 : vector<1x1024xf32> to vector<8x1024xf32>
    %74 = arith.mulf %71, %73 : vector<8x1024xf32>
    %c993_i32 = arith.constant 993 : i32
    %75 = tpu.dynamic_rotate %11 by %c993_i32 dim 1 : vector<8x1024xf32>, i32 -> vector<8x1024xf32>
    %76 = vector.extract_strided_slice %7 {offsets = [6, 0], sizes = [1, 1024], strides = [1, 1]} : vector<9x1024xf32> to vector<1x1024xf32>
    %77 = vector.broadcast %76 : vector<1x1024xf32> to vector<8x1024xf32>
    %78 = arith.mulf %75, %77 : vector<8x1024xf32>
    %c992_i32 = arith.constant 992 : i32
    %79 = tpu.dynamic_rotate %11 by %c992_i32 dim 1 : vector<8x1024xf32>, i32 -> vector<8x1024xf32>
    %80 = vector.extract_strided_slice %7 {offsets = [7, 0], sizes = [1, 1024], strides = [1, 1]} : vector<9x1024xf32> to vector<1x1024xf32>
    %81 = vector.broadcast %80 : vector<1x1024xf32> to vector<8x1024xf32>
    %82 = arith.mulf %79, %81 : vector<8x1024xf32>
    %c991_i32 = arith.constant 991 : i32
    %83 = tpu.dynamic_rotate %11 by %c991_i32 dim 1 : vector<8x1024xf32>, i32 -> vector<8x1024xf32>
    %84 = vector.extract_strided_slice %7 {offsets = [8, 0], sizes = [1, 1024], strides = [1, 1]} : vector<9x1024xf32> to vector<1x1024xf32>
    %85 = vector.broadcast %84 : vector<1x1024xf32> to vector<8x1024xf32>
    %86 = arith.mulf %83, %85 : vector<8x1024xf32>
    %87 = tpu.concatenate %58, %62, %66, %70, %11, %74, %78, %82, %86 in 0 : vector<8x1024xf32>, vector<8x1024xf32>, vector<8x1024xf32>, vector<8x1024xf32>, vector<8x1024xf32>, vector<8x1024xf32>, vector<8x1024xf32>, vector<8x1024xf32>, vector<8x1024xf32> -> vector<72x1024xf32>
    %c0_26 = arith.constant 0 : index
    %c0_27 = arith.constant 0 : index
    %88 = vector.load %arg11[%c0_26, %c0_27] : memref<8x72xf32, #tpu.memory_space<vmem>>, vector<8x72xf32>
    %cst_28 = arith.constant dense<0.000000e+00> : vector<8x1024xf32>
    %89 = tpu.matmul %88, %87, %cst_28 {dimension_numbers = #tpu.dot_dimension_numbers<[1], [0], [0], [1], [0, 0, 1, 1], [], []>} : vector<8x72xf32>, vector<72x1024xf32>, vector<8x1024xf32> -> vector<8x1024xf32>
    %c0_29 = arith.constant 0 : index
    %c0_30 = arith.constant 0 : index
    %90 = vector.load %arg12[%c0_29, %c0_30] : memref<8x1xf32, #tpu.memory_space<vmem>>, vector<8x1xf32>
    %91 = vector.broadcast %90 : vector<8x1xf32> to vector<8x1024xf32>
    %92 = arith.addf %89, %91 : vector<8x1024xf32>
    %c33_i32_31 = arith.constant 33 : i32
    %93 = tpu.dynamic_rotate %13 by %c33_i32_31 dim 1 : vector<8x1024xf32>, i32 -> vector<8x1024xf32>
    %94 = vector.extract_strided_slice %7 {offsets = [0, 0], sizes = [1, 1024], strides = [1, 1]} : vector<9x1024xf32> to vector<1x1024xf32>
    %95 = vector.broadcast %94 : vector<1x1024xf32> to vector<8x1024xf32>
    %96 = arith.mulf %93, %95 : vector<8x1024xf32>
    %c32_i32_32 = arith.constant 32 : i32
    %97 = tpu.dynamic_rotate %13 by %c32_i32_32 dim 1 : vector<8x1024xf32>, i32 -> vector<8x1024xf32>
    %98 = vector.extract_strided_slice %7 {offsets = [1, 0], sizes = [1, 1024], strides = [1, 1]} : vector<9x1024xf32> to vector<1x1024xf32>
    %99 = vector.broadcast %98 : vector<1x1024xf32> to vector<8x1024xf32>
    %100 = arith.mulf %97, %99 : vector<8x1024xf32>
    %c31_i32_33 = arith.constant 31 : i32
    %101 = tpu.dynamic_rotate %13 by %c31_i32_33 dim 1 : vector<8x1024xf32>, i32 -> vector<8x1024xf32>
    %102 = vector.extract_strided_slice %7 {offsets = [2, 0], sizes = [1, 1024], strides = [1, 1]} : vector<9x1024xf32> to vector<1x1024xf32>
    %103 = vector.broadcast %102 : vector<1x1024xf32> to vector<8x1024xf32>
    %104 = arith.mulf %101, %103 : vector<8x1024xf32>
    %c1_i32_34 = arith.constant 1 : i32
    %105 = tpu.dynamic_rotate %13 by %c1_i32_34 dim 1 : vector<8x1024xf32>, i32 -> vector<8x1024xf32>
    %106 = vector.extract_strided_slice %7 {offsets = [3, 0], sizes = [1, 1024], strides = [1, 1]} : vector<9x1024xf32> to vector<1x1024xf32>
    %107 = vector.broadcast %106 : vector<1x1024xf32> to vector<8x1024xf32>
    %108 = arith.mulf %105, %107 : vector<8x1024xf32>
    %c1023_i32_35 = arith.constant 1023 : i32
    %109 = tpu.dynamic_rotate %13 by %c1023_i32_35 dim 1 : vector<8x1024xf32>, i32 -> vector<8x1024xf32>
    %110 = vector.extract_strided_slice %7 {offsets = [5, 0], sizes = [1, 1024], strides = [1, 1]} : vector<9x1024xf32> to vector<1x1024xf32>
    %111 = vector.broadcast %110 : vector<1x1024xf32> to vector<8x1024xf32>
    %112 = arith.mulf %109, %111 : vector<8x1024xf32>
    %c993_i32_36 = arith.constant 993 : i32
    %113 = tpu.dynamic_rotate %13 by %c993_i32_36 dim 1 : vector<8x1024xf32>, i32 -> vector<8x1024xf32>
    %114 = vector.extract_strided_slice %7 {offsets = [6, 0], sizes = [1, 1024], strides = [1, 1]} : vector<9x1024xf32> to vector<1x1024xf32>
    %115 = vector.broadcast %114 : vector<1x1024xf32> to vector<8x1024xf32>
    %116 = arith.mulf %113, %115 : vector<8x1024xf32>
    %c992_i32_37 = arith.constant 992 : i32
    %117 = tpu.dynamic_rotate %13 by %c992_i32_37 dim 1 : vector<8x1024xf32>, i32 -> vector<8x1024xf32>
    %118 = vector.extract_strided_slice %7 {offsets = [7, 0], sizes = [1, 1024], strides = [1, 1]} : vector<9x1024xf32> to vector<1x1024xf32>
    %119 = vector.broadcast %118 : vector<1x1024xf32> to vector<8x1024xf32>
    %120 = arith.mulf %117, %119 : vector<8x1024xf32>
    %c991_i32_38 = arith.constant 991 : i32
    %121 = tpu.dynamic_rotate %13 by %c991_i32_38 dim 1 : vector<8x1024xf32>, i32 -> vector<8x1024xf32>
    %122 = vector.extract_strided_slice %7 {offsets = [8, 0], sizes = [1, 1024], strides = [1, 1]} : vector<9x1024xf32> to vector<1x1024xf32>
    %123 = vector.broadcast %122 : vector<1x1024xf32> to vector<8x1024xf32>
    %124 = arith.mulf %121, %123 : vector<8x1024xf32>
    %125 = tpu.concatenate %96, %100, %104, %108, %13, %112, %116, %120, %124 in 0 : vector<8x1024xf32>, vector<8x1024xf32>, vector<8x1024xf32>, vector<8x1024xf32>, vector<8x1024xf32>, vector<8x1024xf32>, vector<8x1024xf32>, vector<8x1024xf32>, vector<8x1024xf32> -> vector<72x1024xf32>
    %c0_39 = arith.constant 0 : index
    %c0_40 = arith.constant 0 : index
    %126 = vector.load %arg13[%c0_39, %c0_40] : memref<8x72xf32, #tpu.memory_space<vmem>>, vector<8x72xf32>
    %cst_41 = arith.constant dense<0.000000e+00> : vector<8x1024xf32>
    %127 = tpu.matmul %126, %125, %cst_41 {dimension_numbers = #tpu.dot_dimension_numbers<[1], [0], [0], [1], [0, 0, 1, 1], [], []>} : vector<8x72xf32>, vector<72x1024xf32>, vector<8x1024xf32> -> vector<8x1024xf32>
    %c0_42 = arith.constant 0 : index
    %c0_43 = arith.constant 0 : index
    %128 = vector.load %arg14[%c0_42, %c0_43] : memref<8x1xf32, #tpu.memory_space<vmem>>, vector<8x1xf32>
    %129 = vector.broadcast %128 : vector<8x1xf32> to vector<8x1024xf32>
    %130 = arith.addf %127, %129 : vector<8x1024xf32>
    %131 = arith.mulf %92, %130 : vector<8x1024xf32>
    %132 = arith.mulf %131, %5 : vector<8x1024xf32>
    %133 = tpu.concatenate %53, %54 in 0 : vector<8x256xf32>, vector<8x256xf32> -> vector<16x256xf32>
    %c17_i32_44 = arith.constant 17 : i32
    %134 = tpu.dynamic_rotate %133 by %c17_i32_44 dim 1 : vector<16x256xf32>, i32 -> vector<16x256xf32>
    %135 = vector.extract_strided_slice %6 {offsets = [0, 0], sizes = [1, 256], strides = [1, 1]} : vector<9x256xf32> to vector<1x256xf32>
    %136 = vector.broadcast %135 : vector<1x256xf32> to vector<16x256xf32>
    %137 = arith.mulf %134, %136 : vector<16x256xf32>
    %c16_i32_45 = arith.constant 16 : i32
    %138 = tpu.dynamic_rotate %133 by %c16_i32_45 dim 1 : vector<16x256xf32>, i32 -> vector<16x256xf32>
    %139 = vector.extract_strided_slice %6 {offsets = [1, 0], sizes = [1, 256], strides = [1, 1]} : vector<9x256xf32> to vector<1x256xf32>
    %140 = vector.broadcast %139 : vector<1x256xf32> to vector<16x256xf32>
    %141 = arith.mulf %138, %140 : vector<16x256xf32>
    %c15_i32_46 = arith.constant 15 : i32
    %142 = tpu.dynamic_rotate %133 by %c15_i32_46 dim 1 : vector<16x256xf32>, i32 -> vector<16x256xf32>
    %143 = vector.extract_strided_slice %6 {offsets = [2, 0], sizes = [1, 256], strides = [1, 1]} : vector<9x256xf32> to vector<1x256xf32>
    %144 = vector.broadcast %143 : vector<1x256xf32> to vector<16x256xf32>
    %145 = arith.mulf %142, %144 : vector<16x256xf32>
    %c1_i32_47 = arith.constant 1 : i32
    %146 = tpu.dynamic_rotate %133 by %c1_i32_47 dim 1 : vector<16x256xf32>, i32 -> vector<16x256xf32>
    %147 = vector.extract_strided_slice %6 {offsets = [3, 0], sizes = [1, 256], strides = [1, 1]} : vector<9x256xf32> to vector<1x256xf32>
    %148 = vector.broadcast %147 : vector<1x256xf32> to vector<16x256xf32>
    %149 = arith.mulf %146, %148 : vector<16x256xf32>
    %c255_i32_48 = arith.constant 255 : i32
    %150 = tpu.dynamic_rotate %133 by %c255_i32_48 dim 1 : vector<16x256xf32>, i32 -> vector<16x256xf32>
    %151 = vector.extract_strided_slice %6 {offsets = [5, 0], sizes = [1, 256], strides = [1, 1]} : vector<9x256xf32> to vector<1x256xf32>
    %152 = vector.broadcast %151 : vector<1x256xf32> to vector<16x256xf32>
    %153 = arith.mulf %150, %152 : vector<16x256xf32>
    %c241_i32_49 = arith.constant 241 : i32
    %154 = tpu.dynamic_rotate %133 by %c241_i32_49 dim 1 : vector<16x256xf32>, i32 -> vector<16x256xf32>
    %155 = vector.extract_strided_slice %6 {offsets = [6, 0], sizes = [1, 256], strides = [1, 1]} : vector<9x256xf32> to vector<1x256xf32>
    %156 = vector.broadcast %155 : vector<1x256xf32> to vector<16x256xf32>
    %157 = arith.mulf %154, %156 : vector<16x256xf32>
    %c240_i32_50 = arith.constant 240 : i32
    %158 = tpu.dynamic_rotate %133 by %c240_i32_50 dim 1 : vector<16x256xf32>, i32 -> vector<16x256xf32>
    %159 = vector.extract_strided_slice %6 {offsets = [7, 0], sizes = [1, 256], strides = [1, 1]} : vector<9x256xf32> to vector<1x256xf32>
    %160 = vector.broadcast %159 : vector<1x256xf32> to vector<16x256xf32>
    %161 = arith.mulf %158, %160 : vector<16x256xf32>
    %c239_i32_51 = arith.constant 239 : i32
    %162 = tpu.dynamic_rotate %133 by %c239_i32_51 dim 1 : vector<16x256xf32>, i32 -> vector<16x256xf32>
    %163 = vector.extract_strided_slice %6 {offsets = [8, 0], sizes = [1, 256], strides = [1, 1]} : vector<9x256xf32> to vector<1x256xf32>
    %164 = vector.broadcast %163 : vector<1x256xf32> to vector<16x256xf32>
    %165 = arith.mulf %162, %164 : vector<16x256xf32>
    %166 = tpu.concatenate %137, %141, %145, %149, %133, %153, %157, %161, %165 in 0 : vector<16x256xf32>, vector<16x256xf32>, vector<16x256xf32>, vector<16x256xf32>, vector<16x256xf32>, vector<16x256xf32>, vector<16x256xf32>, vector<16x256xf32>, vector<16x256xf32> -> vector<144x256xf32>
    %c0_52 = arith.constant 0 : index
    %c0_53 = arith.constant 0 : index
    %167 = vector.load %arg15[%c0_52, %c0_53] : memref<16x144xf32, #tpu.memory_space<vmem>>, vector<16x144xf32>
    %cst_54 = arith.constant dense<0.000000e+00> : vector<16x256xf32>
    %168 = tpu.matmul %167, %166, %cst_54 {dimension_numbers = #tpu.dot_dimension_numbers<[1], [0], [0], [1], [0, 0, 1, 1], [], []>} : vector<16x144xf32>, vector<144x256xf32>, vector<16x256xf32> -> vector<16x256xf32>
    %c0_55 = arith.constant 0 : index
    %c0_56 = arith.constant 0 : index
    %169 = vector.load %arg16[%c0_55, %c0_56] : memref<16x1xf32, #tpu.memory_space<vmem>>, vector<16x1xf32>
    %170 = vector.broadcast %169 : vector<16x1xf32> to vector<16x256xf32>
    %171 = arith.addf %168, %170 : vector<16x256xf32>
    %c0_57 = arith.constant 0 : index
    %c0_58 = arith.constant 0 : index
    %172 = vector.load %arg6[%c0_57, %c0_58] : memref<256x1024xf32, #tpu.memory_space<vmem>>, vector<256x1024xf32>
    %cst_59 = arith.constant dense<0.000000e+00> : vector<16x1024xf32>
    %173 = tpu.matmul %171, %172, %cst_59 {dimension_numbers = #tpu.dot_dimension_numbers<[1], [0], [0], [1], [0, 0, 1, 1], [], []>} : vector<16x256xf32>, vector<256x1024xf32>, vector<16x1024xf32> -> vector<16x1024xf32>
    %c33_i32_60 = arith.constant 33 : i32
    %174 = tpu.dynamic_rotate %173 by %c33_i32_60 dim 1 : vector<16x1024xf32>, i32 -> vector<16x1024xf32>
    %175 = vector.extract_strided_slice %7 {offsets = [0, 0], sizes = [1, 1024], strides = [1, 1]} : vector<9x1024xf32> to vector<1x1024xf32>
    %176 = vector.broadcast %175 : vector<1x1024xf32> to vector<16x1024xf32>
    %177 = arith.mulf %174, %176 : vector<16x1024xf32>
    %c32_i32_61 = arith.constant 32 : i32
    %178 = tpu.dynamic_rotate %173 by %c32_i32_61 dim 1 : vector<16x1024xf32>, i32 -> vector<16x1024xf32>
    %179 = vector.extract_strided_slice %7 {offsets = [1, 0], sizes = [1, 1024], strides = [1, 1]} : vector<9x1024xf32> to vector<1x1024xf32>
    %180 = vector.broadcast %179 : vector<1x1024xf32> to vector<16x1024xf32>
    %181 = arith.mulf %178, %180 : vector<16x1024xf32>
    %c31_i32_62 = arith.constant 31 : i32
    %182 = tpu.dynamic_rotate %173 by %c31_i32_62 dim 1 : vector<16x1024xf32>, i32 -> vector<16x1024xf32>
    %183 = vector.extract_strided_slice %7 {offsets = [2, 0], sizes = [1, 1024], strides = [1, 1]} : vector<9x1024xf32> to vector<1x1024xf32>
    %184 = vector.broadcast %183 : vector<1x1024xf32> to vector<16x1024xf32>
    %185 = arith.mulf %182, %184 : vector<16x1024xf32>
    %c1_i32_63 = arith.constant 1 : i32
    %186 = tpu.dynamic_rotate %173 by %c1_i32_63 dim 1 : vector<16x1024xf32>, i32 -> vector<16x1024xf32>
    %187 = vector.extract_strided_slice %7 {offsets = [3, 0], sizes = [1, 1024], strides = [1, 1]} : vector<9x1024xf32> to vector<1x1024xf32>
    %188 = vector.broadcast %187 : vector<1x1024xf32> to vector<16x1024xf32>
    %189 = arith.mulf %186, %188 : vector<16x1024xf32>
    %c1023_i32_64 = arith.constant 1023 : i32
    %190 = tpu.dynamic_rotate %173 by %c1023_i32_64 dim 1 : vector<16x1024xf32>, i32 -> vector<16x1024xf32>
    %191 = vector.extract_strided_slice %7 {offsets = [5, 0], sizes = [1, 1024], strides = [1, 1]} : vector<9x1024xf32> to vector<1x1024xf32>
    %192 = vector.broadcast %191 : vector<1x1024xf32> to vector<16x1024xf32>
    %193 = arith.mulf %190, %192 : vector<16x1024xf32>
    %c993_i32_65 = arith.constant 993 : i32
    %194 = tpu.dynamic_rotate %173 by %c993_i32_65 dim 1 : vector<16x1024xf32>, i32 -> vector<16x1024xf32>
    %195 = vector.extract_strided_slice %7 {offsets = [6, 0], sizes = [1, 1024], strides = [1, 1]} : vector<9x1024xf32> to vector<1x1024xf32>
    %196 = vector.broadcast %195 : vector<1x1024xf32> to vector<16x1024xf32>
    %197 = arith.mulf %194, %196 : vector<16x1024xf32>
    %c992_i32_66 = arith.constant 992 : i32
    %198 = tpu.dynamic_rotate %173 by %c992_i32_66 dim 1 : vector<16x1024xf32>, i32 -> vector<16x1024xf32>
    %199 = vector.extract_strided_slice %7 {offsets = [7, 0], sizes = [1, 1024], strides = [1, 1]} : vector<9x1024xf32> to vector<1x1024xf32>
    %200 = vector.broadcast %199 : vector<1x1024xf32> to vector<16x1024xf32>
    %201 = arith.mulf %198, %200 : vector<16x1024xf32>
    %c991_i32_67 = arith.constant 991 : i32
    %202 = tpu.dynamic_rotate %173 by %c991_i32_67 dim 1 : vector<16x1024xf32>, i32 -> vector<16x1024xf32>
    %203 = vector.extract_strided_slice %7 {offsets = [8, 0], sizes = [1, 1024], strides = [1, 1]} : vector<9x1024xf32> to vector<1x1024xf32>
    %204 = vector.broadcast %203 : vector<1x1024xf32> to vector<16x1024xf32>
    %205 = arith.mulf %202, %204 : vector<16x1024xf32>
    %206 = tpu.concatenate %177, %181, %185, %189, %173, %193, %197, %201, %205 in 0 : vector<16x1024xf32>, vector<16x1024xf32>, vector<16x1024xf32>, vector<16x1024xf32>, vector<16x1024xf32>, vector<16x1024xf32>, vector<16x1024xf32>, vector<16x1024xf32>, vector<16x1024xf32> -> vector<144x1024xf32>
    %c0_68 = arith.constant 0 : index
    %c0_69 = arith.constant 0 : index
    %207 = vector.load %arg17[%c0_68, %c0_69] : memref<16x144xf32, #tpu.memory_space<vmem>>, vector<16x144xf32>
    %cst_70 = arith.constant dense<0.000000e+00> : vector<16x1024xf32>
    %208 = tpu.matmul %207, %206, %cst_70 {dimension_numbers = #tpu.dot_dimension_numbers<[1], [0], [0], [1], [0, 0, 1, 1], [], []>} : vector<16x144xf32>, vector<144x1024xf32>, vector<16x1024xf32> -> vector<16x1024xf32>
    %c0_71 = arith.constant 0 : index
    %c0_72 = arith.constant 0 : index
    %209 = vector.load %arg18[%c0_71, %c0_72] : memref<16x1xf32, #tpu.memory_space<vmem>>, vector<16x1xf32>
    %210 = vector.broadcast %209 : vector<16x1xf32> to vector<16x1024xf32>
    %211 = arith.addf %208, %210 : vector<16x1024xf32>
    %212 = tpu.concatenate %132, %211 in 0 : vector<8x1024xf32>, vector<16x1024xf32> -> vector<24x1024xf32>
    %c33_i32_73 = arith.constant 33 : i32
    %213 = tpu.dynamic_rotate %212 by %c33_i32_73 dim 1 : vector<24x1024xf32>, i32 -> vector<24x1024xf32>
    %214 = vector.extract_strided_slice %7 {offsets = [0, 0], sizes = [1, 1024], strides = [1, 1]} : vector<9x1024xf32> to vector<1x1024xf32>
    %215 = vector.broadcast %214 : vector<1x1024xf32> to vector<24x1024xf32>
    %216 = arith.mulf %213, %215 : vector<24x1024xf32>
    %c32_i32_74 = arith.constant 32 : i32
    %217 = tpu.dynamic_rotate %212 by %c32_i32_74 dim 1 : vector<24x1024xf32>, i32 -> vector<24x1024xf32>
    %218 = vector.extract_strided_slice %7 {offsets = [1, 0], sizes = [1, 1024], strides = [1, 1]} : vector<9x1024xf32> to vector<1x1024xf32>
    %219 = vector.broadcast %218 : vector<1x1024xf32> to vector<24x1024xf32>
    %220 = arith.mulf %217, %219 : vector<24x1024xf32>
    %c31_i32_75 = arith.constant 31 : i32
    %221 = tpu.dynamic_rotate %212 by %c31_i32_75 dim 1 : vector<24x1024xf32>, i32 -> vector<24x1024xf32>
    %222 = vector.extract_strided_slice %7 {offsets = [2, 0], sizes = [1, 1024], strides = [1, 1]} : vector<9x1024xf32> to vector<1x1024xf32>
    %223 = vector.broadcast %222 : vector<1x1024xf32> to vector<24x1024xf32>
    %224 = arith.mulf %221, %223 : vector<24x1024xf32>
    %c1_i32_76 = arith.constant 1 : i32
    %225 = tpu.dynamic_rotate %212 by %c1_i32_76 dim 1 : vector<24x1024xf32>, i32 -> vector<24x1024xf32>
    %226 = vector.extract_strided_slice %7 {offsets = [3, 0], sizes = [1, 1024], strides = [1, 1]} : vector<9x1024xf32> to vector<1x1024xf32>
    %227 = vector.broadcast %226 : vector<1x1024xf32> to vector<24x1024xf32>
    %228 = arith.mulf %225, %227 : vector<24x1024xf32>
    %c1023_i32_77 = arith.constant 1023 : i32
    %229 = tpu.dynamic_rotate %212 by %c1023_i32_77 dim 1 : vector<24x1024xf32>, i32 -> vector<24x1024xf32>
    %230 = vector.extract_strided_slice %7 {offsets = [5, 0], sizes = [1, 1024], strides = [1, 1]} : vector<9x1024xf32> to vector<1x1024xf32>
    %231 = vector.broadcast %230 : vector<1x1024xf32> to vector<24x1024xf32>
    %232 = arith.mulf %229, %231 : vector<24x1024xf32>
    %c993_i32_78 = arith.constant 993 : i32
    %233 = tpu.dynamic_rotate %212 by %c993_i32_78 dim 1 : vector<24x1024xf32>, i32 -> vector<24x1024xf32>
    %234 = vector.extract_strided_slice %7 {offsets = [6, 0], sizes = [1, 1024], strides = [1, 1]} : vector<9x1024xf32> to vector<1x1024xf32>
    %235 = vector.broadcast %234 : vector<1x1024xf32> to vector<24x1024xf32>
    %236 = arith.mulf %233, %235 : vector<24x1024xf32>
    %c992_i32_79 = arith.constant 992 : i32
    %237 = tpu.dynamic_rotate %212 by %c992_i32_79 dim 1 : vector<24x1024xf32>, i32 -> vector<24x1024xf32>
    %238 = vector.extract_strided_slice %7 {offsets = [7, 0], sizes = [1, 1024], strides = [1, 1]} : vector<9x1024xf32> to vector<1x1024xf32>
    %239 = vector.broadcast %238 : vector<1x1024xf32> to vector<24x1024xf32>
    %240 = arith.mulf %237, %239 : vector<24x1024xf32>
    %c991_i32_80 = arith.constant 991 : i32
    %241 = tpu.dynamic_rotate %212 by %c991_i32_80 dim 1 : vector<24x1024xf32>, i32 -> vector<24x1024xf32>
    %242 = vector.extract_strided_slice %7 {offsets = [8, 0], sizes = [1, 1024], strides = [1, 1]} : vector<9x1024xf32> to vector<1x1024xf32>
    %243 = vector.broadcast %242 : vector<1x1024xf32> to vector<24x1024xf32>
    %244 = arith.mulf %241, %243 : vector<24x1024xf32>
    %245 = tpu.concatenate %216, %220, %224, %228, %212, %232, %236, %240, %244 in 0 : vector<24x1024xf32>, vector<24x1024xf32>, vector<24x1024xf32>, vector<24x1024xf32>, vector<24x1024xf32>, vector<24x1024xf32>, vector<24x1024xf32>, vector<24x1024xf32>, vector<24x1024xf32> -> vector<216x1024xf32>
    %c0_81 = arith.constant 0 : index
    %c0_82 = arith.constant 0 : index
    %246 = vector.load %arg19[%c0_81, %c0_82] : memref<24x216xf32, #tpu.memory_space<vmem>>, vector<24x216xf32>
    %cst_83 = arith.constant dense<0.000000e+00> : vector<24x1024xf32>
    %247 = tpu.matmul %246, %245, %cst_83 {dimension_numbers = #tpu.dot_dimension_numbers<[1], [0], [0], [1], [0, 0, 1, 1], [], []>} : vector<24x216xf32>, vector<216x1024xf32>, vector<24x1024xf32> -> vector<24x1024xf32>
    %c0_84 = arith.constant 0 : index
    %c0_85 = arith.constant 0 : index
    %248 = vector.load %arg20[%c0_84, %c0_85] : memref<24x1xf32, #tpu.memory_space<vmem>>, vector<24x1xf32>
    %249 = vector.broadcast %248 : vector<24x1xf32> to vector<24x1024xf32>
    %250 = arith.addf %247, %249 : vector<24x1024xf32>
    %c33_i32_86 = arith.constant 33 : i32
    %251 = tpu.dynamic_rotate %250 by %c33_i32_86 dim 1 : vector<24x1024xf32>, i32 -> vector<24x1024xf32>
    %252 = vector.extract_strided_slice %7 {offsets = [0, 0], sizes = [1, 1024], strides = [1, 1]} : vector<9x1024xf32> to vector<1x1024xf32>
    %253 = vector.broadcast %252 : vector<1x1024xf32> to vector<24x1024xf32>
    %254 = arith.mulf %251, %253 : vector<24x1024xf32>
    %c32_i32_87 = arith.constant 32 : i32
    %255 = tpu.dynamic_rotate %250 by %c32_i32_87 dim 1 : vector<24x1024xf32>, i32 -> vector<24x1024xf32>
    %256 = vector.extract_strided_slice %7 {offsets = [1, 0], sizes = [1, 1024], strides = [1, 1]} : vector<9x1024xf32> to vector<1x1024xf32>
    %257 = vector.broadcast %256 : vector<1x1024xf32> to vector<24x1024xf32>
    %258 = arith.mulf %255, %257 : vector<24x1024xf32>
    %c31_i32_88 = arith.constant 31 : i32
    %259 = tpu.dynamic_rotate %250 by %c31_i32_88 dim 1 : vector<24x1024xf32>, i32 -> vector<24x1024xf32>
    %260 = vector.extract_strided_slice %7 {offsets = [2, 0], sizes = [1, 1024], strides = [1, 1]} : vector<9x1024xf32> to vector<1x1024xf32>
    %261 = vector.broadcast %260 : vector<1x1024xf32> to vector<24x1024xf32>
    %262 = arith.mulf %259, %261 : vector<24x1024xf32>
    %c1_i32_89 = arith.constant 1 : i32
    %263 = tpu.dynamic_rotate %250 by %c1_i32_89 dim 1 : vector<24x1024xf32>, i32 -> vector<24x1024xf32>
    %264 = vector.extract_strided_slice %7 {offsets = [3, 0], sizes = [1, 1024], strides = [1, 1]} : vector<9x1024xf32> to vector<1x1024xf32>
    %265 = vector.broadcast %264 : vector<1x1024xf32> to vector<24x1024xf32>
    %266 = arith.mulf %263, %265 : vector<24x1024xf32>
    %c1023_i32_90 = arith.constant 1023 : i32
    %267 = tpu.dynamic_rotate %250 by %c1023_i32_90 dim 1 : vector<24x1024xf32>, i32 -> vector<24x1024xf32>
    %268 = vector.extract_strided_slice %7 {offsets = [5, 0], sizes = [1, 1024], strides = [1, 1]} : vector<9x1024xf32> to vector<1x1024xf32>
    %269 = vector.broadcast %268 : vector<1x1024xf32> to vector<24x1024xf32>
    %270 = arith.mulf %267, %269 : vector<24x1024xf32>
    %c993_i32_91 = arith.constant 993 : i32
    %271 = tpu.dynamic_rotate %250 by %c993_i32_91 dim 1 : vector<24x1024xf32>, i32 -> vector<24x1024xf32>
    %272 = vector.extract_strided_slice %7 {offsets = [6, 0], sizes = [1, 1024], strides = [1, 1]} : vector<9x1024xf32> to vector<1x1024xf32>
    %273 = vector.broadcast %272 : vector<1x1024xf32> to vector<24x1024xf32>
    %274 = arith.mulf %271, %273 : vector<24x1024xf32>
    %c992_i32_92 = arith.constant 992 : i32
    %275 = tpu.dynamic_rotate %250 by %c992_i32_92 dim 1 : vector<24x1024xf32>, i32 -> vector<24x1024xf32>
    %276 = vector.extract_strided_slice %7 {offsets = [7, 0], sizes = [1, 1024], strides = [1, 1]} : vector<9x1024xf32> to vector<1x1024xf32>
    %277 = vector.broadcast %276 : vector<1x1024xf32> to vector<24x1024xf32>
    %278 = arith.mulf %275, %277 : vector<24x1024xf32>
    %c991_i32_93 = arith.constant 991 : i32
    %279 = tpu.dynamic_rotate %250 by %c991_i32_93 dim 1 : vector<24x1024xf32>, i32 -> vector<24x1024xf32>
    %280 = vector.extract_strided_slice %7 {offsets = [8, 0], sizes = [1, 1024], strides = [1, 1]} : vector<9x1024xf32> to vector<1x1024xf32>
    %281 = vector.broadcast %280 : vector<1x1024xf32> to vector<24x1024xf32>
    %282 = arith.mulf %279, %281 : vector<24x1024xf32>
    %283 = tpu.concatenate %254, %258, %262, %266, %250, %270, %274, %278, %282 in 0 : vector<24x1024xf32>, vector<24x1024xf32>, vector<24x1024xf32>, vector<24x1024xf32>, vector<24x1024xf32>, vector<24x1024xf32>, vector<24x1024xf32>, vector<24x1024xf32>, vector<24x1024xf32> -> vector<216x1024xf32>
    %c0_94 = arith.constant 0 : index
    %c0_95 = arith.constant 0 : index
    %284 = vector.load %arg21[%c0_94, %c0_95] : memref<4x216xf32, #tpu.memory_space<vmem>>, vector<4x216xf32>
    %cst_96 = arith.constant dense<0.000000e+00> : vector<4x1024xf32>
    %285 = tpu.matmul %284, %283, %cst_96 {dimension_numbers = #tpu.dot_dimension_numbers<[1], [0], [0], [1], [0, 0, 1, 1], [], []>} : vector<4x216xf32>, vector<216x1024xf32>, vector<4x1024xf32> -> vector<4x1024xf32>
    %c0_97 = arith.constant 0 : index
    %c0_98 = arith.constant 0 : index
    %286 = vector.load %arg22[%c0_97, %c0_98] : memref<4x1xf32, #tpu.memory_space<vmem>>, vector<4x1xf32>
    %287 = vector.broadcast %286 : vector<4x1xf32> to vector<4x1024xf32>
    %288 = arith.addf %285, %287 : vector<4x1024xf32>
    %c0_99 = arith.constant 0 : index
    %c0_100 = arith.constant 0 : index
    %c0_101 = arith.constant 0 : index
    %289 = vector.load %arg23[%c0_99, %c0_100, %c0_101] : memref<1x4x1024xf32, #tpu.memory_space<vmem>>, vector<1x4x1024xf32>
    %290 = vector.shape_cast %289 : vector<1x4x1024xf32> to vector<4x1024xf32>
    %291 = vector.shape_cast %288 : vector<4x1024xf32> to vector<1x4x1024xf32>
    tpu.vector_store %arg23[%c0_99, %c0_100, %c0_101], %291 {strides = array<i32>} : memref<1x4x1024xf32, #tpu.memory_space<vmem>>, vector<1x4x1024xf32>,
    return
  }
  func.func @transform_0(%arg0: i32) -> (i32, i32, i32) {
    %c0_i32 = arith.constant 0 : i32
    %c0_i32_0 = arith.constant 0 : i32
    %c0_i32_1 = arith.constant 0 : i32
    return %arg0, %c0_i32, %c0_i32_0 : i32, i32, i32
  }
  func.func @transform_1(%arg0: i32) -> (i32, i32, i32) {
    %c0_i32 = arith.constant 0 : i32
    %c0_i32_0 = arith.constant 0 : i32
    %c0_i32_1 = arith.constant 0 : i32
    return %arg0, %c0_i32, %c0_i32_0 : i32, i32, i32
  }
  func.func @transform_2(%arg0: i32) -> (i32, i32, i32) {
    %c0_i32 = arith.constant 0 : i32
    %c0_i32_0 = arith.constant 0 : i32
    %c0_i32_1 = arith.constant 0 : i32
    return %arg0, %c0_i32, %c0_i32_0 : i32, i32, i32
  }
  func.func @transform_3(%arg0: i32) -> (i32, i32) {
    %c0_i32 = arith.constant 0 : i32
    %c0_i32_0 = arith.constant 0 : i32
    %c0_i32_1 = arith.constant 0 : i32
    return %c0_i32, %c0_i32_0 : i32, i32
  }
  func.func @transform_4(%arg0: i32) -> (i32, i32) {
    %c0_i32 = arith.constant 0 : i32
    %c0_i32_0 = arith.constant 0 : i32
    %c0_i32_1 = arith.constant 0 : i32
    return %c0_i32, %c0_i32_0 : i32, i32
  }
  func.func @transform_5(%arg0: i32) -> (i32, i32) {
    %c0_i32 = arith.constant 0 : i32
    %c0_i32_0 = arith.constant 0 : i32
    %c0_i32_1 = arith.constant 0 : i32
    return %c0_i32, %c0_i32_0 : i32, i32
  }
  func.func @transform_6(%arg0: i32) -> (i32, i32) {
    %c0_i32 = arith.constant 0 : i32
    %c0_i32_0 = arith.constant 0 : i32
    %c0_i32_1 = arith.constant 0 : i32
    return %c0_i32, %c0_i32_0 : i32, i32
  }
  func.func @transform_7(%arg0: i32) -> (i32, i32) {
    %c0_i32 = arith.constant 0 : i32
    %c0_i32_0 = arith.constant 0 : i32
    %c0_i32_1 = arith.constant 0 : i32
    return %c0_i32, %c0_i32_0 : i32, i32
  }
  func.func @transform_8(%arg0: i32) -> (i32, i32) {
    %c0_i32 = arith.constant 0 : i32
    %c0_i32_0 = arith.constant 0 : i32
    %c0_i32_1 = arith.constant 0 : i32
    return %c0_i32, %c0_i32_0 : i32, i32
  }
  func.func @transform_9(%arg0: i32) -> (i32, i32) {
    %c0_i32 = arith.constant 0 : i32
    %c0_i32_0 = arith.constant 0 : i32
    %c0_i32_1 = arith.constant 0 : i32
    return %c0_i32, %c0_i32_0 : i32, i32
  }
  func.func @transform_10(%arg0: i32) -> (i32, i32) {
    %c0_i32 = arith.constant 0 : i32
    %c0_i32_0 = arith.constant 0 : i32
    %c0_i32_1 = arith.constant 0 : i32
    return %c0_i32, %c0_i32_0 : i32, i32
  }
  func.func @transform_11(%arg0: i32) -> (i32, i32) {
    %c0_i32 = arith.constant 0 : i32
    %c0_i32_0 = arith.constant 0 : i32
    %c0_i32_1 = arith.constant 0 : i32
    return %c0_i32, %c0_i32_0 : i32, i32
  }
  func.func @transform_12(%arg0: i32) -> (i32, i32) {
    %c0_i32 = arith.constant 0 : i32
    %c0_i32_0 = arith.constant 0 : i32
    %c0_i32_1 = arith.constant 0 : i32
    return %c0_i32, %c0_i32_0 : i32, i32
  }
  func.func @transform_13(%arg0: i32) -> (i32, i32) {
    %c0_i32 = arith.constant 0 : i32
    %c0_i32_0 = arith.constant 0 : i32
    %c0_i32_1 = arith.constant 0 : i32
    return %c0_i32, %c0_i32_0 : i32, i32
  }
  func.func @transform_14(%arg0: i32) -> (i32, i32) {
    %c0_i32 = arith.constant 0 : i32
    %c0_i32_0 = arith.constant 0 : i32
    %c0_i32_1 = arith.constant 0 : i32
    return %c0_i32, %c0_i32_0 : i32, i32
  }
  func.func @transform_15(%arg0: i32) -> (i32, i32) {
    %c0_i32 = arith.constant 0 : i32
    %c0_i32_0 = arith.constant 0 : i32
    %c0_i32_1 = arith.constant 0 : i32
    return %c0_i32, %c0_i32_0 : i32, i32
  }
  func.func @transform_16(%arg0: i32) -> (i32, i32) {
    %c0_i32 = arith.constant 0 : i32
    %c0_i32_0 = arith.constant 0 : i32
    %c0_i32_1 = arith.constant 0 : i32
    return %c0_i32, %c0_i32_0 : i32, i32
  }
  func.func @transform_17(%arg0: i32) -> (i32, i32) {
    %c0_i32 = arith.constant 0 : i32
    %c0_i32_0 = arith.constant 0 : i32
    %c0_i32_1 = arith.constant 0 : i32
    return %c0_i32, %c0_i32_0 : i32, i32
  }
  func.func @transform_18(%arg0: i32) -> (i32, i32) {
    %c0_i32 = arith.constant 0 : i32
    %c0_i32_0 = arith.constant 0 : i32
    %c0_i32_1 = arith.constant 0 : i32
    return %c0_i32, %c0_i32_0 : i32, i32
  }
  func.func @transform_19(%arg0: i32) -> (i32, i32) {
    %c0_i32 = arith.constant 0 : i32
    %c0_i32_0 = arith.constant 0 : i32
    %c0_i32_1 = arith.constant 0 : i32
    return %c0_i32, %c0_i32_0 : i32, i32
  }
  func.func @transform_20(%arg0: i32) -> (i32, i32) {
    %c0_i32 = arith.constant 0 : i32
    %c0_i32_0 = arith.constant 0 : i32
    %c0_i32_1 = arith.constant 0 : i32
    return %c0_i32, %c0_i32_0 : i32, i32
  }
  func.func @transform_21(%arg0: i32) -> (i32, i32) {
    %c0_i32 = arith.constant 0 : i32
    %c0_i32_0 = arith.constant 0 : i32
    %c0_i32_1 = arith.constant 0 : i32
    return %c0_i32, %c0_i32_0 : i32, i32
  }
  func.func @transform_22(%arg0: i32) -> (i32, i32, i32) {
    %c0_i32 = arith.constant 0 : i32
    %c0_i32_0 = arith.constant 0 : i32
    %c0_i32_1 = arith.constant 0 : i32
    return %arg0, %c0_i32, %c0_i32_0 : i32, i32, i32
  }
}

</mosaic_0001>

<llo_original>
// kernel: aggregation_forward.1
$region0: #{aggregation_forward.1}
  #allocation0 [shape = 'u32[]', space=smem, size = 0x4, offset = 0x4, fixed_abs, tag = 'smem constant byte address 0x4 - core index']
  #allocation1 [shape = 'u32[144,128]{1,0:T(1,128)}', space=vmem, size = 0x12000, scoped, tag = 'internal scratch']
  %s0 = inlined_call_operand.vmem [shape: f32[2,8,64], index: 0, kind: input, shape index: {}]
  %s1 = inlined_call_operand.vmem [shape: f32[2,8,256], index: 1, kind: input, shape index: {}]
  %s2 = inlined_call_operand.vmem [shape: f32[2,8,1024], index: 2, kind: input, shape index: {}]
  %s3 = inlined_call_operand.vmem [shape: f32[64,256], index: 3, kind: input, shape index: {}]
  %s4 = inlined_call_operand.vmem [shape: f32[64,1024], index: 4, kind: input, shape index: {}]
  %s5 = inlined_call_operand.vmem [shape: f32[256,1024], index: 5, kind: input, shape index: {}]
  %s6 = inlined_call_operand.vmem [shape: f32[9,256], index: 6, kind: input, shape index: {}]
  %s7 = inlined_call_operand.vmem [shape: f32[9,1024], index: 7, kind: input, shape index: {}]
  %s8 = inlined_call_operand.vmem [shape: f32[16,72], index: 8, kind: input, shape index: {}]
  %s9 = inlined_call_operand.vmem [shape: f32[16,1], index: 9, kind: input, shape index: {}]
  %s10 = inlined_call_operand.vmem [shape: f32[8,72], index: 10, kind: input, shape index: {}]
  %s11 = inlined_call_operand.vmem [shape: f32[8,1], index: 11, kind: input, shape index: {}]
  %s12 = inlined_call_operand.vmem [shape: f32[8,72], index: 12, kind: input, shape index: {}]
  %s13 = inlined_call_operand.vmem [shape: f32[8,1], index: 13, kind: input, shape index: {}]
  %s14 = inlined_call_operand.vmem [shape: f32[16,144], index: 14, kind: input, shape index: {}]
  %s15 = inlined_call_operand.vmem [shape: f32[16,1], index: 15, kind: input, shape index: {}]
  %s16 = inlined_call_operand.vmem [shape: f32[16,144], index: 16, kind: input, shape index: {}]
  %s17 = inlined_call_operand.vmem [shape: f32[16,1], index: 17, kind: input, shape index: {}]
  %s18 = inlined_call_operand.vmem [shape: f32[24,216], index: 18, kind: input, shape index: {}]
  %s19 = inlined_call_operand.vmem [shape: f32[24,1], index: 19, kind: input, shape index: {}]
  %s20 = inlined_call_operand.vmem [shape: f32[4,216], index: 20, kind: input, shape index: {}]
  %s21 = inlined_call_operand.vmem [shape: f32[4,1], index: 21, kind: input, shape index: {}]
  %s22 = inlined_call_operand.vmem [shape: f32[2,4,1024], index: 22, kind: output, shape index: {}]
  %s23 = sld [smem:[#allocation0]]
  $region121: #{aggregation_forward.1} parent=0
    _
  %s25 = ssub.s32 1, %s23
  %s26 = scalar_select 0, %s25, %s23
  loop: start=0, step=1, limit=4
  $region2: #{aggregation_forward.1} parent=0 // loop_pre_header
    _
  $region3: #{aggregation_forward.1} parent=0 // loop_header
    %s28 = sphi 0, %s32
    %p29 = scmp.ge.s32.totalorder %s28, 4
    %s38 = sphi 0, %s40
    %s41 = sphi 0, %s38
    %s42 = sphi 0, %s41
    %s58 = sphi 0, %s42
    %s64 = sphi 0, %s66
    %s67 = sphi 0, %s64
    %s68 = sphi 0, %s67
    %s84 = sphi 0, %s68
    %s90 = sphi 0, %s92
    %s93 = sphi 0, %s90
    %s94 = sphi 0, %s93
    %s110 = sphi 0, %s94
    %s114 = sphi 0, %s114
    %s116 = sphi 0, %s114
    %s117 = sphi 0, %s116
    %s131 = sphi 0, %s117
    %s135 = sphi 0, %s135
    %s137 = sphi 0, %s135
    %s138 = sphi 0, %s137
    %s152 = sphi 0, %s138
    %s156 = sphi 0, %s156
    %s158 = sphi 0, %s156
    %s159 = sphi 0, %s158
    %s173 = sphi 0, %s159
    %s177 = sphi 0, %s177
    %s179 = sphi 0, %s177
    %s180 = sphi 0, %s179
    %s194 = sphi 0, %s180
    %s198 = sphi 0, %s198
    %s200 = sphi 0, %s198
    %s201 = sphi 0, %s200
    %s215 = sphi 0, %s201
    %s219 = sphi 0, %s219
    %s221 = sphi 0, %s219
    %s222 = sphi 0, %s221
    %s236 = sphi 0, %s222
    %s240 = sphi 0, %s240
    %s242 = sphi 0, %s240
    %s243 = sphi 0, %s242
    %s257 = sphi 0, %s243
    %s261 = sphi 0, %s261
    %s263 = sphi 0, %s261
    %s264 = sphi 0, %s263
    %s278 = sphi 0, %s264
    %s282 = sphi 0, %s282
    %s284 = sphi 0, %s282
    %s285 = sphi 0, %s284
    %s299 = sphi 0, %s285
    %s303 = sphi 0, %s303
    %s305 = sphi 0, %s303
    %s306 = sphi 0, %s305
    %s320 = sphi 0, %s306
    %s324 = sphi 0, %s324
    %s326 = sphi 0, %s324
    %s327 = sphi 0, %s326
    %s341 = sphi 0, %s327
    %s345 = sphi 0, %s345
    %s347 = sphi 0, %s345
    %s348 = sphi 0, %s347
    %s362 = sphi 0, %s348
    %s366 = sphi 0, %s366
    %s368 = sphi 0, %s366
    %s369 = sphi 0, %s368
    %s383 = sphi 0, %s369
    %s387 = sphi 0, %s387
    %s389 = sphi 0, %s387
    %s390 = sphi 0, %s389
    %s404 = sphi 0, %s390
    %s408 = sphi 0, %s408
    %s410 = sphi 0, %s408
    %s411 = sphi 0, %s410
    %s425 = sphi 0, %s411
    %s429 = sphi 0, %s429
    %s431 = sphi 0, %s429
    %s432 = sphi 0, %s431
    %s446 = sphi 0, %s432
    %s450 = sphi 0, %s450
    %s452 = sphi 0, %s450
    %s453 = sphi 0, %s452
    %s467 = sphi 0, %s453
    %s471 = sphi 0, %s471
    %s473 = sphi 0, %s471
    %s474 = sphi 0, %s473
    %s488 = sphi 0, %s474
    %s492 = sphi 0, %s492
    %s494 = sphi 0, %s492
    %s495 = sphi 0, %s494
    %s509 = sphi 0, %s495
    %s515 = sphi 0, %s517
    %s518 = sphi 0, %s515
    %s519 = sphi 0, %s518
    %s535 = sphi 0, %s519
  $region4: #{aggregation_forward.1} parent=0 // loop_header_branch
    %31 = sbr.rel (%p29) target = $region8
  $region5: #{aggregation_forward.1} parent=0 // loop_body
    %s33 = ssub.s32 %s28, 1
    %s34 = ssub.s32 %s28, 2
    %s35 = sadd.s32 %s28, 1
    %s36 = ssub.s32 %s28, %s35
    %p37 = scmp.eq.s32.totalorder %s36, 0
    %s39 = sadd.s32 %s38, 1
    %s40 = scalar_select %p37, %s38, %s39
    %p43 = pneg %p37
    %p44 = scmp.eq.s32.totalorder %s28, 1
    %p45 = por %p43, %p44
    %p46 = scmp.ne.s32.totalorder %s38, %s41
    %p47 = scmp.eq.s32.totalorder %s28, 0
    %p48 = por %p46, %p47
    %p49 = scmp.ne.s32.totalorder %s38, %s41
    %p50 = scmp.eq.s32.totalorder %s33, 1
    %p51 = por %p49, %p50
    %p52 = scmp.ne.s32.totalorder %s41, %s42
    %p53 = scmp.eq.s32.totalorder %s33, 0
    %p54 = por %p52, %p53
    %p55 = scmp.ne.s32.totalorder %s41, %s42
    %p56 = scmp.eq.s32.totalorder %s34, 1
    %p57 = por %p55, %p56
    %p59 = scmp.ne.s32.totalorder %s42, %s58
    %p60 = scmp.eq.s32.totalorder %s34, 0
    %p61 = por %p59, %p60
    %s62 = ssub.s32 %s28, %s35
    %p63 = scmp.eq.s32.totalorder %s62, 0
    %s65 = sadd.s32 %s64, 1
    %s66 = scalar_select %p63, %s64, %s65
    %p69 = pneg %p63
    %p70 = scmp.eq.s32.totalorder %s28, 1
    %p71 = por %p69, %p70
    %p72 = scmp.ne.s32.totalorder %s64, %s67
    %p73 = scmp.eq.s32.totalorder %s28, 0
    %p74 = por %p72, %p73
    %p75 = scmp.ne.s32.totalorder %s64, %s67
    %p76 = scmp.eq.s32.totalorder %s33, 1
    %p77 = por %p75, %p76
    %p78 = scmp.ne.s32.totalorder %s67, %s68
    %p79 = scmp.eq.s32.totalorder %s33, 0
    %p80 = por %p78, %p79
    %p81 = scmp.ne.s32.totalorder %s67, %s68
    %p82 = scmp.eq.s32.totalorder %s34, 1
    %p83 = por %p81, %p82
    %p85 = scmp.ne.s32.totalorder %s68, %s84
    %p86 = scmp.eq.s32.totalorder %s34, 0
    %p87 = por %p85, %p86
    %s88 = ssub.s32 %s28, %s35
    %p89 = scmp.eq.s32.totalorder %s88, 0
    %s91 = sadd.s32 %s90, 1
    %s92 = scalar_select %p89, %s90, %s91
    %p95 = pneg %p89
    %p96 = scmp.eq.s32.totalorder %s28, 1
    %p97 = por %p95, %p96
    %p98 = scmp.ne.s32.totalorder %s90, %s93
    %p99 = scmp.eq.s32.totalorder %s28, 0
    %p100 = por %p98, %p99
    %p101 = scmp.ne.s32.totalorder %s90, %s93
    %p102 = scmp.eq.s32.totalorder %s33, 1
    %p103 = por %p101, %p102
    %p104 = scmp.ne.s32.totalorder %s93, %s94
    %p105 = scmp.eq.s32.totalorder %s33, 0
    %p106 = por %p104, %p105
    %p107 = scmp.ne.s32.totalorder %s93, %s94
    %p108 = scmp.eq.s32.totalorder %s34, 1
    %p109 = por %p107, %p108
    %p111 = scmp.ne.s32.totalorder %s94, %s110
    %p112 = scmp.eq.s32.totalorder %s34, 0
    %p113 = por %p111, %p112
    %s115 = sadd.s32 %s114, 1
    %p118 = scmp.eq.s32.totalorder %s28, 1
    %p119 = scmp.ne.s32.totalorder %s114, %s116
    %p120 = scmp.eq.s32.totalorder %s28, 0
    %p121 = por %p119, %p120
    %p122 = scmp.ne.s32.totalorder %s114, %s116
    %p123 = scmp.eq.s32.totalorder %s33, 1
    %p124 = por %p122, %p123
    %p125 = scmp.ne.s32.totalorder %s116, %s117
    %p126 = scmp.eq.s32.totalorder %s33, 0
    %p127 = por %p125, %p126
    %p128 = scmp.ne.s32.totalorder %s116, %s117
    %p129 = scmp.eq.s32.totalorder %s34, 1
    %p130 = por %p128, %p129
    %p132 = scmp.ne.s32.totalorder %s117, %s131
    %p133 = scmp.eq.s32.totalorder %s34, 0
    %p134 = por %p132, %p133
    %s136 = sadd.s32 %s135, 1
    %p139 = scmp.eq.s32.totalorder %s28, 1
    %p140 = scmp.ne.s32.totalorder %s135, %s137
    %p141 = scmp.eq.s32.totalorder %s28, 0
    %p142 = por %p140, %p141
    %p143 = scmp.ne.s32.totalorder %s135, %s137
    %p144 = scmp.eq.s32.totalorder %s33, 1
    %p145 = por %p143, %p144
    %p146 = scmp.ne.s32.totalorder %s137, %s138
    %p147 = scmp.eq.s32.totalorder %s33, 0
    %p148 = por %p146, %p147
    %p149 = scmp.ne.s32.totalorder %s137, %s138
    %p150 = scmp.eq.s32.totalorder %s34, 1
    %p151 = por %p149, %p150
    %p153 = scmp.ne.s32.totalorder %s138, %s152
    %p154 = scmp.eq.s32.totalorder %s34, 0
    %p155 = por %p153, %p154
    %s157 = sadd.s32 %s156, 1
    %p160 = scmp.eq.s32.totalorder %s28, 1
    %p161 = scmp.ne.s32.totalorder %s156, %s158
    %p162 = scmp.eq.s32.totalorder %s28, 0
    %p163 = por %p161, %p162
    %p164 = scmp.ne.s32.totalorder %s156, %s158
    %p165 = scmp.eq.s32.totalorder %s33, 1
    %p166 = por %p164, %p165
    %p167 = scmp.ne.s32.totalorder %s158, %s159
    %p168 = scmp.eq.s32.totalorder %s33, 0
    %p169 = por %p167, %p168
    %p170 = scmp.ne.s32.totalorder %s158, %s159
    %p171 = scmp.eq.s32.totalorder %s34, 1
    %p172 = por %p170, %p171
    %p174 = scmp.ne.s32.totalorder %s159, %s173
    %p175 = scmp.eq.s32.totalorder %s34, 0
    %p176 = por %p174, %p175
    %s178 = sadd.s32 %s177, 1
    %p181 = scmp.eq.s32.totalorder %s28, 1
    %p182 = scmp.ne.s32.totalorder %s177, %s179
    %p183 = scmp.eq.s32.totalorder %s28, 0
    %p184 = por %p182, %p183
    %p185 = scmp.ne.s32.totalorder %s177, %s179
    %p186 = scmp.eq.s32.totalorder %s33, 1
    %p187 = por %p185, %p186
    %p188 = scmp.ne.s32.totalorder %s179, %s180
    %p189 = scmp.eq.s32.totalorder %s33, 0
    %p190 = por %p188, %p189
    %p191 = scmp.ne.s32.totalorder %s179, %s180
    %p192 = scmp.eq.s32.totalorder %s34, 1
    %p193 = por %p191, %p192
    %p195 = scmp.ne.s32.totalorder %s180, %s194
    %p196 = scmp.eq.s32.totalorder %s34, 0
    %p197 = por %p195, %p196
    %s199 = sadd.s32 %s198, 1
    %p202 = scmp.eq.s32.totalorder %s28, 1
    %p203 = scmp.ne.s32.totalorder %s198, %s200
    %p204 = scmp.eq.s32.totalorder %s28, 0
    %p205 = por %p203, %p204
    %p206 = scmp.ne.s32.totalorder %s198, %s200
    %p207 = scmp.eq.s32.totalorder %s33, 1
    %p208 = por %p206, %p207
    %p209 = scmp.ne.s32.totalorder %s200, %s201
    %p210 = scmp.eq.s32.totalorder %s33, 0
    %p211 = por %p209, %p210
    %p212 = scmp.ne.s32.totalorder %s200, %s201
    %p213 = scmp.eq.s32.totalorder %s34, 1
    %p214 = por %p212, %p213
    %p216 = scmp.ne.s32.totalorder %s201, %s215
    %p217 = scmp.eq.s32.totalorder %s34, 0
    %p218 = por %p216, %p217
    %s220 = sadd.s32 %s219, 1
    %p223 = scmp.eq.s32.totalorder %s28, 1
    %p224 = scmp.ne.s32.totalorder %s219, %s221
    %p225 = scmp.eq.s32.totalorder %s28, 0
    %p226 = por %p224, %p225
    %p227 = scmp.ne.s32.totalorder %s219, %s221
    %p228 = scmp.eq.s32.totalorder %s33, 1
    %p229 = por %p227, %p228
    %p230 = scmp.ne.s32.totalorder %s221, %s222
    %p231 = scmp.eq.s32.totalorder %s33, 0
    %p232 = por %p230, %p231
    %p233 = scmp.ne.s32.totalorder %s221, %s222
    %p234 = scmp.eq.s32.totalorder %s34, 1
    %p235 = por %p233, %p234
    %p237 = scmp.ne.s32.totalorder %s222, %s236
    %p238 = scmp.eq.s32.totalorder %s34, 0
    %p239 = por %p237, %p238
    %s241 = sadd.s32 %s240, 1
    %p244 = scmp.eq.s32.totalorder %s28, 1
    %p245 = scmp.ne.s32.totalorder %s240, %s242
    %p246 = scmp.eq.s32.totalorder %s28, 0
    %p247 = por %p245, %p246
    %p248 = scmp.ne.s32.totalorder %s240, %s242
    %p249 = scmp.eq.s32.totalorder %s33, 1
    %p250 = por %p248, %p249
    %p251 = scmp.ne.s32.totalorder %s242, %s243
    %p252 = scmp.eq.s32.totalorder %s33, 0
    %p253 = por %p251, %p252
    %p254 = scmp.ne.s32.totalorder %s242, %s243
    %p255 = scmp.eq.s32.totalorder %s34, 1
    %p256 = por %p254, %p255
    %p258 = scmp.ne.s32.totalorder %s243, %s257
    %p259 = scmp.eq.s32.totalorder %s34, 0
    %p260 = por %p258, %p259
    %s262 = sadd.s32 %s261, 1
    %p265 = scmp.eq.s32.totalorder %s28, 1
    %p266 = scmp.ne.s32.totalorder %s261, %s263
    %p267 = scmp.eq.s32.totalorder %s28, 0
    %p268 = por %p266, %p267
    %p269 = scmp.ne.s32.totalorder %s261, %s263
    %p270 = scmp.eq.s32.totalorder %s33, 1
    %p271 = por %p269, %p270
    %p272 = scmp.ne.s32.totalorder %s263, %s264
    %p273 = scmp.eq.s32.totalorder %s33, 0
    %p274 = por %p272, %p273
    %p275 = scmp.ne.s32.totalorder %s263, %s264
    %p276 = scmp.eq.s32.totalorder %s34, 1
    %p277 = por %p275, %p276
    %p279 = scmp.ne.s32.totalorder %s264, %s278
    %p280 = scmp.eq.s32.totalorder %s34, 0
    %p281 = por %p279, %p280
    %s283 = sadd.s32 %s282, 1
    %p286 = scmp.eq.s32.totalorder %s28, 1
    %p287 = scmp.ne.s32.totalorder %s282, %s284
    %p288 = scmp.eq.s32.totalorder %s28, 0
    %p289 = por %p287, %p288
    %p290 = scmp.ne.s32.totalorder %s282, %s284
    %p291 = scmp.eq.s32.totalorder %s33, 1
    %p292 = por %p290, %p291
    %p293 = scmp.ne.s32.totalorder %s284, %s285
    %p294 = scmp.eq.s32.totalorder %s33, 0
    %p295 = por %p293, %p294
    %p296 = scmp.ne.s32.totalorder %s284, %s285
    %p297 = scmp.eq.s32.totalorder %s34, 1
    %p298 = por %p296, %p297
    %p300 = scmp.ne.s32.totalorder %s285, %s299
    %p301 = scmp.eq.s32.totalorder %s34, 0
    %p302 = por %p300, %p301
    %s304 = sadd.s32 %s303, 1
    %p307 = scmp.eq.s32.totalorder %s28, 1
    %p308 = scmp.ne.s32.totalorder %s303, %s305
    %p309 = scmp.eq.s32.totalorder %s28, 0
    %p310 = por %p308, %p309
    %p311 = scmp.ne.s32.totalorder %s303, %s305
    %p312 = scmp.eq.s32.totalorder %s33, 1
    %p313 = por %p311, %p312
    %p314 = scmp.ne.s32.totalorder %s305, %s306
    %p315 = scmp.eq.s32.totalorder %s33, 0
    %p316 = por %p314, %p315
    %p317 = scmp.ne.s32.totalorder %s305, %s306
    %p318 = scmp.eq.s32.totalorder %s34, 1
    %p319 = por %p317, %p318
    %p321 = scmp.ne.s32.totalorder %s306, %s320
    %p322 = scmp.eq.s32.totalorder %s34, 0
    %p323 = por %p321, %p322
    %s325 = sadd.s32 %s324, 1
    %p328 = scmp.eq.s32.totalorder %s28, 1
    %p329 = scmp.ne.s32.totalorder %s324, %s326
    %p330 = scmp.eq.s32.totalorder %s28, 0
    %p331 = por %p329, %p330
    %p332 = scmp.ne.s32.totalorder %s324, %s326
    %p333 = scmp.eq.s32.totalorder %s33, 1
    %p334 = por %p332, %p333
    %p335 = scmp.ne.s32.totalorder %s326, %s327
    %p336 = scmp.eq.s32.totalorder %s33, 0
    %p337 = por %p335, %p336
    %p338 = scmp.ne.s32.totalorder %s326, %s327
    %p339 = scmp.eq.s32.totalorder %s34, 1
    %p340 = por %p338, %p339
    %p342 = scmp.ne.s32.totalorder %s327, %s341
    %p343 = scmp.eq.s32.totalorder %s34, 0
    %p344 = por %p342, %p343
    %s346 = sadd.s32 %s345, 1
    %p349 = scmp.eq.s32.totalorder %s28, 1
    %p350 = scmp.ne.s32.totalorder %s345, %s347
    %p351 = scmp.eq.s32.totalorder %s28, 0
    %p352 = por %p350, %p351
    %p353 = scmp.ne.s32.totalorder %s345, %s347
    %p354 = scmp.eq.s32.totalorder %s33, 1
    %p355 = por %p353, %p354
    %p356 = scmp.ne.s32.totalorder %s347, %s348
    %p357 = scmp.eq.s32.totalorder %s33, 0
    %p358 = por %p356, %p357
    %p359 = scmp.ne.s32.totalorder %s347, %s348
    %p360 = scmp.eq.s32.totalorder %s34, 1
    %p361 = por %p359, %p360
    %p363 = scmp.ne.s32.totalorder %s348, %s362
    %p364 = scmp.eq.s32.totalorder %s34, 0
    %p365 = por %p363, %p364
    %s367 = sadd.s32 %s366, 1
    %p370 = scmp.eq.s32.totalorder %s28, 1
    %p371 = scmp.ne.s32.totalorder %s366, %s368
    %p372 = scmp.eq.s32.totalorder %s28, 0
    %p373 = por %p371, %p372
    %p374 = scmp.ne.s32.totalorder %s366, %s368
    %p375 = scmp.eq.s32.totalorder %s33, 1
    %p376 = por %p374, %p375
    %p377 = scmp.ne.s32.totalorder %s368, %s369
    %p378 = scmp.eq.s32.totalorder %s33, 0
    %p379 = por %p377, %p378
    %p380 = scmp.ne.s32.totalorder %s368, %s369
    %p381 = scmp.eq.s32.totalorder %s34, 1
    %p382 = por %p380, %p381
    %p384 = scmp.ne.s32.totalorder %s369, %s383
    %p385 = scmp.eq.s32.totalorder %s34, 0
    %p386 = por %p384, %p385
    %s388 = sadd.s32 %s387, 1
    %p391 = scmp.eq.s32.totalorder %s28, 1
    %p392 = scmp.ne.s32.totalorder %s387, %s389
    %p393 = scmp.eq.s32.totalorder %s28, 0
    %p394 = por %p392, %p393
    %p395 = scmp.ne.s32.totalorder %s387, %s389
    %p396 = scmp.eq.s32.totalorder %s33, 1
    %p397 = por %p395, %p396
    %p398 = scmp.ne.s32.totalorder %s389, %s390
    %p399 = scmp.eq.s32.totalorder %s33, 0
    %p400 = por %p398, %p399
    %p401 = scmp.ne.s32.totalorder %s389, %s390
    %p402 = scmp.eq.s32.totalorder %s34, 1
    %p403 = por %p401, %p402
    %p405 = scmp.ne.s32.totalorder %s390, %s404
    %p406 = scmp.eq.s32.totalorder %s34, 0
    %p407 = por %p405, %p406
    %s409 = sadd.s32 %s408, 1
    %p412 = scmp.eq.s32.totalorder %s28, 1
    %p413 = scmp.ne.s32.totalorder %s408, %s410
    %p414 = scmp.eq.s32.totalorder %s28, 0
    %p415 = por %p413, %p414
    %p416 = scmp.ne.s32.totalorder %s408, %s410
    %p417 = scmp.eq.s32.totalorder %s33, 1
    %p418 = por %p416, %p417
    %p419 = scmp.ne.s32.totalorder %s410, %s411
    %p420 = scmp.eq.s32.totalorder %s33, 0
    %p421 = por %p419, %p420
    %p422 = scmp.ne.s32.totalorder %s410, %s411
    %p423 = scmp.eq.s32.totalorder %s34, 1
    %p424 = por %p422, %p423
    %p426 = scmp.ne.s32.totalorder %s411, %s425
    %p427 = scmp.eq.s32.totalorder %s34, 0
    %p428 = por %p426, %p427
    %s430 = sadd.s32 %s429, 1
    %p433 = scmp.eq.s32.totalorder %s28, 1
    %p434 = scmp.ne.s32.totalorder %s429, %s431
    %p435 = scmp.eq.s32.totalorder %s28, 0
    %p436 = por %p434, %p435
    %p437 = scmp.ne.s32.totalorder %s429, %s431
    %p438 = scmp.eq.s32.totalorder %s33, 1
    %p439 = por %p437, %p438
    %p440 = scmp.ne.s32.totalorder %s431, %s432
    %p441 = scmp.eq.s32.totalorder %s33, 0
    %p442 = por %p440, %p441
    %p443 = scmp.ne.s32.totalorder %s431, %s432
    %p444 = scmp.eq.s32.totalorder %s34, 1
    %p445 = por %p443, %p444
    %p447 = scmp.ne.s32.totalorder %s432, %s446
    %p448 = scmp.eq.s32.totalorder %s34, 0
    %p449 = por %p447, %p448
    %s451 = sadd.s32 %s450, 1
    %p454 = scmp.eq.s32.totalorder %s28, 1
    %p455 = scmp.ne.s32.totalorder %s450, %s452
    %p456 = scmp.eq.s32.totalorder %s28, 0
    %p457 = por %p455, %p456
    %p458 = scmp.ne.s32.totalorder %s450, %s452
    %p459 = scmp.eq.s32.totalorder %s33, 1
    %p460 = por %p458, %p459
    %p461 = scmp.ne.s32.totalorder %s452, %s453
    %p462 = scmp.eq.s32.totalorder %s33, 0
    %p463 = por %p461, %p462
    %p464 = scmp.ne.s32.totalorder %s452, %s453
    %p465 = scmp.eq.s32.totalorder %s34, 1
    %p466 = por %p464, %p465
    %p468 = scmp.ne.s32.totalorder %s453, %s467
    %p469 = scmp.eq.s32.totalorder %s34, 0
    %p470 = por %p468, %p469
    %s472 = sadd.s32 %s471, 1
    %p475 = scmp.eq.s32.totalorder %s28, 1
    %p476 = scmp.ne.s32.totalorder %s471, %s473
    %p477 = scmp.eq.s32.totalorder %s28, 0
    %p478 = por %p476, %p477
    %p479 = scmp.ne.s32.totalorder %s471, %s473
    %p480 = scmp.eq.s32.totalorder %s33, 1
    %p481 = por %p479, %p480
    %p482 = scmp.ne.s32.totalorder %s473, %s474
    %p483 = scmp.eq.s32.totalorder %s33, 0
    %p484 = por %p482, %p483
    %p485 = scmp.ne.s32.totalorder %s473, %s474
    %p486 = scmp.eq.s32.totalorder %s34, 1
    %p487 = por %p485, %p486
    %p489 = scmp.ne.s32.totalorder %s474, %s488
    %p490 = scmp.eq.s32.totalorder %s34, 0
    %p491 = por %p489, %p490
    %s493 = sadd.s32 %s492, 1
    %p496 = scmp.eq.s32.totalorder %s28, 1
    %p497 = scmp.ne.s32.totalorder %s492, %s494
    %p498 = scmp.eq.s32.totalorder %s28, 0
    %p499 = por %p497, %p498
    %p500 = scmp.ne.s32.totalorder %s492, %s494
    %p501 = scmp.eq.s32.totalorder %s33, 1
    %p502 = por %p500, %p501
    %p503 = scmp.ne.s32.totalorder %s494, %s495
    %p504 = scmp.eq.s32.totalorder %s33, 0
    %p505 = por %p503, %p504
    %p506 = scmp.ne.s32.totalorder %s494, %s495
    %p507 = scmp.eq.s32.totalorder %s34, 1
    %p508 = por %p506, %p507
    %p510 = scmp.ne.s32.totalorder %s495, %s509
    %p511 = scmp.eq.s32.totalorder %s34, 0
    %p512 = por %p510, %p511
    %s513 = ssub.s32 %s28, %s35
    %p514 = scmp.eq.s32.totalorder %s513, 0
    %s516 = sadd.s32 %s515, 1
    %s517 = scalar_select %p514, %s515, %s516
    %p520 = pneg %p514
    %p521 = scmp.eq.s32.totalorder %s28, 1
    %p522 = por %p520, %p521
    %p523 = scmp.ne.s32.totalorder %s515, %s518
    %p524 = scmp.eq.s32.totalorder %s28, 0
    %p525 = por %p523, %p524
    %p526 = scmp.ne.s32.totalorder %s515, %s518
    %p527 = scmp.eq.s32.totalorder %s33, 1
    %p528 = por %p526, %p527
    %p529 = scmp.ne.s32.totalorder %s518, %s519
    %p530 = scmp.eq.s32.totalorder %s33, 0
    %p531 = por %p529, %p530
    %p532 = scmp.ne.s32.totalorder %s518, %s519
    %p533 = scmp.eq.s32.totalorder %s34, 1
    %p534 = por %p532, %p533
    %p536 = scmp.ne.s32.totalorder %s519, %s535
    %p537 = scmp.eq.s32.totalorder %s34, 0
    %p538 = por %p536, %p537
    %p539 = scmp.le.s32.totalorder 1, %s28
    %p540 = scmp.lt.s32.totalorder %s28, 3
    %p541 = pnand %p539, %p540
    %p542 = pneg %p541
    // Predicated region
    $region9: #{aggregation_forward.1} parent=5 // pred_check
      _
    $region10: #{aggregation_forward.1} parent=5 // pred_check_branch
      %544 = sbr.rel (%p541) target = $region12
    $region11: #{aggregation_forward.1} parent=5 // pred_region
      %s545 = ssub.s32 %s28, 1
      // Predicated region
      $region13: #{aggregation_forward.1} parent=11 // pred_check
        %p546 = pneg %p127
      $region14: #{aggregation_forward.1} parent=11 // pred_check_branch
        %548 = sbr.rel (%p546) target = $region16
      $region15: #{aggregation_forward.1} parent=11 // pred_region
        _
      $region16: #{aggregation_forward.1} parent=11 // pred_fallthru
        _
      // Predicated region
      $region17: #{aggregation_forward.1} parent=11 // pred_check
        %p549 = pneg %p148
      $region18: #{aggregation_forward.1} parent=11 // pred_check_branch
        %551 = sbr.rel (%p549) target = $region20
      $region19: #{aggregation_forward.1} parent=11 // pred_region
        _
      $region20: #{aggregation_forward.1} parent=11 // pred_fallthru
        _
      // Predicated region
      $region21: #{aggregation_forward.1} parent=11 // pred_check
        %p552 = pneg %p169
      $region22: #{aggregation_forward.1} parent=11 // pred_check_branch
        %554 = sbr.rel (%p552) target = $region24
      $region23: #{aggregation_forward.1} parent=11 // pred_region
        _
      $region24: #{aggregation_forward.1} parent=11 // pred_fallthru
        _
      // Predicated region
      $region25: #{aggregation_forward.1} parent=11 // pred_check
        %p555 = pneg %p190
      $region26: #{aggregation_forward.1} parent=11 // pred_check_branch
        %557 = sbr.rel (%p555) target = $region28
      $region27: #{aggregation_forward.1} parent=11 // pred_region
        _
      $region28: #{aggregation_forward.1} parent=11 // pred_fallthru
        _
      // Predicated region
      $region29: #{aggregation_forward.1} parent=11 // pred_check
        %p558 = pneg %p211
      $region30: #{aggregation_forward.1} parent=11 // pred_check_branch
        %560 = sbr.rel (%p558) target = $region32
      $region31: #{aggregation_forward.1} parent=11 // pred_region
        _
      $region32: #{aggregation_forward.1} parent=11 // pred_fallthru
        _
      // Predicated region
      $region33: #{aggregation_forward.1} parent=11 // pred_check
        %p561 = pneg %p232
      $region34: #{aggregation_forward.1} parent=11 // pred_check_branch
        %563 = sbr.rel (%p561) target = $region36
      $region35: #{aggregation_forward.1} parent=11 // pred_region
        _
      $region36: #{aggregation_forward.1} parent=11 // pred_fallthru
        _
      // Predicated region
      $region37: #{aggregation_forward.1} parent=11 // pred_check
        %p564 = pneg %p253
      $region38: #{aggregation_forward.1} parent=11 // pred_check_branch
        %566 = sbr.rel (%p564) target = $region40
      $region39: #{aggregation_forward.1} parent=11 // pred_region
        _
      $region40: #{aggregation_forward.1} parent=11 // pred_fallthru
        _
      // Predicated region
      $region41: #{aggregation_forward.1} parent=11 // pred_check
        %p567 = pneg %p274
      $region42: #{aggregation_forward.1} parent=11 // pred_check_branch
        %569 = sbr.rel (%p567) target = $region44
      $region43: #{aggregation_forward.1} parent=11 // pred_region
        _
      $region44: #{aggregation_forward.1} parent=11 // pred_fallthru
        _
      // Predicated region
      $region45: #{aggregation_forward.1} parent=11 // pred_check
        %p570 = pneg %p295
      $region46: #{aggregation_forward.1} parent=11 // pred_check_branch
        %572 = sbr.rel (%p570) target = $region48
      $region47: #{aggregation_forward.1} parent=11 // pred_region
        _
      $region48: #{aggregation_forward.1} parent=11 // pred_fallthru
        _
      // Predicated region
      $region49: #{aggregation_forward.1} parent=11 // pred_check
        %p573 = pneg %p316
      $region50: #{aggregation_forward.1} parent=11 // pred_check_branch
        %575 = sbr.rel (%p573) target = $region52
      $region51: #{aggregation_forward.1} parent=11 // pred_region
        _
      $region52: #{aggregation_forward.1} parent=11 // pred_fallthru
        _
      // Predicated region
      $region53: #{aggregation_forward.1} parent=11 // pred_check
        %p576 = pneg %p337
      $region54: #{aggregation_forward.1} parent=11 // pred_check_branch
        %578 = sbr.rel (%p576) target = $region56
      $region55: #{aggregation_forward.1} parent=11 // pred_region
        _
      $region56: #{aggregation_forward.1} parent=11 // pred_fallthru
        _
      // Predicated region
      $region57: #{aggregation_forward.1} parent=11 // pred_check
        %p579 = pneg %p358
      $region58: #{aggregation_forward.1} parent=11 // pred_check_branch
        %581 = sbr.rel (%p579) target = $region60
      $region59: #{aggregation_forward.1} parent=11 // pred_region
        _
      $region60: #{aggregation_forward.1} parent=11 // pred_fallthru
        _
      // Predicated region
      $region61: #{aggregation_forward.1} parent=11 // pred_check
        %p582 = pneg %p379
      $region62: #{aggregation_forward.1} parent=11 // pred_check_branch
        %584 = sbr.rel (%p582) target = $region64
      $region63: #{aggregation_forward.1} parent=11 // pred_region
        _
      $region64: #{aggregation_forward.1} parent=11 // pred_fallthru
        _
      // Predicated region
      $region65: #{aggregation_forward.1} parent=11 // pred_check
        %p585 = pneg %p400
      $region66: #{aggregation_forward.1} parent=11 // pred_check_branch
        %587 = sbr.rel (%p585) target = $region68
      $region67: #{aggregation_forward.1} parent=11 // pred_region
        _
      $region68: #{aggregation_forward.1} parent=11 // pred_fallthru
        _
      // Predicated region
      $region69: #{aggregation_forward.1} parent=11 // pred_check
        %p588 = pneg %p421
      $region70: #{aggregation_forward.1} parent=11 // pred_check_branch
        %590 = sbr.rel (%p588) target = $region72
      $region71: #{aggregation_forward.1} parent=11 // pred_region
        _
      $region72: #{aggregation_forward.1} parent=11 // pred_fallthru
        _
      // Predicated region
      $region73: #{aggregation_forward.1} parent=11 // pred_check
        %p591 = pneg %p442
      $region74: #{aggregation_forward.1} parent=11 // pred_check_branch
        %593 = sbr.rel (%p591) target = $region76
      $region75: #{aggregation_forward.1} parent=11 // pred_region
        _
      $region76: #{aggregation_forward.1} parent=11 // pred_fallthru
        _
      // Predicated region
      $region77: #{aggregation_forward.1} parent=11 // pred_check
        %p594 = pneg %p463
      $region78: #{aggregation_forward.1} parent=11 // pred_check_branch
        %596 = sbr.rel (%p594) target = $region80
      $region79: #{aggregation_forward.1} parent=11 // pred_region
        _
      $region80: #{aggregation_forward.1} parent=11 // pred_fallthru
        _
      // Predicated region
      $region81: #{aggregation_forward.1} parent=11 // pred_check
        %p597 = pneg %p484
      $region82: #{aggregation_forward.1} parent=11 // pred_check_branch
        %599 = sbr.rel (%p597) target = $region84
      $region83: #{aggregation_forward.1} parent=11 // pred_region
        _
      $region84: #{aggregation_forward.1} parent=11 // pred_fallthru
        _
      // Predicated region
      $region85: #{aggregation_forward.1} parent=11 // pred_check
        %p600 = pneg %p505
      $region86: #{aggregation_forward.1} parent=11 // pred_check_branch
        %602 = sbr.rel (%p600) target = $region88
      $region87: #{aggregation_forward.1} parent=11 // pred_region
        _
      $region88: #{aggregation_forward.1} parent=11 // pred_fallthru
        _
    $region12: #{aggregation_forward.1} parent=5 // pred_fallthru
      _
    %p603 = scmp.lt.s32.totalorder %s28, 2
    // Predicated region
    $region89: #{aggregation_forward.1} parent=5 // pred_check
      %p604 = pneg %p603
    $region90: #{aggregation_forward.1} parent=5 // pred_check_branch
      %606 = sbr.rel (%p604) target = $region92
    $region91: #{aggregation_forward.1} parent=5 // pred_region
      // Predicated region
      $region93: #{aggregation_forward.1} parent=91 // pred_check
        %p607 = pneg %p48
      $region94: #{aggregation_forward.1} parent=91 // pred_check_branch
        %609 = sbr.rel (%p607) target = $region96
      $region95: #{aggregation_forward.1} parent=91 // pred_region
        %p610 = scmp.lt.s32.totalorder %s28, 1
        %s611 = scalar_select %p610, %s28, 1
        %s612 = smul.addr %s611, 8
        %s613 = scalar_lea.vmem %s0, %s612
      $region96: #{aggregation_forward.1} parent=91 // pred_fallthru
        _
      // Predicated region
      $region97: #{aggregation_forward.1} parent=91 // pred_check
        %p614 = pneg %p74
      $region98: #{aggregation_forward.1} parent=91 // pred_check_branch
        %616 = sbr.rel (%p614) target = $region100
      $region99: #{aggregation_forward.1} parent=91 // pred_region
        %p617 = scmp.lt.s32.totalorder %s28, 1
        %s618 = scalar_select %p617, %s28, 1
        %s619 = smul.addr %s618, 2
        %s620 = smul.addr %s619, 8
        %s621 = scalar_lea.vmem %s1, %s620
      $region100: #{aggregation_forward.1} parent=91 // pred_fallthru
        _
      // Predicated region
      $region101: #{aggregation_forward.1} parent=91 // pred_check
        %p622 = pneg %p100
      $region102: #{aggregation_forward.1} parent=91 // pred_check_branch
        %624 = sbr.rel (%p622) target = $region104
      $region103: #{aggregation_forward.1} parent=91 // pred_region
        %p625 = scmp.lt.s32.totalorder %s28, 1
        %s626 = scalar_select %p625, %s28, 1
        %s627 = smul.addr %s626, 8
        %s628 = smul.addr %s627, 8
        %s629 = scalar_lea.vmem %s2, %s628
      $region104: #{aggregation_forward.1} parent=91 // pred_fallthru
        _
    $region92: #{aggregation_forward.1} parent=5 // pred_fallthru
      _
    %p630 = scmp.le.s32.totalorder 1, %s28
    %p631 = scmp.lt.s32.totalorder %s28, 3
    %p632 = pnand %p630, %p631
    %p633 = pneg %p632
    // Predicated region
    $region105: #{aggregation_forward.1} parent=5 // pred_check
      _
    $region106: #{aggregation_forward.1} parent=5 // pred_check_branch
      %635 = sbr.rel (%p632) target = $region108
    $region107: #{aggregation_forward.1} parent=5 // pred_region
      %s636 = ssub.s32 %s28, 1
      %p637 = scmp.lt.s32.totalorder %s33, 1
      %s638 = scalar_select %p637, %s33, 1
      %s639 = smul.addr %s638, 8
      %s640 = scalar_lea.vmem %s0, %s639
      %p641 = pneg %p54
      %p642 = pneg %p51
      %p643 = scmp.lt.s32.totalorder %s33, 1
      %s644 = scalar_select %p643, %s33, 1
      %s645 = smul.addr %s644, 2
      %s646 = smul.addr %s645, 8
      %s647 = scalar_lea.vmem %s1, %s646
      %p648 = pneg %p80
      %p649 = pneg %p77
      %p650 = scmp.lt.s32.totalorder %s33, 1
      %s651 = scalar_select %p650, %s33, 1
      %s652 = smul.addr %s651, 8
      %s653 = smul.addr %s652, 8
      %s654 = scalar_lea.vmem %s2, %s653
      %p655 = pneg %p106
      %p656 = pneg %p103
      %p657 = pneg %p127
      %p658 = pneg %p124
      %p659 = pneg %p148
      %p660 = pneg %p145
      %p661 = pneg %p169
      %p662 = pneg %p166
      %p663 = pneg %p190
      %p664 = pneg %p187
      %p665 = pneg %p211
      %p666 = pneg %p208
      %p667 = pneg %p232
      %p668 = pneg %p229
      %p669 = pneg %p253
      %p670 = pneg %p250
      %p671 = pneg %p274
      %p672 = pneg %p271
      %p673 = pneg %p295
      %p674 = pneg %p292
      %p675 = pneg %p316
      %p676 = pneg %p313
      %p677 = pneg %p337
      %p678 = pneg %p334
      %p679 = pneg %p358
      %p680 = pneg %p355
      %p681 = pneg %p379
      %p682 = pneg %p376
      %p683 = pneg %p400
      %p684 = pneg %p397
      %p685 = pneg %p421
      %p686 = pneg %p418
      %p687 = pneg %p442
      %p688 = pneg %p439
      %p689 = pneg %p463
      %p690 = pneg %p460
      %p691 = pneg %p484
      %p692 = pneg %p481
      %p693 = pneg %p505
      %p694 = pneg %p502
      %p695 = pneg %p531
      %p696 = pneg %p528
      %p697 = scmp.lt.s32.totalorder %s33, 1
      %s698 = scalar_select %p697, %s33, 1
      %s699 = smul.addr %s698, 8
      %s700 = smul.addr %s699, 4
      %s701 = scalar_lea.vmem %s22, %s700
      %p702 = scmp.lt.s32.totalorder %s33, 1
      %s703 = scalar_select %p702, %s33, 1
      %s704 = smul.addr %s703, 8
      %s705 = scalar_lea.vmem %s0, %s704
      %p706 = scmp.lt.s32.totalorder %s33, 1
      %s707 = scalar_select %p706, %s33, 1
      %s708 = smul.addr %s707, 2
      %s709 = smul.addr %s708, 8
      %s710 = scalar_lea.vmem %s1, %s709
      %p711 = scmp.lt.s32.totalorder %s33, 1
      %s712 = scalar_select %p711, %s33, 1
      %s713 = smul.addr %s712, 8
      %s714 = smul.addr %s713, 8
      %s715 = scalar_lea.vmem %s2, %s714
      %p716 = scmp.lt.s32.totalorder %s33, 1
      %s717 = scalar_select %p716, %s33, 1
      %s718 = smul.addr %s717, 8
      %s719 = smul.addr %s718, 4
      %s720 = scalar_lea.vmem %s22, %s719
      %v721 = vld [vmem:[%s705] sm:$0xff]
      %v722 = vld [vmem:[%s710] sm:$0xff]
      %v723 = vld [vmem:[%s710 + $0x8] sm:$0xff]
      %v724 = vld [vmem:[%s715] sm:$0xff]
      %v725 = vld [vmem:[%s715 + $0x8] sm:$0xff]
      %v726 = vld [vmem:[%s715 + $0x10] sm:$0xff]
      %v727 = vld [vmem:[%s715 + $0x18] sm:$0xff]
      %v728 = vld [vmem:[%s715 + $0x20] sm:$0xff]
      %v729 = vld [vmem:[%s715 + $0x28] sm:$0xff]
      %v730 = vld [vmem:[%s715 + $0x30] sm:$0xff]
      %v731 = vld [vmem:[%s715 + $0x38] sm:$0xff]
      %v732 = vld [vmem:[%s6] sm:$0xff]
      %v733 = vld [vmem:[%s6 + $0x8] sm:$0xff]
      %v734 = vld [vmem:[%s6 + $0x10] sm:$0x1]
      %v735 = vld [vmem:[%s6 + $0x18] sm:$0x1]
      %v736 = vld [vmem:[%s7] sm:$0xff]
      %v737 = vld [vmem:[%s7 + $0x8] sm:$0xff]
      %v738 = vld [vmem:[%s7 + $0x10] sm:$0xff]
      %v739 = vld [vmem:[%s7 + $0x18] sm:$0xff]
      %v740 = vld [vmem:[%s7 + $0x20] sm:$0xff]
      %v741 = vld [vmem:[%s7 + $0x28] sm:$0xff]
      %v742 = vld [vmem:[%s7 + $0x30] sm:$0xff]
      %v743 = vld [vmem:[%s7 + $0x38] sm:$0xff]
      %v744 = vld [vmem:[%s7 + $0x40] sm:$0x1]
      %v745 = vld [vmem:[%s7 + $0x48] sm:$0x1]
      %v746 = vld [vmem:[%s7 + $0x50] sm:$0x1]
      %v747 = vld [vmem:[%s7 + $0x58] sm:$0x1]
      %v748 = vld [vmem:[%s7 + $0x60] sm:$0x1]
      %v749 = vld [vmem:[%s7 + $0x68] sm:$0x1]
      %v750 = vld [vmem:[%s7 + $0x70] sm:$0x1]
      %v751 = vld [vmem:[%s7 + $0x78] sm:$0x1]
      %v752 = vld [vmem:[%s3] sm:$0xff]
      %v753 = vld [vmem:[%s3 + $0x8] sm:$0xff]
      %v754 = vld [vmem:[%s3 + $0x10] sm:$0xff]
      %v755 = vld [vmem:[%s3 + $0x18] sm:$0xff]
      %v756 = vld [vmem:[%s3 + $0x20] sm:$0xff]
      %v757 = vld [vmem:[%s3 + $0x28] sm:$0xff]
      %v758 = vld [vmem:[%s3 + $0x30] sm:$0xff]
      %v759 = vld [vmem:[%s3 + $0x38] sm:$0xff]
      %v760 = vld [vmem:[%s3 + $0x40] sm:$0xff]
      %v761 = vld [vmem:[%s3 + $0x48] sm:$0xff]
      %v762 = vld [vmem:[%s3 + $0x50] sm:$0xff]
      %v763 = vld [vmem:[%s3 + $0x58] sm:$0xff]
      %v764 = vld [vmem:[%s3 + $0x60] sm:$0xff]
      %v765 = vld [vmem:[%s3 + $0x68] sm:$0xff]
      %v766 = vld [vmem:[%s3 + $0x70] sm:$0xff]
      %v767 = vld [vmem:[%s3 + $0x78] sm:$0xff]
      %vm768 = vcmask 523264
      %v770 = vsel %vm768, %v721, 0
      %772 = vmatprep.subr.mxu0 %v753
      %773 = vmatpush1.msra.mxu0 %v752
      %774 = vmatprep.subr.mxu0 %v755
      %775 = vmatpush1.msra.mxu0 %v754
      %776 = vmatprep.subr.mxu0 %v757
      %777 = vmatpush1.msra.mxu0 %v756
      %778 = vmatprep.subr.mxu0 %v759
      %779 = vmatpush1.msra.mxu0 %v758
      %780 = vmatprep.subr.mxu0 %v761
      %781 = vmatpush1.msra.mxu0 %v760
      %782 = vmatprep.subr.mxu0 %v763
      %783 = vmatpush1.msra.mxu0 %v762
      %784 = vmatprep.subr.mxu0 %v765
      %785 = vmatpush1.msra.mxu0 %v764
      %786 = vmatprep.subr.mxu0 %v767
      %787 = vmatpush1.msra.mxu0 %v766
      %788 = vmatprep.subr.mxu0 0.0
      %789 = vmatpush1.msra.mxu0 0.0
      %790 = vmatprep.subr.mxu0 0.0
      %791 = vmatpush1.msra.mxu0 0.0
      %792 = vmatprep.subr.mxu0 0.0
      %793 = vmatpush1.msra.mxu0 0.0
      %794 = vmatprep.subr.mxu0 0.0
      %795 = vmatpush1.msra.mxu0 0.0
      %796 = vmatprep.subr.mxu0 0.0
      %797 = vmatpush1.msra.mxu0 0.0
      %798 = vmatprep.subr.mxu0 0.0
      %799 = vmatpush1.msra.mxu0 0.0
      %800 = vmatprep.subr.mxu0 0.0
      %801 = vmatpush1.msra.mxu0 0.0
      %802 = vmatprep.subr.mxu0 0.0
      %803 = vmatpush1.msra.mxu0 0.0
      %804 = vmatprep.subr.mxu0 0.0
      %805 = vmatpush1.msra.mxu0 0.0
      %806 = vmatprep.subr.mxu0 0.0
      %807 = vmatpush1.msra.mxu0 0.0
      %808 = vmatprep.subr.mxu0 0.0
      %809 = vmatpush1.msra.mxu0 0.0
      %810 = vmatprep.subr.mxu0 0.0
      %811 = vmatpush1.msra.mxu0 0.0
      %812 = vmatprep.subr.mxu0 0.0
      %813 = vmatpush1.msra.mxu0 0.0
      %814 = vmatprep.subr.mxu0 0.0
      %815 = vmatpush1.msra.mxu0 0.0
      %816 = vmatprep.subr.mxu0 0.0
      %817 = vmatpush1.msra.mxu0 0.0
      %818 = vmatprep.subr.mxu0 0.0
      %819 = vmatpush1.msra.mxu0 0.0
      %820 = vmatprep.subr.mxu0 0.0
      %821 = vmatpush1.msra.mxu0 0.0
      %822 = vmatprep.subr.mxu0 0.0
      %823 = vmatpush1.msra.mxu0 0.0
      %824 = vmatprep.subr.mxu0 0.0
      %825 = vmatpush1.msra.mxu0 0.0
      %826 = vmatprep.subr.mxu0 0.0
      %827 = vmatpush1.msra.mxu0 0.0
      %828 = vmatprep.subr.mxu0 0.0
      %829 = vmatpush1.msra.mxu0 0.0
      %830 = vmatprep.subr.mxu0 0.0
      %831 = vmatpush1.msra.mxu0 0.0
      %832 = vmatprep.subr.mxu0 0.0
      %833 = vmatpush1.msra.mxu0 0.0
      %834 = vmatprep.subr.mxu0 0.0
      %835 = vmatpush1.msra.mxu0 0.0
      %836 = vmatprep.mubr.f32.mxu0 0.0
      %837 = vmatmul.mubr.f32.gmra.mrb[0].mxu0 %v770
      %v838 = vpop.f32.mrb[0].mxu0
      %v839 = vadd.f32 0.0, %v838
      %v840 = vpop.f32.mrb[0].mxu0
      %v841 = vadd.f32 0.0, %v840
      %842 = vdwg.mxu0
      %v843 = vld [vmem:[%s4] sm:$0xff]
      %v844 = vld [vmem:[%s4 + $0x8] sm:$0xff]
      %v845 = vld [vmem:[%s4 + $0x10] sm:$0xff]
      %v846 = vld [vmem:[%s4 + $0x18] sm:$0xff]
      %v847 = vld [vmem:[%s4 + $0x20] sm:$0xff]
      %v848 = vld [vmem:[%s4 + $0x28] sm:$0xff]
      %v849 = vld [vmem:[%s4 + $0x30] sm:$0xff]
      %v850 = vld [vmem:[%s4 + $0x38] sm:$0xff]
      %v851 = vld [vmem:[%s4 + $0x40] sm:$0xff]
      %v852 = vld [vmem:[%s4 + $0x48] sm:$0xff]
      %v853 = vld [vmem:[%s4 + $0x50] sm:$0xff]
      %v854 = vld [vmem:[%s4 + $0x58] sm:$0xff]
      %v855 = vld [vmem:[%s4 + $0x60] sm:$0xff]
      %v856 = vld [vmem:[%s4 + $0x68] sm:$0xff]
      %v857 = vld [vmem:[%s4 + $0x70] sm:$0xff]
      %v858 = vld [vmem:[%s4 + $0x78] sm:$0xff]
      %v859 = vld [vmem:[%s4 + $0x80] sm:$0xff]
      %v860 = vld [vmem:[%s4 + $0x88] sm:$0xff]
      %v861 = vld [vmem:[%s4 + $0x90] sm:$0xff]
      %v862 = vld [vmem:[%s4 + $0x98] sm:$0xff]
      %v863 = vld [vmem:[%s4 + $0xa0] sm:$0xff]
      %v864 = vld [vmem:[%s4 + $0xa8] sm:$0xff]
      %v865 = vld [vmem:[%s4 + $0xb0] sm:$0xff]
      %v866 = vld [vmem:[%s4 + $0xb8] sm:$0xff]
      %v867 = vld [vmem:[%s4 + $0xc0] sm:$0xff]
      %v868 = vld [vmem:[%s4 + $0xc8] sm:$0xff]
      %v869 = vld [vmem:[%s4 + $0xd0] sm:$0xff]
      %v870 = vld [vmem:[%s4 + $0xd8] sm:$0xff]
      %v871 = vld [vmem:[%s4 + $0xe0] sm:$0xff]
      %v872 = vld [vmem:[%s4 + $0xe8] sm:$0xff]
      %v873 = vld [vmem:[%s4 + $0xf0] sm:$0xff]
      %v874 = vld [vmem:[%s4 + $0xf8] sm:$0xff]
      %v875 = vld [vmem:[%s4 + $0x100] sm:$0xff]
      %v876 = vld [vmem:[%s4 + $0x108] sm:$0xff]
      %v877 = vld [vmem:[%s4 + $0x110] sm:$0xff]
      %v878 = vld [vmem:[%s4 + $0x118] sm:$0xff]
      %v879 = vld [vmem:[%s4 + $0x120] sm:$0xff]
      %v880 = vld [vmem:[%s4 + $0x128] sm:$0xff]
      %v881 = vld [vmem:[%s4 + $0x130] sm:$0xff]
      %v882 = vld [vmem:[%s4 + $0x138] sm:$0xff]
      %v883 = vld [vmem:[%s4 + $0x140] sm:$0xff]
      %v884 = vld [vmem:[%s4 + $0x148] sm:$0xff]
      %v885 = vld [vmem:[%s4 + $0x150] sm:$0xff]
      %v886 = vld [vmem:[%s4 + $0x158] sm:$0xff]
      %v887 = vld [vmem:[%s4 + $0x160] sm:$0xff]
      %v888 = vld [vmem:[%s4 + $0x168] sm:$0xff]
      %v889 = vld [vmem:[%s4 + $0x170] sm:$0xff]
      %v890 = vld [vmem:[%s4 + $0x178] sm:$0xff]
      %v891 = vld [vmem:[%s4 + $0x180] sm:$0xff]
      %v892 = vld [vmem:[%s4 + $0x188] sm:$0xff]
      %v893 = vld [vmem:[%s4 + $0x190] sm:$0xff]
      %v894 = vld [vmem:[%s4 + $0x198] sm:$0xff]
      %v895 = vld [vmem:[%s4 + $0x1a0] sm:$0xff]
      %v896 = vld [vmem:[%s4 + $0x1a8] sm:$0xff]
      %v897 = vld [vmem:[%s4 + $0x1b0] sm:$0xff]
      %v898 = vld [vmem:[%s4 + $0x1b8] sm:$0xff]
      %v899 = vld [vmem:[%s4 + $0x1c0] sm:$0xff]
      %v900 = vld [vmem:[%s4 + $0x1c8] sm:$0xff]
      %v901 = vld [vmem:[%s4 + $0x1d0] sm:$0xff]
      %v902 = vld [vmem:[%s4 + $0x1d8] sm:$0xff]
      %v903 = vld [vmem:[%s4 + $0x1e0] sm:$0xff]
      %v904 = vld [vmem:[%s4 + $0x1e8] sm:$0xff]
      %v905 = vld [vmem:[%s4 + $0x1f0] sm:$0xff]
      %v906 = vld [vmem:[%s4 + $0x1f8] sm:$0xff]
      %907 = vmatprep.subr.mxu0 %v844
      %908 = vmatpush1.msra.mxu0 %v843
      %909 = vmatprep.subr.mxu0 %v852
      %910 = vmatpush1.msra.mxu0 %v851
      %911 = vmatprep.subr.mxu0 %v860
      %912 = vmatpush1.msra.mxu0 %v859
      %913 = vmatprep.subr.mxu0 %v868
      %914 = vmatpush1.msra.mxu0 %v867
      %915 = vmatprep.subr.mxu0 %v876
      %916 = vmatpush1.msra.mxu0 %v875
      %917 = vmatprep.subr.mxu0 %v884
      %918 = vmatpush1.msra.mxu0 %v883
      %919 = vmatprep.subr.mxu0 %v892
      %920 = vmatpush1.msra.mxu0 %v891
      %921 = vmatprep.subr.mxu0 %v900
      %922 = vmatpush1.msra.mxu0 %v899
      %923 = vmatprep.subr.mxu0 0.0
      %924 = vmatpush1.msra.mxu0 0.0
      %925 = vmatprep.subr.mxu0 0.0
      %926 = vmatpush1.msra.mxu0 0.0
      %927 = vmatprep.subr.mxu0 0.0
      %928 = vmatpush1.msra.mxu0 0.0
      %929 = vmatprep.subr.mxu0 0.0
      %930 = vmatpush1.msra.mxu0 0.0
      %931 = vmatprep.subr.mxu0 0.0
      %932 = vmatpush1.msra.mxu0 0.0
      %933 = vmatprep.subr.mxu0 0.0
      %934 = vmatpush1.msra.mxu0 0.0
      %935 = vmatprep.subr.mxu0 0.0
      %936 = vmatpush1.msra.mxu0 0.0
      %937 = vmatprep.subr.mxu0 0.0
      %938 = vmatpush1.msra.mxu0 0.0
      %939 = vmatprep.subr.mxu0 0.0
      %940 = vmatpush1.msra.mxu0 0.0
      %941 = vmatprep.subr.mxu0 0.0
      %942 = vmatpush1.msra.mxu0 0.0
      %943 = vmatprep.subr.mxu0 0.0
      %944 = vmatpush1.msra.mxu0 0.0
      %945 = vmatprep.subr.mxu0 0.0
      %946 = vmatpush1.msra.mxu0 0.0
      %947 = vmatprep.subr.mxu0 0.0
      %948 = vmatpush1.msra.mxu0 0.0
      %949 = vmatprep.subr.mxu0 0.0
      %950 = vmatpush1.msra.mxu0 0.0
      %951 = vmatprep.subr.mxu0 0.0
      %952 = vmatpush1.msra.mxu0 0.0
      %953 = vmatprep.subr.mxu0 0.0
      %954 = vmatpush1.msra.mxu0 0.0
      %955 = vmatprep.subr.mxu0 0.0
      %956 = vmatpush1.msra.mxu0 0.0
      %957 = vmatprep.subr.mxu0 0.0
      %958 = vmatpush1.msra.mxu0 0.0
      %959 = vmatprep.subr.mxu0 0.0
      %960 = vmatpush1.msra.mxu0 0.0
      %961 = vmatprep.subr.mxu0 0.0
      %962 = vmatpush1.msra.mxu0 0.0
      %963 = vmatprep.subr.mxu0 0.0
      %964 = vmatpush1.msra.mxu0 0.0
      %965 = vmatprep.subr.mxu0 0.0
      %966 = vmatpush1.msra.mxu0 0.0
      %967 = vmatprep.subr.mxu0 0.0
      %968 = vmatpush1.msra.mxu0 0.0
      %969 = vmatprep.subr.mxu0 0.0
      %970 = vmatpush1.msra.mxu0 0.0
      %971 = vmatprep.mubr.f32.mxu0 0.0
      %972 = vmatmul.mubr.f32.gmra.mrb[0].mxu0 %v770
      %v973 = vpop.f32.mrb[0].mxu0
      %v974 = vadd.f32 0.0, %v973
      %v975 = vpop.f32.mrb[0].mxu0
      %v976 = vadd.f32 0.0, %v975
      %977 = vdwg.mxu0
      %978 = vmatprep.subr.mxu0 %v846
      %979 = vmatpush1.msra.mxu0 %v845
      %980 = vmatprep.subr.mxu0 %v854
      %981 = vmatpush1.msra.mxu0 %v853
      %982 = vmatprep.subr.mxu0 %v862
      %983 = vmatpush1.msra.mxu0 %v861
      %984 = vmatprep.subr.mxu0 %v870
      %985 = vmatpush1.msra.mxu0 %v869
      %986 = vmatprep.subr.mxu0 %v878
      %987 = vmatpush1.msra.mxu0 %v877
      %988 = vmatprep.subr.mxu0 %v886
      %989 = vmatpush1.msra.mxu0 %v885
      %990 = vmatprep.subr.mxu0 %v894
      %991 = vmatpush1.msra.mxu0 %v893
      %992 = vmatprep.subr.mxu0 %v902
      %993 = vmatpush1.msra.mxu0 %v901
      %994 = vmatprep.subr.mxu0 0.0
      %995 = vmatpush1.msra.mxu0 0.0
      %996 = vmatprep.subr.mxu0 0.0
      %997 = vmatpush1.msra.mxu0 0.0
      %998 = vmatprep.subr.mxu0 0.0
      %999 = vmatpush1.msra.mxu0 0.0
      %1000 = vmatprep.subr.mxu0 0.0
      %1001 = vmatpush1.msra.mxu0 0.0
      %1002 = vmatprep.subr.mxu0 0.0
      %1003 = vmatpush1.msra.mxu0 0.0
      %1004 = vmatprep.subr.mxu0 0.0
      %1005 = vmatpush1.msra.mxu0 0.0
      %1006 = vmatprep.subr.mxu0 0.0
      %1007 = vmatpush1.msra.mxu0 0.0
      %1008 = vmatprep.subr.mxu0 0.0
      %1009 = vmatpush1.msra.mxu0 0.0
      %1010 = vmatprep.subr.mxu0 0.0
      %1011 = vmatpush1.msra.mxu0 0.0
      %1012 = vmatprep.subr.mxu0 0.0
      %1013 = vmatpush1.msra.mxu0 0.0
      %1014 = vmatprep.subr.mxu0 0.0
      %1015 = vmatpush1.msra.mxu0 0.0
      %1016 = vmatprep.subr.mxu0 0.0
      %1017 = vmatpush1.msra.mxu0 0.0
      %1018 = vmatprep.subr.mxu0 0.0
      %1019 = vmatpush1.msra.mxu0 0.0
      %1020 = vmatprep.subr.mxu0 0.0
      %1021 = vmatpush1.msra.mxu0 0.0
      %1022 = vmatprep.subr.mxu0 0.0
      %1023 = vmatpush1.msra.mxu0 0.0
      %1024 = vmatprep.subr.mxu0 0.0
      %1025 = vmatpush1.msra.mxu0 0.0
      %1026 = vmatprep.subr.mxu0 0.0
      %1027 = vmatpush1.msra.mxu0 0.0
      %1028 = vmatprep.subr.mxu0 0.0
      %1029 = vmatpush1.msra.mxu0 0.0
      %1030 = vmatprep.subr.mxu0 0.0
      %1031 = vmatpush1.msra.mxu0 0.0
      %1032 = vmatprep.subr.mxu0 0.0
      %1033 = vmatpush1.msra.mxu0 0.0
      %1034 = vmatprep.subr.mxu0 0.0
      %1035 = vmatpush1.msra.mxu0 0.0
      %1036 = vmatprep.subr.mxu0 0.0
      %1037 = vmatpush1.msra.mxu0 0.0
      %1038 = vmatprep.subr.mxu0 0.0
      %1039 = vmatpush1.msra.mxu0 0.0
      %1040 = vmatprep.subr.mxu0 0.0
      %1041 = vmatpush1.msra.mxu0 0.0
      %1042 = vmatprep.mubr.f32.mxu0 0.0
      %1043 = vmatmul.mubr.f32.gmra.mrb[0].mxu0 %v770
      %v1044 = vpop.f32.mrb[0].mxu0
      %v1045 = vadd.f32 0.0, %v1044
      %v1046 = vpop.f32.mrb[0].mxu0
      %v1047 = vadd.f32 0.0, %v1046
      %1048 = vdwg.mxu0
      %1049 = vmatprep.subr.mxu0 %v848
      %1050 = vmatpush1.msra.mxu0 %v847
      %1051 = vmatprep.subr.mxu0 %v856
      %1052 = vmatpush1.msra.mxu0 %v855
      %1053 = vmatprep.subr.mxu0 %v864
      %1054 = vmatpush1.msra.mxu0 %v863
      %1055 = vmatprep.subr.mxu0 %v872
      %1056 = vmatpush1.msra.mxu0 %v871
      %1057 = vmatprep.subr.mxu0 %v880
      %1058 = vmatpush1.msra.mxu0 %v879
      %1059 = vmatprep.subr.mxu0 %v888
      %1060 = vmatpush1.msra.mxu0 %v887
      %1061 = vmatprep.subr.mxu0 %v896
      %1062 = vmatpush1.msra.mxu0 %v895
      %1063 = vmatprep.subr.mxu0 %v904
      %1064 = vmatpush1.msra.mxu0 %v903
      %1065 = vmatprep.subr.mxu0 0.0
      %1066 = vmatpush1.msra.mxu0 0.0
      %1067 = vmatprep.subr.mxu0 0.0
      %1068 = vmatpush1.msra.mxu0 0.0
      %1069 = vmatprep.subr.mxu0 0.0
      %1070 = vmatpush1.msra.mxu0 0.0
      %1071 = vmatprep.subr.mxu0 0.0
      %1072 = vmatpush1.msra.mxu0 0.0
      %1073 = vmatprep.subr.mxu0 0.0
      %1074 = vmatpush1.msra.mxu0 0.0
      %1075 = vmatprep.subr.mxu0 0.0
      %1076 = vmatpush1.msra.mxu0 0.0
      %1077 = vmatprep.subr.mxu0 0.0
      %1078 = vmatpush1.msra.mxu0 0.0
      %1079 = vmatprep.subr.mxu0 0.0
      %1080 = vmatpush1.msra.mxu0 0.0
      %1081 = vmatprep.subr.mxu0 0.0
      %1082 = vmatpush1.msra.mxu0 0.0
      %1083 = vmatprep.subr.mxu0 0.0
      %1084 = vmatpush1.msra.mxu0 0.0
      %1085 = vmatprep.subr.mxu0 0.0
      %1086 = vmatpush1.msra.mxu0 0.0
      %1087 = vmatprep.subr.mxu0 0.0
      %1088 = vmatpush1.msra.mxu0 0.0
      %1089 = vmatprep.subr.mxu0 0.0
      %1090 = vmatpush1.msra.mxu0 0.0
      %1091 = vmatprep.subr.mxu0 0.0
      %1092 = vmatpush1.msra.mxu0 0.0
      %1093 = vmatprep.subr.mxu0 0.0
      %1094 = vmatpush1.msra.mxu0 0.0
      %1095 = vmatprep.subr.mxu0 0.0
      %1096 = vmatpush1.msra.mxu0 0.0
      %1097 = vmatprep.subr.mxu0 0.0
      %1098 = vmatpush1.msra.mxu0 0.0
      %1099 = vmatprep.subr.mxu0 0.0
      %1100 = vmatpush1.msra.mxu0 0.0
      %1101 = vmatprep.subr.mxu0 0.0
      %1102 = vmatpush1.msra.mxu0 0.0
      %1103 = vmatprep.subr.mxu0 0.0
      %1104 = vmatpush1.msra.mxu0 0.0
      %1105 = vmatprep.subr.mxu0 0.0
      %1106 = vmatpush1.msra.mxu0 0.0
      %1107 = vmatprep.subr.mxu0 0.0
      %1108 = vmatpush1.msra.mxu0 0.0
      %1109 = vmatprep.subr.mxu0 0.0
      %1110 = vmatpush1.msra.mxu0 0.0
      %1111 = vmatprep.subr.mxu0 0.0
      %1112 = vmatpush1.msra.mxu0 0.0
      %1113 = vmatprep.mubr.f32.mxu0 0.0
      %1114 = vmatmul.mubr.f32.gmra.mrb[0].mxu0 %v770
      %v1115 = vpop.f32.mrb[0].mxu0
      %v1116 = vadd.f32 0.0, %v1115
      %v1117 = vpop.f32.mrb[0].mxu0
      %v1118 = vadd.f32 0.0, %v1117
      %1119 = vdwg.mxu0
      %1120 = vmatprep.subr.mxu0 %v850
      %1121 = vmatpush1.msra.mxu0 %v849
      %1122 = vmatprep.subr.mxu0 %v858
      %1123 = vmatpush1.msra.mxu0 %v857
      %1124 = vmatprep.subr.mxu0 %v866
      %1125 = vmatpush1.msra.mxu0 %v865
      %1126 = vmatprep.subr.mxu0 %v874
      %1127 = vmatpush1.msra.mxu0 %v873
      %1128 = vmatprep.subr.mxu0 %v882
      %1129 = vmatpush1.msra.mxu0 %v881
      %1130 = vmatprep.subr.mxu0 %v890
      %1131 = vmatpush1.msra.mxu0 %v889
      %1132 = vmatprep.subr.mxu0 %v898
      %1133 = vmatpush1.msra.mxu0 %v897
      %1134 = vmatprep.subr.mxu0 %v906
      %1135 = vmatpush1.msra.mxu0 %v905
      %1136 = vmatprep.subr.mxu0 0.0
      %1137 = vmatpush1.msra.mxu0 0.0
      %1138 = vmatprep.subr.mxu0 0.0
      %1139 = vmatpush1.msra.mxu0 0.0
      %1140 = vmatprep.subr.mxu0 0.0
      %1141 = vmatpush1.msra.mxu0 0.0
      %1142 = vmatprep.subr.mxu0 0.0
      %1143 = vmatpush1.msra.mxu0 0.0
      %1144 = vmatprep.subr.mxu0 0.0
      %1145 = vmatpush1.msra.mxu0 0.0
      %1146 = vmatprep.subr.mxu0 0.0
      %1147 = vmatpush1.msra.mxu0 0.0
      %1148 = vmatprep.subr.mxu0 0.0
      %1149 = vmatpush1.msra.mxu0 0.0
      %1150 = vmatprep.subr.mxu0 0.0
      %1151 = vmatpush1.msra.mxu0 0.0
      %1152 = vmatprep.subr.mxu0 0.0
      %1153 = vmatpush1.msra.mxu0 0.0
      %1154 = vmatprep.subr.mxu0 0.0
      %1155 = vmatpush1.msra.mxu0 0.0
      %1156 = vmatprep.subr.mxu0 0.0
      %1157 = vmatpush1.msra.mxu0 0.0
      %1158 = vmatprep.subr.mxu0 0.0
      %1159 = vmatpush1.msra.mxu0 0.0
      %1160 = vmatprep.subr.mxu0 0.0
      %1161 = vmatpush1.msra.mxu0 0.0
      %1162 = vmatprep.subr.mxu0 0.0
      %1163 = vmatpush1.msra.mxu0 0.0
      %1164 = vmatprep.subr.mxu0 0.0
      %1165 = vmatpush1.msra.mxu0 0.0
      %1166 = vmatprep.subr.mxu0 0.0
      %1167 = vmatpush1.msra.mxu0 0.0
      %1168 = vmatprep.subr.mxu0 0.0
      %1169 = vmatpush1.msra.mxu0 0.0
      %1170 = vmatprep.subr.mxu0 0.0
      %1171 = vmatpush1.msra.mxu0 0.0
      %1172 = vmatprep.subr.mxu0 0.0
      %1173 = vmatpush1.msra.mxu0 0.0
      %1174 = vmatprep.subr.mxu0 0.0
      %1175 = vmatpush1.msra.mxu0 0.0
      %1176 = vmatprep.subr.mxu0 0.0
      %1177 = vmatpush1.msra.mxu0 0.0
      %1178 = vmatprep.subr.mxu0 0.0
      %1179 = vmatpush1.msra.mxu0 0.0
      %1180 = vmatprep.subr.mxu0 0.0
      %1181 = vmatpush1.msra.mxu0 0.0
      %1182 = vmatprep.subr.mxu0 0.0
      %1183 = vmatpush1.msra.mxu0 0.0
      %1184 = vmatprep.mubr.f32.mxu0 0.0
      %1185 = vmatmul.mubr.f32.gmra.mrb[0].mxu0 %v770
      %v1186 = vpop.f32.mrb[0].mxu0
      %v1187 = vadd.f32 0.0, %v1186
      %v1188 = vpop.f32.mrb[0].mxu0
      %v1189 = vadd.f32 0.0, %v1188
      %1190 = vdwg.mxu0
      %v1191 = vld [vmem:[%s5] sm:$0xff]
      %v1192 = vld [vmem:[%s5 + $0x8] sm:$0xff]
      %v1193 = vld [vmem:[%s5 + $0x10] sm:$0xff]
      %v1194 = vld [vmem:[%s5 + $0x18] sm:$0xff]
      %v1195 = vld [vmem:[%s5 + $0x20] sm:$0xff]
      %v1196 = vld [vmem:[%s5 + $0x28] sm:$0xff]
      %v1197 = vld [vmem:[%s5 + $0x30] sm:$0xff]
      %v1198 = vld [vmem:[%s5 + $0x38] sm:$0xff]
      %v1199 = vld [vmem:[%s5 + $0x40] sm:$0xff]
      %v1200 = vld [vmem:[%s5 + $0x48] sm:$0xff]
      %v1201 = vld [vmem:[%s5 + $0x50] sm:$0xff]
      %v1202 = vld [vmem:[%s5 + $0x58] sm:$0xff]
      %v1203 = vld [vmem:[%s5 + $0x60] sm:$0xff]
      %v1204 = vld [vmem:[%s5 + $0x68] sm:$0xff]
      %v1205 = vld [vmem:[%s5 + $0x70] sm:$0xff]
      %v1206 = vld [vmem:[%s5 + $0x78] sm:$0xff]
      %v1207 = vld [vmem:[%s5 + $0x80] sm:$0xff]
      %v1208 = vld [vmem:[%s5 + $0x88] sm:$0xff]
      %v1209 = vld [vmem:[%s5 + $0x90] sm:$0xff]
      %v1210 = vld [vmem:[%s5 + $0x98] sm:$0xff]
      %v1211 = vld [vmem:[%s5 + $0xa0] sm:$0xff]
      %v1212 = vld [vmem:[%s5 + $0xa8] sm:$0xff]
      %v1213 = vld [vmem:[%s5 + $0xb0] sm:$0xff]
      %v1214 = vld [vmem:[%s5 + $0xb8] sm:$0xff]
      %v1215 = vld [vmem:[%s5 + $0xc0] sm:$0xff]
      %v1216 = vld [vmem:[%s5 + $0xc8] sm:$0xff]
      %v1217 = vld [vmem:[%s5 + $0xd0] sm:$0xff]
      %v1218 = vld [vmem:[%s5 + $0xd8] sm:$0xff]
      %v1219 = vld [vmem:[%s5 + $0xe0] sm:$0xff]
      %v1220 = vld [vmem:[%s5 + $0xe8] sm:$0xff]
      %v1221 = vld [vmem:[%s5 + $0xf0] sm:$0xff]
      %v1222 = vld [vmem:[%s5 + $0xf8] sm:$0xff]
      %v1223 = vld [vmem:[%s5 + $0x100] sm:$0xff]
      %v1224 = vld [vmem:[%s5 + $0x108] sm:$0xff]
      %v1225 = vld [vmem:[%s5 + $0x110] sm:$0xff]
      %v1226 = vld [vmem:[%s5 + $0x118] sm:$0xff]
      %v1227 = vld [vmem:[%s5 + $0x120] sm:$0xff]
      %v1228 = vld [vmem:[%s5 + $0x128] sm:$0xff]
      %v1229 = vld [vmem:[%s5 + $0x130] sm:$0xff]
      %v1230 = vld [vmem:[%s5 + $0x138] sm:$0xff]
      %v1231 = vld [vmem:[%s5 + $0x140] sm:$0xff]
      %v1232 = vld [vmem:[%s5 + $0x148] sm:$0xff]
      %v1233 = vld [vmem:[%s5 + $0x150] sm:$0xff]
      %v1234 = vld [vmem:[%s5 + $0x158] sm:$0xff]
      %v1235 = vld [vmem:[%s5 + $0x160] sm:$0xff]
      %v1236 = vld [vmem:[%s5 + $0x168] sm:$0xff]
      %v1237 = vld [vmem:[%s5 + $0x170] sm:$0xff]
      %v1238 = vld [vmem:[%s5 + $0x178] sm:$0xff]
      %v1239 = vld [vmem:[%s5 + $0x180] sm:$0xff]
      %v1240 = vld [vmem:[%s5 + $0x188] sm:$0xff]
      %v1241 = vld [vmem:[%s5 + $0x190] sm:$0xff]
      %v1242 = vld [vmem:[%s5 + $0x198] sm:$0xff]
      %v1243 = vld [vmem:[%s5 + $0x1a0] sm:$0xff]
      %v1244 = vld [vmem:[%s5 + $0x1a8] sm:$0xff]
      %v1245 = vld [vmem:[%s5 + $0x1b0] sm:$0xff]
      %v1246 = vld [vmem:[%s5 + $0x1b8] sm:$0xff]
      %v1247 = vld [vmem:[%s5 + $0x1c0] sm:$0xff]
      %v1248 = vld [vmem:[%s5 + $0x1c8] sm:$0xff]
      %v1249 = vld [vmem:[%s5 + $0x1d0] sm:$0xff]
      %v1250 = vld [vmem:[%s5 + $0x1d8] sm:$0xff]
      %v1251 = vld [vmem:[%s5 + $0x1e0] sm:$0xff]
      %v1252 = vld [vmem:[%s5 + $0x1e8] sm:$0xff]
      %v1253 = vld [vmem:[%s5 + $0x1f0] sm:$0xff]
      %v1254 = vld [vmem:[%s5 + $0x1f8] sm:$0xff]
      %v1255 = vld [vmem:[%s5 + $0x200] sm:$0xff]
      %v1256 = vld [vmem:[%s5 + $0x208] sm:$0xff]
      %v1257 = vld [vmem:[%s5 + $0x210] sm:$0xff]
      %v1258 = vld [vmem:[%s5 + $0x218] sm:$0xff]
      %v1259 = vld [vmem:[%s5 + $0x220] sm:$0xff]
      %v1260 = vld [vmem:[%s5 + $0x228] sm:$0xff]
      %v1261 = vld [vmem:[%s5 + $0x230] sm:$0xff]
      %v1262 = vld [vmem:[%s5 + $0x238] sm:$0xff]
      %v1263 = vld [vmem:[%s5 + $0x240] sm:$0xff]
      %v1264 = vld [vmem:[%s5 + $0x248] sm:$0xff]
      %v1265 = vld [vmem:[%s5 + $0x250] sm:$0xff]
      %v1266 = vld [vmem:[%s5 + $0x258] sm:$0xff]
      %v1267 = vld [vmem:[%s5 + $0x260] sm:$0xff]
      %v1268 = vld [vmem:[%s5 + $0x268] sm:$0xff]
      %v1269 = vld [vmem:[%s5 + $0x270] sm:$0xff]
      %v1270 = vld [vmem:[%s5 + $0x278] sm:$0xff]
      %v1271 = vld [vmem:[%s5 + $0x280] sm:$0xff]
      %v1272 = vld [vmem:[%s5 + $0x288] sm:$0xff]
      %v1273 = vld [vmem:[%s5 + $0x290] sm:$0xff]
      %v1274 = vld [vmem:[%s5 + $0x298] sm:$0xff]
      %v1275 = vld [vmem:[%s5 + $0x2a0] sm:$0xff]
      %v1276 = vld [vmem:[%s5 + $0x2a8] sm:$0xff]
      %v1277 = vld [vmem:[%s5 + $0x2b0] sm:$0xff]
      %v1278 = vld [vmem:[%s5 + $0x2b8] sm:$0xff]
      %v1279 = vld [vmem:[%s5 + $0x2c0] sm:$0xff]
      %v1280 = vld [vmem:[%s5 + $0x2c8] sm:$0xff]
      %v1281 = vld [vmem:[%s5 + $0x2d0] sm:$0xff]
      %v1282 = vld [vmem:[%s5 + $0x2d8] sm:$0xff]
      %v1283 = vld [vmem:[%s5 + $0x2e0] sm:$0xff]
      %v1284 = vld [vmem:[%s5 + $0x2e8] sm:$0xff]
      %v1285 = vld [vmem:[%s5 + $0x2f0] sm:$0xff]
      %v1286 = vld [vmem:[%s5 + $0x2f8] sm:$0xff]
      %v1287 = vld [vmem:[%s5 + $0x300] sm:$0xff]
      %v1288 = vld [vmem:[%s5 + $0x308] sm:$0xff]
      %v1289 = vld [vmem:[%s5 + $0x310] sm:$0xff]
      %v1290 = vld [vmem:[%s5 + $0x318] sm:$0xff]
      %v1291 = vld [vmem:[%s5 + $0x320] sm:$0xff]
      %v1292 = vld [vmem:[%s5 + $0x328] sm:$0xff]
      %v1293 = vld [vmem:[%s5 + $0x330] sm:$0xff]
      %v1294 = vld [vmem:[%s5 + $0x338] sm:$0xff]
      %v1295 = vld [vmem:[%s5 + $0x340] sm:$0xff]
      %v1296 = vld [vmem:[%s5 + $0x348] sm:$0xff]
      %v1297 = vld [vmem:[%s5 + $0x350] sm:$0xff]
      %v1298 = vld [vmem:[%s5 + $0x358] sm:$0xff]
      %v1299 = vld [vmem:[%s5 + $0x360] sm:$0xff]
      %v1300 = vld [vmem:[%s5 + $0x368] sm:$0xff]
      %v1301 = vld [vmem:[%s5 + $0x370] sm:$0xff]
      %v1302 = vld [vmem:[%s5 + $0x378] sm:$0xff]
      %v1303 = vld [vmem:[%s5 + $0x380] sm:$0xff]
      %v1304 = vld [vmem:[%s5 + $0x388] sm:$0xff]
      %v1305 = vld [vmem:[%s5 + $0x390] sm:$0xff]
      %v1306 = vld [vmem:[%s5 + $0x398] sm:$0xff]
      %v1307 = vld [vmem:[%s5 + $0x3a0] sm:$0xff]
      %v1308 = vld [vmem:[%s5 + $0x3a8] sm:$0xff]
      %v1309 = vld [vmem:[%s5 + $0x3b0] sm:$0xff]
      %v1310 = vld [vmem:[%s5 + $0x3b8] sm:$0xff]
      %v1311 = vld [vmem:[%s5 + $0x3c0] sm:$0xff]
      %v1312 = vld [vmem:[%s5 + $0x3c8] sm:$0xff]
      %v1313 = vld [vmem:[%s5 + $0x3d0] sm:$0xff]
      %v1314 = vld [vmem:[%s5 + $0x3d8] sm:$0xff]
      %v1315 = vld [vmem:[%s5 + $0x3e0] sm:$0xff]
      %v1316 = vld [vmem:[%s5 + $0x3e8] sm:$0xff]
      %v1317 = vld [vmem:[%s5 + $0x3f0] sm:$0xff]
      %v1318 = vld [vmem:[%s5 + $0x3f8] sm:$0xff]
      %v1319 = vld [vmem:[%s5 + $0x400] sm:$0xff]
      %v1320 = vld [vmem:[%s5 + $0x408] sm:$0xff]
      %v1321 = vld [vmem:[%s5 + $0x410] sm:$0xff]
      %v1322 = vld [vmem:[%s5 + $0x418] sm:$0xff]
      %v1323 = vld [vmem:[%s5 + $0x420] sm:$0xff]
      %v1324 = vld [vmem:[%s5 + $0x428] sm:$0xff]
      %v1325 = vld [vmem:[%s5 + $0x430] sm:$0xff]
      %v1326 = vld [vmem:[%s5 + $0x438] sm:$0xff]
      %v1327 = vld [vmem:[%s5 + $0x440] sm:$0xff]
      %v1328 = vld [vmem:[%s5 + $0x448] sm:$0xff]
      %v1329 = vld [vmem:[%s5 + $0x450] sm:$0xff]
      %v1330 = vld [vmem:[%s5 + $0x458] sm:$0xff]
      %v1331 = vld [vmem:[%s5 + $0x460] sm:$0xff]
      %v1332 = vld [vmem:[%s5 + $0x468] sm:$0xff]
      %v1333 = vld [vmem:[%s5 + $0x470] sm:$0xff]
      %v1334 = vld [vmem:[%s5 + $0x478] sm:$0xff]
      %v1335 = vld [vmem:[%s5 + $0x480] sm:$0xff]
      %v1336 = vld [vmem:[%s5 + $0x488] sm:$0xff]
      %v1337 = vld [vmem:[%s5 + $0x490] sm:$0xff]
      %v1338 = vld [vmem:[%s5 + $0x498] sm:$0xff]
      %v1339 = vld [vmem:[%s5 + $0x4a0] sm:$0xff]
      %v1340 = vld [vmem:[%s5 + $0x4a8] sm:$0xff]
      %v1341 = vld [vmem:[%s5 + $0x4b0] sm:$0xff]
      %v1342 = vld [vmem:[%s5 + $0x4b8] sm:$0xff]
      %v1343 = vld [vmem:[%s5 + $0x4c0] sm:$0xff]
      %v1344 = vld [vmem:[%s5 + $0x4c8] sm:$0xff]
      %v1345 = vld [vmem:[%s5 + $0x4d0] sm:$0xff]
      %v1346 = vld [vmem:[%s5 + $0x4d8] sm:$0xff]
      %v1347 = vld [vmem:[%s5 + $0x4e0] sm:$0xff]
      %v1348 = vld [vmem:[%s5 + $0x4e8] sm:$0xff]
      %v1349 = vld [vmem:[%s5 + $0x4f0] sm:$0xff]
      %v1350 = vld [vmem:[%s5 + $0x4f8] sm:$0xff]
      %v1351 = vld [vmem:[%s5 + $0x500] sm:$0xff]
      %v1352 = vld [vmem:[%s5 + $0x508] sm:$0xff]
      %v1353 = vld [vmem:[%s5 + $0x510] sm:$0xff]
      %v1354 = vld [vmem:[%s5 + $0x518] sm:$0xff]
      %v1355 = vld [vmem:[%s5 + $0x520] sm:$0xff]
      %v1356 = vld [vmem:[%s5 + $0x528] sm:$0xff]
      %v1357 = vld [vmem:[%s5 + $0x530] sm:$0xff]
      %v1358 = vld [vmem:[%s5 + $0x538] sm:$0xff]
      %v1359 = vld [vmem:[%s5 + $0x540] sm:$0xff]
      %v1360 = vld [vmem:[%s5 + $0x548] sm:$0xff]
      %v1361 = vld [vmem:[%s5 + $0x550] sm:$0xff]
      %v1362 = vld [vmem:[%s5 + $0x558] sm:$0xff]
      %v1363 = vld [vmem:[%s5 + $0x560] sm:$0xff]
      %v1364 = vld [vmem:[%s5 + $0x568] sm:$0xff]
      %v1365 = vld [vmem:[%s5 + $0x570] sm:$0xff]
      %v1366 = vld [vmem:[%s5 + $0x578] sm:$0xff]
      %v1367 = vld [vmem:[%s5 + $0x580] sm:$0xff]
      %v1368 = vld [vmem:[%s5 + $0x588] sm:$0xff]
      %v1369 = vld [vmem:[%s5 + $0x590] sm:$0xff]
      %v1370 = vld [vmem:[%s5 + $0x598] sm:$0xff]
      %v1371 = vld [vmem:[%s5 + $0x5a0] sm:$0xff]
      %v1372 = vld [vmem:[%s5 + $0x5a8] sm:$0xff]
      %v1373 = vld [vmem:[%s5 + $0x5b0] sm:$0xff]
      %v1374 = vld [vmem:[%s5 + $0x5b8] sm:$0xff]
      %v1375 = vld [vmem:[%s5 + $0x5c0] sm:$0xff]
      %v1376 = vld [vmem:[%s5 + $0x5c8] sm:$0xff]
      %v1377 = vld [vmem:[%s5 + $0x5d0] sm:$0xff]
      %v1378 = vld [vmem:[%s5 + $0x5d8] sm:$0xff]
      %v1379 = vld [vmem:[%s5 + $0x5e0] sm:$0xff]
      %v1380 = vld [vmem:[%s5 + $0x5e8] sm:$0xff]
      %v1381 = vld [vmem:[%s5 + $0x5f0] sm:$0xff]
      %v1382 = vld [vmem:[%s5 + $0x5f8] sm:$0xff]
      %v1383 = vld [vmem:[%s5 + $0x600] sm:$0xff]
      %v1384 = vld [vmem:[%s5 + $0x608] sm:$0xff]
      %v1385 = vld [vmem:[%s5 + $0x610] sm:$0xff]
      %v1386 = vld [vmem:[%s5 + $0x618] sm:$0xff]
      %v1387 = vld [vmem:[%s5 + $0x620] sm:$0xff]
      %v1388 = vld [vmem:[%s5 + $0x628] sm:$0xff]
      %v1389 = vld [vmem:[%s5 + $0x630] sm:$0xff]
      %v1390 = vld [vmem:[%s5 + $0x638] sm:$0xff]
      %v1391 = vld [vmem:[%s5 + $0x640] sm:$0xff]
      %v1392 = vld [vmem:[%s5 + $0x648] sm:$0xff]
      %v1393 = vld [vmem:[%s5 + $0x650] sm:$0xff]
      %v1394 = vld [vmem:[%s5 + $0x658] sm:$0xff]
      %v1395 = vld [vmem:[%s5 + $0x660] sm:$0xff]
      %v1396 = vld [vmem:[%s5 + $0x668] sm:$0xff]
      %v1397 = vld [vmem:[%s5 + $0x670] sm:$0xff]
      %v1398 = vld [vmem:[%s5 + $0x678] sm:$0xff]
      %v1399 = vld [vmem:[%s5 + $0x680] sm:$0xff]
      %v1400 = vld [vmem:[%s5 + $0x688] sm:$0xff]
      %v1401 = vld [vmem:[%s5 + $0x690] sm:$0xff]
      %v1402 = vld [vmem:[%s5 + $0x698] sm:$0xff]
      %v1403 = vld [vmem:[%s5 + $0x6a0] sm:$0xff]
      %v1404 = vld [vmem:[%s5 + $0x6a8] sm:$0xff]
      %v1405 = vld [vmem:[%s5 + $0x6b0] sm:$0xff]
      %v1406 = vld [vmem:[%s5 + $0x6b8] sm:$0xff]
      %v1407 = vld [vmem:[%s5 + $0x6c0] sm:$0xff]
      %v1408 = vld [vmem:[%s5 + $0x6c8] sm:$0xff]
      %v1409 = vld [vmem:[%s5 + $0x6d0] sm:$0xff]
      %v1410 = vld [vmem:[%s5 + $0x6d8] sm:$0xff]
      %v1411 = vld [vmem:[%s5 + $0x6e0] sm:$0xff]
      %v1412 = vld [vmem:[%s5 + $0x6e8] sm:$0xff]
      %v1413 = vld [vmem:[%s5 + $0x6f0] sm:$0xff]
      %v1414 = vld [vmem:[%s5 + $0x6f8] sm:$0xff]
      %v1415 = vld [vmem:[%s5 + $0x700] sm:$0xff]
      %v1416 = vld [vmem:[%s5 + $0x708] sm:$0xff]
      %v1417 = vld [vmem:[%s5 + $0x710] sm:$0xff]
      %v1418 = vld [vmem:[%s5 + $0x718] sm:$0xff]
      %v1419 = vld [vmem:[%s5 + $0x720] sm:$0xff]
      %v1420 = vld [vmem:[%s5 + $0x728] sm:$0xff]
      %v1421 = vld [vmem:[%s5 + $0x730] sm:$0xff]
      %v1422 = vld [vmem:[%s5 + $0x738] sm:$0xff]
      %v1423 = vld [vmem:[%s5 + $0x740] sm:$0xff]
      %v1424 = vld [vmem:[%s5 + $0x748] sm:$0xff]
      %v1425 = vld [vmem:[%s5 + $0x750] sm:$0xff]
      %v1426 = vld [vmem:[%s5 + $0x758] sm:$0xff]
      %v1427 = vld [vmem:[%s5 + $0x760] sm:$0xff]
      %v1428 = vld [vmem:[%s5 + $0x768] sm:$0xff]
      %v1429 = vld [vmem:[%s5 + $0x770] sm:$0xff]
      %v1430 = vld [vmem:[%s5 + $0x778] sm:$0xff]
      %v1431 = vld [vmem:[%s5 + $0x780] sm:$0xff]
      %v1432 = vld [vmem:[%s5 + $0x788] sm:$0xff]
      %v1433 = vld [vmem:[%s5 + $0x790] sm:$0xff]
      %v1434 = vld [vmem:[%s5 + $0x798] sm:$0xff]
      %v1435 = vld [vmem:[%s5 + $0x7a0] sm:$0xff]
      %v1436 = vld [vmem:[%s5 + $0x7a8] sm:$0xff]
      %v1437 = vld [vmem:[%s5 + $0x7b0] sm:$0xff]
      %v1438 = vld [vmem:[%s5 + $0x7b8] sm:$0xff]
      %v1439 = vld [vmem:[%s5 + $0x7c0] sm:$0xff]
      %v1440 = vld [vmem:[%s5 + $0x7c8] sm:$0xff]
      %v1441 = vld [vmem:[%s5 + $0x7d0] sm:$0xff]
      %v1442 = vld [vmem:[%s5 + $0x7d8] sm:$0xff]
      %v1443 = vld [vmem:[%s5 + $0x7e0] sm:$0xff]
      %v1444 = vld [vmem:[%s5 + $0x7e8] sm:$0xff]
      %v1445 = vld [vmem:[%s5 + $0x7f0] sm:$0xff]
      %v1446 = vld [vmem:[%s5 + $0x7f8] sm:$0xff]
      %1447 = vmatprep.subr.mxu0 %v1192
      %1448 = vmatpush1.msra.mxu0 %v1191
      %1449 = vmatprep.subr.mxu0 %v1200
      %1450 = vmatpush1.msra.mxu0 %v1199
      %1451 = vmatprep.subr.mxu0 %v1208
      %1452 = vmatpush1.msra.mxu0 %v1207
      %1453 = vmatprep.subr.mxu0 %v1216
      %1454 = vmatpush1.msra.mxu0 %v1215
      %1455 = vmatprep.subr.mxu0 %v1224
      %1456 = vmatpush1.msra.mxu0 %v1223
      %1457 = vmatprep.subr.mxu0 %v1232
      %1458 = vmatpush1.msra.mxu0 %v1231
      %1459 = vmatprep.subr.mxu0 %v1240
      %1460 = vmatpush1.msra.mxu0 %v1239
      %1461 = vmatprep.subr.mxu0 %v1248
      %1462 = vmatpush1.msra.mxu0 %v1247
      %1463 = vmatprep.subr.mxu0 %v1256
      %1464 = vmatpush1.msra.mxu0 %v1255
      %1465 = vmatprep.subr.mxu0 %v1264
      %1466 = vmatpush1.msra.mxu0 %v1263
      %1467 = vmatprep.subr.mxu0 %v1272
      %1468 = vmatpush1.msra.mxu0 %v1271
      %1469 = vmatprep.subr.mxu0 %v1280
      %1470 = vmatpush1.msra.mxu0 %v1279
      %1471 = vmatprep.subr.mxu0 %v1288
      %1472 = vmatpush1.msra.mxu0 %v1287
      %1473 = vmatprep.subr.mxu0 %v1296
      %1474 = vmatpush1.msra.mxu0 %v1295
      %1475 = vmatprep.subr.mxu0 %v1304
      %1476 = vmatpush1.msra.mxu0 %v1303
      %1477 = vmatprep.subr.mxu0 %v1312
      %1478 = vmatpush1.msra.mxu0 %v1311
      %1479 = vmatprep.subr.mxu0 %v1320
      %1480 = vmatpush1.msra.mxu0 %v1319
      %1481 = vmatprep.subr.mxu0 %v1328
      %1482 = vmatpush1.msra.mxu0 %v1327
      %1483 = vmatprep.subr.mxu0 %v1336
      %1484 = vmatpush1.msra.mxu0 %v1335
      %1485 = vmatprep.subr.mxu0 %v1344
      %1486 = vmatpush1.msra.mxu0 %v1343
      %1487 = vmatprep.subr.mxu0 %v1352
      %1488 = vmatpush1.msra.mxu0 %v1351
      %1489 = vmatprep.subr.mxu0 %v1360
      %1490 = vmatpush1.msra.mxu0 %v1359
      %1491 = vmatprep.subr.mxu0 %v1368
      %1492 = vmatpush1.msra.mxu0 %v1367
      %1493 = vmatprep.subr.mxu0 %v1376
      %1494 = vmatpush1.msra.mxu0 %v1375
      %1495 = vmatprep.subr.mxu0 %v1384
      %1496 = vmatpush1.msra.mxu0 %v1383
      %1497 = vmatprep.subr.mxu0 %v1392
      %1498 = vmatpush1.msra.mxu0 %v1391
      %1499 = vmatprep.subr.mxu0 %v1400
      %1500 = vmatpush1.msra.mxu0 %v1399
      %1501 = vmatprep.subr.mxu0 %v1408
      %1502 = vmatpush1.msra.mxu0 %v1407
      %1503 = vmatprep.subr.mxu0 %v1416
      %1504 = vmatpush1.msra.mxu0 %v1415
      %1505 = vmatprep.subr.mxu0 %v1424
      %1506 = vmatpush1.msra.mxu0 %v1423
      %1507 = vmatprep.subr.mxu0 %v1432
      %1508 = vmatpush1.msra.mxu0 %v1431
      %1509 = vmatprep.subr.mxu0 %v1440
      %1510 = vmatpush1.msra.mxu0 %v1439
      %1511 = vmatprep.mubr.f32.mxu0 %v723
      %1512 = vmatmul.mubr.f32.gmra.mrb[0].mxu0 %v722
      %v1513 = vpop.f32.mrb[0].mxu0
      %v1514 = vadd.f32 0.0, %v1513
      %v1515 = vpop.f32.mrb[0].mxu0
      %v1516 = vadd.f32 0.0, %v1515
      %1517 = vdwg.mxu0
      %1518 = vmatprep.subr.mxu0 %v1194
      %1519 = vmatpush1.msra.mxu0 %v1193
      %1520 = vmatprep.subr.mxu0 %v1202
      %1521 = vmatpush1.msra.mxu0 %v1201
      %1522 = vmatprep.subr.mxu0 %v1210
      %1523 = vmatpush1.msra.mxu0 %v1209
      %1524 = vmatprep.subr.mxu0 %v1218
      %1525 = vmatpush1.msra.mxu0 %v1217
      %1526 = vmatprep.subr.mxu0 %v1226
      %1527 = vmatpush1.msra.mxu0 %v1225
      %1528 = vmatprep.subr.mxu0 %v1234
      %1529 = vmatpush1.msra.mxu0 %v1233
      %1530 = vmatprep.subr.mxu0 %v1242
      %1531 = vmatpush1.msra.mxu0 %v1241
      %1532 = vmatprep.subr.mxu0 %v1250
      %1533 = vmatpush1.msra.mxu0 %v1249
      %1534 = vmatprep.subr.mxu0 %v1258
      %1535 = vmatpush1.msra.mxu0 %v1257
      %1536 = vmatprep.subr.mxu0 %v1266
      %1537 = vmatpush1.msra.mxu0 %v1265
      %1538 = vmatprep.subr.mxu0 %v1274
      %1539 = vmatpush1.msra.mxu0 %v1273
      %1540 = vmatprep.subr.mxu0 %v1282
      %1541 = vmatpush1.msra.mxu0 %v1281
      %1542 = vmatprep.subr.mxu0 %v1290
      %1543 = vmatpush1.msra.mxu0 %v1289
      %1544 = vmatprep.subr.mxu0 %v1298
      %1545 = vmatpush1.msra.mxu0 %v1297
      %1546 = vmatprep.subr.mxu0 %v1306
      %1547 = vmatpush1.msra.mxu0 %v1305
      %1548 = vmatprep.subr.mxu0 %v1314
      %1549 = vmatpush1.msra.mxu0 %v1313
      %1550 = vmatprep.subr.mxu0 %v1322
      %1551 = vmatpush1.msra.mxu0 %v1321
      %1552 = vmatprep.subr.mxu0 %v1330
      %1553 = vmatpush1.msra.mxu0 %v1329
      %1554 = vmatprep.subr.mxu0 %v1338
      %1555 = vmatpush1.msra.mxu0 %v1337
      %1556 = vmatprep.subr.mxu0 %v1346
      %1557 = vmatpush1.msra.mxu0 %v1345
      %1558 = vmatprep.subr.mxu0 %v1354
      %1559 = vmatpush1.msra.mxu0 %v1353
      %1560 = vmatprep.subr.mxu0 %v1362
      %1561 = vmatpush1.msra.mxu0 %v1361
      %1562 = vmatprep.subr.mxu0 %v1370
      %1563 = vmatpush1.msra.mxu0 %v1369
      %1564 = vmatprep.subr.mxu0 %v1378
      %1565 = vmatpush1.msra.mxu0 %v1377
      %1566 = vmatprep.subr.mxu0 %v1386
      %1567 = vmatpush1.msra.mxu0 %v1385
      %1568 = vmatprep.subr.mxu0 %v1394
      %1569 = vmatpush1.msra.mxu0 %v1393
      %1570 = vmatprep.subr.mxu0 %v1402
      %1571 = vmatpush1.msra.mxu0 %v1401
      %1572 = vmatprep.subr.mxu0 %v1410
      %1573 = vmatpush1.msra.mxu0 %v1409
      %1574 = vmatprep.subr.mxu0 %v1418
      %1575 = vmatpush1.msra.mxu0 %v1417
      %1576 = vmatprep.subr.mxu0 %v1426
      %1577 = vmatpush1.msra.mxu0 %v1425
      %1578 = vmatprep.subr.mxu0 %v1434
      %1579 = vmatpush1.msra.mxu0 %v1433
      %1580 = vmatprep.subr.mxu0 %v1442
      %1581 = vmatpush1.msra.mxu0 %v1441
      %1582 = vmatprep.mubr.f32.mxu0 %v723
      %1583 = vmatmul.mubr.f32.gmra.mrb[0].mxu0 %v722
      %v1584 = vpop.f32.mrb[0].mxu0
      %v1585 = vadd.f32 0.0, %v1584
      %v1586 = vpop.f32.mrb[0].mxu0
      %v1587 = vadd.f32 0.0, %v1586
      %1588 = vdwg.mxu0
      %1589 = vmatprep.subr.mxu0 %v1196
      %1590 = vmatpush1.msra.mxu0 %v1195
      %1591 = vmatprep.subr.mxu0 %v1204
      %1592 = vmatpush1.msra.mxu0 %v1203
      %1593 = vmatprep.subr.mxu0 %v1212
      %1594 = vmatpush1.msra.mxu0 %v1211
      %1595 = vmatprep.subr.mxu0 %v1220
      %1596 = vmatpush1.msra.mxu0 %v1219
      %1597 = vmatprep.subr.mxu0 %v1228
      %1598 = vmatpush1.msra.mxu0 %v1227
      %1599 = vmatprep.subr.mxu0 %v1236
      %1600 = vmatpush1.msra.mxu0 %v1235
      %1601 = vmatprep.subr.mxu0 %v1244
      %1602 = vmatpush1.msra.mxu0 %v1243
      %1603 = vmatprep.subr.mxu0 %v1252
      %1604 = vmatpush1.msra.mxu0 %v1251
      %1605 = vmatprep.subr.mxu0 %v1260
      %1606 = vmatpush1.msra.mxu0 %v1259
      %1607 = vmatprep.subr.mxu0 %v1268
      %1608 = vmatpush1.msra.mxu0 %v1267
      %1609 = vmatprep.subr.mxu0 %v1276
      %1610 = vmatpush1.msra.mxu0 %v1275
      %1611 = vmatprep.subr.mxu0 %v1284
      %1612 = vmatpush1.msra.mxu0 %v1283
      %1613 = vmatprep.subr.mxu0 %v1292
      %1614 = vmatpush1.msra.mxu0 %v1291
      %1615 = vmatprep.subr.mxu0 %v1300
      %1616 = vmatpush1.msra.mxu0 %v1299
      %1617 = vmatprep.subr.mxu0 %v1308
      %1618 = vmatpush1.msra.mxu0 %v1307
      %1619 = vmatprep.subr.mxu0 %v1316
      %1620 = vmatpush1.msra.mxu0 %v1315
      %1621 = vmatprep.subr.mxu0 %v1324
      %1622 = vmatpush1.msra.mxu0 %v1323
      %1623 = vmatprep.subr.mxu0 %v1332
      %1624 = vmatpush1.msra.mxu0 %v1331
      %1625 = vmatprep.subr.mxu0 %v1340
      %1626 = vmatpush1.msra.mxu0 %v1339
      %1627 = vmatprep.subr.mxu0 %v1348
      %1628 = vmatpush1.msra.mxu0 %v1347
      %1629 = vmatprep.subr.mxu0 %v1356
      %1630 = vmatpush1.msra.mxu0 %v1355
      %1631 = vmatprep.subr.mxu0 %v1364
      %1632 = vmatpush1.msra.mxu0 %v1363
      %1633 = vmatprep.subr.mxu0 %v1372
      %1634 = vmatpush1.msra.mxu0 %v1371
      %1635 = vmatprep.subr.mxu0 %v1380
      %1636 = vmatpush1.msra.mxu0 %v1379
      %1637 = vmatprep.subr.mxu0 %v1388
      %1638 = vmatpush1.msra.mxu0 %v1387
      %1639 = vmatprep.subr.mxu0 %v1396
      %1640 = vmatpush1.msra.mxu0 %v1395
      %1641 = vmatprep.subr.mxu0 %v1404
      %1642 = vmatpush1.msra.mxu0 %v1403
      %1643 = vmatprep.subr.mxu0 %v1412
      %1644 = vmatpush1.msra.mxu0 %v1411
      %1645 = vmatprep.subr.mxu0 %v1420
      %1646 = vmatpush1.msra.mxu0 %v1419
      %1647 = vmatprep.subr.mxu0 %v1428
      %1648 = vmatpush1.msra.mxu0 %v1427
      %1649 = vmatprep.subr.mxu0 %v1436
      %1650 = vmatpush1.msra.mxu0 %v1435
      %1651 = vmatprep.subr.mxu0 %v1444
      %1652 = vmatpush1.msra.mxu0 %v1443
      %1653 = vmatprep.mubr.f32.mxu0 %v723
      %1654 = vmatmul.mubr.f32.gmra.mrb[0].mxu0 %v722
      %v1655 = vpop.f32.mrb[0].mxu0
      %v1656 = vadd.f32 0.0, %v1655
      %v1657 = vpop.f32.mrb[0].mxu0
      %v1658 = vadd.f32 0.0, %v1657
      %1659 = vdwg.mxu0
      %1660 = vmatprep.subr.mxu0 %v1198
      %1661 = vmatpush1.msra.mxu0 %v1197
      %1662 = vmatprep.subr.mxu0 %v1206
      %1663 = vmatpush1.msra.mxu0 %v1205
      %1664 = vmatprep.subr.mxu0 %v1214
      %1665 = vmatpush1.msra.mxu0 %v1213
      %1666 = vmatprep.subr.mxu0 %v1222
      %1667 = vmatpush1.msra.mxu0 %v1221
      %1668 = vmatprep.subr.mxu0 %v1230
      %1669 = vmatpush1.msra.mxu0 %v1229
      %1670 = vmatprep.subr.mxu0 %v1238
      %1671 = vmatpush1.msra.mxu0 %v1237
      %1672 = vmatprep.subr.mxu0 %v1246
      %1673 = vmatpush1.msra.mxu0 %v1245
      %1674 = vmatprep.subr.mxu0 %v1254
      %1675 = vmatpush1.msra.mxu0 %v1253
      %1676 = vmatprep.subr.mxu0 %v1262
      %1677 = vmatpush1.msra.mxu0 %v1261
      %1678 = vmatprep.subr.mxu0 %v1270
      %1679 = vmatpush1.msra.mxu0 %v1269
      %1680 = vmatprep.subr.mxu0 %v1278
      %1681 = vmatpush1.msra.mxu0 %v1277
      %1682 = vmatprep.subr.mxu0 %v1286
      %1683 = vmatpush1.msra.mxu0 %v1285
      %1684 = vmatprep.subr.mxu0 %v1294
      %1685 = vmatpush1.msra.mxu0 %v1293
      %1686 = vmatprep.subr.mxu0 %v1302
      %1687 = vmatpush1.msra.mxu0 %v1301
      %1688 = vmatprep.subr.mxu0 %v1310
      %1689 = vmatpush1.msra.mxu0 %v1309
      %1690 = vmatprep.subr.mxu0 %v1318
      %1691 = vmatpush1.msra.mxu0 %v1317
      %1692 = vmatprep.subr.mxu0 %v1326
      %1693 = vmatpush1.msra.mxu0 %v1325
      %1694 = vmatprep.subr.mxu0 %v1334
      %1695 = vmatpush1.msra.mxu0 %v1333
      %1696 = vmatprep.subr.mxu0 %v1342
      %1697 = vmatpush1.msra.mxu0 %v1341
      %1698 = vmatprep.subr.mxu0 %v1350
      %1699 = vmatpush1.msra.mxu0 %v1349
      %1700 = vmatprep.subr.mxu0 %v1358
      %1701 = vmatpush1.msra.mxu0 %v1357
      %1702 = vmatprep.subr.mxu0 %v1366
      %1703 = vmatpush1.msra.mxu0 %v1365
      %1704 = vmatprep.subr.mxu0 %v1374
      %1705 = vmatpush1.msra.mxu0 %v1373
      %1706 = vmatprep.subr.mxu0 %v1382
      %1707 = vmatpush1.msra.mxu0 %v1381
      %1708 = vmatprep.subr.mxu0 %v1390
      %1709 = vmatpush1.msra.mxu0 %v1389
      %1710 = vmatprep.subr.mxu0 %v1398
      %1711 = vmatpush1.msra.mxu0 %v1397
      %1712 = vmatprep.subr.mxu0 %v1406
      %1713 = vmatpush1.msra.mxu0 %v1405
      %1714 = vmatprep.subr.mxu0 %v1414
      %1715 = vmatpush1.msra.mxu0 %v1413
      %1716 = vmatprep.subr.mxu0 %v1422
      %1717 = vmatpush1.msra.mxu0 %v1421
      %1718 = vmatprep.subr.mxu0 %v1430
      %1719 = vmatpush1.msra.mxu0 %v1429
      %1720 = vmatprep.subr.mxu0 %v1438
      %1721 = vmatpush1.msra.mxu0 %v1437
      %1722 = vmatprep.subr.mxu0 %v1446
      %1723 = vmatpush1.msra.mxu0 %v1445
      %1724 = vmatprep.mubr.f32.mxu0 %v723
      %1725 = vmatmul.mubr.f32.gmra.mrb[0].mxu0 %v722
      %v1726 = vpop.f32.mrb[0].mxu0
      %v1727 = vadd.f32 0.0, %v1726
      %v1728 = vpop.f32.mrb[0].mxu0
      %v1729 = vadd.f32 0.0, %v1728
      %1730 = vdwg.mxu0
      %1731 = vrot.lane.b32.xlu0 %v839, 17
      %v1732 = vpop.permute.xlu0 %1731
      %1733 = vrot.lane.b32.xlu0 %v841, 17
      %v1734 = vpop.permute.xlu0 %1733
      %v1735 = vlaneseq
      %v1736 = vand.u32 %v1735, 127
      %vm1737 = vcmp.lt.s32.totalorder %v1736, 17
      %v1738 = vsel %vm1737, %v1732, %v1734
      %v1739 = vsel %vm1737, %v1734, %v1732
      %v1740 = vlaneseq
      %v1741 = vshrl.u32 %v1740, 7
      %v1742 = vsub.s32 0, %v1741
      %v1743 = vrot.slane %v732, %v1742
      %v1744 = vlaneseq
      %v1745 = vshrl.u32 %v1744, 7
      %v1746 = vsub.s32 0, %v1745
      %v1747 = vrot.slane %v733, %v1746
      %v1748 = vmul.f32 %v1739, %v1743
      %v1749 = vmul.f32 %v1738, %v1747
      %1750 = vrot.lane.b32.xlu0 %v839, 16
      %v1751 = vpop.permute.xlu0 %1750
      %1752 = vrot.lane.b32.xlu0 %v841, 16
      %v1753 = vpop.permute.xlu0 %1752
      %vm1754 = vcmp.lt.s32.totalorder %v1736, 16
      %v1755 = vsel %vm1754, %v1751, %v1753
      %v1756 = vsel %vm1754, %v1753, %v1751
      %v1757 = vlaneseq
      %v1758 = vshrl.u32 %v1757, 7
      %v1759 = vsub.s32 1, %v1758
      %v1760 = vrot.slane %v732, %v1759
      %v1761 = vlaneseq
      %v1762 = vshrl.u32 %v1761, 7
      %v1763 = vsub.s32 1, %v1762
      %v1764 = vrot.slane %v733, %v1763
      %v1765 = vmul.f32 %v1756, %v1760
      %v1766 = vmul.f32 %v1755, %v1764
      %1767 = vrot.lane.b32.xlu0 %v839, 15
      %v1768 = vpop.permute.xlu0 %1767
      %1769 = vrot.lane.b32.xlu0 %v841, 15
      %v1770 = vpop.permute.xlu0 %1769
      %vm1771 = vcmp.lt.s32.totalorder %v1736, 15
      %v1772 = vsel %vm1771, %v1768, %v1770
      %v1773 = vsel %vm1771, %v1770, %v1768
      %v1774 = vlaneseq
      %v1775 = vshrl.u32 %v1774, 7
      %v1776 = vsub.s32 2, %v1775
      %v1777 = vrot.slane %v732, %v1776
      %v1778 = vlaneseq
      %v1779 = vshrl.u32 %v1778, 7
      %v1780 = vsub.s32 2, %v1779
      %v1781 = vrot.slane %v733, %v1780
      %v1782 = vmul.f32 %v1773, %v1777
      %v1783 = vmul.f32 %v1772, %v1781
      %1784 = vrot.lane.b32.xlu0 %v839, 1
      %v1785 = vpop.permute.xlu0 %1784
      %1786 = vrot.lane.b32.xlu0 %v841, 1
      %v1787 = vpop.permute.xlu0 %1786
      %vm1788 = vcmp.lt.s32.totalorder %v1736, 1
      %v1789 = vsel %vm1788, %v1785, %v1787
      %v1790 = vsel %vm1788, %v1787, %v1785
      %v1791 = vlaneseq
      %v1792 = vshrl.u32 %v1791, 7
      %v1793 = vsub.s32 3, %v1792
      %v1794 = vrot.slane %v732, %v1793
      %v1795 = vlaneseq
      %v1796 = vshrl.u32 %v1795, 7
      %v1797 = vsub.s32 3, %v1796
      %v1798 = vrot.slane %v733, %v1797
      %v1799 = vmul.f32 %v1790, %v1794
      %v1800 = vmul.f32 %v1789, %v1798
      %1801 = vrot.lane.b32.xlu0 %v839, 127
      %v1802 = vpop.permute.xlu0 %1801
      %1803 = vrot.lane.b32.xlu0 %v841, 127
      %v1804 = vpop.permute.xlu0 %1803
      %vm1805 = vcmp.lt.s32.totalorder %v1736, 127
      %v1806 = vsel %vm1805, %v1802, %v1804
      %v1807 = vsel %vm1805, %v1804, %v1802
      %v1808 = vlaneseq
      %v1809 = vshrl.u32 %v1808, 7
      %v1810 = vsub.s32 5, %v1809
      %v1811 = vrot.slane %v732, %v1810
      %v1812 = vlaneseq
      %v1813 = vshrl.u32 %v1812, 7
      %v1814 = vsub.s32 5, %v1813
      %v1815 = vrot.slane %v733, %v1814
      %v1816 = vmul.f32 %v1806, %v1811
      %v1817 = vmul.f32 %v1807, %v1815
      %1818 = vrot.lane.b32.xlu0 %v839, 113
      %v1819 = vpop.permute.xlu0 %1818
      %1820 = vrot.lane.b32.xlu0 %v841, 113
      %v1821 = vpop.permute.xlu0 %1820
      %vm1822 = vcmp.lt.s32.totalorder %v1736, 113
      %v1823 = vsel %vm1822, %v1819, %v1821
      %v1824 = vsel %vm1822, %v1821, %v1819
      %v1825 = vlaneseq
      %v1826 = vshrl.u32 %v1825, 7
      %v1827 = vsub.s32 6, %v1826
      %v1828 = vrot.slane %v732, %v1827
      %v1829 = vlaneseq
      %v1830 = vshrl.u32 %v1829, 7
      %v1831 = vsub.s32 6, %v1830
      %v1832 = vrot.slane %v733, %v1831
      %v1833 = vmul.f32 %v1823, %v1828
      %v1834 = vmul.f32 %v1824, %v1832
      %1835 = vrot.lane.b32.xlu0 %v839, 112
      %v1836 = vpop.permute.xlu0 %1835
      %1837 = vrot.lane.b32.xlu0 %v841, 112
      %v1838 = vpop.permute.xlu0 %1837
      %vm1839 = vcmp.lt.s32.totalorder %v1736, 112
      %v1840 = vsel %vm1839, %v1836, %v1838
      %v1841 = vsel %vm1839, %v1838, %v1836
      %v1842 = vlaneseq
      %v1843 = vshrl.u32 %v1842, 7
      %v1844 = vsub.s32 7, %v1843
      %v1845 = vrot.slane %v732, %v1844
      %v1846 = vlaneseq
      %v1847 = vshrl.u32 %v1846, 7
      %v1848 = vsub.s32 7, %v1847
      %v1849 = vrot.slane %v733, %v1848
      %v1850 = vmul.f32 %v1840, %v1845
      %v1851 = vmul.f32 %v1841, %v1849
      %1852 = vrot.lane.b32.xlu0 %v839, 111
      %v1853 = vpop.permute.xlu0 %1852
      %1854 = vrot.lane.b32.xlu0 %v841, 111
      %v1855 = vpop.permute.xlu0 %1854
      %vm1856 = vcmp.lt.s32.totalorder %v1736, 111
      %v1857 = vsel %vm1856, %v1853, %v1855
      %v1858 = vsel %vm1856, %v1855, %v1853
      %v1859 = vlaneseq
      %v1860 = vshrl.u32 %v1859, 7
      %v1861 = vsub.s32 0, %v1860
      %v1862 = vrot.slane %v734, %v1861
      %v1863 = vlaneseq
      %v1864 = vshrl.u32 %v1863, 7
      %v1865 = vsub.s32 0, %v1864
      %v1866 = vrot.slane %v735, %v1865
      %v1867 = vmul.f32 %v1857, %v1862
      %v1868 = vmul.f32 %v1858, %v1866
      %v1869 = vld [vmem:[%s8] sm:$0xff]
      %v1870 = vld [vmem:[%s8 + $0x8] sm:$0xff]
      %v1871 = vld [vmem:[%s9] sm:$0xff]
      %v1872 = vld [vmem:[%s9 + $0x8] sm:$0xff]
      %1874 = vset.pattern.permute.xlu0 0
      %1875 = vperm.xlu0 %1874, %v1871
      %v1876 = vpop.permute.xlu0 %1875
      %1879 = vset.pattern.permute.xlu0 0
      %1880 = vperm.xlu0 %1879, %v1872
      %v1881 = vpop.permute.xlu0 %1880
      %vm1883 = vcmask 588800
      %v1885 = vsel %vm1883, %v1869, 0
      %v1888 = vsel %vm1883, %v1870, 0
      %1890 = vmatprep.subr.mxu0 %v1749
      %1891 = vmatpush1.msra.mxu0 %v1748
      %1892 = vmatprep.subr.mxu0 %v1766
      %1893 = vmatpush1.msra.mxu0 %v1765
      %1894 = vmatprep.subr.mxu0 %v1783
      %1895 = vmatpush1.msra.mxu0 %v1782
      %1896 = vmatprep.subr.mxu0 %v1800
      %1897 = vmatpush1.msra.mxu0 %v1799
      %1898 = vmatprep.subr.mxu0 %v841
      %1899 = vmatpush1.msra.mxu0 %v839
      %1900 = vmatprep.subr.mxu0 %v1817
      %1901 = vmatpush1.msra.mxu0 %v1816
      %1902 = vmatprep.subr.mxu0 %v1834
      %1903 = vmatpush1.msra.mxu0 %v1833
      %1904 = vmatprep.subr.mxu0 %v1851
      %1905 = vmatpush1.msra.mxu0 %v1850
      %1906 = vmatprep.subr.mxu0 %v1868
      %1907 = vmatpush1.msra.mxu0 %v1867
      %1908 = vmatprep.subr.mxu0 0.0
      %1909 = vmatpush1.msra.mxu0 0.0
      %1910 = vmatprep.subr.mxu0 0.0
      %1911 = vmatpush1.msra.mxu0 0.0
      %1912 = vmatprep.subr.mxu0 0.0
      %1913 = vmatpush1.msra.mxu0 0.0
      %1914 = vmatprep.subr.mxu0 0.0
      %1915 = vmatpush1.msra.mxu0 0.0
      %1916 = vmatprep.subr.mxu0 0.0
      %1917 = vmatpush1.msra.mxu0 0.0
      %1918 = vmatprep.subr.mxu0 0.0
      %1919 = vmatpush1.msra.mxu0 0.0
      %1920 = vmatprep.subr.mxu0 0.0
      %1921 = vmatpush1.msra.mxu0 0.0
      %1922 = vmatprep.subr.mxu0 0.0
      %1923 = vmatpush1.msra.mxu0 0.0
      %1924 = vmatprep.subr.mxu0 0.0
      %1925 = vmatpush1.msra.mxu0 0.0
      %1926 = vmatprep.subr.mxu0 0.0
      %1927 = vmatpush1.msra.mxu0 0.0
      %1928 = vmatprep.subr.mxu0 0.0
      %1929 = vmatpush1.msra.mxu0 0.0
      %1930 = vmatprep.subr.mxu0 0.0
      %1931 = vmatpush1.msra.mxu0 0.0
      %1932 = vmatprep.subr.mxu0 0.0
      %1933 = vmatpush1.msra.mxu0 0.0
      %1934 = vmatprep.subr.mxu0 0.0
      %1935 = vmatpush1.msra.mxu0 0.0
      %1936 = vmatprep.subr.mxu0 0.0
      %1937 = vmatpush1.msra.mxu0 0.0
      %1938 = vmatprep.subr.mxu0 0.0
      %1939 = vmatpush1.msra.mxu0 0.0
      %1940 = vmatprep.subr.mxu0 0.0
      %1941 = vmatpush1.msra.mxu0 0.0
      %1942 = vmatprep.subr.mxu0 0.0
      %1943 = vmatpush1.msra.mxu0 0.0
      %1944 = vmatprep.subr.mxu0 0.0
      %1945 = vmatpush1.msra.mxu0 0.0
      %1946 = vmatprep.subr.mxu0 0.0
      %1947 = vmatpush1.msra.mxu0 0.0
      %1948 = vmatprep.subr.mxu0 0.0
      %1949 = vmatpush1.msra.mxu0 0.0
      %1950 = vmatprep.subr.mxu0 0.0
      %1951 = vmatpush1.msra.mxu0 0.0
      %1952 = vmatprep.subr.mxu0 0.0
      %1953 = vmatpush1.msra.mxu0 0.0
      %1954 = vmatprep.mubr.f32.mxu0 0.0
      %1955 = vmatmul.mubr.f32.gmra.mrb[0].mxu0 %v1885
      %v1956 = vpop.f32.mrb[0].mxu0
      %v1957 = vadd.f32 %v1876, %v1956
      %v1958 = vpop.f32.mrb[0].mxu0
      %v1959 = vadd.f32 %v1876, %v1958
      %1960 = vmatprep.mubr.f32.mxu0 0.0
      %1961 = vmatmul.mubr.f32.gmra.mrb[0].mxu0 %v1888
      %v1962 = vpop.f32.mrb[0].mxu0
      %v1963 = vadd.f32 %v1881, %v1962
      %v1964 = vpop.f32.mrb[0].mxu0
      %v1965 = vadd.f32 %v1881, %v1964
      %1966 = vdwg.mxu0
      %v1967 = vmul.f32 %v1957, %v722
      %v1968 = vmul.f32 %v1959, %v723
      %1969 = vrot.lane.b32.xlu0 %v974, 33
      %v1970 = vpop.permute.xlu0 %1969
      %1971 = vrot.lane.b32.xlu0 %v976, 33
      %v1972 = vpop.permute.xlu0 %1971
      %1973 = vrot.lane.b32.xlu0 %v1045, 33
      %v1974 = vpop.permute.xlu0 %1973
      %1975 = vrot.lane.b32.xlu0 %v1047, 33
      %v1976 = vpop.permute.xlu0 %1975
      %1977 = vrot.lane.b32.xlu0 %v1116, 33
      %v1978 = vpop.permute.xlu0 %1977
      %1979 = vrot.lane.b32.xlu0 %v1118, 33
      %v1980 = vpop.permute.xlu0 %1979
      %1981 = vrot.lane.b32.xlu0 %v1187, 33
      %v1982 = vpop.permute.xlu0 %1981
      %1983 = vrot.lane.b32.xlu0 %v1189, 33
      %v1984 = vpop.permute.xlu0 %1983
      %vm1985 = vcmp.lt.s32.totalorder %v1736, 33
      %v1986 = vsel %vm1985, %v1982, %v1984
      %v1987 = vsel %vm1985, %v1980, %v1982
      %v1988 = vsel %vm1985, %v1978, %v1980
      %v1989 = vsel %vm1985, %v1976, %v1978
      %v1990 = vsel %vm1985, %v1974, %v1976
      %v1991 = vsel %vm1985, %v1972, %v1974
      %v1992 = vsel %vm1985, %v1970, %v1972
      %v1993 = vsel %vm1985, %v1984, %v1970
      %v1994 = vlaneseq
      %v1995 = vshrl.u32 %v1994, 7
      %v1996 = vsub.s32 0, %v1995
      %v1997 = vrot.slane %v736, %v1996
      %v1998 = vlaneseq
      %v1999 = vshrl.u32 %v1998, 7
      %v2000 = vsub.s32 0, %v1999
      %v2001 = vrot.slane %v737, %v2000
      %v2002 = vlaneseq
      %v2003 = vshrl.u32 %v2002, 7
      %v2004 = vsub.s32 0, %v2003
      %v2005 = vrot.slane %v738, %v2004
      %v2006 = vlaneseq
      %v2007 = vshrl.u32 %v2006, 7
      %v2008 = vsub.s32 0, %v2007
      %v2009 = vrot.slane %v739, %v2008
      %v2010 = vlaneseq
      %v2011 = vshrl.u32 %v2010, 7
      %v2012 = vsub.s32 0, %v2011
      %v2013 = vrot.slane %v740, %v2012
      %v2014 = vlaneseq
      %v2015 = vshrl.u32 %v2014, 7
      %v2016 = vsub.s32 0, %v2015
      %v2017 = vrot.slane %v741, %v2016
      %v2018 = vlaneseq
      %v2019 = vshrl.u32 %v2018, 7
      %v2020 = vsub.s32 0, %v2019
      %v2021 = vrot.slane %v742, %v2020
      %v2022 = vlaneseq
      %v2023 = vshrl.u32 %v2022, 7
      %v2024 = vsub.s32 0, %v2023
      %v2025 = vrot.slane %v743, %v2024
      %v2026 = vmul.f32 %v1993, %v1997
      %v2027 = vmul.f32 %v1992, %v2001
      %v2028 = vmul.f32 %v1991, %v2005
      %v2029 = vmul.f32 %v1990, %v2009
      %v2030 = vmul.f32 %v1989, %v2013
      %v2031 = vmul.f32 %v1988, %v2017
      %v2032 = vmul.f32 %v1987, %v2021
      %v2033 = vmul.f32 %v1986, %v2025
      %2034 = vrot.lane.b32.xlu0 %v974, 32
      %v2035 = vpop.permute.xlu0 %2034
      %2036 = vrot.lane.b32.xlu0 %v976, 32
      %v2037 = vpop.permute.xlu0 %2036
      %2038 = vrot.lane.b32.xlu0 %v1045, 32
      %v2039 = vpop.permute.xlu0 %2038
      %2040 = vrot.lane.b32.xlu0 %v1047, 32
      %v2041 = vpop.permute.xlu0 %2040
      %2042 = vrot.lane.b32.xlu0 %v1116, 32
      %v2043 = vpop.permute.xlu0 %2042
      %2044 = vrot.lane.b32.xlu0 %v1118, 32
      %v2045 = vpop.permute.xlu0 %2044
      %2046 = vrot.lane.b32.xlu0 %v1187, 32
      %v2047 = vpop.permute.xlu0 %2046
      %2048 = vrot.lane.b32.xlu0 %v1189, 32
      %v2049 = vpop.permute.xlu0 %2048
      %vm2050 = vcmp.lt.s32.totalorder %v1736, 32
      %v2051 = vsel %vm2050, %v2047, %v2049
      %v2052 = vsel %vm2050, %v2045, %v2047
      %v2053 = vsel %vm2050, %v2043, %v2045
      %v2054 = vsel %vm2050, %v2041, %v2043
      %v2055 = vsel %vm2050, %v2039, %v2041
      %v2056 = vsel %vm2050, %v2037, %v2039
      %v2057 = vsel %vm2050, %v2035, %v2037
      %v2058 = vsel %vm2050, %v2049, %v2035
      %v2059 = vlaneseq
      %v2060 = vshrl.u32 %v2059, 7
      %v2061 = vsub.s32 1, %v2060
      %v2062 = vrot.slane %v736, %v2061
      %v2063 = vlaneseq
      %v2064 = vshrl.u32 %v2063, 7
      %v2065 = vsub.s32 1, %v2064
      %v2066 = vrot.slane %v737, %v2065
      %v2067 = vlaneseq
      %v2068 = vshrl.u32 %v2067, 7
      %v2069 = vsub.s32 1, %v2068
      %v2070 = vrot.slane %v738, %v2069
      %v2071 = vlaneseq
      %v2072 = vshrl.u32 %v2071, 7
      %v2073 = vsub.s32 1, %v2072
      %v2074 = vrot.slane %v739, %v2073
      %v2075 = vlaneseq
      %v2076 = vshrl.u32 %v2075, 7
      %v2077 = vsub.s32 1, %v2076
      %v2078 = vrot.slane %v740, %v2077
      %v2079 = vlaneseq
      %v2080 = vshrl.u32 %v2079, 7
      %v2081 = vsub.s32 1, %v2080
      %v2082 = vrot.slane %v741, %v2081
      %v2083 = vlaneseq
      %v2084 = vshrl.u32 %v2083, 7
      %v2085 = vsub.s32 1, %v2084
      %v2086 = vrot.slane %v742, %v2085
      %v2087 = vlaneseq
      %v2088 = vshrl.u32 %v2087, 7
      %v2089 = vsub.s32 1, %v2088
      %v2090 = vrot.slane %v743, %v2089
      %v2091 = vmul.f32 %v2058, %v2062
      %v2092 = vmul.f32 %v2057, %v2066
      %v2093 = vmul.f32 %v2056, %v2070
      %v2094 = vmul.f32 %v2055, %v2074
      %v2095 = vmul.f32 %v2054, %v2078
      %v2096 = vmul.f32 %v2053, %v2082
      %v2097 = vmul.f32 %v2052, %v2086
      %v2098 = vmul.f32 %v2051, %v2090
      %2099 = vrot.lane.b32.xlu0 %v974, 31
      %v2100 = vpop.permute.xlu0 %2099
      %2101 = vrot.lane.b32.xlu0 %v976, 31
      %v2102 = vpop.permute.xlu0 %2101
      %2103 = vrot.lane.b32.xlu0 %v1045, 31
      %v2104 = vpop.permute.xlu0 %2103
      %2105 = vrot.lane.b32.xlu0 %v1047, 31
      %v2106 = vpop.permute.xlu0 %2105
      %2107 = vrot.lane.b32.xlu0 %v1116, 31
      %v2108 = vpop.permute.xlu0 %2107
      %2109 = vrot.lane.b32.xlu0 %v1118, 31
      %v2110 = vpop.permute.xlu0 %2109
      %2111 = vrot.lane.b32.xlu0 %v1187, 31
      %v2112 = vpop.permute.xlu0 %2111
      %2113 = vrot.lane.b32.xlu0 %v1189, 31
      %v2114 = vpop.permute.xlu0 %2113
      %vm2115 = vcmp.lt.s32.totalorder %v1736, 31
      %v2116 = vsel %vm2115, %v2112, %v2114
      %v2117 = vsel %vm2115, %v2110, %v2112
      %v2118 = vsel %vm2115, %v2108, %v2110
      %v2119 = vsel %vm2115, %v2106, %v2108
      %v2120 = vsel %vm2115, %v2104, %v2106
      %v2121 = vsel %vm2115, %v2102, %v2104
      %v2122 = vsel %vm2115, %v2100, %v2102
      %v2123 = vsel %vm2115, %v2114, %v2100
      %v2124 = vlaneseq
      %v2125 = vshrl.u32 %v2124, 7
      %v2126 = vsub.s32 2, %v2125
      %v2127 = vrot.slane %v736, %v2126
      %v2128 = vlaneseq
      %v2129 = vshrl.u32 %v2128, 7
      %v2130 = vsub.s32 2, %v2129
      %v2131 = vrot.slane %v737, %v2130
      %v2132 = vlaneseq
      %v2133 = vshrl.u32 %v2132, 7
      %v2134 = vsub.s32 2, %v2133
      %v2135 = vrot.slane %v738, %v2134
      %v2136 = vlaneseq
      %v2137 = vshrl.u32 %v2136, 7
      %v2138 = vsub.s32 2, %v2137
      %v2139 = vrot.slane %v739, %v2138
      %v2140 = vlaneseq
      %v2141 = vshrl.u32 %v2140, 7
      %v2142 = vsub.s32 2, %v2141
      %v2143 = vrot.slane %v740, %v2142
      %v2144 = vlaneseq
      %v2145 = vshrl.u32 %v2144, 7
      %v2146 = vsub.s32 2, %v2145
      %v2147 = vrot.slane %v741, %v2146
      %v2148 = vlaneseq
      %v2149 = vshrl.u32 %v2148, 7
      %v2150 = vsub.s32 2, %v2149
      %v2151 = vrot.slane %v742, %v2150
      %v2152 = vlaneseq
      %v2153 = vshrl.u32 %v2152, 7
      %v2154 = vsub.s32 2, %v2153
      %v2155 = vrot.slane %v743, %v2154
      %v2156 = vmul.f32 %v2123, %v2127
      %v2157 = vmul.f32 %v2122, %v2131
      %v2158 = vmul.f32 %v2121, %v2135
      %v2159 = vmul.f32 %v2120, %v2139
      %v2160 = vmul.f32 %v2119, %v2143
      %v2161 = vmul.f32 %v2118, %v2147
      %v2162 = vmul.f32 %v2117, %v2151
      %v2163 = vmul.f32 %v2116, %v2155
      %2164 = vrot.lane.b32.xlu0 %v974, 1
      %v2165 = vpop.permute.xlu0 %2164
      %2166 = vrot.lane.b32.xlu0 %v976, 1
      %v2167 = vpop.permute.xlu0 %2166
      %2168 = vrot.lane.b32.xlu0 %v1045, 1
      %v2169 = vpop.permute.xlu0 %2168
      %2170 = vrot.lane.b32.xlu0 %v1047, 1
      %v2171 = vpop.permute.xlu0 %2170
      %2172 = vrot.lane.b32.xlu0 %v1116, 1
      %v2173 = vpop.permute.xlu0 %2172
      %2174 = vrot.lane.b32.xlu0 %v1118, 1
      %v2175 = vpop.permute.xlu0 %2174
      %2176 = vrot.lane.b32.xlu0 %v1187, 1
      %v2177 = vpop.permute.xlu0 %2176
      %2178 = vrot.lane.b32.xlu0 %v1189, 1
      %v2179 = vpop.permute.xlu0 %2178
      %v2180 = vsel %vm1788, %v2177, %v2179
      %v2181 = vsel %vm1788, %v2175, %v2177
      %v2182 = vsel %vm1788, %v2173, %v2175
      %v2183 = vsel %vm1788, %v2171, %v2173
      %v2184 = vsel %vm1788, %v2169, %v2171
      %v2185 = vsel %vm1788, %v2167, %v2169
      %v2186 = vsel %vm1788, %v2165, %v2167
      %v2187 = vsel %vm1788, %v2179, %v2165
      %v2188 = vlaneseq
      %v2189 = vshrl.u32 %v2188, 7
      %v2190 = vsub.s32 3, %v2189
      %v2191 = vrot.slane %v736, %v2190
      %v2192 = vlaneseq
      %v2193 = vshrl.u32 %v2192, 7
      %v2194 = vsub.s32 3, %v2193
      %v2195 = vrot.slane %v737, %v2194
      %v2196 = vlaneseq
      %v2197 = vshrl.u32 %v2196, 7
      %v2198 = vsub.s32 3, %v2197
      %v2199 = vrot.slane %v738, %v2198
      %v2200 = vlaneseq
      %v2201 = vshrl.u32 %v2200, 7
      %v2202 = vsub.s32 3, %v2201
      %v2203 = vrot.slane %v739, %v2202
      %v2204 = vlaneseq
      %v2205 = vshrl.u32 %v2204, 7
      %v2206 = vsub.s32 3, %v2205
      %v2207 = vrot.slane %v740, %v2206
      %v2208 = vlaneseq
      %v2209 = vshrl.u32 %v2208, 7
      %v2210 = vsub.s32 3, %v2209
      %v2211 = vrot.slane %v741, %v2210
      %v2212 = vlaneseq
      %v2213 = vshrl.u32 %v2212, 7
      %v2214 = vsub.s32 3, %v2213
      %v2215 = vrot.slane %v742, %v2214
      %v2216 = vlaneseq
      %v2217 = vshrl.u32 %v2216, 7
      %v2218 = vsub.s32 3, %v2217
      %v2219 = vrot.slane %v743, %v2218
      %v2220 = vmul.f32 %v2187, %v2191
      %v2221 = vmul.f32 %v2186, %v2195
      %v2222 = vmul.f32 %v2185, %v2199
      %v2223 = vmul.f32 %v2184, %v2203
      %v2224 = vmul.f32 %v2183, %v2207
      %v2225 = vmul.f32 %v2182, %v2211
      %v2226 = vmul.f32 %v2181, %v2215
      %v2227 = vmul.f32 %v2180, %v2219
      %2228 = vrot.lane.b32.xlu0 %v974, 127
      %v2229 = vpop.permute.xlu0 %2228
      %2230 = vrot.lane.b32.xlu0 %v976, 127
      %v2231 = vpop.permute.xlu0 %2230
      %2232 = vrot.lane.b32.xlu0 %v1045, 127
      %v2233 = vpop.permute.xlu0 %2232
      %2234 = vrot.lane.b32.xlu0 %v1047, 127
      %v2235 = vpop.permute.xlu0 %2234
      %2236 = vrot.lane.b32.xlu0 %v1116, 127
      %v2237 = vpop.permute.xlu0 %2236
      %2238 = vrot.lane.b32.xlu0 %v1118, 127
      %v2239 = vpop.permute.xlu0 %2238
      %2240 = vrot.lane.b32.xlu0 %v1187, 127
      %v2241 = vpop.permute.xlu0 %2240
      %2242 = vrot.lane.b32.xlu0 %v1189, 127
      %v2243 = vpop.permute.xlu0 %2242
      %v2244 = vsel %vm1805, %v2241, %v2243
      %v2245 = vsel %vm1805, %v2239, %v2241
      %v2246 = vsel %vm1805, %v2237, %v2239
      %v2247 = vsel %vm1805, %v2235, %v2237
      %v2248 = vsel %vm1805, %v2233, %v2235
      %v2249 = vsel %vm1805, %v2231, %v2233
      %v2250 = vsel %vm1805, %v2229, %v2231
      %v2251 = vsel %vm1805, %v2243, %v2229
      %v2252 = vlaneseq
      %v2253 = vshrl.u32 %v2252, 7
      %v2254 = vsub.s32 5, %v2253
      %v2255 = vrot.slane %v736, %v2254
      %v2256 = vlaneseq
      %v2257 = vshrl.u32 %v2256, 7
      %v2258 = vsub.s32 5, %v2257
      %v2259 = vrot.slane %v737, %v2258
      %v2260 = vlaneseq
      %v2261 = vshrl.u32 %v2260, 7
      %v2262 = vsub.s32 5, %v2261
      %v2263 = vrot.slane %v738, %v2262
      %v2264 = vlaneseq
      %v2265 = vshrl.u32 %v2264, 7
      %v2266 = vsub.s32 5, %v2265
      %v2267 = vrot.slane %v739, %v2266
      %v2268 = vlaneseq
      %v2269 = vshrl.u32 %v2268, 7
      %v2270 = vsub.s32 5, %v2269
      %v2271 = vrot.slane %v740, %v2270
      %v2272 = vlaneseq
      %v2273 = vshrl.u32 %v2272, 7
      %v2274 = vsub.s32 5, %v2273
      %v2275 = vrot.slane %v741, %v2274
      %v2276 = vlaneseq
      %v2277 = vshrl.u32 %v2276, 7
      %v2278 = vsub.s32 5, %v2277
      %v2279 = vrot.slane %v742, %v2278
      %v2280 = vlaneseq
      %v2281 = vshrl.u32 %v2280, 7
      %v2282 = vsub.s32 5, %v2281
      %v2283 = vrot.slane %v743, %v2282
      %v2284 = vmul.f32 %v2250, %v2255
      %v2285 = vmul.f32 %v2249, %v2259
      %v2286 = vmul.f32 %v2248, %v2263
      %v2287 = vmul.f32 %v2247, %v2267
      %v2288 = vmul.f32 %v2246, %v2271
      %v2289 = vmul.f32 %v2245, %v2275
      %v2290 = vmul.f32 %v2244, %v2279
      %v2291 = vmul.f32 %v2251, %v2283
      %2292 = vrot.lane.b32.xlu0 %v974, 97
      %v2293 = vpop.permute.xlu0 %2292
      %2294 = vrot.lane.b32.xlu0 %v976, 97
      %v2295 = vpop.permute.xlu0 %2294
      %2296 = vrot.lane.b32.xlu0 %v1045, 97
      %v2297 = vpop.permute.xlu0 %2296
      %2298 = vrot.lane.b32.xlu0 %v1047, 97
      %v2299 = vpop.permute.xlu0 %2298
      %2300 = vrot.lane.b32.xlu0 %v1116, 97
      %v2301 = vpop.permute.xlu0 %2300
      %2302 = vrot.lane.b32.xlu0 %v1118, 97
      %v2303 = vpop.permute.xlu0 %2302
      %2304 = vrot.lane.b32.xlu0 %v1187, 97
      %v2305 = vpop.permute.xlu0 %2304
      %2306 = vrot.lane.b32.xlu0 %v1189, 97
      %v2307 = vpop.permute.xlu0 %2306
      %vm2308 = vcmp.lt.s32.totalorder %v1736, 97
      %v2309 = vsel %vm2308, %v2305, %v2307
      %v2310 = vsel %vm2308, %v2303, %v2305
      %v2311 = vsel %vm2308, %v2301, %v2303
      %v2312 = vsel %vm2308, %v2299, %v2301
      %v2313 = vsel %vm2308, %v2297, %v2299
      %v2314 = vsel %vm2308, %v2295, %v2297
      %v2315 = vsel %vm2308, %v2293, %v2295
      %v2316 = vsel %vm2308, %v2307, %v2293
      %v2317 = vlaneseq
      %v2318 = vshrl.u32 %v2317, 7
      %v2319 = vsub.s32 6, %v2318
      %v2320 = vrot.slane %v736, %v2319
      %v2321 = vlaneseq
      %v2322 = vshrl.u32 %v2321, 7
      %v2323 = vsub.s32 6, %v2322
      %v2324 = vrot.slane %v737, %v2323
      %v2325 = vlaneseq
      %v2326 = vshrl.u32 %v2325, 7
      %v2327 = vsub.s32 6, %v2326
      %v2328 = vrot.slane %v738, %v2327
      %v2329 = vlaneseq
      %v2330 = vshrl.u32 %v2329, 7
      %v2331 = vsub.s32 6, %v2330
      %v2332 = vrot.slane %v739, %v2331
      %v2333 = vlaneseq
      %v2334 = vshrl.u32 %v2333, 7
      %v2335 = vsub.s32 6, %v2334
      %v2336 = vrot.slane %v740, %v2335
      %v2337 = vlaneseq
      %v2338 = vshrl.u32 %v2337, 7
      %v2339 = vsub.s32 6, %v2338
      %v2340 = vrot.slane %v741, %v2339
      %v2341 = vlaneseq
      %v2342 = vshrl.u32 %v2341, 7
      %v2343 = vsub.s32 6, %v2342
      %v2344 = vrot.slane %v742, %v2343
      %v2345 = vlaneseq
      %v2346 = vshrl.u32 %v2345, 7
      %v2347 = vsub.s32 6, %v2346
      %v2348 = vrot.slane %v743, %v2347
      %v2349 = vmul.f32 %v2315, %v2320
      %v2350 = vmul.f32 %v2314, %v2324
      %v2351 = vmul.f32 %v2313, %v2328
      %v2352 = vmul.f32 %v2312, %v2332
      %v2353 = vmul.f32 %v2311, %v2336
      %v2354 = vmul.f32 %v2310, %v2340
      %v2355 = vmul.f32 %v2309, %v2344
      %v2356 = vmul.f32 %v2316, %v2348
      %2357 = vrot.lane.b32.xlu0 %v974, 96
      %v2358 = vpop.permute.xlu0 %2357
      %2359 = vrot.lane.b32.xlu0 %v976, 96
      %v2360 = vpop.permute.xlu0 %2359
      %2361 = vrot.lane.b32.xlu0 %v1045, 96
      %v2362 = vpop.permute.xlu0 %2361
      %2363 = vrot.lane.b32.xlu0 %v1047, 96
      %v2364 = vpop.permute.xlu0 %2363
      %2365 = vrot.lane.b32.xlu0 %v1116, 96
      %v2366 = vpop.permute.xlu0 %2365
      %2367 = vrot.lane.b32.xlu0 %v1118, 96
      %v2368 = vpop.permute.xlu0 %2367
      %2369 = vrot.lane.b32.xlu0 %v1187, 96
      %v2370 = vpop.permute.xlu0 %2369
      %2371 = vrot.lane.b32.xlu0 %v1189, 96
      %v2372 = vpop.permute.xlu0 %2371
      %vm2373 = vcmp.lt.s32.totalorder %v1736, 96
      %v2374 = vsel %vm2373, %v2370, %v2372
      %v2375 = vsel %vm2373, %v2368, %v2370
      %v2376 = vsel %vm2373, %v2366, %v2368
      %v2377 = vsel %vm2373, %v2364, %v2366
      %v2378 = vsel %vm2373, %v2362, %v2364
      %v2379 = vsel %vm2373, %v2360, %v2362
      %v2380 = vsel %vm2373, %v2358, %v2360
      %v2381 = vsel %vm2373, %v2372, %v2358
      %v2382 = vlaneseq
      %v2383 = vshrl.u32 %v2382, 7
      %v2384 = vsub.s32 7, %v2383
      %v2385 = vrot.slane %v736, %v2384
      %v2386 = vlaneseq
      %v2387 = vshrl.u32 %v2386, 7
      %v2388 = vsub.s32 7, %v2387
      %v2389 = vrot.slane %v737, %v2388
      %v2390 = vlaneseq
      %v2391 = vshrl.u32 %v2390, 7
      %v2392 = vsub.s32 7, %v2391
      %v2393 = vrot.slane %v738, %v2392
      %v2394 = vlaneseq
      %v2395 = vshrl.u32 %v2394, 7
      %v2396 = vsub.s32 7, %v2395
      %v2397 = vrot.slane %v739, %v2396
      %v2398 = vlaneseq
      %v2399 = vshrl.u32 %v2398, 7
      %v2400 = vsub.s32 7, %v2399
      %v2401 = vrot.slane %v740, %v2400
      %v2402 = vlaneseq
      %v2403 = vshrl.u32 %v2402, 7
      %v2404 = vsub.s32 7, %v2403
      %v2405 = vrot.slane %v741, %v2404
      %v2406 = vlaneseq
      %v2407 = vshrl.u32 %v2406, 7
      %v2408 = vsub.s32 7, %v2407
      %v2409 = vrot.slane %v742, %v2408
      %v2410 = vlaneseq
      %v2411 = vshrl.u32 %v2410, 7
      %v2412 = vsub.s32 7, %v2411
      %v2413 = vrot.slane %v743, %v2412
      %v2414 = vmul.f32 %v2380, %v2385
      %v2415 = vmul.f32 %v2379, %v2389
      %v2416 = vmul.f32 %v2378, %v2393
      %v2417 = vmul.f32 %v2377, %v2397
      %v2418 = vmul.f32 %v2376, %v2401
      %v2419 = vmul.f32 %v2375, %v2405
      %v2420 = vmul.f32 %v2374, %v2409
      %v2421 = vmul.f32 %v2381, %v2413
      %2422 = vrot.lane.b32.xlu0 %v974, 95
      %v2423 = vpop.permute.xlu0 %2422
      %2424 = vrot.lane.b32.xlu0 %v976, 95
      %v2425 = vpop.permute.xlu0 %2424
      %2426 = vrot.lane.b32.xlu0 %v1045, 95
      %v2427 = vpop.permute.xlu0 %2426
      %2428 = vrot.lane.b32.xlu0 %v1047, 95
      %v2429 = vpop.permute.xlu0 %2428
      %2430 = vrot.lane.b32.xlu0 %v1116, 95
      %v2431 = vpop.permute.xlu0 %2430
      %2432 = vrot.lane.b32.xlu0 %v1118, 95
      %v2433 = vpop.permute.xlu0 %2432
      %2434 = vrot.lane.b32.xlu0 %v1187, 95
      %v2435 = vpop.permute.xlu0 %2434
      %2436 = vrot.lane.b32.xlu0 %v1189, 95
      %v2437 = vpop.permute.xlu0 %2436
      %vm2438 = vcmp.lt.s32.totalorder %v1736, 95
      %v2439 = vsel %vm2438, %v2435, %v2437
      %v2440 = vsel %vm2438, %v2433, %v2435
      %v2441 = vsel %vm2438, %v2431, %v2433
      %v2442 = vsel %vm2438, %v2429, %v2431
      %v2443 = vsel %vm2438, %v2427, %v2429
      %v2444 = vsel %vm2438, %v2425, %v2427
      %v2445 = vsel %vm2438, %v2423, %v2425
      %v2446 = vsel %vm2438, %v2437, %v2423
      %v2447 = vlaneseq
      %v2448 = vshrl.u32 %v2447, 7
      %v2449 = vsub.s32 0, %v2448
      %v2450 = vrot.slane %v744, %v2449
      %v2451 = vlaneseq
      %v2452 = vshrl.u32 %v2451, 7
      %v2453 = vsub.s32 0, %v2452
      %v2454 = vrot.slane %v745, %v2453
      %v2455 = vlaneseq
      %v2456 = vshrl.u32 %v2455, 7
      %v2457 = vsub.s32 0, %v2456
      %v2458 = vrot.slane %v746, %v2457
      %v2459 = vlaneseq
      %v2460 = vshrl.u32 %v2459, 7
      %v2461 = vsub.s32 0, %v2460
      %v2462 = vrot.slane %v747, %v2461
      %v2463 = vlaneseq
      %v2464 = vshrl.u32 %v2463, 7
      %v2465 = vsub.s32 0, %v2464
      %v2466 = vrot.slane %v748, %v2465
      %v2467 = vlaneseq
      %v2468 = vshrl.u32 %v2467, 7
      %v2469 = vsub.s32 0, %v2468
      %v2470 = vrot.slane %v749, %v2469
      %v2471 = vlaneseq
      %v2472 = vshrl.u32 %v2471, 7
      %v2473 = vsub.s32 0, %v2472
      %v2474 = vrot.slane %v750, %v2473
      %v2475 = vlaneseq
      %v2476 = vshrl.u32 %v2475, 7
      %v2477 = vsub.s32 0, %v2476
      %v2478 = vrot.slane %v751, %v2477
      %v2479 = vmul.f32 %v2445, %v2450
      %v2480 = vmul.f32 %v2444, %v2454
      %v2481 = vmul.f32 %v2443, %v2458
      %v2482 = vmul.f32 %v2442, %v2462
      %v2483 = vmul.f32 %v2441, %v2466
      %v2484 = vmul.f32 %v2440, %v2470
      %v2485 = vmul.f32 %v2439, %v2474
      %v2486 = vmul.f32 %v2446, %v2478
      %v2487 = vld [vmem:[%s10] sm:$0xff]
      %v2488 = vld [vmem:[%s11] sm:$0xff]
      %2490 = vset.pattern.permute.xlu0 0
      %2491 = vperm.xlu0 %2490, %v2488
      %v2492 = vpop.permute.xlu0 %2491
      %v2495 = vsel %vm1883, %v2487, 0
      %2497 = vmatprep.subr.mxu0 %v2027
      %2498 = vmatpush1.msra.mxu0 %v2026
      %2499 = vmatprep.subr.mxu0 %v2092
      %2500 = vmatpush1.msra.mxu0 %v2091
      %2501 = vmatprep.subr.mxu0 %v2157
      %2502 = vmatpush1.msra.mxu0 %v2156
      %2503 = vmatprep.subr.mxu0 %v2221
      %2504 = vmatpush1.msra.mxu0 %v2220
      %2505 = vmatprep.subr.mxu0 %v976
      %2506 = vmatpush1.msra.mxu0 %v974
      %2507 = vmatprep.subr.mxu0 %v2285
      %2508 = vmatpush1.msra.mxu0 %v2284
      %2509 = vmatprep.subr.mxu0 %v2350
      %2510 = vmatpush1.msra.mxu0 %v2349
      %2511 = vmatprep.subr.mxu0 %v2415
      %2512 = vmatpush1.msra.mxu0 %v2414
      %2513 = vmatprep.subr.mxu0 %v2480
      %2514 = vmatpush1.msra.mxu0 %v2479
      %2515 = vmatprep.subr.mxu0 0.0
      %2516 = vmatpush1.msra.mxu0 0.0
      %2517 = vmatprep.subr.mxu0 0.0
      %2518 = vmatpush1.msra.mxu0 0.0
      %2519 = vmatprep.subr.mxu0 0.0
      %2520 = vmatpush1.msra.mxu0 0.0
      %2521 = vmatprep.subr.mxu0 0.0
      %2522 = vmatpush1.msra.mxu0 0.0
      %2523 = vmatprep.subr.mxu0 0.0
      %2524 = vmatpush1.msra.mxu0 0.0
      %2525 = vmatprep.subr.mxu0 0.0
      %2526 = vmatpush1.msra.mxu0 0.0
      %2527 = vmatprep.subr.mxu0 0.0
      %2528 = vmatpush1.msra.mxu0 0.0
      %2529 = vmatprep.subr.mxu0 0.0
      %2530 = vmatpush1.msra.mxu0 0.0
      %2531 = vmatprep.subr.mxu0 0.0
      %2532 = vmatpush1.msra.mxu0 0.0
      %2533 = vmatprep.subr.mxu0 0.0
      %2534 = vmatpush1.msra.mxu0 0.0
      %2535 = vmatprep.subr.mxu0 0.0
      %2536 = vmatpush1.msra.mxu0 0.0
      %2537 = vmatprep.subr.mxu0 0.0
      %2538 = vmatpush1.msra.mxu0 0.0
      %2539 = vmatprep.subr.mxu0 0.0
      %2540 = vmatpush1.msra.mxu0 0.0
      %2541 = vmatprep.subr.mxu0 0.0
      %2542 = vmatpush1.msra.mxu0 0.0
      %2543 = vmatprep.subr.mxu0 0.0
      %2544 = vmatpush1.msra.mxu0 0.0
      %2545 = vmatprep.subr.mxu0 0.0
      %2546 = vmatpush1.msra.mxu0 0.0
      %2547 = vmatprep.subr.mxu0 0.0
      %2548 = vmatpush1.msra.mxu0 0.0
      %2549 = vmatprep.subr.mxu0 0.0
      %2550 = vmatpush1.msra.mxu0 0.0
      %2551 = vmatprep.subr.mxu0 0.0
      %2552 = vmatpush1.msra.mxu0 0.0
      %2553 = vmatprep.subr.mxu0 0.0
      %2554 = vmatpush1.msra.mxu0 0.0
      %2555 = vmatprep.subr.mxu0 0.0
      %2556 = vmatpush1.msra.mxu0 0.0
      %2557 = vmatprep.subr.mxu0 0.0
      %2558 = vmatpush1.msra.mxu0 0.0
      %2559 = vmatprep.subr.mxu0 0.0
      %2560 = vmatpush1.msra.mxu0 0.0
      %2561 = vmatprep.mubr.f32.mxu0 0.0
      %2562 = vmatmul.mubr.f32.gmra.mrb[0].mxu0 %v2495
      %v2563 = vpop.f32.mrb[0].mxu0
      %v2564 = vadd.f32 %v2492, %v2563
      %v2565 = vpop.f32.mrb[0].mxu0
      %v2566 = vadd.f32 %v2492, %v2565
      %2567 = vdwg.mxu0
      %2568 = vmatprep.subr.mxu0 %v2029
      %2569 = vmatpush1.msra.mxu0 %v2028
      %2570 = vmatprep.subr.mxu0 %v2094
      %2571 = vmatpush1.msra.mxu0 %v2093
      %2572 = vmatprep.subr.mxu0 %v2159
      %2573 = vmatpush1.msra.mxu0 %v2158
      %2574 = vmatprep.subr.mxu0 %v2223
      %2575 = vmatpush1.msra.mxu0 %v2222
      %2576 = vmatprep.subr.mxu0 %v1047
      %2577 = vmatpush1.msra.mxu0 %v1045
      %2578 = vmatprep.subr.mxu0 %v2287
      %2579 = vmatpush1.msra.mxu0 %v2286
      %2580 = vmatprep.subr.mxu0 %v2352
      %2581 = vmatpush1.msra.mxu0 %v2351
      %2582 = vmatprep.subr.mxu0 %v2417
      %2583 = vmatpush1.msra.mxu0 %v2416
      %2584 = vmatprep.subr.mxu0 %v2482
      %2585 = vmatpush1.msra.mxu0 %v2481
      %2586 = vmatprep.subr.mxu0 0.0
      %2587 = vmatpush1.msra.mxu0 0.0
      %2588 = vmatprep.subr.mxu0 0.0
      %2589 = vmatpush1.msra.mxu0 0.0
      %2590 = vmatprep.subr.mxu0 0.0
      %2591 = vmatpush1.msra.mxu0 0.0
      %2592 = vmatprep.subr.mxu0 0.0
      %2593 = vmatpush1.msra.mxu0 0.0
      %2594 = vmatprep.subr.mxu0 0.0
      %2595 = vmatpush1.msra.mxu0 0.0
      %2596 = vmatprep.subr.mxu0 0.0
      %2597 = vmatpush1.msra.mxu0 0.0
      %2598 = vmatprep.subr.mxu0 0.0
      %2599 = vmatpush1.msra.mxu0 0.0
      %2600 = vmatprep.subr.mxu0 0.0
      %2601 = vmatpush1.msra.mxu0 0.0
      %2602 = vmatprep.subr.mxu0 0.0
      %2603 = vmatpush1.msra.mxu0 0.0
      %2604 = vmatprep.subr.mxu0 0.0
      %2605 = vmatpush1.msra.mxu0 0.0
      %2606 = vmatprep.subr.mxu0 0.0
      %2607 = vmatpush1.msra.mxu0 0.0
      %2608 = vmatprep.subr.mxu0 0.0
      %2609 = vmatpush1.msra.mxu0 0.0
      %2610 = vmatprep.subr.mxu0 0.0
      %2611 = vmatpush1.msra.mxu0 0.0
      %2612 = vmatprep.subr.mxu0 0.0
      %2613 = vmatpush1.msra.mxu0 0.0
      %2614 = vmatprep.subr.mxu0 0.0
      %2615 = vmatpush1.msra.mxu0 0.0
      %2616 = vmatprep.subr.mxu0 0.0
      %2617 = vmatpush1.msra.mxu0 0.0
      %2618 = vmatprep.subr.mxu0 0.0
      %2619 = vmatpush1.msra.mxu0 0.0
      %2620 = vmatprep.subr.mxu0 0.0
      %2621 = vmatpush1.msra.mxu0 0.0
      %2622 = vmatprep.subr.mxu0 0.0
      %2623 = vmatpush1.msra.mxu0 0.0
      %2624 = vmatprep.subr.mxu0 0.0
      %2625 = vmatpush1.msra.mxu0 0.0
      %2626 = vmatprep.subr.mxu0 0.0
      %2627 = vmatpush1.msra.mxu0 0.0
      %2628 = vmatprep.subr.mxu0 0.0
      %2629 = vmatpush1.msra.mxu0 0.0
      %2630 = vmatprep.subr.mxu0 0.0
      %2631 = vmatpush1.msra.mxu0 0.0
      %2632 = vmatprep.mubr.f32.mxu0 0.0
      %2633 = vmatmul.mubr.f32.gmra.mrb[0].mxu0 %v2495
      %v2634 = vpop.f32.mrb[0].mxu0
      %v2635 = vadd.f32 %v2492, %v2634
      %v2636 = vpop.f32.mrb[0].mxu0
      %v2637 = vadd.f32 %v2492, %v2636
      %2638 = vdwg.mxu0
      %2639 = vmatprep.subr.mxu0 %v2031
      %2640 = vmatpush1.msra.mxu0 %v2030
      %2641 = vmatprep.subr.mxu0 %v2096
      %2642 = vmatpush1.msra.mxu0 %v2095
      %2643 = vmatprep.subr.mxu0 %v2161
      %2644 = vmatpush1.msra.mxu0 %v2160
      %2645 = vmatprep.subr.mxu0 %v2225
      %2646 = vmatpush1.msra.mxu0 %v2224
      %2647 = vmatprep.subr.mxu0 %v1118
      %2648 = vmatpush1.msra.mxu0 %v1116
      %2649 = vmatprep.subr.mxu0 %v2289
      %2650 = vmatpush1.msra.mxu0 %v2288
      %2651 = vmatprep.subr.mxu0 %v2354
      %2652 = vmatpush1.msra.mxu0 %v2353
      %2653 = vmatprep.subr.mxu0 %v2419
      %2654 = vmatpush1.msra.mxu0 %v2418
      %2655 = vmatprep.subr.mxu0 %v2484
      %2656 = vmatpush1.msra.mxu0 %v2483
      %2657 = vmatprep.subr.mxu0 0.0
      %2658 = vmatpush1.msra.mxu0 0.0
      %2659 = vmatprep.subr.mxu0 0.0
      %2660 = vmatpush1.msra.mxu0 0.0
      %2661 = vmatprep.subr.mxu0 0.0
      %2662 = vmatpush1.msra.mxu0 0.0
      %2663 = vmatprep.subr.mxu0 0.0
      %2664 = vmatpush1.msra.mxu0 0.0
      %2665 = vmatprep.subr.mxu0 0.0
      %2666 = vmatpush1.msra.mxu0 0.0
      %2667 = vmatprep.subr.mxu0 0.0
      %2668 = vmatpush1.msra.mxu0 0.0
      %2669 = vmatprep.subr.mxu0 0.0
      %2670 = vmatpush1.msra.mxu0 0.0
      %2671 = vmatprep.subr.mxu0 0.0
      %2672 = vmatpush1.msra.mxu0 0.0
      %2673 = vmatprep.subr.mxu0 0.0
      %2674 = vmatpush1.msra.mxu0 0.0
      %2675 = vmatprep.subr.mxu0 0.0
      %2676 = vmatpush1.msra.mxu0 0.0
      %2677 = vmatprep.subr.mxu0 0.0
      %2678 = vmatpush1.msra.mxu0 0.0
      %2679 = vmatprep.subr.mxu0 0.0
      %2680 = vmatpush1.msra.mxu0 0.0
      %2681 = vmatprep.subr.mxu0 0.0
      %2682 = vmatpush1.msra.mxu0 0.0
      %2683 = vmatprep.subr.mxu0 0.0
      %2684 = vmatpush1.msra.mxu0 0.0
      %2685 = vmatprep.subr.mxu0 0.0
      %2686 = vmatpush1.msra.mxu0 0.0
      %2687 = vmatprep.subr.mxu0 0.0
      %2688 = vmatpush1.msra.mxu0 0.0
      %2689 = vmatprep.subr.mxu0 0.0
      %2690 = vmatpush1.msra.mxu0 0.0
      %2691 = vmatprep.subr.mxu0 0.0
      %2692 = vmatpush1.msra.mxu0 0.0
      %2693 = vmatprep.subr.mxu0 0.0
      %2694 = vmatpush1.msra.mxu0 0.0
      %2695 = vmatprep.subr.mxu0 0.0
      %2696 = vmatpush1.msra.mxu0 0.0
      %2697 = vmatprep.subr.mxu0 0.0
      %2698 = vmatpush1.msra.mxu0 0.0
      %2699 = vmatprep.subr.mxu0 0.0
      %2700 = vmatpush1.msra.mxu0 0.0
      %2701 = vmatprep.subr.mxu0 0.0
      %2702 = vmatpush1.msra.mxu0 0.0
      %2703 = vmatprep.mubr.f32.mxu0 0.0
      %2704 = vmatmul.mubr.f32.gmra.mrb[0].mxu0 %v2495
      %v2705 = vpop.f32.mrb[0].mxu0
      %v2706 = vadd.f32 %v2492, %v2705
      %v2707 = vpop.f32.mrb[0].mxu0
      %v2708 = vadd.f32 %v2492, %v2707
      %2709 = vdwg.mxu0
      %2710 = vmatprep.subr.mxu0 %v2033
      %2711 = vmatpush1.msra.mxu0 %v2032
      %2712 = vmatprep.subr.mxu0 %v2098
      %2713 = vmatpush1.msra.mxu0 %v2097
      %2714 = vmatprep.subr.mxu0 %v2163
      %2715 = vmatpush1.msra.mxu0 %v2162
      %2716 = vmatprep.subr.mxu0 %v2227
      %2717 = vmatpush1.msra.mxu0 %v2226
      %2718 = vmatprep.subr.mxu0 %v1189
      %2719 = vmatpush1.msra.mxu0 %v1187
      %2720 = vmatprep.subr.mxu0 %v2291
      %2721 = vmatpush1.msra.mxu0 %v2290
      %2722 = vmatprep.subr.mxu0 %v2356
      %2723 = vmatpush1.msra.mxu0 %v2355
      %2724 = vmatprep.subr.mxu0 %v2421
      %2725 = vmatpush1.msra.mxu0 %v2420
      %2726 = vmatprep.subr.mxu0 %v2486
      %2727 = vmatpush1.msra.mxu0 %v2485
      %2728 = vmatprep.subr.mxu0 0.0
      %2729 = vmatpush1.msra.mxu0 0.0
      %2730 = vmatprep.subr.mxu0 0.0
      %2731 = vmatpush1.msra.mxu0 0.0
      %2732 = vmatprep.subr.mxu0 0.0
      %2733 = vmatpush1.msra.mxu0 0.0
      %2734 = vmatprep.subr.mxu0 0.0
      %2735 = vmatpush1.msra.mxu0 0.0
      %2736 = vmatprep.subr.mxu0 0.0
      %2737 = vmatpush1.msra.mxu0 0.0
      %2738 = vmatprep.subr.mxu0 0.0
      %2739 = vmatpush1.msra.mxu0 0.0
      %2740 = vmatprep.subr.mxu0 0.0
      %2741 = vmatpush1.msra.mxu0 0.0
      %2742 = vmatprep.subr.mxu0 0.0
      %2743 = vmatpush1.msra.mxu0 0.0
      %2744 = vmatprep.subr.mxu0 0.0
      %2745 = vmatpush1.msra.mxu0 0.0
      %2746 = vmatprep.subr.mxu0 0.0
      %2747 = vmatpush1.msra.mxu0 0.0
      %2748 = vmatprep.subr.mxu0 0.0
      %2749 = vmatpush1.msra.mxu0 0.0
      %2750 = vmatprep.subr.mxu0 0.0
      %2751 = vmatpush1.msra.mxu0 0.0
      %2752 = vmatprep.subr.mxu0 0.0
      %2753 = vmatpush1.msra.mxu0 0.0
      %2754 = vmatprep.subr.mxu0 0.0
      %2755 = vmatpush1.msra.mxu0 0.0
      %2756 = vmatprep.subr.mxu0 0.0
      %2757 = vmatpush1.msra.mxu0 0.0
      %2758 = vmatprep.subr.mxu0 0.0
      %2759 = vmatpush1.msra.mxu0 0.0
      %2760 = vmatprep.subr.mxu0 0.0
      %2761 = vmatpush1.msra.mxu0 0.0
      %2762 = vmatprep.subr.mxu0 0.0
      %2763 = vmatpush1.msra.mxu0 0.0
      %2764 = vmatprep.subr.mxu0 0.0
      %2765 = vmatpush1.msra.mxu0 0.0
      %2766 = vmatprep.subr.mxu0 0.0
      %2767 = vmatpush1.msra.mxu0 0.0
      %2768 = vmatprep.subr.mxu0 0.0
      %2769 = vmatpush1.msra.mxu0 0.0
      %2770 = vmatprep.subr.mxu0 0.0
      %2771 = vmatpush1.msra.mxu0 0.0
      %2772 = vmatprep.subr.mxu0 0.0
      %2773 = vmatpush1.msra.mxu0 0.0
      %2774 = vmatprep.mubr.f32.mxu0 0.0
      %2775 = vmatmul.mubr.f32.gmra.mrb[0].mxu0 %v2495
      %v2776 = vpop.f32.mrb[0].mxu0
      %v2777 = vadd.f32 %v2492, %v2776
      %v2778 = vpop.f32.mrb[0].mxu0
      %v2779 = vadd.f32 %v2492, %v2778
      %2780 = vdwg.mxu0
      %2781 = vrot.lane.b32.xlu0 %v1514, 33
      %v2782 = vpop.permute.xlu0 %2781
      %2783 = vrot.lane.b32.xlu0 %v1516, 33
      %v2784 = vpop.permute.xlu0 %2783
      %2785 = vrot.lane.b32.xlu0 %v1585, 33
      %v2786 = vpop.permute.xlu0 %2785
      %2787 = vrot.lane.b32.xlu0 %v1587, 33
      %v2788 = vpop.permute.xlu0 %2787
      %2789 = vrot.lane.b32.xlu0 %v1656, 33
      %v2790 = vpop.permute.xlu0 %2789
      %2791 = vrot.lane.b32.xlu0 %v1658, 33
      %v2792 = vpop.permute.xlu0 %2791
      %2793 = vrot.lane.b32.xlu0 %v1727, 33
      %v2794 = vpop.permute.xlu0 %2793
      %2795 = vrot.lane.b32.xlu0 %v1729, 33
      %v2796 = vpop.permute.xlu0 %2795
      %v2797 = vsel %vm1985, %v2794, %v2796
      %v2798 = vsel %vm1985, %v2792, %v2794
      %v2799 = vsel %vm1985, %v2790, %v2792
      %v2800 = vsel %vm1985, %v2788, %v2790
      %v2801 = vsel %vm1985, %v2786, %v2788
      %v2802 = vsel %vm1985, %v2784, %v2786
      %v2803 = vsel %vm1985, %v2782, %v2784
      %v2804 = vsel %vm1985, %v2796, %v2782
      %v2805 = vmul.f32 %v2804, %v1997
      %v2806 = vmul.f32 %v2803, %v2001
      %v2807 = vmul.f32 %v2802, %v2005
      %v2808 = vmul.f32 %v2801, %v2009
      %v2809 = vmul.f32 %v2800, %v2013
      %v2810 = vmul.f32 %v2799, %v2017
      %v2811 = vmul.f32 %v2798, %v2021
      %v2812 = vmul.f32 %v2797, %v2025
      %2813 = vrot.lane.b32.xlu0 %v1514, 32
      %v2814 = vpop.permute.xlu0 %2813
      %2815 = vrot.lane.b32.xlu0 %v1516, 32
      %v2816 = vpop.permute.xlu0 %2815
      %2817 = vrot.lane.b32.xlu0 %v1585, 32
      %v2818 = vpop.permute.xlu0 %2817
      %2819 = vrot.lane.b32.xlu0 %v1587, 32
      %v2820 = vpop.permute.xlu0 %2819
      %2821 = vrot.lane.b32.xlu0 %v1656, 32
      %v2822 = vpop.permute.xlu0 %2821
      %2823 = vrot.lane.b32.xlu0 %v1658, 32
      %v2824 = vpop.permute.xlu0 %2823
      %2825 = vrot.lane.b32.xlu0 %v1727, 32
      %v2826 = vpop.permute.xlu0 %2825
      %2827 = vrot.lane.b32.xlu0 %v1729, 32
      %v2828 = vpop.permute.xlu0 %2827
      %v2829 = vsel %vm2050, %v2826, %v2828
      %v2830 = vsel %vm2050, %v2824, %v2826
      %v2831 = vsel %vm2050, %v2822, %v2824
      %v2832 = vsel %vm2050, %v2820, %v2822
      %v2833 = vsel %vm2050, %v2818, %v2820
      %v2834 = vsel %vm2050, %v2816, %v2818
      %v2835 = vsel %vm2050, %v2814, %v2816
      %v2836 = vsel %vm2050, %v2828, %v2814
      %v2837 = vmul.f32 %v2836, %v2062
      %v2838 = vmul.f32 %v2835, %v2066
      %v2839 = vmul.f32 %v2834, %v2070
      %v2840 = vmul.f32 %v2833, %v2074
      %v2841 = vmul.f32 %v2832, %v2078
      %v2842 = vmul.f32 %v2831, %v2082
      %v2843 = vmul.f32 %v2830, %v2086
      %v2844 = vmul.f32 %v2829, %v2090
      %2845 = vrot.lane.b32.xlu0 %v1514, 31
      %v2846 = vpop.permute.xlu0 %2845
      %2847 = vrot.lane.b32.xlu0 %v1516, 31
      %v2848 = vpop.permute.xlu0 %2847
      %2849 = vrot.lane.b32.xlu0 %v1585, 31
      %v2850 = vpop.permute.xlu0 %2849
      %2851 = vrot.lane.b32.xlu0 %v1587, 31
      %v2852 = vpop.permute.xlu0 %2851
      %2853 = vrot.lane.b32.xlu0 %v1656, 31
      %v2854 = vpop.permute.xlu0 %2853
      %2855 = vrot.lane.b32.xlu0 %v1658, 31
      %v2856 = vpop.permute.xlu0 %2855
      %2857 = vrot.lane.b32.xlu0 %v1727, 31
      %v2858 = vpop.permute.xlu0 %2857
      %2859 = vrot.lane.b32.xlu0 %v1729, 31
      %v2860 = vpop.permute.xlu0 %2859
      %v2861 = vsel %vm2115, %v2858, %v2860
      %v2862 = vsel %vm2115, %v2856, %v2858
      %v2863 = vsel %vm2115, %v2854, %v2856
      %v2864 = vsel %vm2115, %v2852, %v2854
      %v2865 = vsel %vm2115, %v2850, %v2852
      %v2866 = vsel %vm2115, %v2848, %v2850
      %v2867 = vsel %vm2115, %v2846, %v2848
      %v2868 = vsel %vm2115, %v2860, %v2846
      %v2869 = vmul.f32 %v2868, %v2127
      %v2870 = vmul.f32 %v2867, %v2131
      %v2871 = vmul.f32 %v2866, %v2135
      %v2872 = vmul.f32 %v2865, %v2139
      %v2873 = vmul.f32 %v2864, %v2143
      %v2874 = vmul.f32 %v2863, %v2147
      %v2875 = vmul.f32 %v2862, %v2151
      %v2876 = vmul.f32 %v2861, %v2155
      %2877 = vrot.lane.b32.xlu0 %v1514, 1
      %v2878 = vpop.permute.xlu0 %2877
      %2879 = vrot.lane.b32.xlu0 %v1516, 1
      %v2880 = vpop.permute.xlu0 %2879
      %2881 = vrot.lane.b32.xlu0 %v1585, 1
      %v2882 = vpop.permute.xlu0 %2881
      %2883 = vrot.lane.b32.xlu0 %v1587, 1
      %v2884 = vpop.permute.xlu0 %2883
      %2885 = vrot.lane.b32.xlu0 %v1656, 1
      %v2886 = vpop.permute.xlu0 %2885
      %2887 = vrot.lane.b32.xlu0 %v1658, 1
      %v2888 = vpop.permute.xlu0 %2887
      %2889 = vrot.lane.b32.xlu0 %v1727, 1
      %v2890 = vpop.permute.xlu0 %2889
      %2891 = vrot.lane.b32.xlu0 %v1729, 1
      %v2892 = vpop.permute.xlu0 %2891
      %v2893 = vsel %vm1788, %v2890, %v2892
      %v2894 = vsel %vm1788, %v2888, %v2890
      %v2895 = vsel %vm1788, %v2886, %v2888
      %v2896 = vsel %vm1788, %v2884, %v2886
      %v2897 = vsel %vm1788, %v2882, %v2884
      %v2898 = vsel %vm1788, %v2880, %v2882
      %v2899 = vsel %vm1788, %v2878, %v2880
      %v2900 = vsel %vm1788, %v2892, %v2878
      %v2901 = vmul.f32 %v2900, %v2191
      %v2902 = vmul.f32 %v2899, %v2195
      %v2903 = vmul.f32 %v2898, %v2199
      %v2904 = vmul.f32 %v2897, %v2203
      %v2905 = vmul.f32 %v2896, %v2207
      %v2906 = vmul.f32 %v2895, %v2211
      %v2907 = vmul.f32 %v2894, %v2215
      %v2908 = vmul.f32 %v2893, %v2219
      %2909 = vrot.lane.b32.xlu0 %v1514, 127
      %v2910 = vpop.permute.xlu0 %2909
      %2911 = vrot.lane.b32.xlu0 %v1516, 127
      %v2912 = vpop.permute.xlu0 %2911
      %2913 = vrot.lane.b32.xlu0 %v1585, 127
      %v2914 = vpop.permute.xlu0 %2913
      %2915 = vrot.lane.b32.xlu0 %v1587, 127
      %v2916 = vpop.permute.xlu0 %2915
      %2917 = vrot.lane.b32.xlu0 %v1656, 127
      %v2918 = vpop.permute.xlu0 %2917
      %2919 = vrot.lane.b32.xlu0 %v1658, 127
      %v2920 = vpop.permute.xlu0 %2919
      %2921 = vrot.lane.b32.xlu0 %v1727, 127
      %v2922 = vpop.permute.xlu0 %2921
      %2923 = vrot.lane.b32.xlu0 %v1729, 127
      %v2924 = vpop.permute.xlu0 %2923
      %v2925 = vsel %vm1805, %v2922, %v2924
      %v2926 = vsel %vm1805, %v2920, %v2922
      %v2927 = vsel %vm1805, %v2918, %v2920
      %v2928 = vsel %vm1805, %v2916, %v2918
      %v2929 = vsel %vm1805, %v2914, %v2916
      %v2930 = vsel %vm1805, %v2912, %v2914
      %v2931 = vsel %vm1805, %v2910, %v2912
      %v2932 = vsel %vm1805, %v2924, %v2910
      %v2933 = vmul.f32 %v2931, %v2255
      %v2934 = vmul.f32 %v2930, %v2259
      %v2935 = vmul.f32 %v2929, %v2263
      %v2936 = vmul.f32 %v2928, %v2267
      %v2937 = vmul.f32 %v2927, %v2271
      %v2938 = vmul.f32 %v2926, %v2275
      %v2939 = vmul.f32 %v2925, %v2279
      %v2940 = vmul.f32 %v2932, %v2283
      %2941 = vrot.lane.b32.xlu0 %v1514, 97
      %v2942 = vpop.permute.xlu0 %2941
      %2943 = vrot.lane.b32.xlu0 %v1516, 97
      %v2944 = vpop.permute.xlu0 %2943
      %2945 = vrot.lane.b32.xlu0 %v1585, 97
      %v2946 = vpop.permute.xlu0 %2945
      %2947 = vrot.lane.b32.xlu0 %v1587, 97
      %v2948 = vpop.permute.xlu0 %2947
      %2949 = vrot.lane.b32.xlu0 %v1656, 97
      %v2950 = vpop.permute.xlu0 %2949
      %2951 = vrot.lane.b32.xlu0 %v1658, 97
      %v2952 = vpop.permute.xlu0 %2951
      %2953 = vrot.lane.b32.xlu0 %v1727, 97
      %v2954 = vpop.permute.xlu0 %2953
      %2955 = vrot.lane.b32.xlu0 %v1729, 97
      %v2956 = vpop.permute.xlu0 %2955
      %v2957 = vsel %vm2308, %v2954, %v2956
      %v2958 = vsel %vm2308, %v2952, %v2954
      %v2959 = vsel %vm2308, %v2950, %v2952
      %v2960 = vsel %vm2308, %v2948, %v2950
      %v2961 = vsel %vm2308, %v2946, %v2948
      %v2962 = vsel %vm2308, %v2944, %v2946
      %v2963 = vsel %vm2308, %v2942, %v2944
      %v2964 = vsel %vm2308, %v2956, %v2942
      %v2965 = vmul.f32 %v2963, %v2320
      %v2966 = vmul.f32 %v2962, %v2324
      %v2967 = vmul.f32 %v2961, %v2328
      %v2968 = vmul.f32 %v2960, %v2332
      %v2969 = vmul.f32 %v2959, %v2336
      %v2970 = vmul.f32 %v2958, %v2340
      %v2971 = vmul.f32 %v2957, %v2344
      %v2972 = vmul.f32 %v2964, %v2348
      %2973 = vrot.lane.b32.xlu0 %v1514, 96
      %v2974 = vpop.permute.xlu0 %2973
      %2975 = vrot.lane.b32.xlu0 %v1516, 96
      %v2976 = vpop.permute.xlu0 %2975
      %2977 = vrot.lane.b32.xlu0 %v1585, 96
      %v2978 = vpop.permute.xlu0 %2977
      %2979 = vrot.lane.b32.xlu0 %v1587, 96
      %v2980 = vpop.permute.xlu0 %2979
      %2981 = vrot.lane.b32.xlu0 %v1656, 96
      %v2982 = vpop.permute.xlu0 %2981
      %2983 = vrot.lane.b32.xlu0 %v1658, 96
      %v2984 = vpop.permute.xlu0 %2983
      %2985 = vrot.lane.b32.xlu0 %v1727, 96
      %v2986 = vpop.permute.xlu0 %2985
      %2987 = vrot.lane.b32.xlu0 %v1729, 96
      %v2988 = vpop.permute.xlu0 %2987
      %v2989 = vsel %vm2373, %v2986, %v2988
      %v2990 = vsel %vm2373, %v2984, %v2986
      %v2991 = vsel %vm2373, %v2982, %v2984
      %v2992 = vsel %vm2373, %v2980, %v2982
      %v2993 = vsel %vm2373, %v2978, %v2980
      %v2994 = vsel %vm2373, %v2976, %v2978
      %v2995 = vsel %vm2373, %v2974, %v2976
      %v2996 = vsel %vm2373, %v2988, %v2974
      %v2997 = vmul.f32 %v2995, %v2385
      %v2998 = vmul.f32 %v2994, %v2389
      %v2999 = vmul.f32 %v2993, %v2393
      %v3000 = vmul.f32 %v2992, %v2397
      %v3001 = vmul.f32 %v2991, %v2401
      %v3002 = vmul.f32 %v2990, %v2405
      %v3003 = vmul.f32 %v2989, %v2409
      %v3004 = vmul.f32 %v2996, %v2413
      %3005 = vrot.lane.b32.xlu0 %v1514, 95
      %v3006 = vpop.permute.xlu0 %3005
      %3007 = vrot.lane.b32.xlu0 %v1516, 95
      %v3008 = vpop.permute.xlu0 %3007
      %3009 = vrot.lane.b32.xlu0 %v1585, 95
      %v3010 = vpop.permute.xlu0 %3009
      %3011 = vrot.lane.b32.xlu0 %v1587, 95
      %v3012 = vpop.permute.xlu0 %3011
      %3013 = vrot.lane.b32.xlu0 %v1656, 95
      %v3014 = vpop.permute.xlu0 %3013
      %3015 = vrot.lane.b32.xlu0 %v1658, 95
      %v3016 = vpop.permute.xlu0 %3015
      %3017 = vrot.lane.b32.xlu0 %v1727, 95
      %v3018 = vpop.permute.xlu0 %3017
      %3019 = vrot.lane.b32.xlu0 %v1729, 95
      %v3020 = vpop.permute.xlu0 %3019
      %v3021 = vsel %vm2438, %v3018, %v3020
      %v3022 = vsel %vm2438, %v3016, %v3018
      %v3023 = vsel %vm2438, %v3014, %v3016
      %v3024 = vsel %vm2438, %v3012, %v3014
      %v3025 = vsel %vm2438, %v3010, %v3012
      %v3026 = vsel %vm2438, %v3008, %v3010
      %v3027 = vsel %vm2438, %v3006, %v3008
      %v3028 = vsel %vm2438, %v3020, %v3006
      %v3029 = vmul.f32 %v3027, %v2450
      %v3030 = vmul.f32 %v3026, %v2454
      %v3031 = vmul.f32 %v3025, %v2458
      %v3032 = vmul.f32 %v3024, %v2462
      %v3033 = vmul.f32 %v3023, %v2466
      %v3034 = vmul.f32 %v3022, %v2470
      %v3035 = vmul.f32 %v3021, %v2474
      %v3036 = vmul.f32 %v3028, %v2478
      %v3037 = vld [vmem:[%s12] sm:$0xff]
      %v3038 = vld [vmem:[%s13] sm:$0xff]
      %3040 = vset.pattern.permute.xlu0 0
      %3041 = vperm.xlu0 %3040, %v3038
      %v3042 = vpop.permute.xlu0 %3041
      %v3045 = vsel %vm1883, %v3037, 0
      %3047 = vmatprep.subr.mxu0 %v2806
      %3048 = vmatpush1.msra.mxu0 %v2805
      %3049 = vmatprep.subr.mxu0 %v2838
      %3050 = vmatpush1.msra.mxu0 %v2837
      %3051 = vmatprep.subr.mxu0 %v2870
      %3052 = vmatpush1.msra.mxu0 %v2869
      %3053 = vmatprep.subr.mxu0 %v2902
      %3054 = vmatpush1.msra.mxu0 %v2901
      %3055 = vmatprep.subr.mxu0 %v1516
      %3056 = vmatpush1.msra.mxu0 %v1514
      %3057 = vmatprep.subr.mxu0 %v2934
      %3058 = vmatpush1.msra.mxu0 %v2933
      %3059 = vmatprep.subr.mxu0 %v2966
      %3060 = vmatpush1.msra.mxu0 %v2965
      %3061 = vmatprep.subr.mxu0 %v2998
      %3062 = vmatpush1.msra.mxu0 %v2997
      %3063 = vmatprep.subr.mxu0 %v3030
      %3064 = vmatpush1.msra.mxu0 %v3029
      %3065 = vmatprep.subr.mxu0 0.0
      %3066 = vmatpush1.msra.mxu0 0.0
      %3067 = vmatprep.subr.mxu0 0.0
      %3068 = vmatpush1.msra.mxu0 0.0
      %3069 = vmatprep.subr.mxu0 0.0
      %3070 = vmatpush1.msra.mxu0 0.0
      %3071 = vmatprep.subr.mxu0 0.0
      %3072 = vmatpush1.msra.mxu0 0.0
      %3073 = vmatprep.subr.mxu0 0.0
      %3074 = vmatpush1.msra.mxu0 0.0
      %3075 = vmatprep.subr.mxu0 0.0
      %3076 = vmatpush1.msra.mxu0 0.0
      %3077 = vmatprep.subr.mxu0 0.0
      %3078 = vmatpush1.msra.mxu0 0.0
      %3079 = vmatprep.subr.mxu0 0.0
      %3080 = vmatpush1.msra.mxu0 0.0
      %3081 = vmatprep.subr.mxu0 0.0
      %3082 = vmatpush1.msra.mxu0 0.0
      %3083 = vmatprep.subr.mxu0 0.0
      %3084 = vmatpush1.msra.mxu0 0.0
      %3085 = vmatprep.subr.mxu0 0.0
      %3086 = vmatpush1.msra.mxu0 0.0
      %3087 = vmatprep.subr.mxu0 0.0
      %3088 = vmatpush1.msra.mxu0 0.0
      %3089 = vmatprep.subr.mxu0 0.0
      %3090 = vmatpush1.msra.mxu0 0.0
      %3091 = vmatprep.subr.mxu0 0.0
      %3092 = vmatpush1.msra.mxu0 0.0
      %3093 = vmatprep.subr.mxu0 0.0
      %3094 = vmatpush1.msra.mxu0 0.0
      %3095 = vmatprep.subr.mxu0 0.0
      %3096 = vmatpush1.msra.mxu0 0.0
      %3097 = vmatprep.subr.mxu0 0.0
      %3098 = vmatpush1.msra.mxu0 0.0
      %3099 = vmatprep.subr.mxu0 0.0
      %3100 = vmatpush1.msra.mxu0 0.0
      %3101 = vmatprep.subr.mxu0 0.0
      %3102 = vmatpush1.msra.mxu0 0.0
      %3103 = vmatprep.subr.mxu0 0.0
      %3104 = vmatpush1.msra.mxu0 0.0
      %3105 = vmatprep.subr.mxu0 0.0
      %3106 = vmatpush1.msra.mxu0 0.0
      %3107 = vmatprep.subr.mxu0 0.0
      %3108 = vmatpush1.msra.mxu0 0.0
      %3109 = vmatprep.subr.mxu0 0.0
      %3110 = vmatpush1.msra.mxu0 0.0
      %3111 = vmatprep.mubr.f32.mxu0 0.0
      %3112 = vmatmul.mubr.f32.gmra.mrb[0].mxu0 %v3045
      %v3113 = vpop.f32.mrb[0].mxu0
      %v3114 = vadd.f32 %v3042, %v3113
      %v3115 = vpop.f32.mrb[0].mxu0
      %v3116 = vadd.f32 %v3042, %v3115
      %3117 = vdwg.mxu0
      %3118 = vmatprep.subr.mxu0 %v2808
      %3119 = vmatpush1.msra.mxu0 %v2807
      %3120 = vmatprep.subr.mxu0 %v2840
      %3121 = vmatpush1.msra.mxu0 %v2839
      %3122 = vmatprep.subr.mxu0 %v2872
      %3123 = vmatpush1.msra.mxu0 %v2871
      %3124 = vmatprep.subr.mxu0 %v2904
      %3125 = vmatpush1.msra.mxu0 %v2903
      %3126 = vmatprep.subr.mxu0 %v1587
      %3127 = vmatpush1.msra.mxu0 %v1585
      %3128 = vmatprep.subr.mxu0 %v2936
      %3129 = vmatpush1.msra.mxu0 %v2935
      %3130 = vmatprep.subr.mxu0 %v2968
      %3131 = vmatpush1.msra.mxu0 %v2967
      %3132 = vmatprep.subr.mxu0 %v3000
      %3133 = vmatpush1.msra.mxu0 %v2999
      %3134 = vmatprep.subr.mxu0 %v3032
      %3135 = vmatpush1.msra.mxu0 %v3031
      %3136 = vmatprep.subr.mxu0 0.0
      %3137 = vmatpush1.msra.mxu0 0.0
      %3138 = vmatprep.subr.mxu0 0.0
      %3139 = vmatpush1.msra.mxu0 0.0
      %3140 = vmatprep.subr.mxu0 0.0
      %3141 = vmatpush1.msra.mxu0 0.0
      %3142 = vmatprep.subr.mxu0 0.0
      %3143 = vmatpush1.msra.mxu0 0.0
      %3144 = vmatprep.subr.mxu0 0.0
      %3145 = vmatpush1.msra.mxu0 0.0
      %3146 = vmatprep.subr.mxu0 0.0
      %3147 = vmatpush1.msra.mxu0 0.0
      %3148 = vmatprep.subr.mxu0 0.0
      %3149 = vmatpush1.msra.mxu0 0.0
      %3150 = vmatprep.subr.mxu0 0.0
      %3151 = vmatpush1.msra.mxu0 0.0
      %3152 = vmatprep.subr.mxu0 0.0
      %3153 = vmatpush1.msra.mxu0 0.0
      %3154 = vmatprep.subr.mxu0 0.0
      %3155 = vmatpush1.msra.mxu0 0.0
      %3156 = vmatprep.subr.mxu0 0.0
      %3157 = vmatpush1.msra.mxu0 0.0
      %3158 = vmatprep.subr.mxu0 0.0
      %3159 = vmatpush1.msra.mxu0 0.0
      %3160 = vmatprep.subr.mxu0 0.0
      %3161 = vmatpush1.msra.mxu0 0.0
      %3162 = vmatprep.subr.mxu0 0.0
      %3163 = vmatpush1.msra.mxu0 0.0
      %3164 = vmatprep.subr.mxu0 0.0
      %3165 = vmatpush1.msra.mxu0 0.0
      %3166 = vmatprep.subr.mxu0 0.0
      %3167 = vmatpush1.msra.mxu0 0.0
      %3168 = vmatprep.subr.mxu0 0.0
      %3169 = vmatpush1.msra.mxu0 0.0
      %3170 = vmatprep.subr.mxu0 0.0
      %3171 = vmatpush1.msra.mxu0 0.0
      %3172 = vmatprep.subr.mxu0 0.0
      %3173 = vmatpush1.msra.mxu0 0.0
      %3174 = vmatprep.subr.mxu0 0.0
      %3175 = vmatpush1.msra.mxu0 0.0
      %3176 = vmatprep.subr.mxu0 0.0
      %3177 = vmatpush1.msra.mxu0 0.0
      %3178 = vmatprep.subr.mxu0 0.0
      %3179 = vmatpush1.msra.mxu0 0.0
      %3180 = vmatprep.subr.mxu0 0.0
      %3181 = vmatpush1.msra.mxu0 0.0
      %3182 = vmatprep.mubr.f32.mxu0 0.0
      %3183 = vmatmul.mubr.f32.gmra.mrb[0].mxu0 %v3045
      %v3184 = vpop.f32.mrb[0].mxu0
      %v3185 = vadd.f32 %v3042, %v3184
      %v3186 = vpop.f32.mrb[0].mxu0
      %v3187 = vadd.f32 %v3042, %v3186
      %3188 = vdwg.mxu0
      %3189 = vmatprep.subr.mxu0 %v2810
      %3190 = vmatpush1.msra.mxu0 %v2809
      %3191 = vmatprep.subr.mxu0 %v2842
      %3192 = vmatpush1.msra.mxu0 %v2841
      %3193 = vmatprep.subr.mxu0 %v2874
      %3194 = vmatpush1.msra.mxu0 %v2873
      %3195 = vmatprep.subr.mxu0 %v2906
      %3196 = vmatpush1.msra.mxu0 %v2905
      %3197 = vmatprep.subr.mxu0 %v1658
      %3198 = vmatpush1.msra.mxu0 %v1656
      %3199 = vmatprep.subr.mxu0 %v2938
      %3200 = vmatpush1.msra.mxu0 %v2937
      %3201 = vmatprep.subr.mxu0 %v2970
      %3202 = vmatpush1.msra.mxu0 %v2969
      %3203 = vmatprep.subr.mxu0 %v3002
      %3204 = vmatpush1.msra.mxu0 %v3001
      %3205 = vmatprep.subr.mxu0 %v3034
      %3206 = vmatpush1.msra.mxu0 %v3033
      %3207 = vmatprep.subr.mxu0 0.0
      %3208 = vmatpush1.msra.mxu0 0.0
      %3209 = vmatprep.subr.mxu0 0.0
      %3210 = vmatpush1.msra.mxu0 0.0
      %3211 = vmatprep.subr.mxu0 0.0
      %3212 = vmatpush1.msra.mxu0 0.0
      %3213 = vmatprep.subr.mxu0 0.0
      %3214 = vmatpush1.msra.mxu0 0.0
      %3215 = vmatprep.subr.mxu0 0.0
      %3216 = vmatpush1.msra.mxu0 0.0
      %3217 = vmatprep.subr.mxu0 0.0
      %3218 = vmatpush1.msra.mxu0 0.0
      %3219 = vmatprep.subr.mxu0 0.0
      %3220 = vmatpush1.msra.mxu0 0.0
      %3221 = vmatprep.subr.mxu0 0.0
      %3222 = vmatpush1.msra.mxu0 0.0
      %3223 = vmatprep.subr.mxu0 0.0
      %3224 = vmatpush1.msra.mxu0 0.0
      %3225 = vmatprep.subr.mxu0 0.0
      %3226 = vmatpush1.msra.mxu0 0.0
      %3227 = vmatprep.subr.mxu0 0.0
      %3228 = vmatpush1.msra.mxu0 0.0
      %3229 = vmatprep.subr.mxu0 0.0
      %3230 = vmatpush1.msra.mxu0 0.0
      %3231 = vmatprep.subr.mxu0 0.0
      %3232 = vmatpush1.msra.mxu0 0.0
      %3233 = vmatprep.subr.mxu0 0.0
      %3234 = vmatpush1.msra.mxu0 0.0
      %3235 = vmatprep.subr.mxu0 0.0
      %3236 = vmatpush1.msra.mxu0 0.0
      %3237 = vmatprep.subr.mxu0 0.0
      %3238 = vmatpush1.msra.mxu0 0.0
      %3239 = vmatprep.subr.mxu0 0.0
      %3240 = vmatpush1.msra.mxu0 0.0
      %3241 = vmatprep.subr.mxu0 0.0
      %3242 = vmatpush1.msra.mxu0 0.0
      %3243 = vmatprep.subr.mxu0 0.0
      %3244 = vmatpush1.msra.mxu0 0.0
      %3245 = vmatprep.subr.mxu0 0.0
      %3246 = vmatpush1.msra.mxu0 0.0
      %3247 = vmatprep.subr.mxu0 0.0
      %3248 = vmatpush1.msra.mxu0 0.0
      %3249 = vmatprep.subr.mxu0 0.0
      %3250 = vmatpush1.msra.mxu0 0.0
      %3251 = vmatprep.subr.mxu0 0.0
      %3252 = vmatpush1.msra.mxu0 0.0
      %3253 = vmatprep.mubr.f32.mxu0 0.0
      %3254 = vmatmul.mubr.f32.gmra.mrb[0].mxu0 %v3045
      %v3255 = vpop.f32.mrb[0].mxu0
      %v3256 = vadd.f32 %v3042, %v3255
      %v3257 = vpop.f32.mrb[0].mxu0
      %v3258 = vadd.f32 %v3042, %v3257
      %3259 = vdwg.mxu0
      %3260 = vmatprep.subr.mxu0 %v2812
      %3261 = vmatpush1.msra.mxu0 %v2811
      %3262 = vmatprep.subr.mxu0 %v2844
      %3263 = vmatpush1.msra.mxu0 %v2843
      %3264 = vmatprep.subr.mxu0 %v2876
      %3265 = vmatpush1.msra.mxu0 %v2875
      %3266 = vmatprep.subr.mxu0 %v2908
      %3267 = vmatpush1.msra.mxu0 %v2907
      %3268 = vmatprep.subr.mxu0 %v1729
      %3269 = vmatpush1.msra.mxu0 %v1727
      %3270 = vmatprep.subr.mxu0 %v2940
      %3271 = vmatpush1.msra.mxu0 %v2939
      %3272 = vmatprep.subr.mxu0 %v2972
      %3273 = vmatpush1.msra.mxu0 %v2971
      %3274 = vmatprep.subr.mxu0 %v3004
      %3275 = vmatpush1.msra.mxu0 %v3003
      %3276 = vmatprep.subr.mxu0 %v3036
      %3277 = vmatpush1.msra.mxu0 %v3035
      %3278 = vmatprep.subr.mxu0 0.0
      %3279 = vmatpush1.msra.mxu0 0.0
      %3280 = vmatprep.subr.mxu0 0.0
      %3281 = vmatpush1.msra.mxu0 0.0
      %3282 = vmatprep.subr.mxu0 0.0
      %3283 = vmatpush1.msra.mxu0 0.0
      %3284 = vmatprep.subr.mxu0 0.0
      %3285 = vmatpush1.msra.mxu0 0.0
      %3286 = vmatprep.subr.mxu0 0.0
      %3287 = vmatpush1.msra.mxu0 0.0
      %3288 = vmatprep.subr.mxu0 0.0
      %3289 = vmatpush1.msra.mxu0 0.0
      %3290 = vmatprep.subr.mxu0 0.0
      %3291 = vmatpush1.msra.mxu0 0.0
      %3292 = vmatprep.subr.mxu0 0.0
      %3293 = vmatpush1.msra.mxu0 0.0
      %3294 = vmatprep.subr.mxu0 0.0
      %3295 = vmatpush1.msra.mxu0 0.0
      %3296 = vmatprep.subr.mxu0 0.0
      %3297 = vmatpush1.msra.mxu0 0.0
      %3298 = vmatprep.subr.mxu0 0.0
      %3299 = vmatpush1.msra.mxu0 0.0
      %3300 = vmatprep.subr.mxu0 0.0
      %3301 = vmatpush1.msra.mxu0 0.0
      %3302 = vmatprep.subr.mxu0 0.0
      %3303 = vmatpush1.msra.mxu0 0.0
      %3304 = vmatprep.subr.mxu0 0.0
      %3305 = vmatpush1.msra.mxu0 0.0
      %3306 = vmatprep.subr.mxu0 0.0
      %3307 = vmatpush1.msra.mxu0 0.0
      %3308 = vmatprep.subr.mxu0 0.0
      %3309 = vmatpush1.msra.mxu0 0.0
      %3310 = vmatprep.subr.mxu0 0.0
      %3311 = vmatpush1.msra.mxu0 0.0
      %3312 = vmatprep.subr.mxu0 0.0
      %3313 = vmatpush1.msra.mxu0 0.0
      %3314 = vmatprep.subr.mxu0 0.0
      %3315 = vmatpush1.msra.mxu0 0.0
      %3316 = vmatprep.subr.mxu0 0.0
      %3317 = vmatpush1.msra.mxu0 0.0
      %3318 = vmatprep.subr.mxu0 0.0
      %3319 = vmatpush1.msra.mxu0 0.0
      %3320 = vmatprep.subr.mxu0 0.0
      %3321 = vmatpush1.msra.mxu0 0.0
      %3322 = vmatprep.subr.mxu0 0.0
      %3323 = vmatpush1.msra.mxu0 0.0
      %3324 = vmatprep.mubr.f32.mxu0 0.0
      %3325 = vmatmul.mubr.f32.gmra.mrb[0].mxu0 %v3045
      %v3326 = vpop.f32.mrb[0].mxu0
      %v3327 = vadd.f32 %v3042, %v3326
      %v3328 = vpop.f32.mrb[0].mxu0
      %v3329 = vadd.f32 %v3042, %v3328
      %3330 = vdwg.mxu0
      %v3331 = vmul.f32 %v2564, %v3114
      %v3332 = vmul.f32 %v2566, %v3116
      %v3333 = vmul.f32 %v2635, %v3185
      %v3334 = vmul.f32 %v2637, %v3187
      %v3335 = vmul.f32 %v2706, %v3256
      %v3336 = vmul.f32 %v2708, %v3258
      %v3337 = vmul.f32 %v2777, %v3327
      %v3338 = vmul.f32 %v2779, %v3329
      %v3339 = vmul.f32 %v3331, %v724
      %v3340 = vmul.f32 %v3332, %v725
      %v3341 = vmul.f32 %v3333, %v726
      %v3342 = vmul.f32 %v3334, %v727
      %v3343 = vmul.f32 %v3335, %v728
      %v3344 = vmul.f32 %v3336, %v729
      %v3345 = vmul.f32 %v3337, %v730
      %v3346 = vmul.f32 %v3338, %v731
      %3347 = vrot.lane.b32.xlu0 %v1967, 17
      %v3348 = vpop.permute.xlu0 %3347
      %3349 = vrot.lane.b32.xlu0 %v1963, 17
      %v3350 = vpop.permute.xlu0 %3349
      %3351 = vrot.lane.b32.xlu0 %v1968, 17
      %v3352 = vpop.permute.xlu0 %3351
      %3353 = vrot.lane.b32.xlu0 %v1965, 17
      %v3354 = vpop.permute.xlu0 %3353
      %v3355 = vsel %vm1737, %v3348, %v3352
      %v3356 = vsel %vm1737, %v3350, %v3354
      %v3357 = vsel %vm1737, %v3352, %v3348
      %v3358 = vsel %vm1737, %v3354, %v3350
      %v3359 = vmul.f32 %v3357, %v1743
      %v3360 = vmul.f32 %v3355, %v1747
      %v3361 = vmul.f32 %v3358, %v1743
      %v3362 = vmul.f32 %v3356, %v1747
      %3363 = vrot.lane.b32.xlu0 %v1967, 16
      %v3364 = vpop.permute.xlu0 %3363
      %3365 = vrot.lane.b32.xlu0 %v1963, 16
      %v3366 = vpop.permute.xlu0 %3365
      %3367 = vrot.lane.b32.xlu0 %v1968, 16
      %v3368 = vpop.permute.xlu0 %3367
      %3369 = vrot.lane.b32.xlu0 %v1965, 16
      %v3370 = vpop.permute.xlu0 %3369
      %v3371 = vsel %vm1754, %v3364, %v3368
      %v3372 = vsel %vm1754, %v3366, %v3370
      %v3373 = vsel %vm1754, %v3368, %v3364
      %v3374 = vsel %vm1754, %v3370, %v3366
      %v3375 = vmul.f32 %v3373, %v1760
      %v3376 = vmul.f32 %v3371, %v1764
      %v3377 = vmul.f32 %v3374, %v1760
      %v3378 = vmul.f32 %v3372, %v1764
      %3379 = vrot.lane.b32.xlu0 %v1967, 15
      %v3380 = vpop.permute.xlu0 %3379
      %3381 = vrot.lane.b32.xlu0 %v1963, 15
      %v3382 = vpop.permute.xlu0 %3381
      %3383 = vrot.lane.b32.xlu0 %v1968, 15
      %v3384 = vpop.permute.xlu0 %3383
      %3385 = vrot.lane.b32.xlu0 %v1965, 15
      %v3386 = vpop.permute.xlu0 %3385
      %v3387 = vsel %vm1771, %v3380, %v3384
      %v3388 = vsel %vm1771, %v3382, %v3386
      %v3389 = vsel %vm1771, %v3384, %v3380
      %v3390 = vsel %vm1771, %v3386, %v3382
      %v3391 = vmul.f32 %v3389, %v1777
      %v3392 = vmul.f32 %v3387, %v1781
      %v3393 = vmul.f32 %v3390, %v1777
      %v3394 = vmul.f32 %v3388, %v1781
      %3395 = vrot.lane.b32.xlu0 %v1967, 1
      %v3396 = vpop.permute.xlu0 %3395
      %3397 = vrot.lane.b32.xlu0 %v1963, 1
      %v3398 = vpop.permute.xlu0 %3397
      %3399 = vrot.lane.b32.xlu0 %v1968, 1
      %v3400 = vpop.permute.xlu0 %3399
      %3401 = vrot.lane.b32.xlu0 %v1965, 1
      %v3402 = vpop.permute.xlu0 %3401
      %v3403 = vsel %vm1788, %v3396, %v3400
      %v3404 = vsel %vm1788, %v3398, %v3402
      %v3405 = vsel %vm1788, %v3400, %v3396
      %v3406 = vsel %vm1788, %v3402, %v3398
      %v3407 = vmul.f32 %v3405, %v1794
      %v3408 = vmul.f32 %v3403, %v1798
      %v3409 = vmul.f32 %v3406, %v1794
      %v3410 = vmul.f32 %v3404, %v1798
      %3411 = vrot.lane.b32.xlu0 %v1967, 127
      %v3412 = vpop.permute.xlu0 %3411
      %3413 = vrot.lane.b32.xlu0 %v1963, 127
      %v3414 = vpop.permute.xlu0 %3413
      %3415 = vrot.lane.b32.xlu0 %v1968, 127
      %v3416 = vpop.permute.xlu0 %3415
      %3417 = vrot.lane.b32.xlu0 %v1965, 127
      %v3418 = vpop.permute.xlu0 %3417
      %v3419 = vsel %vm1805, %v3412, %v3416
      %v3420 = vsel %vm1805, %v3414, %v3418
      %v3421 = vsel %vm1805, %v3416, %v3412
      %v3422 = vsel %vm1805, %v3418, %v3414
      %v3423 = vmul.f32 %v3419, %v1811
      %v3424 = vmul.f32 %v3421, %v1815
      %v3425 = vmul.f32 %v3420, %v1811
      %v3426 = vmul.f32 %v3422, %v1815
      %3427 = vrot.lane.b32.xlu0 %v1967, 113
      %v3428 = vpop.permute.xlu0 %3427
      %3429 = vrot.lane.b32.xlu0 %v1963, 113
      %v3430 = vpop.permute.xlu0 %3429
      %3431 = vrot.lane.b32.xlu0 %v1968, 113
      %v3432 = vpop.permute.xlu0 %3431
      %3433 = vrot.lane.b32.xlu0 %v1965, 113
      %v3434 = vpop.permute.xlu0 %3433
      %v3435 = vsel %vm1822, %v3428, %v3432
      %v3436 = vsel %vm1822, %v3430, %v3434
      %v3437 = vsel %vm1822, %v3432, %v3428
      %v3438 = vsel %vm1822, %v3434, %v3430
      %v3439 = vmul.f32 %v3435, %v1828
      %v3440 = vmul.f32 %v3437, %v1832
      %v3441 = vmul.f32 %v3436, %v1828
      %v3442 = vmul.f32 %v3438, %v1832
      %3443 = vrot.lane.b32.xlu0 %v1967, 112
      %v3444 = vpop.permute.xlu0 %3443
      %3445 = vrot.lane.b32.xlu0 %v1963, 112
      %v3446 = vpop.permute.xlu0 %3445
      %3447 = vrot.lane.b32.xlu0 %v1968, 112
      %v3448 = vpop.permute.xlu0 %3447
      %3449 = vrot.lane.b32.xlu0 %v1965, 112
      %v3450 = vpop.permute.xlu0 %3449
      %v3451 = vsel %vm1839, %v3444, %v3448
      %v3452 = vsel %vm1839, %v3446, %v3450
      %v3453 = vsel %vm1839, %v3448, %v3444
      %v3454 = vsel %vm1839, %v3450, %v3446
      %v3455 = vmul.f32 %v3451, %v1845
      %v3456 = vmul.f32 %v3453, %v1849
      %v3457 = vmul.f32 %v3452, %v1845
      %v3458 = vmul.f32 %v3454, %v1849
      %3459 = vrot.lane.b32.xlu0 %v1967, 111
      %v3460 = vpop.permute.xlu0 %3459
      %3461 = vrot.lane.b32.xlu0 %v1963, 111
      %v3462 = vpop.permute.xlu0 %3461
      %3463 = vrot.lane.b32.xlu0 %v1968, 111
      %v3464 = vpop.permute.xlu0 %3463
      %3465 = vrot.lane.b32.xlu0 %v1965, 111
      %v3466 = vpop.permute.xlu0 %3465
      %v3467 = vsel %vm1856, %v3460, %v3464
      %v3468 = vsel %vm1856, %v3462, %v3466
      %v3469 = vsel %vm1856, %v3464, %v3460
      %v3470 = vsel %vm1856, %v3466, %v3462
      %v3471 = vmul.f32 %v3467, %v1862
      %v3472 = vmul.f32 %v3469, %v1866
      %v3473 = vmul.f32 %v3468, %v1862
      %v3474 = vmul.f32 %v3470, %v1866
      %v3475 = vld [vmem:[%s14] sm:$0xff]
      %v3476 = vld [vmem:[%s14 + $0x8] sm:$0xff]
      %v3477 = vld [vmem:[%s14 + $0x10] sm:$0xff]
      %v3478 = vld [vmem:[%s14 + $0x18] sm:$0xff]
      %v3479 = vld [vmem:[%s15] sm:$0xff]
      %v3480 = vld [vmem:[%s15 + $0x8] sm:$0xff]
      %3482 = vset.pattern.permute.xlu0 0
      %3483 = vperm.xlu0 %3482, %v3479
      %v3484 = vpop.permute.xlu0 %3483
      %3487 = vset.pattern.permute.xlu0 0
      %3488 = vperm.xlu0 %3487, %v3480
      %v3489 = vpop.permute.xlu0 %3488
      %vm3491 = vcmask 130048
      %v3493 = vsel %vm3491, %v3476, 0
      %v3496 = vsel %vm3491, %v3478, 0
      %3498 = vmatprep.subr.mxu0 %v3360
      %3499 = vmatpush1.msra.mxu0 %v3359
      %3500 = vmatprep.subr.mxu0 %v3362
      %3501 = vmatpush1.msra.mxu0 %v3361
      %3502 = vmatprep.subr.mxu0 %v3376
      %3503 = vmatpush1.msra.mxu0 %v3375
      %3504 = vmatprep.subr.mxu0 %v3378
      %3505 = vmatpush1.msra.mxu0 %v3377
      %3506 = vmatprep.subr.mxu0 %v3392
      %3507 = vmatpush1.msra.mxu0 %v3391
      %3508 = vmatprep.subr.mxu0 %v3394
      %3509 = vmatpush1.msra.mxu0 %v3393
      %3510 = vmatprep.subr.mxu0 %v3408
      %3511 = vmatpush1.msra.mxu0 %v3407
      %3512 = vmatprep.subr.mxu0 %v3410
      %3513 = vmatpush1.msra.mxu0 %v3409
      %3514 = vmatprep.subr.mxu0 %v1968
      %3515 = vmatpush1.msra.mxu0 %v1967
      %3516 = vmatprep.subr.mxu0 %v1965
      %3517 = vmatpush1.msra.mxu0 %v1963
      %3518 = vmatprep.subr.mxu0 %v3424
      %3519 = vmatpush1.msra.mxu0 %v3423
      %3520 = vmatprep.subr.mxu0 %v3426
      %3521 = vmatpush1.msra.mxu0 %v3425
      %3522 = vmatprep.subr.mxu0 %v3440
      %3523 = vmatpush1.msra.mxu0 %v3439
      %3524 = vmatprep.subr.mxu0 %v3442
      %3525 = vmatpush1.msra.mxu0 %v3441
      %3526 = vmatprep.subr.mxu0 %v3456
      %3527 = vmatpush1.msra.mxu0 %v3455
      %3528 = vmatprep.subr.mxu0 %v3458
      %3529 = vmatpush1.msra.mxu0 %v3457
      %3530 = vmatprep.subr.mxu0 %v3472
      %3531 = vmatpush1.msra.mxu0 %v3471
      %3532 = vmatprep.subr.mxu0 %v3474
      %3533 = vmatpush1.msra.mxu0 %v3473
      %3534 = vmatprep.subr.mxu0 0.0
      %3535 = vmatpush1.msra.mxu0 0.0
      %3536 = vmatprep.subr.mxu0 0.0
      %3537 = vmatpush1.msra.mxu0 0.0
      %3538 = vmatprep.subr.mxu0 0.0
      %3539 = vmatpush1.msra.mxu0 0.0
      %3540 = vmatprep.subr.mxu0 0.0
      %3541 = vmatpush1.msra.mxu0 0.0
      %3542 = vmatprep.subr.mxu0 0.0
      %3543 = vmatpush1.msra.mxu0 0.0
      %3544 = vmatprep.subr.mxu0 0.0
      %3545 = vmatpush1.msra.mxu0 0.0
      %3546 = vmatprep.subr.mxu0 0.0
      %3547 = vmatpush1.msra.mxu0 0.0
      %3548 = vmatprep.subr.mxu0 0.0
      %3549 = vmatpush1.msra.mxu0 0.0
      %3550 = vmatprep.subr.mxu0 0.0
      %3551 = vmatpush1.msra.mxu0 0.0
      %3552 = vmatprep.subr.mxu0 0.0
      %3553 = vmatpush1.msra.mxu0 0.0
      %3554 = vmatprep.subr.mxu0 0.0
      %3555 = vmatpush1.msra.mxu0 0.0
      %3556 = vmatprep.subr.mxu0 0.0
      %3557 = vmatpush1.msra.mxu0 0.0
      %3558 = vmatprep.subr.mxu0 0.0
      %3559 = vmatpush1.msra.mxu0 0.0
      %3560 = vmatprep.subr.mxu0 0.0
      %3561 = vmatpush1.msra.mxu0 0.0
      %3562 = vmatprep.mubr.f32.mxu0 %v3493
      %3563 = vmatmul.mubr.f32.gmra.mrb[0].mxu0 %v3475
      %v3564 = vpop.f32.mrb[0].mxu0
      %v3565 = vadd.f32 %v3484, %v3564
      %v3566 = vpop.f32.mrb[0].mxu0
      %v3567 = vadd.f32 %v3484, %v3566
      %3568 = vmatprep.mubr.f32.mxu0 %v3496
      %3569 = vmatmul.mubr.f32.gmra.mrb[0].mxu0 %v3477
      %v3570 = vpop.f32.mrb[0].mxu0
      %v3571 = vadd.f32 %v3489, %v3570
      %v3572 = vpop.f32.mrb[0].mxu0
      %v3573 = vadd.f32 %v3489, %v3572
      %3574 = vdwg.mxu0
      %3575 = vmatprep.subr.mxu0 %v1192
      %3576 = vmatpush1.msra.mxu0 %v1191
      %3577 = vmatprep.subr.mxu0 %v1200
      %3578 = vmatpush1.msra.mxu0 %v1199
      %3579 = vmatprep.subr.mxu0 %v1208
      %3580 = vmatpush1.msra.mxu0 %v1207
      %3581 = vmatprep.subr.mxu0 %v1216
      %3582 = vmatpush1.msra.mxu0 %v1215
      %3583 = vmatprep.subr.mxu0 %v1224
      %3584 = vmatpush1.msra.mxu0 %v1223
      %3585 = vmatprep.subr.mxu0 %v1232
      %3586 = vmatpush1.msra.mxu0 %v1231
      %3587 = vmatprep.subr.mxu0 %v1240
      %3588 = vmatpush1.msra.mxu0 %v1239
      %3589 = vmatprep.subr.mxu0 %v1248
      %3590 = vmatpush1.msra.mxu0 %v1247
      %3591 = vmatprep.subr.mxu0 %v1256
      %3592 = vmatpush1.msra.mxu0 %v1255
      %3593 = vmatprep.subr.mxu0 %v1264
      %3594 = vmatpush1.msra.mxu0 %v1263
      %3595 = vmatprep.subr.mxu0 %v1272
      %3596 = vmatpush1.msra.mxu0 %v1271
      %3597 = vmatprep.subr.mxu0 %v1280
      %3598 = vmatpush1.msra.mxu0 %v1279
      %3599 = vmatprep.subr.mxu0 %v1288
      %3600 = vmatpush1.msra.mxu0 %v1287
      %3601 = vmatprep.subr.mxu0 %v1296
      %3602 = vmatpush1.msra.mxu0 %v1295
      %3603 = vmatprep.subr.mxu0 %v1304
      %3604 = vmatpush1.msra.mxu0 %v1303
      %3605 = vmatprep.subr.mxu0 %v1312
      %3606 = vmatpush1.msra.mxu0 %v1311
      %3607 = vmatprep.subr.mxu0 %v1320
      %3608 = vmatpush1.msra.mxu0 %v1319
      %3609 = vmatprep.subr.mxu0 %v1328
      %3610 = vmatpush1.msra.mxu0 %v1327
      %3611 = vmatprep.subr.mxu0 %v1336
      %3612 = vmatpush1.msra.mxu0 %v1335
      %3613 = vmatprep.subr.mxu0 %v1344
      %3614 = vmatpush1.msra.mxu0 %v1343
      %3615 = vmatprep.subr.mxu0 %v1352
      %3616 = vmatpush1.msra.mxu0 %v1351
      %3617 = vmatprep.subr.mxu0 %v1360
      %3618 = vmatpush1.msra.mxu0 %v1359
      %3619 = vmatprep.subr.mxu0 %v1368
      %3620 = vmatpush1.msra.mxu0 %v1367
      %3621 = vmatprep.subr.mxu0 %v1376
      %3622 = vmatpush1.msra.mxu0 %v1375
      %3623 = vmatprep.subr.mxu0 %v1384
      %3624 = vmatpush1.msra.mxu0 %v1383
      %3625 = vmatprep.subr.mxu0 %v1392
      %3626 = vmatpush1.msra.mxu0 %v1391
      %3627 = vmatprep.subr.mxu0 %v1400
      %3628 = vmatpush1.msra.mxu0 %v1399
      %3629 = vmatprep.subr.mxu0 %v1408
      %3630 = vmatpush1.msra.mxu0 %v1407
      %3631 = vmatprep.subr.mxu0 %v1416
      %3632 = vmatpush1.msra.mxu0 %v1415
      %3633 = vmatprep.subr.mxu0 %v1424
      %3634 = vmatpush1.msra.mxu0 %v1423
      %3635 = vmatprep.subr.mxu0 %v1432
      %3636 = vmatpush1.msra.mxu0 %v1431
      %3637 = vmatprep.subr.mxu0 %v1440
      %3638 = vmatpush1.msra.mxu0 %v1439
      %3639 = vmatprep.mubr.f32.mxu0 %v3567
      %3640 = vmatmul.mubr.f32.gmra.mrb[0].mxu0 %v3565
      %v3641 = vpop.f32.mrb[0].mxu0
      %v3642 = vadd.f32 0.0, %v3641
      %v3643 = vpop.f32.mrb[0].mxu0
      %v3644 = vadd.f32 0.0, %v3643
      %3645 = vmatprep.mubr.f32.mxu0 %v3573
      %3646 = vmatmul.mubr.f32.gmra.mrb[0].mxu0 %v3571
      %v3647 = vpop.f32.mrb[0].mxu0
      %v3648 = vadd.f32 0.0, %v3647
      %v3649 = vpop.f32.mrb[0].mxu0
      %v3650 = vadd.f32 0.0, %v3649
      %3651 = vdwg.mxu0
      %3652 = vmatprep.subr.mxu0 %v1194
      %3653 = vmatpush1.msra.mxu0 %v1193
      %3654 = vmatprep.subr.mxu0 %v1202
      %3655 = vmatpush1.msra.mxu0 %v1201
      %3656 = vmatprep.subr.mxu0 %v1210
      %3657 = vmatpush1.msra.mxu0 %v1209
      %3658 = vmatprep.subr.mxu0 %v1218
      %3659 = vmatpush1.msra.mxu0 %v1217
      %3660 = vmatprep.subr.mxu0 %v1226
      %3661 = vmatpush1.msra.mxu0 %v1225
      %3662 = vmatprep.subr.mxu0 %v1234
      %3663 = vmatpush1.msra.mxu0 %v1233
      %3664 = vmatprep.subr.mxu0 %v1242
      %3665 = vmatpush1.msra.mxu0 %v1241
      %3666 = vmatprep.subr.mxu0 %v1250
      %3667 = vmatpush1.msra.mxu0 %v1249
      %3668 = vmatprep.subr.mxu0 %v1258
      %3669 = vmatpush1.msra.mxu0 %v1257
      %3670 = vmatprep.subr.mxu0 %v1266
      %3671 = vmatpush1.msra.mxu0 %v1265
      %3672 = vmatprep.subr.mxu0 %v1274
      %3673 = vmatpush1.msra.mxu0 %v1273
      %3674 = vmatprep.subr.mxu0 %v1282
      %3675 = vmatpush1.msra.mxu0 %v1281
      %3676 = vmatprep.subr.mxu0 %v1290
      %3677 = vmatpush1.msra.mxu0 %v1289
      %3678 = vmatprep.subr.mxu0 %v1298
      %3679 = vmatpush1.msra.mxu0 %v1297
      %3680 = vmatprep.subr.mxu0 %v1306
      %3681 = vmatpush1.msra.mxu0 %v1305
      %3682 = vmatprep.subr.mxu0 %v1314
      %3683 = vmatpush1.msra.mxu0 %v1313
      %3684 = vmatprep.subr.mxu0 %v1322
      %3685 = vmatpush1.msra.mxu0 %v1321
      %3686 = vmatprep.subr.mxu0 %v1330
      %3687 = vmatpush1.msra.mxu0 %v1329
      %3688 = vmatprep.subr.mxu0 %v1338
      %3689 = vmatpush1.msra.mxu0 %v1337
      %3690 = vmatprep.subr.mxu0 %v1346
      %3691 = vmatpush1.msra.mxu0 %v1345
      %3692 = vmatprep.subr.mxu0 %v1354
      %3693 = vmatpush1.msra.mxu0 %v1353
      %3694 = vmatprep.subr.mxu0 %v1362
      %3695 = vmatpush1.msra.mxu0 %v1361
      %3696 = vmatprep.subr.mxu0 %v1370
      %3697 = vmatpush1.msra.mxu0 %v1369
      %3698 = vmatprep.subr.mxu0 %v1378
      %3699 = vmatpush1.msra.mxu0 %v1377
      %3700 = vmatprep.subr.mxu0 %v1386
      %3701 = vmatpush1.msra.mxu0 %v1385
      %3702 = vmatprep.subr.mxu0 %v1394
      %3703 = vmatpush1.msra.mxu0 %v1393
      %3704 = vmatprep.subr.mxu0 %v1402
      %3705 = vmatpush1.msra.mxu0 %v1401
      %3706 = vmatprep.subr.mxu0 %v1410
      %3707 = vmatpush1.msra.mxu0 %v1409
      %3708 = vmatprep.subr.mxu0 %v1418
      %3709 = vmatpush1.msra.mxu0 %v1417
      %3710 = vmatprep.subr.mxu0 %v1426
      %3711 = vmatpush1.msra.mxu0 %v1425
      %3712 = vmatprep.subr.mxu0 %v1434
      %3713 = vmatpush1.msra.mxu0 %v1433
      %3714 = vmatprep.subr.mxu0 %v1442
      %3715 = vmatpush1.msra.mxu0 %v1441
      %3716 = vmatprep.mubr.f32.mxu0 %v3567
      %3717 = vmatmul.mubr.f32.gmra.mrb[0].mxu0 %v3565
      %v3718 = vpop.f32.mrb[0].mxu0
      %v3719 = vadd.f32 0.0, %v3718
      %v3720 = vpop.f32.mrb[0].mxu0
      %v3721 = vadd.f32 0.0, %v3720
      %3722 = vmatprep.mubr.f32.mxu0 %v3573
      %3723 = vmatmul.mubr.f32.gmra.mrb[0].mxu0 %v3571
      %v3724 = vpop.f32.mrb[0].mxu0
      %v3725 = vadd.f32 0.0, %v3724
      %v3726 = vpop.f32.mrb[0].mxu0
      %v3727 = vadd.f32 0.0, %v3726
      %3728 = vdwg.mxu0
      %3729 = vmatprep.subr.mxu0 %v1196
      %3730 = vmatpush1.msra.mxu0 %v1195
      %3731 = vmatprep.subr.mxu0 %v1204
      %3732 = vmatpush1.msra.mxu0 %v1203
      %3733 = vmatprep.subr.mxu0 %v1212
      %3734 = vmatpush1.msra.mxu0 %v1211
      %3735 = vmatprep.subr.mxu0 %v1220
      %3736 = vmatpush1.msra.mxu0 %v1219
      %3737 = vmatprep.subr.mxu0 %v1228
      %3738 = vmatpush1.msra.mxu0 %v1227
      %3739 = vmatprep.subr.mxu0 %v1236
      %3740 = vmatpush1.msra.mxu0 %v1235
      %3741 = vmatprep.subr.mxu0 %v1244
      %3742 = vmatpush1.msra.mxu0 %v1243
      %3743 = vmatprep.subr.mxu0 %v1252
      %3744 = vmatpush1.msra.mxu0 %v1251
      %3745 = vmatprep.subr.mxu0 %v1260
      %3746 = vmatpush1.msra.mxu0 %v1259
      %3747 = vmatprep.subr.mxu0 %v1268
      %3748 = vmatpush1.msra.mxu0 %v1267
      %3749 = vmatprep.subr.mxu0 %v1276
      %3750 = vmatpush1.msra.mxu0 %v1275
      %3751 = vmatprep.subr.mxu0 %v1284
      %3752 = vmatpush1.msra.mxu0 %v1283
      %3753 = vmatprep.subr.mxu0 %v1292
      %3754 = vmatpush1.msra.mxu0 %v1291
      %3755 = vmatprep.subr.mxu0 %v1300
      %3756 = vmatpush1.msra.mxu0 %v1299
      %3757 = vmatprep.subr.mxu0 %v1308
      %3758 = vmatpush1.msra.mxu0 %v1307
      %3759 = vmatprep.subr.mxu0 %v1316
      %3760 = vmatpush1.msra.mxu0 %v1315
      %3761 = vmatprep.subr.mxu0 %v1324
      %3762 = vmatpush1.msra.mxu0 %v1323
      %3763 = vmatprep.subr.mxu0 %v1332
      %3764 = vmatpush1.msra.mxu0 %v1331
      %3765 = vmatprep.subr.mxu0 %v1340
      %3766 = vmatpush1.msra.mxu0 %v1339
      %3767 = vmatprep.subr.mxu0 %v1348
      %3768 = vmatpush1.msra.mxu0 %v1347
      %3769 = vmatprep.subr.mxu0 %v1356
      %3770 = vmatpush1.msra.mxu0 %v1355
      %3771 = vmatprep.subr.mxu0 %v1364
      %3772 = vmatpush1.msra.mxu0 %v1363
      %3773 = vmatprep.subr.mxu0 %v1372
      %3774 = vmatpush1.msra.mxu0 %v1371
      %3775 = vmatprep.subr.mxu0 %v1380
      %3776 = vmatpush1.msra.mxu0 %v1379
      %3777 = vmatprep.subr.mxu0 %v1388
      %3778 = vmatpush1.msra.mxu0 %v1387
      %3779 = vmatprep.subr.mxu0 %v1396
      %3780 = vmatpush1.msra.mxu0 %v1395
      %3781 = vmatprep.subr.mxu0 %v1404
      %3782 = vmatpush1.msra.mxu0 %v1403
      %3783 = vmatprep.subr.mxu0 %v1412
      %3784 = vmatpush1.msra.mxu0 %v1411
      %3785 = vmatprep.subr.mxu0 %v1420
      %3786 = vmatpush1.msra.mxu0 %v1419
      %3787 = vmatprep.subr.mxu0 %v1428
      %3788 = vmatpush1.msra.mxu0 %v1427
      %3789 = vmatprep.subr.mxu0 %v1436
      %3790 = vmatpush1.msra.mxu0 %v1435
      %3791 = vmatprep.subr.mxu0 %v1444
      %3792 = vmatpush1.msra.mxu0 %v1443
      %3793 = vmatprep.mubr.f32.mxu0 %v3567
      %3794 = vmatmul.mubr.f32.gmra.mrb[0].mxu0 %v3565
      %v3795 = vpop.f32.mrb[0].mxu0
      %v3796 = vadd.f32 0.0, %v3795
      %v3797 = vpop.f32.mrb[0].mxu0
      %v3798 = vadd.f32 0.0, %v3797
      %3799 = vmatprep.mubr.f32.mxu0 %v3573
      %3800 = vmatmul.mubr.f32.gmra.mrb[0].mxu0 %v3571
      %v3801 = vpop.f32.mrb[0].mxu0
      %v3802 = vadd.f32 0.0, %v3801
      %v3803 = vpop.f32.mrb[0].mxu0
      %v3804 = vadd.f32 0.0, %v3803
      %3805 = vdwg.mxu0
      %3806 = vmatprep.subr.mxu0 %v1198
      %3807 = vmatpush1.msra.mxu0 %v1197
      %3808 = vmatprep.subr.mxu0 %v1206
      %3809 = vmatpush1.msra.mxu0 %v1205
      %3810 = vmatprep.subr.mxu0 %v1214
      %3811 = vmatpush1.msra.mxu0 %v1213
      %3812 = vmatprep.subr.mxu0 %v1222
      %3813 = vmatpush1.msra.mxu0 %v1221
      %3814 = vmatprep.subr.mxu0 %v1230
      %3815 = vmatpush1.msra.mxu0 %v1229
      %3816 = vmatprep.subr.mxu0 %v1238
      %3817 = vmatpush1.msra.mxu0 %v1237
      %3818 = vmatprep.subr.mxu0 %v1246
      %3819 = vmatpush1.msra.mxu0 %v1245
      %3820 = vmatprep.subr.mxu0 %v1254
      %3821 = vmatpush1.msra.mxu0 %v1253
      %3822 = vmatprep.subr.mxu0 %v1262
      %3823 = vmatpush1.msra.mxu0 %v1261
      %3824 = vmatprep.subr.mxu0 %v1270
      %3825 = vmatpush1.msra.mxu0 %v1269
      %3826 = vmatprep.subr.mxu0 %v1278
      %3827 = vmatpush1.msra.mxu0 %v1277
      %3828 = vmatprep.subr.mxu0 %v1286
      %3829 = vmatpush1.msra.mxu0 %v1285
      %3830 = vmatprep.subr.mxu0 %v1294
      %3831 = vmatpush1.msra.mxu0 %v1293
      %3832 = vmatprep.subr.mxu0 %v1302
      %3833 = vmatpush1.msra.mxu0 %v1301
      %3834 = vmatprep.subr.mxu0 %v1310
      %3835 = vmatpush1.msra.mxu0 %v1309
      %3836 = vmatprep.subr.mxu0 %v1318
      %3837 = vmatpush1.msra.mxu0 %v1317
      %3838 = vmatprep.subr.mxu0 %v1326
      %3839 = vmatpush1.msra.mxu0 %v1325
      %3840 = vmatprep.subr.mxu0 %v1334
      %3841 = vmatpush1.msra.mxu0 %v1333
      %3842 = vmatprep.subr.mxu0 %v1342
      %3843 = vmatpush1.msra.mxu0 %v1341
      %3844 = vmatprep.subr.mxu0 %v1350
      %3845 = vmatpush1.msra.mxu0 %v1349
      %3846 = vmatprep.subr.mxu0 %v1358
      %3847 = vmatpush1.msra.mxu0 %v1357
      %3848 = vmatprep.subr.mxu0 %v1366
      %3849 = vmatpush1.msra.mxu0 %v1365
      %3850 = vmatprep.subr.mxu0 %v1374
      %3851 = vmatpush1.msra.mxu0 %v1373
      %3852 = vmatprep.subr.mxu0 %v1382
      %3853 = vmatpush1.msra.mxu0 %v1381
      %3854 = vmatprep.subr.mxu0 %v1390
      %3855 = vmatpush1.msra.mxu0 %v1389
      %3856 = vmatprep.subr.mxu0 %v1398
      %3857 = vmatpush1.msra.mxu0 %v1397
      %3858 = vmatprep.subr.mxu0 %v1406
      %3859 = vmatpush1.msra.mxu0 %v1405
      %3860 = vmatprep.subr.mxu0 %v1414
      %3861 = vmatpush1.msra.mxu0 %v1413
      %3862 = vmatprep.subr.mxu0 %v1422
      %3863 = vmatpush1.msra.mxu0 %v1421
      %3864 = vmatprep.subr.mxu0 %v1430
      %3865 = vmatpush1.msra.mxu0 %v1429
      %3866 = vmatprep.subr.mxu0 %v1438
      %3867 = vmatpush1.msra.mxu0 %v1437
      %3868 = vmatprep.subr.mxu0 %v1446
      %3869 = vmatpush1.msra.mxu0 %v1445
      %3870 = vmatprep.mubr.f32.mxu0 %v3567
      %3871 = vmatmul.mubr.f32.gmra.mrb[0].mxu0 %v3565
      %v3872 = vpop.f32.mrb[0].mxu0
      %v3873 = vadd.f32 0.0, %v3872
      %v3874 = vpop.f32.mrb[0].mxu0
      %v3875 = vadd.f32 0.0, %v3874
      %3876 = vmatprep.mubr.f32.mxu0 %v3573
      %3877 = vmatmul.mubr.f32.gmra.mrb[0].mxu0 %v3571
      %v3878 = vpop.f32.mrb[0].mxu0
      %v3879 = vadd.f32 0.0, %v3878
      %v3880 = vpop.f32.mrb[0].mxu0
      %v3881 = vadd.f32 0.0, %v3880
      %3882 = vdwg.mxu0
      %3883 = vrot.lane.b32.xlu0 %v3642, 33
      %v3884 = vpop.permute.xlu0 %3883
      %3885 = vrot.lane.b32.xlu0 %v3648, 33
      %v3886 = vpop.permute.xlu0 %3885
      %3887 = vrot.lane.b32.xlu0 %v3644, 33
      %v3888 = vpop.permute.xlu0 %3887
      %3889 = vrot.lane.b32.xlu0 %v3650, 33
      %v3890 = vpop.permute.xlu0 %3889
      %3891 = vrot.lane.b32.xlu0 %v3719, 33
      %v3892 = vpop.permute.xlu0 %3891
      %3893 = vrot.lane.b32.xlu0 %v3725, 33
      %v3894 = vpop.permute.xlu0 %3893
      %3895 = vrot.lane.b32.xlu0 %v3721, 33
      %v3896 = vpop.permute.xlu0 %3895
      %3897 = vrot.lane.b32.xlu0 %v3727, 33
      %v3898 = vpop.permute.xlu0 %3897
      %3899 = vrot.lane.b32.xlu0 %v3796, 33
      %v3900 = vpop.permute.xlu0 %3899
      %3901 = vrot.lane.b32.xlu0 %v3802, 33
      %v3902 = vpop.permute.xlu0 %3901
      %3903 = vrot.lane.b32.xlu0 %v3798, 33
      %v3904 = vpop.permute.xlu0 %3903
      %3905 = vrot.lane.b32.xlu0 %v3804, 33
      %v3906 = vpop.permute.xlu0 %3905
      %3907 = vrot.lane.b32.xlu0 %v3873, 33
      %v3908 = vpop.permute.xlu0 %3907
      %3909 = vrot.lane.b32.xlu0 %v3879, 33
      %v3910 = vpop.permute.xlu0 %3909
      %3911 = vrot.lane.b32.xlu0 %v3875, 33
      %v3912 = vpop.permute.xlu0 %3911
      %3913 = vrot.lane.b32.xlu0 %v3881, 33
      %v3914 = vpop.permute.xlu0 %3913
      %v3915 = vsel %vm1985, %v3908, %v3912
      %v3916 = vsel %vm1985, %v3910, %v3914
      %v3917 = vsel %vm1985, %v3904, %v3908
      %v3918 = vsel %vm1985, %v3906, %v3910
      %v3919 = vsel %vm1985, %v3900, %v3904
      %v3920 = vsel %vm1985, %v3902, %v3906
      %v3921 = vsel %vm1985, %v3896, %v3900
      %v3922 = vsel %vm1985, %v3898, %v3902
      %v3923 = vsel %vm1985, %v3892, %v3896
      %v3924 = vsel %vm1985, %v3894, %v3898
      %v3925 = vsel %vm1985, %v3888, %v3892
      %v3926 = vsel %vm1985, %v3890, %v3894
      %v3927 = vsel %vm1985, %v3884, %v3888
      %v3928 = vsel %vm1985, %v3886, %v3890
      %v3929 = vsel %vm1985, %v3912, %v3884
      %v3930 = vsel %vm1985, %v3914, %v3886
      %v3931 = vmul.f32 %v3929, %v1997
      %v3932 = vmul.f32 %v3927, %v2001
      %v3933 = vmul.f32 %v3925, %v2005
      %v3934 = vmul.f32 %v3923, %v2009
      %v3935 = vmul.f32 %v3921, %v2013
      %v3936 = vmul.f32 %v3919, %v2017
      %v3937 = vmul.f32 %v3917, %v2021
      %v3938 = vmul.f32 %v3915, %v2025
      %v3939 = vmul.f32 %v3930, %v1997
      %v3940 = vmul.f32 %v3928, %v2001
      %v3941 = vmul.f32 %v3926, %v2005
      %v3942 = vmul.f32 %v3924, %v2009
      %v3943 = vmul.f32 %v3922, %v2013
      %v3944 = vmul.f32 %v3920, %v2017
      %v3945 = vmul.f32 %v3918, %v2021
      %v3946 = vmul.f32 %v3916, %v2025
      %3947 = vrot.lane.b32.xlu0 %v3642, 32
      %v3948 = vpop.permute.xlu0 %3947
      %3949 = vrot.lane.b32.xlu0 %v3648, 32
      %v3950 = vpop.permute.xlu0 %3949
      %3951 = vrot.lane.b32.xlu0 %v3644, 32
      %v3952 = vpop.permute.xlu0 %3951
      %3953 = vrot.lane.b32.xlu0 %v3650, 32
      %v3954 = vpop.permute.xlu0 %3953
      %3955 = vrot.lane.b32.xlu0 %v3719, 32
      %v3956 = vpop.permute.xlu0 %3955
      %3957 = vrot.lane.b32.xlu0 %v3725, 32
      %v3958 = vpop.permute.xlu0 %3957
      %3959 = vrot.lane.b32.xlu0 %v3721, 32
      %v3960 = vpop.permute.xlu0 %3959
      %3961 = vrot.lane.b32.xlu0 %v3727, 32
      %v3962 = vpop.permute.xlu0 %3961
      %3963 = vrot.lane.b32.xlu0 %v3796, 32
      %v3964 = vpop.permute.xlu0 %3963
      %3965 = vrot.lane.b32.xlu0 %v3802, 32
      %v3966 = vpop.permute.xlu0 %3965
      %3967 = vrot.lane.b32.xlu0 %v3798, 32
      %v3968 = vpop.permute.xlu0 %3967
      %3969 = vrot.lane.b32.xlu0 %v3804, 32
      %v3970 = vpop.permute.xlu0 %3969
      %3971 = vrot.lane.b32.xlu0 %v3873, 32
      %v3972 = vpop.permute.xlu0 %3971
      %3973 = vrot.lane.b32.xlu0 %v3879, 32
      %v3974 = vpop.permute.xlu0 %3973
      %3975 = vrot.lane.b32.xlu0 %v3875, 32
      %v3976 = vpop.permute.xlu0 %3975
      %3977 = vrot.lane.b32.xlu0 %v3881, 32
      %v3978 = vpop.permute.xlu0 %3977
      %v3979 = vsel %vm2050, %v3972, %v3976
      %v3980 = vsel %vm2050, %v3974, %v3978
      %v3981 = vsel %vm2050, %v3968, %v3972
      %v3982 = vsel %vm2050, %v3970, %v3974
      %v3983 = vsel %vm2050, %v3964, %v3968
      %v3984 = vsel %vm2050, %v3966, %v3970
      %v3985 = vsel %vm2050, %v3960, %v3964
      %v3986 = vsel %vm2050, %v3962, %v3966
      %v3987 = vsel %vm2050, %v3956, %v3960
      %v3988 = vsel %vm2050, %v3958, %v3962
      %v3989 = vsel %vm2050, %v3952, %v3956
      %v3990 = vsel %vm2050, %v3954, %v3958
      %v3991 = vsel %vm2050, %v3948, %v3952
      %v3992 = vsel %vm2050, %v3950, %v3954
      %v3993 = vsel %vm2050, %v3976, %v3948
      %v3994 = vsel %vm2050, %v3978, %v3950
      %v3995 = vmul.f32 %v3993, %v2062
      %v3996 = vmul.f32 %v3991, %v2066
      %v3997 = vmul.f32 %v3989, %v2070
      %v3998 = vmul.f32 %v3987, %v2074
      %v3999 = vmul.f32 %v3985, %v2078
      %v4000 = vmul.f32 %v3983, %v2082
      %v4001 = vmul.f32 %v3981, %v2086
      %v4002 = vmul.f32 %v3979, %v2090
      %v4003 = vmul.f32 %v3994, %v2062
      %v4004 = vmul.f32 %v3992, %v2066
      %v4005 = vmul.f32 %v3990, %v2070
      %v4006 = vmul.f32 %v3988, %v2074
      %v4007 = vmul.f32 %v3986, %v2078
      %v4008 = vmul.f32 %v3984, %v2082
      %v4009 = vmul.f32 %v3982, %v2086
      %v4010 = vmul.f32 %v3980, %v2090
      %4011 = vrot.lane.b32.xlu0 %v3642, 31
      %v4012 = vpop.permute.xlu0 %4011
      %4013 = vrot.lane.b32.xlu0 %v3648, 31
      %v4014 = vpop.permute.xlu0 %4013
      %4015 = vrot.lane.b32.xlu0 %v3644, 31
      %v4016 = vpop.permute.xlu0 %4015
      %4017 = vrot.lane.b32.xlu0 %v3650, 31
      %v4018 = vpop.permute.xlu0 %4017
      %4019 = vrot.lane.b32.xlu0 %v3719, 31
      %v4020 = vpop.permute.xlu0 %4019
      %4021 = vrot.lane.b32.xlu0 %v3725, 31
      %v4022 = vpop.permute.xlu0 %4021
      %4023 = vrot.lane.b32.xlu0 %v3721, 31
      %v4024 = vpop.permute.xlu0 %4023
      %4025 = vrot.lane.b32.xlu0 %v3727, 31
      %v4026 = vpop.permute.xlu0 %4025
      %4027 = vrot.lane.b32.xlu0 %v3796, 31
      %v4028 = vpop.permute.xlu0 %4027
      %4029 = vrot.lane.b32.xlu0 %v3802, 31
      %v4030 = vpop.permute.xlu0 %4029
      %4031 = vrot.lane.b32.xlu0 %v3798, 31
      %v4032 = vpop.permute.xlu0 %4031
      %4033 = vrot.lane.b32.xlu0 %v3804, 31
      %v4034 = vpop.permute.xlu0 %4033
      %4035 = vrot.lane.b32.xlu0 %v3873, 31
      %v4036 = vpop.permute.xlu0 %4035
      %4037 = vrot.lane.b32.xlu0 %v3879, 31
      %v4038 = vpop.permute.xlu0 %4037
      %4039 = vrot.lane.b32.xlu0 %v3875, 31
      %v4040 = vpop.permute.xlu0 %4039
      %4041 = vrot.lane.b32.xlu0 %v3881, 31
      %v4042 = vpop.permute.xlu0 %4041
      %v4043 = vsel %vm2115, %v4036, %v4040
      %v4044 = vsel %vm2115, %v4038, %v4042
      %v4045 = vsel %vm2115, %v4032, %v4036
      %v4046 = vsel %vm2115, %v4034, %v4038
      %v4047 = vsel %vm2115, %v4028, %v4032
      %v4048 = vsel %vm2115, %v4030, %v4034
      %v4049 = vsel %vm2115, %v4024, %v4028
      %v4050 = vsel %vm2115, %v4026, %v4030
      %v4051 = vsel %vm2115, %v4020, %v4024
      %v4052 = vsel %vm2115, %v4022, %v4026
      %v4053 = vsel %vm2115, %v4016, %v4020
      %v4054 = vsel %vm2115, %v4018, %v4022
      %v4055 = vsel %vm2115, %v4012, %v4016
      %v4056 = vsel %vm2115, %v4014, %v4018
      %v4057 = vsel %vm2115, %v4040, %v4012
      %v4058 = vsel %vm2115, %v4042, %v4014
      %v4059 = vmul.f32 %v4057, %v2127
      %v4060 = vmul.f32 %v4055, %v2131
      %v4061 = vmul.f32 %v4053, %v2135
      %v4062 = vmul.f32 %v4051, %v2139
      %v4063 = vmul.f32 %v4049, %v2143
      %v4064 = vmul.f32 %v4047, %v2147
      %v4065 = vmul.f32 %v4045, %v2151
      %v4066 = vmul.f32 %v4043, %v2155
      %v4067 = vmul.f32 %v4058, %v2127
      %v4068 = vmul.f32 %v4056, %v2131
      %v4069 = vmul.f32 %v4054, %v2135
      %v4070 = vmul.f32 %v4052, %v2139
      %v4071 = vmul.f32 %v4050, %v2143
      %v4072 = vmul.f32 %v4048, %v2147
      %v4073 = vmul.f32 %v4046, %v2151
      %v4074 = vmul.f32 %v4044, %v2155
      %4075 = vrot.lane.b32.xlu0 %v3642, 1
      %v4076 = vpop.permute.xlu0 %4075
      %4077 = vrot.lane.b32.xlu0 %v3648, 1
      %v4078 = vpop.permute.xlu0 %4077
      %4079 = vrot.lane.b32.xlu0 %v3644, 1
      %v4080 = vpop.permute.xlu0 %4079
      %4081 = vrot.lane.b32.xlu0 %v3650, 1
      %v4082 = vpop.permute.xlu0 %4081
      %4083 = vrot.lane.b32.xlu0 %v3719, 1
      %v4084 = vpop.permute.xlu0 %4083
      %4085 = vrot.lane.b32.xlu0 %v3725, 1
      %v4086 = vpop.permute.xlu0 %4085
      %4087 = vrot.lane.b32.xlu0 %v3721, 1
      %v4088 = vpop.permute.xlu0 %4087
      %4089 = vrot.lane.b32.xlu0 %v3727, 1
      %v4090 = vpop.permute.xlu0 %4089
      %4091 = vrot.lane.b32.xlu0 %v3796, 1
      %v4092 = vpop.permute.xlu0 %4091
      %4093 = vrot.lane.b32.xlu0 %v3802, 1
      %v4094 = vpop.permute.xlu0 %4093
      %4095 = vrot.lane.b32.xlu0 %v3798, 1
      %v4096 = vpop.permute.xlu0 %4095
      %4097 = vrot.lane.b32.xlu0 %v3804, 1
      %v4098 = vpop.permute.xlu0 %4097
      %4099 = vrot.lane.b32.xlu0 %v3873, 1
      %v4100 = vpop.permute.xlu0 %4099
      %4101 = vrot.lane.b32.xlu0 %v3879, 1
      %v4102 = vpop.permute.xlu0 %4101
      %4103 = vrot.lane.b32.xlu0 %v3875, 1
      %v4104 = vpop.permute.xlu0 %4103
      %4105 = vrot.lane.b32.xlu0 %v3881, 1
      %v4106 = vpop.permute.xlu0 %4105
      %v4107 = vsel %vm1788, %v4100, %v4104
      %v4108 = vsel %vm1788, %v4102, %v4106
      %v4109 = vsel %vm1788, %v4096, %v4100
      %v4110 = vsel %vm1788, %v4098, %v4102
      %v4111 = vsel %vm1788, %v4092, %v4096
      %v4112 = vsel %vm1788, %v4094, %v4098
      %v4113 = vsel %vm1788, %v4088, %v4092
      %v4114 = vsel %vm1788, %v4090, %v4094
      %v4115 = vsel %vm1788, %v4084, %v4088
      %v4116 = vsel %vm1788, %v4086, %v4090
      %v4117 = vsel %vm1788, %v4080, %v4084
      %v4118 = vsel %vm1788, %v4082, %v4086
      %v4119 = vsel %vm1788, %v4076, %v4080
      %v4120 = vsel %vm1788, %v4078, %v4082
      %v4121 = vsel %vm1788, %v4104, %v4076
      %v4122 = vsel %vm1788, %v4106, %v4078
      %v4123 = vmul.f32 %v4121, %v2191
      %v4124 = vmul.f32 %v4119, %v2195
      %v4125 = vmul.f32 %v4117, %v2199
      %v4126 = vmul.f32 %v4115, %v2203
      %v4127 = vmul.f32 %v4113, %v2207
      %v4128 = vmul.f32 %v4111, %v2211
      %v4129 = vmul.f32 %v4109, %v2215
      %v4130 = vmul.f32 %v4107, %v2219
      %v4131 = vmul.f32 %v4122, %v2191
      %v4132 = vmul.f32 %v4120, %v2195
      %v4133 = vmul.f32 %v4118, %v2199
      %v4134 = vmul.f32 %v4116, %v2203
      %v4135 = vmul.f32 %v4114, %v2207
      %v4136 = vmul.f32 %v4112, %v2211
      %v4137 = vmul.f32 %v4110, %v2215
      %v4138 = vmul.f32 %v4108, %v2219
      %4139 = vrot.lane.b32.xlu0 %v3642, 127
      %v4140 = vpop.permute.xlu0 %4139
      %4141 = vrot.lane.b32.xlu0 %v3648, 127
      %v4142 = vpop.permute.xlu0 %4141
      %4143 = vrot.lane.b32.xlu0 %v3644, 127
      %v4144 = vpop.permute.xlu0 %4143
      %4145 = vrot.lane.b32.xlu0 %v3650, 127
      %v4146 = vpop.permute.xlu0 %4145
      %4147 = vrot.lane.b32.xlu0 %v3719, 127
      %v4148 = vpop.permute.xlu0 %4147
      %4149 = vrot.lane.b32.xlu0 %v3725, 127
      %v4150 = vpop.permute.xlu0 %4149
      %4151 = vrot.lane.b32.xlu0 %v3721, 127
      %v4152 = vpop.permute.xlu0 %4151
      %4153 = vrot.lane.b32.xlu0 %v3727, 127
      %v4154 = vpop.permute.xlu0 %4153
      %4155 = vrot.lane.b32.xlu0 %v3796, 127
      %v4156 = vpop.permute.xlu0 %4155
      %4157 = vrot.lane.b32.xlu0 %v3802, 127
      %v4158 = vpop.permute.xlu0 %4157
      %4159 = vrot.lane.b32.xlu0 %v3798, 127
      %v4160 = vpop.permute.xlu0 %4159
      %4161 = vrot.lane.b32.xlu0 %v3804, 127
      %v4162 = vpop.permute.xlu0 %4161
      %4163 = vrot.lane.b32.xlu0 %v3873, 127
      %v4164 = vpop.permute.xlu0 %4163
      %4165 = vrot.lane.b32.xlu0 %v3879, 127
      %v4166 = vpop.permute.xlu0 %4165
      %4167 = vrot.lane.b32.xlu0 %v3875, 127
      %v4168 = vpop.permute.xlu0 %4167
      %4169 = vrot.lane.b32.xlu0 %v3881, 127
      %v4170 = vpop.permute.xlu0 %4169
      %v4171 = vsel %vm1805, %v4164, %v4168
      %v4172 = vsel %vm1805, %v4166, %v4170
      %v4173 = vsel %vm1805, %v4160, %v4164
      %v4174 = vsel %vm1805, %v4162, %v4166
      %v4175 = vsel %vm1805, %v4156, %v4160
      %v4176 = vsel %vm1805, %v4158, %v4162
      %v4177 = vsel %vm1805, %v4152, %v4156
      %v4178 = vsel %vm1805, %v4154, %v4158
      %v4179 = vsel %vm1805, %v4148, %v4152
      %v4180 = vsel %vm1805, %v4150, %v4154
      %v4181 = vsel %vm1805, %v4144, %v4148
      %v4182 = vsel %vm1805, %v4146, %v4150
      %v4183 = vsel %vm1805, %v4140, %v4144
      %v4184 = vsel %vm1805, %v4142, %v4146
      %v4185 = vsel %vm1805, %v4168, %v4140
      %v4186 = vsel %vm1805, %v4170, %v4142
      %v4187 = vmul.f32 %v4183, %v2255
      %v4188 = vmul.f32 %v4181, %v2259
      %v4189 = vmul.f32 %v4179, %v2263
      %v4190 = vmul.f32 %v4177, %v2267
      %v4191 = vmul.f32 %v4175, %v2271
      %v4192 = vmul.f32 %v4173, %v2275
      %v4193 = vmul.f32 %v4171, %v2279
      %v4194 = vmul.f32 %v4185, %v2283
      %v4195 = vmul.f32 %v4184, %v2255
      %v4196 = vmul.f32 %v4182, %v2259
      %v4197 = vmul.f32 %v4180, %v2263
      %v4198 = vmul.f32 %v4178, %v2267
      %v4199 = vmul.f32 %v4176, %v2271
      %v4200 = vmul.f32 %v4174, %v2275
      %v4201 = vmul.f32 %v4172, %v2279
      %v4202 = vmul.f32 %v4186, %v2283
      %4203 = vrot.lane.b32.xlu0 %v3642, 97
      %v4204 = vpop.permute.xlu0 %4203
      %4205 = vrot.lane.b32.xlu0 %v3648, 97
      %v4206 = vpop.permute.xlu0 %4205
      %4207 = vrot.lane.b32.xlu0 %v3644, 97
      %v4208 = vpop.permute.xlu0 %4207
      %4209 = vrot.lane.b32.xlu0 %v3650, 97
      %v4210 = vpop.permute.xlu0 %4209
      %4211 = vrot.lane.b32.xlu0 %v3719, 97
      %v4212 = vpop.permute.xlu0 %4211
      %4213 = vrot.lane.b32.xlu0 %v3725, 97
      %v4214 = vpop.permute.xlu0 %4213
      %4215 = vrot.lane.b32.xlu0 %v3721, 97
      %v4216 = vpop.permute.xlu0 %4215
      %4217 = vrot.lane.b32.xlu0 %v3727, 97
      %v4218 = vpop.permute.xlu0 %4217
      %4219 = vrot.lane.b32.xlu0 %v3796, 97
      %v4220 = vpop.permute.xlu0 %4219
      %4221 = vrot.lane.b32.xlu0 %v3802, 97
      %v4222 = vpop.permute.xlu0 %4221
      %4223 = vrot.lane.b32.xlu0 %v3798, 97
      %v4224 = vpop.permute.xlu0 %4223
      %4225 = vrot.lane.b32.xlu0 %v3804, 97
      %v4226 = vpop.permute.xlu0 %4225
      %4227 = vrot.lane.b32.xlu0 %v3873, 97
      %v4228 = vpop.permute.xlu0 %4227
      %4229 = vrot.lane.b32.xlu0 %v3879, 97
      %v4230 = vpop.permute.xlu0 %4229
      %4231 = vrot.lane.b32.xlu0 %v3875, 97
      %v4232 = vpop.permute.xlu0 %4231
      %4233 = vrot.lane.b32.xlu0 %v3881, 97
      %v4234 = vpop.permute.xlu0 %4233
      %v4235 = vsel %vm2308, %v4228, %v4232
      %v4236 = vsel %vm2308, %v4230, %v4234
      %v4237 = vsel %vm2308, %v4224, %v4228
      %v4238 = vsel %vm2308, %v4226, %v4230
      %v4239 = vsel %vm2308, %v4220, %v4224
      %v4240 = vsel %vm2308, %v4222, %v4226
      %v4241 = vsel %vm2308, %v4216, %v4220
      %v4242 = vsel %vm2308, %v4218, %v4222
      %v4243 = vsel %vm2308, %v4212, %v4216
      %v4244 = vsel %vm2308, %v4214, %v4218
      %v4245 = vsel %vm2308, %v4208, %v4212
      %v4246 = vsel %vm2308, %v4210, %v4214
      %v4247 = vsel %vm2308, %v4204, %v4208
      %v4248 = vsel %vm2308, %v4206, %v4210
      %v4249 = vsel %vm2308, %v4232, %v4204
      %v4250 = vsel %vm2308, %v4234, %v4206
      %v4251 = vmul.f32 %v4247, %v2320
      %v4252 = vmul.f32 %v4245, %v2324
      %v4253 = vmul.f32 %v4243, %v2328
      %v4254 = vmul.f32 %v4241, %v2332
      %v4255 = vmul.f32 %v4239, %v2336
      %v4256 = vmul.f32 %v4237, %v2340
      %v4257 = vmul.f32 %v4235, %v2344
      %v4258 = vmul.f32 %v4249, %v2348
      %v4259 = vmul.f32 %v4248, %v2320
      %v4260 = vmul.f32 %v4246, %v2324
      %v4261 = vmul.f32 %v4244, %v2328
      %v4262 = vmul.f32 %v4242, %v2332
      %v4263 = vmul.f32 %v4240, %v2336
      %v4264 = vmul.f32 %v4238, %v2340
      %v4265 = vmul.f32 %v4236, %v2344
      %v4266 = vmul.f32 %v4250, %v2348
      %4267 = vrot.lane.b32.xlu0 %v3642, 96
      %v4268 = vpop.permute.xlu0 %4267
      %4269 = vrot.lane.b32.xlu0 %v3648, 96
      %v4270 = vpop.permute.xlu0 %4269
      %4271 = vrot.lane.b32.xlu0 %v3644, 96
      %v4272 = vpop.permute.xlu0 %4271
      %4273 = vrot.lane.b32.xlu0 %v3650, 96
      %v4274 = vpop.permute.xlu0 %4273
      %4275 = vrot.lane.b32.xlu0 %v3719, 96
      %v4276 = vpop.permute.xlu0 %4275
      %4277 = vrot.lane.b32.xlu0 %v3725, 96
      %v4278 = vpop.permute.xlu0 %4277
      %4279 = vrot.lane.b32.xlu0 %v3721, 96
      %v4280 = vpop.permute.xlu0 %4279
      %4281 = vrot.lane.b32.xlu0 %v3727, 96
      %v4282 = vpop.permute.xlu0 %4281
      %4283 = vrot.lane.b32.xlu0 %v3796, 96
      %v4284 = vpop.permute.xlu0 %4283
      %4285 = vrot.lane.b32.xlu0 %v3802, 96
      %v4286 = vpop.permute.xlu0 %4285
      %4287 = vrot.lane.b32.xlu0 %v3798, 96
      %v4288 = vpop.permute.xlu0 %4287
      %4289 = vrot.lane.b32.xlu0 %v3804, 96
      %v4290 = vpop.permute.xlu0 %4289
      %4291 = vrot.lane.b32.xlu0 %v3873, 96
      %v4292 = vpop.permute.xlu0 %4291
      %4293 = vrot.lane.b32.xlu0 %v3879, 96
      %v4294 = vpop.permute.xlu0 %4293
      %4295 = vrot.lane.b32.xlu0 %v3875, 96
      %v4296 = vpop.permute.xlu0 %4295
      %4297 = vrot.lane.b32.xlu0 %v3881, 96
      %v4298 = vpop.permute.xlu0 %4297
      %v4299 = vsel %vm2373, %v4292, %v4296
      %v4300 = vsel %vm2373, %v4294, %v4298
      %v4301 = vsel %vm2373, %v4288, %v4292
      %v4302 = vsel %vm2373, %v4290, %v4294
      %v4303 = vsel %vm2373, %v4284, %v4288
      %v4304 = vsel %vm2373, %v4286, %v4290
      %v4305 = vsel %vm2373, %v4280, %v4284
      %v4306 = vsel %vm2373, %v4282, %v4286
      %v4307 = vsel %vm2373, %v4276, %v4280
      %v4308 = vsel %vm2373, %v4278, %v4282
      %v4309 = vsel %vm2373, %v4272, %v4276
      %v4310 = vsel %vm2373, %v4274, %v4278
      %v4311 = vsel %vm2373, %v4268, %v4272
      %v4312 = vsel %vm2373, %v4270, %v4274
      %v4313 = vsel %vm2373, %v4296, %v4268
      %v4314 = vsel %vm2373, %v4298, %v4270
      %v4315 = vmul.f32 %v4311, %v2385
      %v4316 = vmul.f32 %v4309, %v2389
      %v4317 = vmul.f32 %v4307, %v2393
      %v4318 = vmul.f32 %v4305, %v2397
      %v4319 = vmul.f32 %v4303, %v2401
      %v4320 = vmul.f32 %v4301, %v2405
      %v4321 = vmul.f32 %v4299, %v2409
      %v4322 = vmul.f32 %v4313, %v2413
      %v4323 = vmul.f32 %v4312, %v2385
      %v4324 = vmul.f32 %v4310, %v2389
      %v4325 = vmul.f32 %v4308, %v2393
      %v4326 = vmul.f32 %v4306, %v2397
      %v4327 = vmul.f32 %v4304, %v2401
      %v4328 = vmul.f32 %v4302, %v2405
      %v4329 = vmul.f32 %v4300, %v2409
      %v4330 = vmul.f32 %v4314, %v2413
      %4331 = vrot.lane.b32.xlu0 %v3642, 95
      %v4332 = vpop.permute.xlu0 %4331
      %4333 = vrot.lane.b32.xlu0 %v3648, 95
      %v4334 = vpop.permute.xlu0 %4333
      %4335 = vrot.lane.b32.xlu0 %v3644, 95
      %v4336 = vpop.permute.xlu0 %4335
      %4337 = vrot.lane.b32.xlu0 %v3650, 95
      %v4338 = vpop.permute.xlu0 %4337
      %4339 = vrot.lane.b32.xlu0 %v3719, 95
      %v4340 = vpop.permute.xlu0 %4339
      %4341 = vrot.lane.b32.xlu0 %v3725, 95
      %v4342 = vpop.permute.xlu0 %4341
      %4343 = vrot.lane.b32.xlu0 %v3721, 95
      %v4344 = vpop.permute.xlu0 %4343
      %4345 = vrot.lane.b32.xlu0 %v3727, 95
      %v4346 = vpop.permute.xlu0 %4345
      %4347 = vrot.lane.b32.xlu0 %v3796, 95
      %v4348 = vpop.permute.xlu0 %4347
      %4349 = vrot.lane.b32.xlu0 %v3802, 95
      %v4350 = vpop.permute.xlu0 %4349
      %4351 = vrot.lane.b32.xlu0 %v3798, 95
      %v4352 = vpop.permute.xlu0 %4351
      %4353 = vrot.lane.b32.xlu0 %v3804, 95
      %v4354 = vpop.permute.xlu0 %4353
      %4355 = vrot.lane.b32.xlu0 %v3873, 95
      %v4356 = vpop.permute.xlu0 %4355
      %4357 = vrot.lane.b32.xlu0 %v3879, 95
      %v4358 = vpop.permute.xlu0 %4357
      %4359 = vrot.lane.b32.xlu0 %v3875, 95
      %v4360 = vpop.permute.xlu0 %4359
      %4361 = vrot.lane.b32.xlu0 %v3881, 95
      %v4362 = vpop.permute.xlu0 %4361
      %v4363 = vsel %vm2438, %v4356, %v4360
      %v4364 = vsel %vm2438, %v4358, %v4362
      %v4365 = vsel %vm2438, %v4352, %v4356
      %v4366 = vsel %vm2438, %v4354, %v4358
      %v4367 = vsel %vm2438, %v4348, %v4352
      %v4368 = vsel %vm2438, %v4350, %v4354
      %v4369 = vsel %vm2438, %v4344, %v4348
      %v4370 = vsel %vm2438, %v4346, %v4350
      %v4371 = vsel %vm2438, %v4340, %v4344
      %v4372 = vsel %vm2438, %v4342, %v4346
      %v4373 = vsel %vm2438, %v4336, %v4340
      %v4374 = vsel %vm2438, %v4338, %v4342
      %v4375 = vsel %vm2438, %v4332, %v4336
      %v4376 = vsel %vm2438, %v4334, %v4338
      %v4377 = vsel %vm2438, %v4360, %v4332
      %v4378 = vsel %vm2438, %v4362, %v4334
      %v4379 = vmul.f32 %v4375, %v2450
      %v4380 = vmul.f32 %v4373, %v2454
      %v4381 = vmul.f32 %v4371, %v2458
      %v4382 = vmul.f32 %v4369, %v2462
      %v4383 = vmul.f32 %v4367, %v2466
      %v4384 = vmul.f32 %v4365, %v2470
      %v4385 = vmul.f32 %v4363, %v2474
      %v4386 = vmul.f32 %v4377, %v2478
      %v4387 = vmul.f32 %v4376, %v2450
      %v4388 = vmul.f32 %v4374, %v2454
      %v4389 = vmul.f32 %v4372, %v2458
      %v4390 = vmul.f32 %v4370, %v2462
      %v4391 = vmul.f32 %v4368, %v2466
      %v4392 = vmul.f32 %v4366, %v2470
      %v4393 = vmul.f32 %v4364, %v2474
      %v4394 = vmul.f32 %v4378, %v2478
      %v4395 = vld [vmem:[%s16] sm:$0xff]
      %v4396 = vld [vmem:[%s16 + $0x8] sm:$0xff]
      %v4397 = vld [vmem:[%s16 + $0x10] sm:$0xff]
      %v4398 = vld [vmem:[%s16 + $0x18] sm:$0xff]
      %v4399 = vld [vmem:[%s17] sm:$0xff]
      %v4400 = vld [vmem:[%s17 + $0x8] sm:$0xff]
      %4402 = vset.pattern.permute.xlu0 0
      %4403 = vperm.xlu0 %4402, %v4399
      %v4404 = vpop.permute.xlu0 %4403
      %4407 = vset.pattern.permute.xlu0 0
      %4408 = vperm.xlu0 %4407, %v4400
      %v4409 = vpop.permute.xlu0 %4408
      %v4412 = vsel %vm3491, %v4396, 0
      %v4415 = vsel %vm3491, %v4398, 0
      %4417 = vmatprep.subr.mxu0 %v3932
      %4418 = vmatpush1.msra.mxu0 %v3931
      %4419 = vmatprep.subr.mxu0 %v3940
      %4420 = vmatpush1.msra.mxu0 %v3939
      %4421 = vmatprep.subr.mxu0 %v3996
      %4422 = vmatpush1.msra.mxu0 %v3995
      %4423 = vmatprep.subr.mxu0 %v4004
      %4424 = vmatpush1.msra.mxu0 %v4003
      %4425 = vmatprep.subr.mxu0 %v4060
      %4426 = vmatpush1.msra.mxu0 %v4059
      %4427 = vmatprep.subr.mxu0 %v4068
      %4428 = vmatpush1.msra.mxu0 %v4067
      %4429 = vmatprep.subr.mxu0 %v4124
      %4430 = vmatpush1.msra.mxu0 %v4123
      %4431 = vmatprep.subr.mxu0 %v4132
      %4432 = vmatpush1.msra.mxu0 %v4131
      %4433 = vmatprep.subr.mxu0 %v3644
      %4434 = vmatpush1.msra.mxu0 %v3642
      %4435 = vmatprep.subr.mxu0 %v3650
      %4436 = vmatpush1.msra.mxu0 %v3648
      %4437 = vmatprep.subr.mxu0 %v4188
      %4438 = vmatpush1.msra.mxu0 %v4187
      %4439 = vmatprep.subr.mxu0 %v4196
      %4440 = vmatpush1.msra.mxu0 %v4195
      %4441 = vmatprep.subr.mxu0 %v4252
      %4442 = vmatpush1.msra.mxu0 %v4251
      %4443 = vmatprep.subr.mxu0 %v4260
      %4444 = vmatpush1.msra.mxu0 %v4259
      %4445 = vmatprep.subr.mxu0 %v4316
      %4446 = vmatpush1.msra.mxu0 %v4315
      %4447 = vmatprep.subr.mxu0 %v4324
      %4448 = vmatpush1.msra.mxu0 %v4323
      %4449 = vmatprep.subr.mxu0 %v4380
      %4450 = vmatpush1.msra.mxu0 %v4379
      %4451 = vmatprep.subr.mxu0 %v4388
      %4452 = vmatpush1.msra.mxu0 %v4387
      %4453 = vmatprep.subr.mxu0 0.0
      %4454 = vmatpush1.msra.mxu0 0.0
      %4455 = vmatprep.subr.mxu0 0.0
      %4456 = vmatpush1.msra.mxu0 0.0
      %4457 = vmatprep.subr.mxu0 0.0
      %4458 = vmatpush1.msra.mxu0 0.0
      %4459 = vmatprep.subr.mxu0 0.0
      %4460 = vmatpush1.msra.mxu0 0.0
      %4461 = vmatprep.subr.mxu0 0.0
      %4462 = vmatpush1.msra.mxu0 0.0
      %4463 = vmatprep.subr.mxu0 0.0
      %4464 = vmatpush1.msra.mxu0 0.0
      %4465 = vmatprep.subr.mxu0 0.0
      %4466 = vmatpush1.msra.mxu0 0.0
      %4467 = vmatprep.subr.mxu0 0.0
      %4468 = vmatpush1.msra.mxu0 0.0
      %4469 = vmatprep.subr.mxu0 0.0
      %4470 = vmatpush1.msra.mxu0 0.0
      %4471 = vmatprep.subr.mxu0 0.0
      %4472 = vmatpush1.msra.mxu0 0.0
      %4473 = vmatprep.subr.mxu0 0.0
      %4474 = vmatpush1.msra.mxu0 0.0
      %4475 = vmatprep.subr.mxu0 0.0
      %4476 = vmatpush1.msra.mxu0 0.0
      %4477 = vmatprep.subr.mxu0 0.0
      %4478 = vmatpush1.msra.mxu0 0.0
      %4479 = vmatprep.subr.mxu0 0.0
      %4480 = vmatpush1.msra.mxu0 0.0
      %4481 = vmatprep.mubr.f32.mxu0 %v4412
      %4482 = vmatmul.mubr.f32.gmra.mrb[0].mxu0 %v4395
      %v4483 = vpop.f32.mrb[0].mxu0
      %v4484 = vadd.f32 %v4404, %v4483
      %v4485 = vpop.f32.mrb[0].mxu0
      %v4486 = vadd.f32 %v4404, %v4485
      %4487 = vmatprep.mubr.f32.mxu0 %v4415
      %4488 = vmatmul.mubr.f32.gmra.mrb[0].mxu0 %v4397
      %v4489 = vpop.f32.mrb[0].mxu0
      %v4490 = vadd.f32 %v4409, %v4489
      %v4491 = vpop.f32.mrb[0].mxu0
      %v4492 = vadd.f32 %v4409, %v4491
      %4493 = vdwg.mxu0
      %4494 = vmatprep.subr.mxu0 %v3934
      %4495 = vmatpush1.msra.mxu0 %v3933
      %4496 = vmatprep.subr.mxu0 %v3942
      %4497 = vmatpush1.msra.mxu0 %v3941
      %4498 = vmatprep.subr.mxu0 %v3998
      %4499 = vmatpush1.msra.mxu0 %v3997
      %4500 = vmatprep.subr.mxu0 %v4006
      %4501 = vmatpush1.msra.mxu0 %v4005
      %4502 = vmatprep.subr.mxu0 %v4062
      %4503 = vmatpush1.msra.mxu0 %v4061
      %4504 = vmatprep.subr.mxu0 %v4070
      %4505 = vmatpush1.msra.mxu0 %v4069
      %4506 = vmatprep.subr.mxu0 %v4126
      %4507 = vmatpush1.msra.mxu0 %v4125
      %4508 = vmatprep.subr.mxu0 %v4134
      %4509 = vmatpush1.msra.mxu0 %v4133
      %4510 = vmatprep.subr.mxu0 %v3721
      %4511 = vmatpush1.msra.mxu0 %v3719
      %4512 = vmatprep.subr.mxu0 %v3727
      %4513 = vmatpush1.msra.mxu0 %v3725
      %4514 = vmatprep.subr.mxu0 %v4190
      %4515 = vmatpush1.msra.mxu0 %v4189
      %4516 = vmatprep.subr.mxu0 %v4198
      %4517 = vmatpush1.msra.mxu0 %v4197
      %4518 = vmatprep.subr.mxu0 %v4254
      %4519 = vmatpush1.msra.mxu0 %v4253
      %4520 = vmatprep.subr.mxu0 %v4262
      %4521 = vmatpush1.msra.mxu0 %v4261
      %4522 = vmatprep.subr.mxu0 %v4318
      %4523 = vmatpush1.msra.mxu0 %v4317
      %4524 = vmatprep.subr.mxu0 %v4326
      %4525 = vmatpush1.msra.mxu0 %v4325
      %4526 = vmatprep.subr.mxu0 %v4382
      %4527 = vmatpush1.msra.mxu0 %v4381
      %4528 = vmatprep.subr.mxu0 %v4390
      %4529 = vmatpush1.msra.mxu0 %v4389
      %4530 = vmatprep.subr.mxu0 0.0
      %4531 = vmatpush1.msra.mxu0 0.0
      %4532 = vmatprep.subr.mxu0 0.0
      %4533 = vmatpush1.msra.mxu0 0.0
      %4534 = vmatprep.subr.mxu0 0.0
      %4535 = vmatpush1.msra.mxu0 0.0
      %4536 = vmatprep.subr.mxu0 0.0
      %4537 = vmatpush1.msra.mxu0 0.0
      %4538 = vmatprep.subr.mxu0 0.0
      %4539 = vmatpush1.msra.mxu0 0.0
      %4540 = vmatprep.subr.mxu0 0.0
      %4541 = vmatpush1.msra.mxu0 0.0
      %4542 = vmatprep.subr.mxu0 0.0
      %4543 = vmatpush1.msra.mxu0 0.0
      %4544 = vmatprep.subr.mxu0 0.0
      %4545 = vmatpush1.msra.mxu0 0.0
      %4546 = vmatprep.subr.mxu0 0.0
      %4547 = vmatpush1.msra.mxu0 0.0
      %4548 = vmatprep.subr.mxu0 0.0
      %4549 = vmatpush1.msra.mxu0 0.0
      %4550 = vmatprep.subr.mxu0 0.0
      %4551 = vmatpush1.msra.mxu0 0.0
      %4552 = vmatprep.subr.mxu0 0.0
      %4553 = vmatpush1.msra.mxu0 0.0
      %4554 = vmatprep.subr.mxu0 0.0
      %4555 = vmatpush1.msra.mxu0 0.0
      %4556 = vmatprep.subr.mxu0 0.0
      %4557 = vmatpush1.msra.mxu0 0.0
      %4558 = vmatprep.mubr.f32.mxu0 %v4412
      %4559 = vmatmul.mubr.f32.gmra.mrb[0].mxu0 %v4395
      %v4560 = vpop.f32.mrb[0].mxu0
      %v4561 = vadd.f32 %v4404, %v4560
      %v4562 = vpop.f32.mrb[0].mxu0
      %v4563 = vadd.f32 %v4404, %v4562
      %4564 = vmatprep.mubr.f32.mxu0 %v4415
      %4565 = vmatmul.mubr.f32.gmra.mrb[0].mxu0 %v4397
      %v4566 = vpop.f32.mrb[0].mxu0
      %v4567 = vadd.f32 %v4409, %v4566
      %v4568 = vpop.f32.mrb[0].mxu0
      %v4569 = vadd.f32 %v4409, %v4568
      %4570 = vdwg.mxu0
      %4571 = vmatprep.subr.mxu0 %v3936
      %4572 = vmatpush1.msra.mxu0 %v3935
      %4573 = vmatprep.subr.mxu0 %v3944
      %4574 = vmatpush1.msra.mxu0 %v3943
      %4575 = vmatprep.subr.mxu0 %v4000
      %4576 = vmatpush1.msra.mxu0 %v3999
      %4577 = vmatprep.subr.mxu0 %v4008
      %4578 = vmatpush1.msra.mxu0 %v4007
      %4579 = vmatprep.subr.mxu0 %v4064
      %4580 = vmatpush1.msra.mxu0 %v4063
      %4581 = vmatprep.subr.mxu0 %v4072
      %4582 = vmatpush1.msra.mxu0 %v4071
      %4583 = vmatprep.subr.mxu0 %v4128
      %4584 = vmatpush1.msra.mxu0 %v4127
      %4585 = vmatprep.subr.mxu0 %v4136
      %4586 = vmatpush1.msra.mxu0 %v4135
      %4587 = vmatprep.subr.mxu0 %v3798
      %4588 = vmatpush1.msra.mxu0 %v3796
      %4589 = vmatprep.subr.mxu0 %v3804
      %4590 = vmatpush1.msra.mxu0 %v3802
      %4591 = vmatprep.subr.mxu0 %v4192
      %4592 = vmatpush1.msra.mxu0 %v4191
      %4593 = vmatprep.subr.mxu0 %v4200
      %4594 = vmatpush1.msra.mxu0 %v4199
      %4595 = vmatprep.subr.mxu0 %v4256
      %4596 = vmatpush1.msra.mxu0 %v4255
      %4597 = vmatprep.subr.mxu0 %v4264
      %4598 = vmatpush1.msra.mxu0 %v4263
      %4599 = vmatprep.subr.mxu0 %v4320
      %4600 = vmatpush1.msra.mxu0 %v4319
      %4601 = vmatprep.subr.mxu0 %v4328
      %4602 = vmatpush1.msra.mxu0 %v4327
      %4603 = vmatprep.subr.mxu0 %v4384
      %4604 = vmatpush1.msra.mxu0 %v4383
      %4605 = vmatprep.subr.mxu0 %v4392
      %4606 = vmatpush1.msra.mxu0 %v4391
      %4607 = vmatprep.subr.mxu0 0.0
      %4608 = vmatpush1.msra.mxu0 0.0
      %4609 = vmatprep.subr.mxu0 0.0
      %4610 = vmatpush1.msra.mxu0 0.0
      %4611 = vmatprep.subr.mxu0 0.0
      %4612 = vmatpush1.msra.mxu0 0.0
      %4613 = vmatprep.subr.mxu0 0.0
      %4614 = vmatpush1.msra.mxu0 0.0
      %4615 = vmatprep.subr.mxu0 0.0
      %4616 = vmatpush1.msra.mxu0 0.0
      %4617 = vmatprep.subr.mxu0 0.0
      %4618 = vmatpush1.msra.mxu0 0.0
      %4619 = vmatprep.subr.mxu0 0.0
      %4620 = vmatpush1.msra.mxu0 0.0
      %4621 = vmatprep.subr.mxu0 0.0
      %4622 = vmatpush1.msra.mxu0 0.0
      %4623 = vmatprep.subr.mxu0 0.0
      %4624 = vmatpush1.msra.mxu0 0.0
      %4625 = vmatprep.subr.mxu0 0.0
      %4626 = vmatpush1.msra.mxu0 0.0
      %4627 = vmatprep.subr.mxu0 0.0
      %4628 = vmatpush1.msra.mxu0 0.0
      %4629 = vmatprep.subr.mxu0 0.0
      %4630 = vmatpush1.msra.mxu0 0.0
      %4631 = vmatprep.subr.mxu0 0.0
      %4632 = vmatpush1.msra.mxu0 0.0
      %4633 = vmatprep.subr.mxu0 0.0
      %4634 = vmatpush1.msra.mxu0 0.0
      %4635 = vmatprep.mubr.f32.mxu0 %v4412
      %4636 = vmatmul.mubr.f32.gmra.mrb[0].mxu0 %v4395
      %v4637 = vpop.f32.mrb[0].mxu0
      %v4638 = vadd.f32 %v4404, %v4637
      %v4639 = vpop.f32.mrb[0].mxu0
      %v4640 = vadd.f32 %v4404, %v4639
      %4641 = vmatprep.mubr.f32.mxu0 %v4415
      %4642 = vmatmul.mubr.f32.gmra.mrb[0].mxu0 %v4397
      %v4643 = vpop.f32.mrb[0].mxu0
      %v4644 = vadd.f32 %v4409, %v4643
      %v4645 = vpop.f32.mrb[0].mxu0
      %v4646 = vadd.f32 %v4409, %v4645
      %4647 = vdwg.mxu0
      %4648 = vmatprep.subr.mxu0 %v3938
      %4649 = vmatpush1.msra.mxu0 %v3937
      %4650 = vmatprep.subr.mxu0 %v3946
      %4651 = vmatpush1.msra.mxu0 %v3945
      %4652 = vmatprep.subr.mxu0 %v4002
      %4653 = vmatpush1.msra.mxu0 %v4001
      %4654 = vmatprep.subr.mxu0 %v4010
      %4655 = vmatpush1.msra.mxu0 %v4009
      %4656 = vmatprep.subr.mxu0 %v4066
      %4657 = vmatpush1.msra.mxu0 %v4065
      %4658 = vmatprep.subr.mxu0 %v4074
      %4659 = vmatpush1.msra.mxu0 %v4073
      %4660 = vmatprep.subr.mxu0 %v4130
      %4661 = vmatpush1.msra.mxu0 %v4129
      %4662 = vmatprep.subr.mxu0 %v4138
      %4663 = vmatpush1.msra.mxu0 %v4137
      %4664 = vmatprep.subr.mxu0 %v3875
      %4665 = vmatpush1.msra.mxu0 %v3873
      %4666 = vmatprep.subr.mxu0 %v3881
      %4667 = vmatpush1.msra.mxu0 %v3879
      %4668 = vmatprep.subr.mxu0 %v4194
      %4669 = vmatpush1.msra.mxu0 %v4193
      %4670 = vmatprep.subr.mxu0 %v4202
      %4671 = vmatpush1.msra.mxu0 %v4201
      %4672 = vmatprep.subr.mxu0 %v4258
      %4673 = vmatpush1.msra.mxu0 %v4257
      %4674 = vmatprep.subr.mxu0 %v4266
      %4675 = vmatpush1.msra.mxu0 %v4265
      %4676 = vmatprep.subr.mxu0 %v4322
      %4677 = vmatpush1.msra.mxu0 %v4321
      %4678 = vmatprep.subr.mxu0 %v4330
      %4679 = vmatpush1.msra.mxu0 %v4329
      %4680 = vmatprep.subr.mxu0 %v4386
      %4681 = vmatpush1.msra.mxu0 %v4385
      %4682 = vmatprep.subr.mxu0 %v4394
      %4683 = vmatpush1.msra.mxu0 %v4393
      %4684 = vmatprep.subr.mxu0 0.0
      %4685 = vmatpush1.msra.mxu0 0.0
      %4686 = vmatprep.subr.mxu0 0.0
      %4687 = vmatpush1.msra.mxu0 0.0
      %4688 = vmatprep.subr.mxu0 0.0
      %4689 = vmatpush1.msra.mxu0 0.0
      %4690 = vmatprep.subr.mxu0 0.0
      %4691 = vmatpush1.msra.mxu0 0.0
      %4692 = vmatprep.subr.mxu0 0.0
      %4693 = vmatpush1.msra.mxu0 0.0
      %4694 = vmatprep.subr.mxu0 0.0
      %4695 = vmatpush1.msra.mxu0 0.0
      %4696 = vmatprep.subr.mxu0 0.0
      %4697 = vmatpush1.msra.mxu0 0.0
      %4698 = vmatprep.subr.mxu0 0.0
      %4699 = vmatpush1.msra.mxu0 0.0
      %4700 = vmatprep.subr.mxu0 0.0
      %4701 = vmatpush1.msra.mxu0 0.0
      %4702 = vmatprep.subr.mxu0 0.0
      %4703 = vmatpush1.msra.mxu0 0.0
      %4704 = vmatprep.subr.mxu0 0.0
      %4705 = vmatpush1.msra.mxu0 0.0
      %4706 = vmatprep.subr.mxu0 0.0
      %4707 = vmatpush1.msra.mxu0 0.0
      %4708 = vmatprep.subr.mxu0 0.0
      %4709 = vmatpush1.msra.mxu0 0.0
      %4710 = vmatprep.subr.mxu0 0.0
      %4711 = vmatpush1.msra.mxu0 0.0
      %4712 = vmatprep.mubr.f32.mxu0 %v4412
      %4713 = vmatmul.mubr.f32.gmra.mrb[0].mxu0 %v4395
      %v4714 = vpop.f32.mrb[0].mxu0
      %v4715 = vadd.f32 %v4404, %v4714
      %v4716 = vpop.f32.mrb[0].mxu0
      %v4717 = vadd.f32 %v4404, %v4716
      %4718 = vmatprep.mubr.f32.mxu0 %v4415
      %4719 = vmatmul.mubr.f32.gmra.mrb[0].mxu0 %v4397
      %v4720 = vpop.f32.mrb[0].mxu0
      %v4721 = vadd.f32 %v4409, %v4720
      %v4722 = vpop.f32.mrb[0].mxu0
      %v4723 = vadd.f32 %v4409, %v4722
      %4724 = vdwg.mxu0
      %4725 = vrot.lane.b32.xlu0 %v3339, 33
      %v4726 = vpop.permute.xlu0 %4725
      %4727 = vrot.lane.b32.xlu0 %v4484, 33
      %v4728 = vpop.permute.xlu0 %4727
      %4729 = vrot.lane.b32.xlu0 %v4490, 33
      %v4730 = vpop.permute.xlu0 %4729
      %4731 = vrot.lane.b32.xlu0 %v3340, 33
      %v4732 = vpop.permute.xlu0 %4731
      %4733 = vrot.lane.b32.xlu0 %v4486, 33
      %v4734 = vpop.permute.xlu0 %4733
      %4735 = vrot.lane.b32.xlu0 %v4492, 33
      %v4736 = vpop.permute.xlu0 %4735
      %4737 = vrot.lane.b32.xlu0 %v3341, 33
      %v4738 = vpop.permute.xlu0 %4737
      %4739 = vrot.lane.b32.xlu0 %v4561, 33
      %v4740 = vpop.permute.xlu0 %4739
      %4741 = vrot.lane.b32.xlu0 %v4567, 33
      %v4742 = vpop.permute.xlu0 %4741
      %4743 = vrot.lane.b32.xlu0 %v3342, 33
      %v4744 = vpop.permute.xlu0 %4743
      %4745 = vrot.lane.b32.xlu0 %v4563, 33
      %v4746 = vpop.permute.xlu0 %4745
      %4747 = vrot.lane.b32.xlu0 %v4569, 33
      %v4748 = vpop.permute.xlu0 %4747
      %4749 = vrot.lane.b32.xlu0 %v3343, 33
      %v4750 = vpop.permute.xlu0 %4749
      %4751 = vrot.lane.b32.xlu0 %v4638, 33
      %v4752 = vpop.permute.xlu0 %4751
      %4753 = vrot.lane.b32.xlu0 %v4644, 33
      %v4754 = vpop.permute.xlu0 %4753
      %4755 = vrot.lane.b32.xlu0 %v3344, 33
      %v4756 = vpop.permute.xlu0 %4755
      %4757 = vrot.lane.b32.xlu0 %v4640, 33
      %v4758 = vpop.permute.xlu0 %4757
      %4759 = vrot.lane.b32.xlu0 %v4646, 33
      %v4760 = vpop.permute.xlu0 %4759
      %4761 = vrot.lane.b32.xlu0 %v3345, 33
      %v4762 = vpop.permute.xlu0 %4761
      %4763 = vrot.lane.b32.xlu0 %v4715, 33
      %v4764 = vpop.permute.xlu0 %4763
      %4765 = vrot.lane.b32.xlu0 %v4721, 33
      %v4766 = vpop.permute.xlu0 %4765
      %4767 = vrot.lane.b32.xlu0 %v3346, 33
      %v4768 = vpop.permute.xlu0 %4767
      %4769 = vrot.lane.b32.xlu0 %v4717, 33
      %v4770 = vpop.permute.xlu0 %4769
      %4771 = vrot.lane.b32.xlu0 %v4723, 33
      %v4772 = vpop.permute.xlu0 %4771
      %v4773 = vsel %vm1985, %v4762, %v4768
      %v4774 = vsel %vm1985, %v4764, %v4770
      %v4775 = vsel %vm1985, %v4766, %v4772
      %v4776 = vsel %vm1985, %v4756, %v4762
      %v4777 = vsel %vm1985, %v4758, %v4764
      %v4778 = vsel %vm1985, %v4760, %v4766
      %v4779 = vsel %vm1985, %v4750, %v4756
      %v4780 = vsel %vm1985, %v4752, %v4758
      %v4781 = vsel %vm1985, %v4754, %v4760
      %v4782 = vsel %vm1985, %v4744, %v4750
      %v4783 = vsel %vm1985, %v4746, %v4752
      %v4784 = vsel %vm1985, %v4748, %v4754
      %v4785 = vsel %vm1985, %v4738, %v4744
      %v4786 = vsel %vm1985, %v4740, %v4746
      %v4787 = vsel %vm1985, %v4742, %v4748
      %v4788 = vsel %vm1985, %v4732, %v4738
      %v4789 = vsel %vm1985, %v4734, %v4740
      %v4790 = vsel %vm1985, %v4736, %v4742
      %v4791 = vsel %vm1985, %v4726, %v4732
      %v4792 = vsel %vm1985, %v4728, %v4734
      %v4793 = vsel %vm1985, %v4730, %v4736
      %v4794 = vsel %vm1985, %v4768, %v4726
      %v4795 = vsel %vm1985, %v4770, %v4728
      %v4796 = vsel %vm1985, %v4772, %v4730
      %v4797 = vmul.f32 %v4794, %v1997
      %v4798 = vmul.f32 %v4791, %v2001
      %v4799 = vmul.f32 %v4788, %v2005
      %v4800 = vmul.f32 %v4785, %v2009
      %v4801 = vmul.f32 %v4782, %v2013
      %v4802 = vmul.f32 %v4779, %v2017
      %v4803 = vmul.f32 %v4776, %v2021
      %v4804 = vmul.f32 %v4773, %v2025
      %v4805 = vmul.f32 %v4795, %v1997
      %v4806 = vmul.f32 %v4792, %v2001
      %v4807 = vmul.f32 %v4789, %v2005
      %v4808 = vmul.f32 %v4786, %v2009
      %v4809 = vmul.f32 %v4783, %v2013
      %v4810 = vmul.f32 %v4780, %v2017
      %v4811 = vmul.f32 %v4777, %v2021
      %v4812 = vmul.f32 %v4774, %v2025
      %v4813 = vmul.f32 %v4796, %v1997
      %v4814 = vmul.f32 %v4793, %v2001
      %v4815 = vmul.f32 %v4790, %v2005
      %v4816 = vmul.f32 %v4787, %v2009
      %v4817 = vmul.f32 %v4784, %v2013
      %v4818 = vmul.f32 %v4781, %v2017
      %v4819 = vmul.f32 %v4778, %v2021
      %v4820 = vmul.f32 %v4775, %v2025
      %4821 = vrot.lane.b32.xlu0 %v3339, 32
      %v4822 = vpop.permute.xlu0 %4821
      %4823 = vrot.lane.b32.xlu0 %v4484, 32
      %v4824 = vpop.permute.xlu0 %4823
      %4825 = vrot.lane.b32.xlu0 %v4490, 32
      %v4826 = vpop.permute.xlu0 %4825
      %4827 = vrot.lane.b32.xlu0 %v3340, 32
      %v4828 = vpop.permute.xlu0 %4827
      %4829 = vrot.lane.b32.xlu0 %v4486, 32
      %v4830 = vpop.permute.xlu0 %4829
      %4831 = vrot.lane.b32.xlu0 %v4492, 32
      %v4832 = vpop.permute.xlu0 %4831
      %4833 = vrot.lane.b32.xlu0 %v3341, 32
      %v4834 = vpop.permute.xlu0 %4833
      %4835 = vrot.lane.b32.xlu0 %v4561, 32
      %v4836 = vpop.permute.xlu0 %4835
      %4837 = vrot.lane.b32.xlu0 %v4567, 32
      %v4838 = vpop.permute.xlu0 %4837
      %4839 = vrot.lane.b32.xlu0 %v3342, 32
      %v4840 = vpop.permute.xlu0 %4839
      %4841 = vrot.lane.b32.xlu0 %v4563, 32
      %v4842 = vpop.permute.xlu0 %4841
      %4843 = vrot.lane.b32.xlu0 %v4569, 32
      %v4844 = vpop.permute.xlu0 %4843
      %4845 = vrot.lane.b32.xlu0 %v3343, 32
      %v4846 = vpop.permute.xlu0 %4845
      %4847 = vrot.lane.b32.xlu0 %v4638, 32
      %v4848 = vpop.permute.xlu0 %4847
      %4849 = vrot.lane.b32.xlu0 %v4644, 32
      %v4850 = vpop.permute.xlu0 %4849
      %4851 = vrot.lane.b32.xlu0 %v3344, 32
      %v4852 = vpop.permute.xlu0 %4851
      %4853 = vrot.lane.b32.xlu0 %v4640, 32
      %v4854 = vpop.permute.xlu0 %4853
      %4855 = vrot.lane.b32.xlu0 %v4646, 32
      %v4856 = vpop.permute.xlu0 %4855
      %4857 = vrot.lane.b32.xlu0 %v3345, 32
      %v4858 = vpop.permute.xlu0 %4857
      %4859 = vrot.lane.b32.xlu0 %v4715, 32
      %v4860 = vpop.permute.xlu0 %4859
      %4861 = vrot.lane.b32.xlu0 %v4721, 32
      %v4862 = vpop.permute.xlu0 %4861
      %4863 = vrot.lane.b32.xlu0 %v3346, 32
      %v4864 = vpop.permute.xlu0 %4863
      %4865 = vrot.lane.b32.xlu0 %v4717, 32
      %v4866 = vpop.permute.xlu0 %4865
      %4867 = vrot.lane.b32.xlu0 %v4723, 32
      %v4868 = vpop.permute.xlu0 %4867
      %v4869 = vsel %vm2050, %v4858, %v4864
      %v4870 = vsel %vm2050, %v4860, %v4866
      %v4871 = vsel %vm2050, %v4862, %v4868
      %v4872 = vsel %vm2050, %v4852, %v4858
      %v4873 = vsel %vm2050, %v4854, %v4860
      %v4874 = vsel %vm2050, %v4856, %v4862
      %v4875 = vsel %vm2050, %v4846, %v4852
      %v4876 = vsel %vm2050, %v4848, %v4854
      %v4877 = vsel %vm2050, %v4850, %v4856
      %v4878 = vsel %vm2050, %v4840, %v4846
      %v4879 = vsel %vm2050, %v4842, %v4848
      %v4880 = vsel %vm2050, %v4844, %v4850
      %v4881 = vsel %vm2050, %v4834, %v4840
      %v4882 = vsel %vm2050, %v4836, %v4842
      %v4883 = vsel %vm2050, %v4838, %v4844
      %v4884 = vsel %vm2050, %v4828, %v4834
      %v4885 = vsel %vm2050, %v4830, %v4836
      %v4886 = vsel %vm2050, %v4832, %v4838
      %v4887 = vsel %vm2050, %v4822, %v4828
      %v4888 = vsel %vm2050, %v4824, %v4830
      %v4889 = vsel %vm2050, %v4826, %v4832
      %v4890 = vsel %vm2050, %v4864, %v4822
      %v4891 = vsel %vm2050, %v4866, %v4824
      %v4892 = vsel %vm2050, %v4868, %v4826
      %v4893 = vmul.f32 %v4890, %v2062
      %v4894 = vmul.f32 %v4887, %v2066
      %v4895 = vmul.f32 %v4884, %v2070
      %v4896 = vmul.f32 %v4881, %v2074
      %v4897 = vmul.f32 %v4878, %v2078
      %v4898 = vmul.f32 %v4875, %v2082
      %v4899 = vmul.f32 %v4872, %v2086
      %v4900 = vmul.f32 %v4869, %v2090
      %v4901 = vmul.f32 %v4891, %v2062
      %v4902 = vmul.f32 %v4888, %v2066
      %v4903 = vmul.f32 %v4885, %v2070
      %v4904 = vmul.f32 %v4882, %v2074
      %v4905 = vmul.f32 %v4879, %v2078
      %v4906 = vmul.f32 %v4876, %v2082
      %v4907 = vmul.f32 %v4873, %v2086
      %v4908 = vmul.f32 %v4870, %v2090
      %v4909 = vmul.f32 %v4892, %v2062
      %v4910 = vmul.f32 %v4889, %v2066
      %v4911 = vmul.f32 %v4886, %v2070
      %v4912 = vmul.f32 %v4883, %v2074
      %v4913 = vmul.f32 %v4880, %v2078
      %v4914 = vmul.f32 %v4877, %v2082
      %v4915 = vmul.f32 %v4874, %v2086
      %v4916 = vmul.f32 %v4871, %v2090
      %4917 = vrot.lane.b32.xlu0 %v3339, 31
      %v4918 = vpop.permute.xlu0 %4917
      %4919 = vrot.lane.b32.xlu0 %v4484, 31
      %v4920 = vpop.permute.xlu0 %4919
      %4921 = vrot.lane.b32.xlu0 %v4490, 31
      %v4922 = vpop.permute.xlu0 %4921
      %4923 = vrot.lane.b32.xlu0 %v3340, 31
      %v4924 = vpop.permute.xlu0 %4923
      %4925 = vrot.lane.b32.xlu0 %v4486, 31
      %v4926 = vpop.permute.xlu0 %4925
      %4927 = vrot.lane.b32.xlu0 %v4492, 31
      %v4928 = vpop.permute.xlu0 %4927
      %4929 = vrot.lane.b32.xlu0 %v3341, 31
      %v4930 = vpop.permute.xlu0 %4929
      %4931 = vrot.lane.b32.xlu0 %v4561, 31
      %v4932 = vpop.permute.xlu0 %4931
      %4933 = vrot.lane.b32.xlu0 %v4567, 31
      %v4934 = vpop.permute.xlu0 %4933
      %4935 = vrot.lane.b32.xlu0 %v3342, 31
      %v4936 = vpop.permute.xlu0 %4935
      %4937 = vrot.lane.b32.xlu0 %v4563, 31
      %v4938 = vpop.permute.xlu0 %4937
      %4939 = vrot.lane.b32.xlu0 %v4569, 31
      %v4940 = vpop.permute.xlu0 %4939
      %4941 = vrot.lane.b32.xlu0 %v3343, 31
      %v4942 = vpop.permute.xlu0 %4941
      %4943 = vrot.lane.b32.xlu0 %v4638, 31
      %v4944 = vpop.permute.xlu0 %4943
      %4945 = vrot.lane.b32.xlu0 %v4644, 31
      %v4946 = vpop.permute.xlu0 %4945
      %4947 = vrot.lane.b32.xlu0 %v3344, 31
      %v4948 = vpop.permute.xlu0 %4947
      %4949 = vrot.lane.b32.xlu0 %v4640, 31
      %v4950 = vpop.permute.xlu0 %4949
      %4951 = vrot.lane.b32.xlu0 %v4646, 31
      %v4952 = vpop.permute.xlu0 %4951
      %4953 = vrot.lane.b32.xlu0 %v3345, 31
      %v4954 = vpop.permute.xlu0 %4953
      %4955 = vrot.lane.b32.xlu0 %v4715, 31
      %v4956 = vpop.permute.xlu0 %4955
      %4957 = vrot.lane.b32.xlu0 %v4721, 31
      %v4958 = vpop.permute.xlu0 %4957
      %4959 = vrot.lane.b32.xlu0 %v3346, 31
      %v4960 = vpop.permute.xlu0 %4959
      %4961 = vrot.lane.b32.xlu0 %v4717, 31
      %v4962 = vpop.permute.xlu0 %4961
      %4963 = vrot.lane.b32.xlu0 %v4723, 31
      %v4964 = vpop.permute.xlu0 %4963
      %v4965 = vsel %vm2115, %v4954, %v4960
      %v4966 = vsel %vm2115, %v4956, %v4962
      %v4967 = vsel %vm2115, %v4958, %v4964
      %v4968 = vsel %vm2115, %v4948, %v4954
      %v4969 = vsel %vm2115, %v4950, %v4956
      %v4970 = vsel %vm2115, %v4952, %v4958
      %v4971 = vsel %vm2115, %v4942, %v4948
      %v4972 = vsel %vm2115, %v4944, %v4950
      %v4973 = vsel %vm2115, %v4946, %v4952
      %v4974 = vsel %vm2115, %v4936, %v4942
      %v4975 = vsel %vm2115, %v4938, %v4944
      %v4976 = vsel %vm2115, %v4940, %v4946
      %v4977 = vsel %vm2115, %v4930, %v4936
      %v4978 = vsel %vm2115, %v4932, %v4938
      %v4979 = vsel %vm2115, %v4934, %v4940
      %v4980 = vsel %vm2115, %v4924, %v4930
      %v4981 = vsel %vm2115, %v4926, %v4932
      %v4982 = vsel %vm2115, %v4928, %v4934
      %v4983 = vsel %vm2115, %v4918, %v4924
      %v4984 = vsel %vm2115, %v4920, %v4926
      %v4985 = vsel %vm2115, %v4922, %v4928
      %v4986 = vsel %vm2115, %v4960, %v4918
      %v4987 = vsel %vm2115, %v4962, %v4920
      %v4988 = vsel %vm2115, %v4964, %v4922
      %v4989 = vmul.f32 %v4986, %v2127
      %v4990 = vmul.f32 %v4983, %v2131
      %v4991 = vmul.f32 %v4980, %v2135
      %v4992 = vmul.f32 %v4977, %v2139
      %v4993 = vmul.f32 %v4974, %v2143
      %v4994 = vmul.f32 %v4971, %v2147
      %v4995 = vmul.f32 %v4968, %v2151
      %v4996 = vmul.f32 %v4965, %v2155
      %v4997 = vmul.f32 %v4987, %v2127
      %v4998 = vmul.f32 %v4984, %v2131
      %v4999 = vmul.f32 %v4981, %v2135
      %v5000 = vmul.f32 %v4978, %v2139
      %v5001 = vmul.f32 %v4975, %v2143
      %v5002 = vmul.f32 %v4972, %v2147
      %v5003 = vmul.f32 %v4969, %v2151
      %v5004 = vmul.f32 %v4966, %v2155
      %v5005 = vmul.f32 %v4988, %v2127
      %v5006 = vmul.f32 %v4985, %v2131
      %v5007 = vmul.f32 %v4982, %v2135
      %v5008 = vmul.f32 %v4979, %v2139
      %v5009 = vmul.f32 %v4976, %v2143
      %v5010 = vmul.f32 %v4973, %v2147
      %v5011 = vmul.f32 %v4970, %v2151
      %v5012 = vmul.f32 %v4967, %v2155
      %5013 = vrot.lane.b32.xlu0 %v3339, 1
      %v5014 = vpop.permute.xlu0 %5013
      %5015 = vrot.lane.b32.xlu0 %v4484, 1
      %v5016 = vpop.permute.xlu0 %5015
      %5017 = vrot.lane.b32.xlu0 %v4490, 1
      %v5018 = vpop.permute.xlu0 %5017
      %5019 = vrot.lane.b32.xlu0 %v3340, 1
      %v5020 = vpop.permute.xlu0 %5019
      %5021 = vrot.lane.b32.xlu0 %v4486, 1
      %v5022 = vpop.permute.xlu0 %5021
      %5023 = vrot.lane.b32.xlu0 %v4492, 1
      %v5024 = vpop.permute.xlu0 %5023
      %5025 = vrot.lane.b32.xlu0 %v3341, 1
      %v5026 = vpop.permute.xlu0 %5025
      %5027 = vrot.lane.b32.xlu0 %v4561, 1
      %v5028 = vpop.permute.xlu0 %5027
      %5029 = vrot.lane.b32.xlu0 %v4567, 1
      %v5030 = vpop.permute.xlu0 %5029
      %5031 = vrot.lane.b32.xlu0 %v3342, 1
      %v5032 = vpop.permute.xlu0 %5031
      %5033 = vrot.lane.b32.xlu0 %v4563, 1
      %v5034 = vpop.permute.xlu0 %5033
      %5035 = vrot.lane.b32.xlu0 %v4569, 1
      %v5036 = vpop.permute.xlu0 %5035
      %5037 = vrot.lane.b32.xlu0 %v3343, 1
      %v5038 = vpop.permute.xlu0 %5037
      %5039 = vrot.lane.b32.xlu0 %v4638, 1
      %v5040 = vpop.permute.xlu0 %5039
      %5041 = vrot.lane.b32.xlu0 %v4644, 1
      %v5042 = vpop.permute.xlu0 %5041
      %5043 = vrot.lane.b32.xlu0 %v3344, 1
      %v5044 = vpop.permute.xlu0 %5043
      %5045 = vrot.lane.b32.xlu0 %v4640, 1
      %v5046 = vpop.permute.xlu0 %5045
      %5047 = vrot.lane.b32.xlu0 %v4646, 1
      %v5048 = vpop.permute.xlu0 %5047
      %5049 = vrot.lane.b32.xlu0 %v3345, 1
      %v5050 = vpop.permute.xlu0 %5049
      %5051 = vrot.lane.b32.xlu0 %v4715, 1
      %v5052 = vpop.permute.xlu0 %5051
      %5053 = vrot.lane.b32.xlu0 %v4721, 1
      %v5054 = vpop.permute.xlu0 %5053
      %5055 = vrot.lane.b32.xlu0 %v3346, 1
      %v5056 = vpop.permute.xlu0 %5055
      %5057 = vrot.lane.b32.xlu0 %v4717, 1
      %v5058 = vpop.permute.xlu0 %5057
      %5059 = vrot.lane.b32.xlu0 %v4723, 1
      %v5060 = vpop.permute.xlu0 %5059
      %v5061 = vsel %vm1788, %v5050, %v5056
      %v5062 = vsel %vm1788, %v5052, %v5058
      %v5063 = vsel %vm1788, %v5054, %v5060
      %v5064 = vsel %vm1788, %v5044, %v5050
      %v5065 = vsel %vm1788, %v5046, %v5052
      %v5066 = vsel %vm1788, %v5048, %v5054
      %v5067 = vsel %vm1788, %v5038, %v5044
      %v5068 = vsel %vm1788, %v5040, %v5046
      %v5069 = vsel %vm1788, %v5042, %v5048
      %v5070 = vsel %vm1788, %v5032, %v5038
      %v5071 = vsel %vm1788, %v5034, %v5040
      %v5072 = vsel %vm1788, %v5036, %v5042
      %v5073 = vsel %vm1788, %v5026, %v5032
      %v5074 = vsel %vm1788, %v5028, %v5034
      %v5075 = vsel %vm1788, %v5030, %v5036
      %v5076 = vsel %vm1788, %v5020, %v5026
      %v5077 = vsel %vm1788, %v5022, %v5028
      %v5078 = vsel %vm1788, %v5024, %v5030
      %v5079 = vsel %vm1788, %v5014, %v5020
      %v5080 = vsel %vm1788, %v5016, %v5022
      %v5081 = vsel %vm1788, %v5018, %v5024
      %v5082 = vsel %vm1788, %v5056, %v5014
      %v5083 = vsel %vm1788, %v5058, %v5016
      %v5084 = vsel %vm1788, %v5060, %v5018
      %v5085 = vmul.f32 %v5082, %v2191
      %v5086 = vmul.f32 %v5079, %v2195
      %v5087 = vmul.f32 %v5076, %v2199
      %v5088 = vmul.f32 %v5073, %v2203
      %v5089 = vmul.f32 %v5070, %v2207
      %v5090 = vmul.f32 %v5067, %v2211
      %v5091 = vmul.f32 %v5064, %v2215
      %v5092 = vmul.f32 %v5061, %v2219
      %v5093 = vmul.f32 %v5083, %v2191
      %v5094 = vmul.f32 %v5080, %v2195
      %v5095 = vmul.f32 %v5077, %v2199
      %v5096 = vmul.f32 %v5074, %v2203
      %v5097 = vmul.f32 %v5071, %v2207
      %v5098 = vmul.f32 %v5068, %v2211
      %v5099 = vmul.f32 %v5065, %v2215
      %v5100 = vmul.f32 %v5062, %v2219
      %v5101 = vmul.f32 %v5084, %v2191
      %v5102 = vmul.f32 %v5081, %v2195
      %v5103 = vmul.f32 %v5078, %v2199
      %v5104 = vmul.f32 %v5075, %v2203
      %v5105 = vmul.f32 %v5072, %v2207
      %v5106 = vmul.f32 %v5069, %v2211
      %v5107 = vmul.f32 %v5066, %v2215
      %v5108 = vmul.f32 %v5063, %v2219
      %5109 = vrot.lane.b32.xlu0 %v3339, 127
      %v5110 = vpop.permute.xlu0 %5109
      %5111 = vrot.lane.b32.xlu0 %v4484, 127
      %v5112 = vpop.permute.xlu0 %5111
      %5113 = vrot.lane.b32.xlu0 %v4490, 127
      %v5114 = vpop.permute.xlu0 %5113
      %5115 = vrot.lane.b32.xlu0 %v3340, 127
      %v5116 = vpop.permute.xlu0 %5115
      %5117 = vrot.lane.b32.xlu0 %v4486, 127
      %v5118 = vpop.permute.xlu0 %5117
      %5119 = vrot.lane.b32.xlu0 %v4492, 127
      %v5120 = vpop.permute.xlu0 %5119
      %5121 = vrot.lane.b32.xlu0 %v3341, 127
      %v5122 = vpop.permute.xlu0 %5121
      %5123 = vrot.lane.b32.xlu0 %v4561, 127
      %v5124 = vpop.permute.xlu0 %5123
      %5125 = vrot.lane.b32.xlu0 %v4567, 127
      %v5126 = vpop.permute.xlu0 %5125
      %5127 = vrot.lane.b32.xlu0 %v3342, 127
      %v5128 = vpop.permute.xlu0 %5127
      %5129 = vrot.lane.b32.xlu0 %v4563, 127
      %v5130 = vpop.permute.xlu0 %5129
      %5131 = vrot.lane.b32.xlu0 %v4569, 127
      %v5132 = vpop.permute.xlu0 %5131
      %5133 = vrot.lane.b32.xlu0 %v3343, 127
      %v5134 = vpop.permute.xlu0 %5133
      %5135 = vrot.lane.b32.xlu0 %v4638, 127
      %v5136 = vpop.permute.xlu0 %5135
      %5137 = vrot.lane.b32.xlu0 %v4644, 127
      %v5138 = vpop.permute.xlu0 %5137
      %5139 = vrot.lane.b32.xlu0 %v3344, 127
      %v5140 = vpop.permute.xlu0 %5139
      %5141 = vrot.lane.b32.xlu0 %v4640, 127
      %v5142 = vpop.permute.xlu0 %5141
      %5143 = vrot.lane.b32.xlu0 %v4646, 127
      %v5144 = vpop.permute.xlu0 %5143
      %5145 = vrot.lane.b32.xlu0 %v3345, 127
      %v5146 = vpop.permute.xlu0 %5145
      %5147 = vrot.lane.b32.xlu0 %v4715, 127
      %v5148 = vpop.permute.xlu0 %5147
      %5149 = vrot.lane.b32.xlu0 %v4721, 127
      %v5150 = vpop.permute.xlu0 %5149
      %5151 = vrot.lane.b32.xlu0 %v3346, 127
      %v5152 = vpop.permute.xlu0 %5151
      %5153 = vrot.lane.b32.xlu0 %v4717, 127
      %v5154 = vpop.permute.xlu0 %5153
      %5155 = vrot.lane.b32.xlu0 %v4723, 127
      %v5156 = vpop.permute.xlu0 %5155
      %v5157 = vsel %vm1805, %v5146, %v5152
      %v5158 = vsel %vm1805, %v5148, %v5154
      %v5159 = vsel %vm1805, %v5150, %v5156
      %v5160 = vsel %vm1805, %v5140, %v5146
      %v5161 = vsel %vm1805, %v5142, %v5148
      %v5162 = vsel %vm1805, %v5144, %v5150
      %v5163 = vsel %vm1805, %v5134, %v5140
      %v5164 = vsel %vm1805, %v5136, %v5142
      %v5165 = vsel %vm1805, %v5138, %v5144
      %v5166 = vsel %vm1805, %v5128, %v5134
      %v5167 = vsel %vm1805, %v5130, %v5136
      %v5168 = vsel %vm1805, %v5132, %v5138
      %v5169 = vsel %vm1805, %v5122, %v5128
      %v5170 = vsel %vm1805, %v5124, %v5130
      %v5171 = vsel %vm1805, %v5126, %v5132
      %v5172 = vsel %vm1805, %v5116, %v5122
      %v5173 = vsel %vm1805, %v5118, %v5124
      %v5174 = vsel %vm1805, %v5120, %v5126
      %v5175 = vsel %vm1805, %v5110, %v5116
      %v5176 = vsel %vm1805, %v5112, %v5118
      %v5177 = vsel %vm1805, %v5114, %v5120
      %v5178 = vsel %vm1805, %v5152, %v5110
      %v5179 = vsel %vm1805, %v5154, %v5112
      %v5180 = vsel %vm1805, %v5156, %v5114
      %v5181 = vmul.f32 %v5175, %v2255
      %v5182 = vmul.f32 %v5172, %v2259
      %v5183 = vmul.f32 %v5169, %v2263
      %v5184 = vmul.f32 %v5166, %v2267
      %v5185 = vmul.f32 %v5163, %v2271
      %v5186 = vmul.f32 %v5160, %v2275
      %v5187 = vmul.f32 %v5157, %v2279
      %v5188 = vmul.f32 %v5178, %v2283
      %v5189 = vmul.f32 %v5176, %v2255
      %v5190 = vmul.f32 %v5173, %v2259
      %v5191 = vmul.f32 %v5170, %v2263
      %v5192 = vmul.f32 %v5167, %v2267
      %v5193 = vmul.f32 %v5164, %v2271
      %v5194 = vmul.f32 %v5161, %v2275
      %v5195 = vmul.f32 %v5158, %v2279
      %v5196 = vmul.f32 %v5179, %v2283
      %v5197 = vmul.f32 %v5177, %v2255
      %v5198 = vmul.f32 %v5174, %v2259
      %v5199 = vmul.f32 %v5171, %v2263
      %v5200 = vmul.f32 %v5168, %v2267
      %v5201 = vmul.f32 %v5165, %v2271
      %v5202 = vmul.f32 %v5162, %v2275
      %v5203 = vmul.f32 %v5159, %v2279
      %v5204 = vmul.f32 %v5180, %v2283
      %5205 = vrot.lane.b32.xlu0 %v3339, 97
      %v5206 = vpop.permute.xlu0 %5205
      %5207 = vrot.lane.b32.xlu0 %v4484, 97
      %v5208 = vpop.permute.xlu0 %5207
      %5209 = vrot.lane.b32.xlu0 %v4490, 97
      %v5210 = vpop.permute.xlu0 %5209
      %5211 = vrot.lane.b32.xlu0 %v3340, 97
      %v5212 = vpop.permute.xlu0 %5211
      %5213 = vrot.lane.b32.xlu0 %v4486, 97
      %v5214 = vpop.permute.xlu0 %5213
      %5215 = vrot.lane.b32.xlu0 %v4492, 97
      %v5216 = vpop.permute.xlu0 %5215
      %5217 = vrot.lane.b32.xlu0 %v3341, 97
      %v5218 = vpop.permute.xlu0 %5217
      %5219 = vrot.lane.b32.xlu0 %v4561, 97
      %v5220 = vpop.permute.xlu0 %5219
      %5221 = vrot.lane.b32.xlu0 %v4567, 97
      %v5222 = vpop.permute.xlu0 %5221
      %5223 = vrot.lane.b32.xlu0 %v3342, 97
      %v5224 = vpop.permute.xlu0 %5223
      %5225 = vrot.lane.b32.xlu0 %v4563, 97
      %v5226 = vpop.permute.xlu0 %5225
      %5227 = vrot.lane.b32.xlu0 %v4569, 97
      %v5228 = vpop.permute.xlu0 %5227
      %5229 = vrot.lane.b32.xlu0 %v3343, 97
      %v5230 = vpop.permute.xlu0 %5229
      %5231 = vrot.lane.b32.xlu0 %v4638, 97
      %v5232 = vpop.permute.xlu0 %5231
      %5233 = vrot.lane.b32.xlu0 %v4644, 97
      %v5234 = vpop.permute.xlu0 %5233
      %5235 = vrot.lane.b32.xlu0 %v3344, 97
      %v5236 = vpop.permute.xlu0 %5235
      %5237 = vrot.lane.b32.xlu0 %v4640, 97
      %v5238 = vpop.permute.xlu0 %5237
      %5239 = vrot.lane.b32.xlu0 %v4646, 97
      %v5240 = vpop.permute.xlu0 %5239
      %5241 = vrot.lane.b32.xlu0 %v3345, 97
      %v5242 = vpop.permute.xlu0 %5241
      %5243 = vrot.lane.b32.xlu0 %v4715, 97
      %v5244 = vpop.permute.xlu0 %5243
      %5245 = vrot.lane.b32.xlu0 %v4721, 97
      %v5246 = vpop.permute.xlu0 %5245
      %5247 = vrot.lane.b32.xlu0 %v3346, 97
      %v5248 = vpop.permute.xlu0 %5247
      %5249 = vrot.lane.b32.xlu0 %v4717, 97
      %v5250 = vpop.permute.xlu0 %5249
      %5251 = vrot.lane.b32.xlu0 %v4723, 97
      %v5252 = vpop.permute.xlu0 %5251
      %v5253 = vsel %vm2308, %v5242, %v5248
      %v5254 = vsel %vm2308, %v5244, %v5250
      %v5255 = vsel %vm2308, %v5246, %v5252
      %v5256 = vsel %vm2308, %v5236, %v5242
      %v5257 = vsel %vm2308, %v5238, %v5244
      %v5258 = vsel %vm2308, %v5240, %v5246
      %v5259 = vsel %vm2308, %v5230, %v5236
      %v5260 = vsel %vm2308, %v5232, %v5238
      %v5261 = vsel %vm2308, %v5234, %v5240
      %v5262 = vsel %vm2308, %v5224, %v5230
      %v5263 = vsel %vm2308, %v5226, %v5232
      %v5264 = vsel %vm2308, %v5228, %v5234
      %v5265 = vsel %vm2308, %v5218, %v5224
      %v5266 = vsel %vm2308, %v5220, %v5226
      %v5267 = vsel %vm2308, %v5222, %v5228
      %v5268 = vsel %vm2308, %v5212, %v5218
      %v5269 = vsel %vm2308, %v5214, %v5220
      %v5270 = vsel %vm2308, %v5216, %v5222
      %v5271 = vsel %vm2308, %v5206, %v5212
      %v5272 = vsel %vm2308, %v5208, %v5214
      %v5273 = vsel %vm2308, %v5210, %v5216
      %v5274 = vsel %vm2308, %v5248, %v5206
      %v5275 = vsel %vm2308, %v5250, %v5208
      %v5276 = vsel %vm2308, %v5252, %v5210
      %v5277 = vmul.f32 %v5271, %v2320
      %v5278 = vmul.f32 %v5268, %v2324
      %v5279 = vmul.f32 %v5265, %v2328
      %v5280 = vmul.f32 %v5262, %v2332
      %v5281 = vmul.f32 %v5259, %v2336
      %v5282 = vmul.f32 %v5256, %v2340
      %v5283 = vmul.f32 %v5253, %v2344
      %v5284 = vmul.f32 %v5274, %v2348
      %v5285 = vmul.f32 %v5272, %v2320
      %v5286 = vmul.f32 %v5269, %v2324
      %v5287 = vmul.f32 %v5266, %v2328
      %v5288 = vmul.f32 %v5263, %v2332
      %v5289 = vmul.f32 %v5260, %v2336
      %v5290 = vmul.f32 %v5257, %v2340
      %v5291 = vmul.f32 %v5254, %v2344
      %v5292 = vmul.f32 %v5275, %v2348
      %v5293 = vmul.f32 %v5273, %v2320
      %v5294 = vmul.f32 %v5270, %v2324
      %v5295 = vmul.f32 %v5267, %v2328
      %v5296 = vmul.f32 %v5264, %v2332
      %v5297 = vmul.f32 %v5261, %v2336
      %v5298 = vmul.f32 %v5258, %v2340
      %v5299 = vmul.f32 %v5255, %v2344
      %v5300 = vmul.f32 %v5276, %v2348
      %5301 = vrot.lane.b32.xlu0 %v3339, 96
      %v5302 = vpop.permute.xlu0 %5301
      %5303 = vrot.lane.b32.xlu0 %v4484, 96
      %v5304 = vpop.permute.xlu0 %5303
      %5305 = vrot.lane.b32.xlu0 %v4490, 96
      %v5306 = vpop.permute.xlu0 %5305
      %5307 = vrot.lane.b32.xlu0 %v3340, 96
      %v5308 = vpop.permute.xlu0 %5307
      %5309 = vrot.lane.b32.xlu0 %v4486, 96
      %v5310 = vpop.permute.xlu0 %5309
      %5311 = vrot.lane.b32.xlu0 %v4492, 96
      %v5312 = vpop.permute.xlu0 %5311
      %5313 = vrot.lane.b32.xlu0 %v3341, 96
      %v5314 = vpop.permute.xlu0 %5313
      %5315 = vrot.lane.b32.xlu0 %v4561, 96
      %v5316 = vpop.permute.xlu0 %5315
      %5317 = vrot.lane.b32.xlu0 %v4567, 96
      %v5318 = vpop.permute.xlu0 %5317
      %5319 = vrot.lane.b32.xlu0 %v3342, 96
      %v5320 = vpop.permute.xlu0 %5319
      %5321 = vrot.lane.b32.xlu0 %v4563, 96
      %v5322 = vpop.permute.xlu0 %5321
      %5323 = vrot.lane.b32.xlu0 %v4569, 96
      %v5324 = vpop.permute.xlu0 %5323
      %5325 = vrot.lane.b32.xlu0 %v3343, 96
      %v5326 = vpop.permute.xlu0 %5325
      %5327 = vrot.lane.b32.xlu0 %v4638, 96
      %v5328 = vpop.permute.xlu0 %5327
      %5329 = vrot.lane.b32.xlu0 %v4644, 96
      %v5330 = vpop.permute.xlu0 %5329
      %5331 = vrot.lane.b32.xlu0 %v3344, 96
      %v5332 = vpop.permute.xlu0 %5331
      %5333 = vrot.lane.b32.xlu0 %v4640, 96
      %v5334 = vpop.permute.xlu0 %5333
      %5335 = vrot.lane.b32.xlu0 %v4646, 96
      %v5336 = vpop.permute.xlu0 %5335
      %5337 = vrot.lane.b32.xlu0 %v3345, 96
      %v5338 = vpop.permute.xlu0 %5337
      %5339 = vrot.lane.b32.xlu0 %v4715, 96
      %v5340 = vpop.permute.xlu0 %5339
      %5341 = vrot.lane.b32.xlu0 %v4721, 96
      %v5342 = vpop.permute.xlu0 %5341
      %5343 = vrot.lane.b32.xlu0 %v3346, 96
      %v5344 = vpop.permute.xlu0 %5343
      %5345 = vrot.lane.b32.xlu0 %v4717, 96
      %v5346 = vpop.permute.xlu0 %5345
      %5347 = vrot.lane.b32.xlu0 %v4723, 96
      %v5348 = vpop.permute.xlu0 %5347
      %v5349 = vsel %vm2373, %v5338, %v5344
      %v5350 = vsel %vm2373, %v5340, %v5346
      %v5351 = vsel %vm2373, %v5342, %v5348
      %v5352 = vsel %vm2373, %v5332, %v5338
      %v5353 = vsel %vm2373, %v5334, %v5340
      %v5354 = vsel %vm2373, %v5336, %v5342
      %v5355 = vsel %vm2373, %v5326, %v5332
      %v5356 = vsel %vm2373, %v5328, %v5334
      %v5357 = vsel %vm2373, %v5330, %v5336
      %v5358 = vsel %vm2373, %v5320, %v5326
      %v5359 = vsel %vm2373, %v5322, %v5328
      %v5360 = vsel %vm2373, %v5324, %v5330
      %v5361 = vsel %vm2373, %v5314, %v5320
      %v5362 = vsel %vm2373, %v5316, %v5322
      %v5363 = vsel %vm2373, %v5318, %v5324
      %v5364 = vsel %vm2373, %v5308, %v5314
      %v5365 = vsel %vm2373, %v5310, %v5316
      %v5366 = vsel %vm2373, %v5312, %v5318
      %v5367 = vsel %vm2373, %v5302, %v5308
      %v5368 = vsel %vm2373, %v5304, %v5310
      %v5369 = vsel %vm2373, %v5306, %v5312
      %v5370 = vsel %vm2373, %v5344, %v5302
      %v5371 = vsel %vm2373, %v5346, %v5304
      %v5372 = vsel %vm2373, %v5348, %v5306
      %v5373 = vmul.f32 %v5367, %v2385
      %v5374 = vmul.f32 %v5364, %v2389
      %v5375 = vmul.f32 %v5361, %v2393
      %v5376 = vmul.f32 %v5358, %v2397
      %v5377 = vmul.f32 %v5355, %v2401
      %v5378 = vmul.f32 %v5352, %v2405
      %v5379 = vmul.f32 %v5349, %v2409
      %v5380 = vmul.f32 %v5370, %v2413
      %v5381 = vmul.f32 %v5368, %v2385
      %v5382 = vmul.f32 %v5365, %v2389
      %v5383 = vmul.f32 %v5362, %v2393
      %v5384 = vmul.f32 %v5359, %v2397
      %v5385 = vmul.f32 %v5356, %v2401
      %v5386 = vmul.f32 %v5353, %v2405
      %v5387 = vmul.f32 %v5350, %v2409
      %v5388 = vmul.f32 %v5371, %v2413
      %v5389 = vmul.f32 %v5369, %v2385
      %v5390 = vmul.f32 %v5366, %v2389
      %v5391 = vmul.f32 %v5363, %v2393
      %v5392 = vmul.f32 %v5360, %v2397
      %v5393 = vmul.f32 %v5357, %v2401
      %v5394 = vmul.f32 %v5354, %v2405
      %v5395 = vmul.f32 %v5351, %v2409
      %v5396 = vmul.f32 %v5372, %v2413
      %5397 = vrot.lane.b32.xlu0 %v3339, 95
      %v5398 = vpop.permute.xlu0 %5397
      %5399 = vrot.lane.b32.xlu0 %v4484, 95
      %v5400 = vpop.permute.xlu0 %5399
      %5401 = vrot.lane.b32.xlu0 %v4490, 95
      %v5402 = vpop.permute.xlu0 %5401
      %5403 = vrot.lane.b32.xlu0 %v3340, 95
      %v5404 = vpop.permute.xlu0 %5403
      %5405 = vrot.lane.b32.xlu0 %v4486, 95
      %v5406 = vpop.permute.xlu0 %5405
      %5407 = vrot.lane.b32.xlu0 %v4492, 95
      %v5408 = vpop.permute.xlu0 %5407
      %5409 = vrot.lane.b32.xlu0 %v3341, 95
      %v5410 = vpop.permute.xlu0 %5409
      %5411 = vrot.lane.b32.xlu0 %v4561, 95
      %v5412 = vpop.permute.xlu0 %5411
      %5413 = vrot.lane.b32.xlu0 %v4567, 95
      %v5414 = vpop.permute.xlu0 %5413
      %5415 = vrot.lane.b32.xlu0 %v3342, 95
      %v5416 = vpop.permute.xlu0 %5415
      %5417 = vrot.lane.b32.xlu0 %v4563, 95
      %v5418 = vpop.permute.xlu0 %5417
      %5419 = vrot.lane.b32.xlu0 %v4569, 95
      %v5420 = vpop.permute.xlu0 %5419
      %5421 = vrot.lane.b32.xlu0 %v3343, 95
      %v5422 = vpop.permute.xlu0 %5421
      %5423 = vrot.lane.b32.xlu0 %v4638, 95
      %v5424 = vpop.permute.xlu0 %5423
      %5425 = vrot.lane.b32.xlu0 %v4644, 95
      %v5426 = vpop.permute.xlu0 %5425
      %5427 = vrot.lane.b32.xlu0 %v3344, 95
      %v5428 = vpop.permute.xlu0 %5427
      %5429 = vrot.lane.b32.xlu0 %v4640, 95
      %v5430 = vpop.permute.xlu0 %5429
      %5431 = vrot.lane.b32.xlu0 %v4646, 95
      %v5432 = vpop.permute.xlu0 %5431
      %5433 = vrot.lane.b32.xlu0 %v3345, 95
      %v5434 = vpop.permute.xlu0 %5433
      %5435 = vrot.lane.b32.xlu0 %v4715, 95
      %v5436 = vpop.permute.xlu0 %5435
      %5437 = vrot.lane.b32.xlu0 %v4721, 95
      %v5438 = vpop.permute.xlu0 %5437
      %5439 = vrot.lane.b32.xlu0 %v3346, 95
      %v5440 = vpop.permute.xlu0 %5439
      %5441 = vrot.lane.b32.xlu0 %v4717, 95
      %v5442 = vpop.permute.xlu0 %5441
      %5443 = vrot.lane.b32.xlu0 %v4723, 95
      %v5444 = vpop.permute.xlu0 %5443
      %v5445 = vsel %vm2438, %v5434, %v5440
      %v5446 = vsel %vm2438, %v5436, %v5442
      %v5447 = vsel %vm2438, %v5438, %v5444
      %v5448 = vsel %vm2438, %v5428, %v5434
      %v5449 = vsel %vm2438, %v5430, %v5436
      %v5450 = vsel %vm2438, %v5432, %v5438
      %v5451 = vsel %vm2438, %v5422, %v5428
      %v5452 = vsel %vm2438, %v5424, %v5430
      %v5453 = vsel %vm2438, %v5426, %v5432
      %v5454 = vsel %vm2438, %v5416, %v5422
      %v5455 = vsel %vm2438, %v5418, %v5424
      %v5456 = vsel %vm2438, %v5420, %v5426
      %v5457 = vsel %vm2438, %v5410, %v5416
      %v5458 = vsel %vm2438, %v5412, %v5418
      %v5459 = vsel %vm2438, %v5414, %v5420
      %v5460 = vsel %vm2438, %v5404, %v5410
      %v5461 = vsel %vm2438, %v5406, %v5412
      %v5462 = vsel %vm2438, %v5408, %v5414
      %v5463 = vsel %vm2438, %v5398, %v5404
      %v5464 = vsel %vm2438, %v5400, %v5406
      %v5465 = vsel %vm2438, %v5402, %v5408
      %v5466 = vsel %vm2438, %v5440, %v5398
      %v5467 = vsel %vm2438, %v5442, %v5400
      %v5468 = vsel %vm2438, %v5444, %v5402
      %v5469 = vmul.f32 %v5463, %v2450
      %v5470 = vmul.f32 %v5460, %v2454
      %v5471 = vmul.f32 %v5457, %v2458
      %v5472 = vmul.f32 %v5454, %v2462
      %v5473 = vmul.f32 %v5451, %v2466
      %v5474 = vmul.f32 %v5448, %v2470
      %v5475 = vmul.f32 %v5445, %v2474
      %v5476 = vmul.f32 %v5466, %v2478
      %v5477 = vmul.f32 %v5464, %v2450
      %v5478 = vmul.f32 %v5461, %v2454
      %v5479 = vmul.f32 %v5458, %v2458
      %v5480 = vmul.f32 %v5455, %v2462
      %v5481 = vmul.f32 %v5452, %v2466
      %v5482 = vmul.f32 %v5449, %v2470
      %v5483 = vmul.f32 %v5446, %v2474
      %v5484 = vmul.f32 %v5467, %v2478
      %v5485 = vmul.f32 %v5465, %v2450
      %v5486 = vmul.f32 %v5462, %v2454
      %v5487 = vmul.f32 %v5459, %v2458
      %v5488 = vmul.f32 %v5456, %v2462
      %v5489 = vmul.f32 %v5453, %v2466
      %v5490 = vmul.f32 %v5450, %v2470
      %v5491 = vmul.f32 %v5447, %v2474
      %v5492 = vmul.f32 %v5468, %v2478
      %v5493 = vld [vmem:[%s18] sm:$0xff]
      %v5494 = vld [vmem:[%s18 + $0x8] sm:$0xff]
      %v5495 = vld [vmem:[%s18 + $0x10] sm:$0xff]
      %v5496 = vld [vmem:[%s18 + $0x18] sm:$0xff]
      %v5497 = vld [vmem:[%s18 + $0x20] sm:$0xff]
      %v5498 = vld [vmem:[%s18 + $0x28] sm:$0xff]
      %v5499 = vld [vmem:[%s19] sm:$0xff]
      %v5500 = vld [vmem:[%s19 + $0x8] sm:$0xff]
      %v5501 = vld [vmem:[%s19 + $0x10] sm:$0xff]
      %5503 = vset.pattern.permute.xlu0 0
      %5504 = vperm.xlu0 %5503, %v5499
      %v5505 = vpop.permute.xlu0 %5504
      %5508 = vset.pattern.permute.xlu0 0
      %5509 = vperm.xlu0 %5508, %v5500
      %v5510 = vpop.permute.xlu0 %5509
      %5513 = vset.pattern.permute.xlu0 0
      %5514 = vperm.xlu0 %5513, %v5501
      %v5515 = vpop.permute.xlu0 %5514
      %vm5517 = vcmask 719872
      %v5519 = vsel %vm5517, %v5494, 0
      %v5522 = vsel %vm5517, %v5496, 0
      %v5525 = vsel %vm5517, %v5498, 0
      %5527 = vmatprep.subr.mxu0 %v4798
      %5528 = vmatpush1.msra.mxu0 %v4797
      %5529 = vmatprep.subr.mxu0 %v4806
      %5530 = vmatpush1.msra.mxu0 %v4805
      %5531 = vmatprep.subr.mxu0 %v4814
      %5532 = vmatpush1.msra.mxu0 %v4813
      %5533 = vmatprep.subr.mxu0 %v4894
      %5534 = vmatpush1.msra.mxu0 %v4893
      %5535 = vmatprep.subr.mxu0 %v4902
      %5536 = vmatpush1.msra.mxu0 %v4901
      %5537 = vmatprep.subr.mxu0 %v4910
      %5538 = vmatpush1.msra.mxu0 %v4909
      %5539 = vmatprep.subr.mxu0 %v4990
      %5540 = vmatpush1.msra.mxu0 %v4989
      %5541 = vmatprep.subr.mxu0 %v4998
      %5542 = vmatpush1.msra.mxu0 %v4997
      %5543 = vmatprep.subr.mxu0 %v5006
      %5544 = vmatpush1.msra.mxu0 %v5005
      %5545 = vmatprep.subr.mxu0 %v5086
      %5546 = vmatpush1.msra.mxu0 %v5085
      %5547 = vmatprep.subr.mxu0 %v5094
      %5548 = vmatpush1.msra.mxu0 %v5093
      %5549 = vmatprep.subr.mxu0 %v5102
      %5550 = vmatpush1.msra.mxu0 %v5101
      %5551 = vmatprep.subr.mxu0 %v3340
      %5552 = vmatpush1.msra.mxu0 %v3339
      %5553 = vmatprep.subr.mxu0 %v4486
      %5554 = vmatpush1.msra.mxu0 %v4484
      %5555 = vmatprep.subr.mxu0 %v4492
      %5556 = vmatpush1.msra.mxu0 %v4490
      %5557 = vmatprep.subr.mxu0 %v5182
      %5558 = vmatpush1.msra.mxu0 %v5181
      %5559 = vmatprep.subr.mxu0 %v5190
      %5560 = vmatpush1.msra.mxu0 %v5189
      %5561 = vmatprep.subr.mxu0 %v5198
      %5562 = vmatpush1.msra.mxu0 %v5197
      %5563 = vmatprep.subr.mxu0 %v5278
      %5564 = vmatpush1.msra.mxu0 %v5277
      %5565 = vmatprep.subr.mxu0 %v5286
      %5566 = vmatpush1.msra.mxu0 %v5285
      %5567 = vmatprep.subr.mxu0 %v5294
      %5568 = vmatpush1.msra.mxu0 %v5293
      %5569 = vmatprep.subr.mxu0 %v5374
      %5570 = vmatpush1.msra.mxu0 %v5373
      %5571 = vmatprep.subr.mxu0 %v5382
      %5572 = vmatpush1.msra.mxu0 %v5381
      %5573 = vmatprep.subr.mxu0 %v5390
      %5574 = vmatpush1.msra.mxu0 %v5389
      %5575 = vmatprep.subr.mxu0 %v5470
      %5576 = vmatpush1.msra.mxu0 %v5469
      %5577 = vmatprep.subr.mxu0 %v5478
      %5578 = vmatpush1.msra.mxu0 %v5477
      %5579 = vmatprep.subr.mxu0 %v5486
      %5580 = vmatpush1.msra.mxu0 %v5485
      %5581 = vmatprep.subr.mxu0 0.0
      %5582 = vmatpush1.msra.mxu0 0.0
      %5583 = vmatprep.subr.mxu0 0.0
      %5584 = vmatpush1.msra.mxu0 0.0
      %5585 = vmatprep.subr.mxu0 0.0
      %5586 = vmatpush1.msra.mxu0 0.0
      %5587 = vmatprep.subr.mxu0 0.0
      %5588 = vmatpush1.msra.mxu0 0.0
      %5589 = vmatprep.subr.mxu0 0.0
      %5590 = vmatpush1.msra.mxu0 0.0
      %5591 = vmatprep.mubr.f32.mxu0 %v5519
      %5592 = vmatmul.mubr.f32.gmra.mrb[0].mxu0 %v5493
      %v5593 = vpop.f32.mrb[0].mxu0
      %v5594 = vadd.f32 %v5505, %v5593
      %v5595 = vpop.f32.mrb[0].mxu0
      %v5596 = vadd.f32 %v5505, %v5595
      %5597 = vmatprep.mubr.f32.mxu0 %v5522
      %5598 = vmatmul.mubr.f32.gmra.mrb[0].mxu0 %v5495
      %v5599 = vpop.f32.mrb[0].mxu0
      %v5600 = vadd.f32 %v5510, %v5599
      %v5601 = vpop.f32.mrb[0].mxu0
      %v5602 = vadd.f32 %v5510, %v5601
      %5603 = vmatprep.mubr.f32.mxu0 %v5525
      %5604 = vmatmul.mubr.f32.gmra.mrb[0].mxu0 %v5497
      %v5605 = vpop.f32.mrb[0].mxu0
      %v5606 = vadd.f32 %v5515, %v5605
      %v5607 = vpop.f32.mrb[0].mxu0
      %v5608 = vadd.f32 %v5515, %v5607
      %5609 = vdwg.mxu0
      %5610 = vmatprep.subr.mxu0 %v4800
      %5611 = vmatpush1.msra.mxu0 %v4799
      %5612 = vmatprep.subr.mxu0 %v4808
      %5613 = vmatpush1.msra.mxu0 %v4807
      %5614 = vmatprep.subr.mxu0 %v4816
      %5615 = vmatpush1.msra.mxu0 %v4815
      %5616 = vmatprep.subr.mxu0 %v4896
      %5617 = vmatpush1.msra.mxu0 %v4895
      %5618 = vmatprep.subr.mxu0 %v4904
      %5619 = vmatpush1.msra.mxu0 %v4903
      %5620 = vmatprep.subr.mxu0 %v4912
      %5621 = vmatpush1.msra.mxu0 %v4911
      %5622 = vmatprep.subr.mxu0 %v4992
      %5623 = vmatpush1.msra.mxu0 %v4991
      %5624 = vmatprep.subr.mxu0 %v5000
      %5625 = vmatpush1.msra.mxu0 %v4999
      %5626 = vmatprep.subr.mxu0 %v5008
      %5627 = vmatpush1.msra.mxu0 %v5007
      %5628 = vmatprep.subr.mxu0 %v5088
      %5629 = vmatpush1.msra.mxu0 %v5087
      %5630 = vmatprep.subr.mxu0 %v5096
      %5631 = vmatpush1.msra.mxu0 %v5095
      %5632 = vmatprep.subr.mxu0 %v5104
      %5633 = vmatpush1.msra.mxu0 %v5103
      %5634 = vmatprep.subr.mxu0 %v3342
      %5635 = vmatpush1.msra.mxu0 %v3341
      %5636 = vmatprep.subr.mxu0 %v4563
      %5637 = vmatpush1.msra.mxu0 %v4561
      %5638 = vmatprep.subr.mxu0 %v4569
      %5639 = vmatpush1.msra.mxu0 %v4567
      %5640 = vmatprep.subr.mxu0 %v5184
      %5641 = vmatpush1.msra.mxu0 %v5183
      %5642 = vmatprep.subr.mxu0 %v5192
      %5643 = vmatpush1.msra.mxu0 %v5191
      %5644 = vmatprep.subr.mxu0 %v5200
      %5645 = vmatpush1.msra.mxu0 %v5199
      %5646 = vmatprep.subr.mxu0 %v5280
      %5647 = vmatpush1.msra.mxu0 %v5279
      %5648 = vmatprep.subr.mxu0 %v5288
      %5649 = vmatpush1.msra.mxu0 %v5287
      %5650 = vmatprep.subr.mxu0 %v5296
      %5651 = vmatpush1.msra.mxu0 %v5295
      %5652 = vmatprep.subr.mxu0 %v5376
      %5653 = vmatpush1.msra.mxu0 %v5375
      %5654 = vmatprep.subr.mxu0 %v5384
      %5655 = vmatpush1.msra.mxu0 %v5383
      %5656 = vmatprep.subr.mxu0 %v5392
      %5657 = vmatpush1.msra.mxu0 %v5391
      %5658 = vmatprep.subr.mxu0 %v5472
      %5659 = vmatpush1.msra.mxu0 %v5471
      %5660 = vmatprep.subr.mxu0 %v5480
      %5661 = vmatpush1.msra.mxu0 %v5479
      %5662 = vmatprep.subr.mxu0 %v5488
      %5663 = vmatpush1.msra.mxu0 %v5487
      %5664 = vmatprep.subr.mxu0 0.0
      %5665 = vmatpush1.msra.mxu0 0.0
      %5666 = vmatprep.subr.mxu0 0.0
      %5667 = vmatpush1.msra.mxu0 0.0
      %5668 = vmatprep.subr.mxu0 0.0
      %5669 = vmatpush1.msra.mxu0 0.0
      %5670 = vmatprep.subr.mxu0 0.0
      %5671 = vmatpush1.msra.mxu0 0.0
      %5672 = vmatprep.subr.mxu0 0.0
      %5673 = vmatpush1.msra.mxu0 0.0
      %5674 = vmatprep.mubr.f32.mxu0 %v5519
      %5675 = vmatmul.mubr.f32.gmra.mrb[0].mxu0 %v5493
      %v5676 = vpop.f32.mrb[0].mxu0
      %v5677 = vadd.f32 %v5505, %v5676
      %v5678 = vpop.f32.mrb[0].mxu0
      %v5679 = vadd.f32 %v5505, %v5678
      %5680 = vmatprep.mubr.f32.mxu0 %v5522
      %5681 = vmatmul.mubr.f32.gmra.mrb[0].mxu0 %v5495
      %v5682 = vpop.f32.mrb[0].mxu0
      %v5683 = vadd.f32 %v5510, %v5682
      %v5684 = vpop.f32.mrb[0].mxu0
      %v5685 = vadd.f32 %v5510, %v5684
      %5686 = vmatprep.mubr.f32.mxu0 %v5525
      %5687 = vmatmul.mubr.f32.gmra.mrb[0].mxu0 %v5497
      %v5688 = vpop.f32.mrb[0].mxu0
      %v5689 = vadd.f32 %v5515, %v5688
      %v5690 = vpop.f32.mrb[0].mxu0
      %v5691 = vadd.f32 %v5515, %v5690
      %5692 = vdwg.mxu0
      %5693 = vmatprep.subr.mxu0 %v4802
      %5694 = vmatpush1.msra.mxu0 %v4801
      %5695 = vmatprep.subr.mxu0 %v4810
      %5696 = vmatpush1.msra.mxu0 %v4809
      %5697 = vmatprep.subr.mxu0 %v4818
      %5698 = vmatpush1.msra.mxu0 %v4817
      %5699 = vmatprep.subr.mxu0 %v4898
      %5700 = vmatpush1.msra.mxu0 %v4897
      %5701 = vmatprep.subr.mxu0 %v4906
      %5702 = vmatpush1.msra.mxu0 %v4905
      %5703 = vmatprep.subr.mxu0 %v4914
      %5704 = vmatpush1.msra.mxu0 %v4913
      %5705 = vmatprep.subr.mxu0 %v4994
      %5706 = vmatpush1.msra.mxu0 %v4993
      %5707 = vmatprep.subr.mxu0 %v5002
      %5708 = vmatpush1.msra.mxu0 %v5001
      %5709 = vmatprep.subr.mxu0 %v5010
      %5710 = vmatpush1.msra.mxu0 %v5009
      %5711 = vmatprep.subr.mxu0 %v5090
      %5712 = vmatpush1.msra.mxu0 %v5089
      %5713 = vmatprep.subr.mxu0 %v5098
      %5714 = vmatpush1.msra.mxu0 %v5097
      %5715 = vmatprep.subr.mxu0 %v5106
      %5716 = vmatpush1.msra.mxu0 %v5105
      %5717 = vmatprep.subr.mxu0 %v3344
      %5718 = vmatpush1.msra.mxu0 %v3343
      %5719 = vmatprep.subr.mxu0 %v4640
      %5720 = vmatpush1.msra.mxu0 %v4638
      %5721 = vmatprep.subr.mxu0 %v4646
      %5722 = vmatpush1.msra.mxu0 %v4644
      %5723 = vmatprep.subr.mxu0 %v5186
      %5724 = vmatpush1.msra.mxu0 %v5185
      %5725 = vmatprep.subr.mxu0 %v5194
      %5726 = vmatpush1.msra.mxu0 %v5193
      %5727 = vmatprep.subr.mxu0 %v5202
      %5728 = vmatpush1.msra.mxu0 %v5201
      %5729 = vmatprep.subr.mxu0 %v5282
      %5730 = vmatpush1.msra.mxu0 %v5281
      %5731 = vmatprep.subr.mxu0 %v5290
      %5732 = vmatpush1.msra.mxu0 %v5289
      %5733 = vmatprep.subr.mxu0 %v5298
      %5734 = vmatpush1.msra.mxu0 %v5297
      %5735 = vmatprep.subr.mxu0 %v5378
      %5736 = vmatpush1.msra.mxu0 %v5377
      %5737 = vmatprep.subr.mxu0 %v5386
      %5738 = vmatpush1.msra.mxu0 %v5385
      %5739 = vmatprep.subr.mxu0 %v5394
      %5740 = vmatpush1.msra.mxu0 %v5393
      %5741 = vmatprep.subr.mxu0 %v5474
      %5742 = vmatpush1.msra.mxu0 %v5473
      %5743 = vmatprep.subr.mxu0 %v5482
      %5744 = vmatpush1.msra.mxu0 %v5481
      %5745 = vmatprep.subr.mxu0 %v5490
      %5746 = vmatpush1.msra.mxu0 %v5489
      %5747 = vmatprep.subr.mxu0 0.0
      %5748 = vmatpush1.msra.mxu0 0.0
      %5749 = vmatprep.subr.mxu0 0.0
      %5750 = vmatpush1.msra.mxu0 0.0
      %5751 = vmatprep.subr.mxu0 0.0
      %5752 = vmatpush1.msra.mxu0 0.0
      %5753 = vmatprep.subr.mxu0 0.0
      %5754 = vmatpush1.msra.mxu0 0.0
      %5755 = vmatprep.subr.mxu0 0.0
      %5756 = vmatpush1.msra.mxu0 0.0
      %5757 = vmatprep.mubr.f32.mxu0 %v5519
      %5758 = vmatmul.mubr.f32.gmra.mrb[0].mxu0 %v5493
      %v5759 = vpop.f32.mrb[0].mxu0
      %v5760 = vadd.f32 %v5505, %v5759
      %v5761 = vpop.f32.mrb[0].mxu0
      %v5762 = vadd.f32 %v5505, %v5761
      %5763 = vmatprep.mubr.f32.mxu0 %v5522
      %5764 = vmatmul.mubr.f32.gmra.mrb[0].mxu0 %v5495
      %v5765 = vpop.f32.mrb[0].mxu0
      %v5766 = vadd.f32 %v5510, %v5765
      %v5767 = vpop.f32.mrb[0].mxu0
      %v5768 = vadd.f32 %v5510, %v5767
      %5769 = vmatprep.mubr.f32.mxu0 %v5525
      %5770 = vmatmul.mubr.f32.gmra.mrb[0].mxu0 %v5497
      %v5771 = vpop.f32.mrb[0].mxu0
      %v5772 = vadd.f32 %v5515, %v5771
      %v5773 = vpop.f32.mrb[0].mxu0
      %v5774 = vadd.f32 %v5515, %v5773
      %5775 = vdwg.mxu0
      %5776 = vmatprep.subr.mxu0 %v4804
      %5777 = vmatpush1.msra.mxu0 %v4803
      %5778 = vmatprep.subr.mxu0 %v4812
      %5779 = vmatpush1.msra.mxu0 %v4811
      %5780 = vmatprep.subr.mxu0 %v4820
      %5781 = vmatpush1.msra.mxu0 %v4819
      %5782 = vmatprep.subr.mxu0 %v4900
      %5783 = vmatpush1.msra.mxu0 %v4899
      %5784 = vmatprep.subr.mxu0 %v4908
      %5785 = vmatpush1.msra.mxu0 %v4907
      %5786 = vmatprep.subr.mxu0 %v4916
      %5787 = vmatpush1.msra.mxu0 %v4915
      %5788 = vmatprep.subr.mxu0 %v4996
      %5789 = vmatpush1.msra.mxu0 %v4995
      %5790 = vmatprep.subr.mxu0 %v5004
      %5791 = vmatpush1.msra.mxu0 %v5003
      %5792 = vmatprep.subr.mxu0 %v5012
      %5793 = vmatpush1.msra.mxu0 %v5011
      %5794 = vmatprep.subr.mxu0 %v5092
      %5795 = vmatpush1.msra.mxu0 %v5091
      %5796 = vmatprep.subr.mxu0 %v5100
      %5797 = vmatpush1.msra.mxu0 %v5099
      %5798 = vmatprep.subr.mxu0 %v5108
      %5799 = vmatpush1.msra.mxu0 %v5107
      %5800 = vmatprep.subr.mxu0 %v3346
      %5801 = vmatpush1.msra.mxu0 %v3345
      %5802 = vmatprep.subr.mxu0 %v4717
      %5803 = vmatpush1.msra.mxu0 %v4715
      %5804 = vmatprep.subr.mxu0 %v4723
      %5805 = vmatpush1.msra.mxu0 %v4721
      %5806 = vmatprep.subr.mxu0 %v5188
      %5807 = vmatpush1.msra.mxu0 %v5187
      %5808 = vmatprep.subr.mxu0 %v5196
      %5809 = vmatpush1.msra.mxu0 %v5195
      %5810 = vmatprep.subr.mxu0 %v5204
      %5811 = vmatpush1.msra.mxu0 %v5203
      %5812 = vmatprep.subr.mxu0 %v5284
      %5813 = vmatpush1.msra.mxu0 %v5283
      %5814 = vmatprep.subr.mxu0 %v5292
      %5815 = vmatpush1.msra.mxu0 %v5291
      %5816 = vmatprep.subr.mxu0 %v5300
      %5817 = vmatpush1.msra.mxu0 %v5299
      %5818 = vmatprep.subr.mxu0 %v5380
      %5819 = vmatpush1.msra.mxu0 %v5379
      %5820 = vmatprep.subr.mxu0 %v5388
      %5821 = vmatpush1.msra.mxu0 %v5387
      %5822 = vmatprep.subr.mxu0 %v5396
      %5823 = vmatpush1.msra.mxu0 %v5395
      %5824 = vmatprep.subr.mxu0 %v5476
      %5825 = vmatpush1.msra.mxu0 %v5475
      %5826 = vmatprep.subr.mxu0 %v5484
      %5827 = vmatpush1.msra.mxu0 %v5483
      %5828 = vmatprep.subr.mxu0 %v5492
      %5829 = vmatpush1.msra.mxu0 %v5491
      %5830 = vmatprep.subr.mxu0 0.0
      %5831 = vmatpush1.msra.mxu0 0.0
      %5832 = vmatprep.subr.mxu0 0.0
      %5833 = vmatpush1.msra.mxu0 0.0
      %5834 = vmatprep.subr.mxu0 0.0
      %5835 = vmatpush1.msra.mxu0 0.0
      %5836 = vmatprep.subr.mxu0 0.0
      %5837 = vmatpush1.msra.mxu0 0.0
      %5838 = vmatprep.subr.mxu0 0.0
      %5839 = vmatpush1.msra.mxu0 0.0
      %5840 = vmatprep.mubr.f32.mxu0 %v5519
      %5841 = vmatmul.mubr.f32.gmra.mrb[0].mxu0 %v5493
      %v5842 = vpop.f32.mrb[0].mxu0
      %v5843 = vadd.f32 %v5505, %v5842
      %v5844 = vpop.f32.mrb[0].mxu0
      %v5845 = vadd.f32 %v5505, %v5844
      %5846 = vmatprep.mubr.f32.mxu0 %v5522
      %5847 = vmatmul.mubr.f32.gmra.mrb[0].mxu0 %v5495
      %v5848 = vpop.f32.mrb[0].mxu0
      %v5849 = vadd.f32 %v5510, %v5848
      %v5850 = vpop.f32.mrb[0].mxu0
      %v5851 = vadd.f32 %v5510, %v5850
      %5852 = vmatprep.mubr.f32.mxu0 %v5525
      %5853 = vmatmul.mubr.f32.gmra.mrb[0].mxu0 %v5497
      %v5854 = vpop.f32.mrb[0].mxu0
      %v5855 = vadd.f32 %v5515, %v5854
      %v5856 = vpop.f32.mrb[0].mxu0
      %v5857 = vadd.f32 %v5515, %v5856
      %5858 = vdwg.mxu0
      %5859 = vrot.lane.b32.xlu0 %v5594, 33
      %v5860 = vpop.permute.xlu0 %5859
      %5861 = vrot.lane.b32.xlu0 %v5600, 33
      %v5862 = vpop.permute.xlu0 %5861
      %5863 = vrot.lane.b32.xlu0 %v5606, 33
      %v5864 = vpop.permute.xlu0 %5863
      %5865 = vrot.lane.b32.xlu0 %v5596, 33
      %v5866 = vpop.permute.xlu0 %5865
      %5867 = vrot.lane.b32.xlu0 %v5602, 33
      %v5868 = vpop.permute.xlu0 %5867
      %5869 = vrot.lane.b32.xlu0 %v5608, 33
      %v5870 = vpop.permute.xlu0 %5869
      %5871 = vrot.lane.b32.xlu0 %v5677, 33
      %v5872 = vpop.permute.xlu0 %5871
      %5873 = vrot.lane.b32.xlu0 %v5683, 33
      %v5874 = vpop.permute.xlu0 %5873
      %5875 = vrot.lane.b32.xlu0 %v5689, 33
      %v5876 = vpop.permute.xlu0 %5875
      %5877 = vrot.lane.b32.xlu0 %v5679, 33
      %v5878 = vpop.permute.xlu0 %5877
      %5879 = vrot.lane.b32.xlu0 %v5685, 33
      %v5880 = vpop.permute.xlu0 %5879
      %5881 = vrot.lane.b32.xlu0 %v5691, 33
      %v5882 = vpop.permute.xlu0 %5881
      %5883 = vrot.lane.b32.xlu0 %v5760, 33
      %v5884 = vpop.permute.xlu0 %5883
      %5885 = vrot.lane.b32.xlu0 %v5766, 33
      %v5886 = vpop.permute.xlu0 %5885
      %5887 = vrot.lane.b32.xlu0 %v5772, 33
      %v5888 = vpop.permute.xlu0 %5887
      %5889 = vrot.lane.b32.xlu0 %v5762, 33
      %v5890 = vpop.permute.xlu0 %5889
      %5891 = vrot.lane.b32.xlu0 %v5768, 33
      %v5892 = vpop.permute.xlu0 %5891
      %5893 = vrot.lane.b32.xlu0 %v5774, 33
      %v5894 = vpop.permute.xlu0 %5893
      %5895 = vrot.lane.b32.xlu0 %v5843, 33
      %v5896 = vpop.permute.xlu0 %5895
      %5897 = vrot.lane.b32.xlu0 %v5849, 33
      %v5898 = vpop.permute.xlu0 %5897
      %5899 = vrot.lane.b32.xlu0 %v5855, 33
      %v5900 = vpop.permute.xlu0 %5899
      %5901 = vrot.lane.b32.xlu0 %v5845, 33
      %v5902 = vpop.permute.xlu0 %5901
      %5903 = vrot.lane.b32.xlu0 %v5851, 33
      %v5904 = vpop.permute.xlu0 %5903
      %5905 = vrot.lane.b32.xlu0 %v5857, 33
      %v5906 = vpop.permute.xlu0 %5905
      %v5907 = vsel %vm1985, %v5896, %v5902
      %v5908 = vsel %vm1985, %v5898, %v5904
      %v5909 = vsel %vm1985, %v5900, %v5906
      %v5910 = vsel %vm1985, %v5890, %v5896
      %v5911 = vsel %vm1985, %v5892, %v5898
      %v5912 = vsel %vm1985, %v5894, %v5900
      %v5913 = vsel %vm1985, %v5884, %v5890
      %v5914 = vsel %vm1985, %v5886, %v5892
      %v5915 = vsel %vm1985, %v5888, %v5894
      %v5916 = vsel %vm1985, %v5878, %v5884
      %v5917 = vsel %vm1985, %v5880, %v5886
      %v5918 = vsel %vm1985, %v5882, %v5888
      %v5919 = vsel %vm1985, %v5872, %v5878
      %v5920 = vsel %vm1985, %v5874, %v5880
      %v5921 = vsel %vm1985, %v5876, %v5882
      %v5922 = vsel %vm1985, %v5866, %v5872
      %v5923 = vsel %vm1985, %v5868, %v5874
      %v5924 = vsel %vm1985, %v5870, %v5876
      %v5925 = vsel %vm1985, %v5860, %v5866
      %v5926 = vsel %vm1985, %v5862, %v5868
      %v5927 = vsel %vm1985, %v5864, %v5870
      %v5928 = vsel %vm1985, %v5902, %v5860
      %v5929 = vsel %vm1985, %v5904, %v5862
      %v5930 = vsel %vm1985, %v5906, %v5864
      %v5931 = vmul.f32 %v5928, %v1997
      %v5932 = vmul.f32 %v5925, %v2001
      %v5933 = vmul.f32 %v5922, %v2005
      %v5934 = vmul.f32 %v5919, %v2009
      %v5935 = vmul.f32 %v5916, %v2013
      %v5936 = vmul.f32 %v5913, %v2017
      %v5937 = vmul.f32 %v5910, %v2021
      %v5938 = vmul.f32 %v5907, %v2025
      %v5939 = vmul.f32 %v5929, %v1997
      %v5940 = vmul.f32 %v5926, %v2001
      %v5941 = vmul.f32 %v5923, %v2005
      %v5942 = vmul.f32 %v5920, %v2009
      %v5943 = vmul.f32 %v5917, %v2013
      %v5944 = vmul.f32 %v5914, %v2017
      %v5945 = vmul.f32 %v5911, %v2021
      %v5946 = vmul.f32 %v5908, %v2025
      %v5947 = vmul.f32 %v5930, %v1997
      %v5948 = vmul.f32 %v5927, %v2001
      %v5949 = vmul.f32 %v5924, %v2005
      %v5950 = vmul.f32 %v5921, %v2009
      %v5951 = vmul.f32 %v5918, %v2013
      %v5952 = vmul.f32 %v5915, %v2017
      %v5953 = vmul.f32 %v5912, %v2021
      %v5954 = vmul.f32 %v5909, %v2025
      %5955 = vrot.lane.b32.xlu0 %v5594, 32
      %v5956 = vpop.permute.xlu0 %5955
      %5957 = vrot.lane.b32.xlu0 %v5600, 32
      %v5958 = vpop.permute.xlu0 %5957
      %5959 = vrot.lane.b32.xlu0 %v5606, 32
      %v5960 = vpop.permute.xlu0 %5959
      %5961 = vrot.lane.b32.xlu0 %v5596, 32
      %v5962 = vpop.permute.xlu0 %5961
      %5963 = vrot.lane.b32.xlu0 %v5602, 32
      %v5964 = vpop.permute.xlu0 %5963
      %5965 = vrot.lane.b32.xlu0 %v5608, 32
      %v5966 = vpop.permute.xlu0 %5965
      %5967 = vrot.lane.b32.xlu0 %v5677, 32
      %v5968 = vpop.permute.xlu0 %5967
      %5969 = vrot.lane.b32.xlu0 %v5683, 32
      %v5970 = vpop.permute.xlu0 %5969
      %5971 = vrot.lane.b32.xlu0 %v5689, 32
      %v5972 = vpop.permute.xlu0 %5971
      %5973 = vrot.lane.b32.xlu0 %v5679, 32
      %v5974 = vpop.permute.xlu0 %5973
      %5975 = vrot.lane.b32.xlu0 %v5685, 32
      %v5976 = vpop.permute.xlu0 %5975
      %5977 = vrot.lane.b32.xlu0 %v5691, 32
      %v5978 = vpop.permute.xlu0 %5977
      %5979 = vrot.lane.b32.xlu0 %v5760, 32
      %v5980 = vpop.permute.xlu0 %5979
      %5981 = vrot.lane.b32.xlu0 %v5766, 32
      %v5982 = vpop.permute.xlu0 %5981
      %5983 = vrot.lane.b32.xlu0 %v5772, 32
      %v5984 = vpop.permute.xlu0 %5983
      %5985 = vrot.lane.b32.xlu0 %v5762, 32
      %v5986 = vpop.permute.xlu0 %5985
      %5987 = vrot.lane.b32.xlu0 %v5768, 32
      %v5988 = vpop.permute.xlu0 %5987
      %5989 = vrot.lane.b32.xlu0 %v5774, 32
      %v5990 = vpop.permute.xlu0 %5989
      %5991 = vrot.lane.b32.xlu0 %v5843, 32
      %v5992 = vpop.permute.xlu0 %5991
      %5993 = vrot.lane.b32.xlu0 %v5849, 32
      %v5994 = vpop.permute.xlu0 %5993
      %5995 = vrot.lane.b32.xlu0 %v5855, 32
      %v5996 = vpop.permute.xlu0 %5995
      %5997 = vrot.lane.b32.xlu0 %v5845, 32
      %v5998 = vpop.permute.xlu0 %5997
      %5999 = vrot.lane.b32.xlu0 %v5851, 32
      %v6000 = vpop.permute.xlu0 %5999
      %6001 = vrot.lane.b32.xlu0 %v5857, 32
      %v6002 = vpop.permute.xlu0 %6001
      %v6003 = vsel %vm2050, %v5992, %v5998
      %v6004 = vsel %vm2050, %v5994, %v6000
      %v6005 = vsel %vm2050, %v5996, %v6002
      %v6006 = vsel %vm2050, %v5986, %v5992
      %v6007 = vsel %vm2050, %v5988, %v5994
      %v6008 = vsel %vm2050, %v5990, %v5996
      %v6009 = vsel %vm2050, %v5980, %v5986
      %v6010 = vsel %vm2050, %v5982, %v5988
      %v6011 = vsel %vm2050, %v5984, %v5990
      %v6012 = vsel %vm2050, %v5974, %v5980
      %v6013 = vsel %vm2050, %v5976, %v5982
      %v6014 = vsel %vm2050, %v5978, %v5984
      %v6015 = vsel %vm2050, %v5968, %v5974
      %v6016 = vsel %vm2050, %v5970, %v5976
      %v6017 = vsel %vm2050, %v5972, %v5978
      %v6018 = vsel %vm2050, %v5962, %v5968
      %v6019 = vsel %vm2050, %v5964, %v5970
      %v6020 = vsel %vm2050, %v5966, %v5972
      %v6021 = vsel %vm2050, %v5956, %v5962
      %v6022 = vsel %vm2050, %v5958, %v5964
      %v6023 = vsel %vm2050, %v5960, %v5966
      %v6024 = vsel %vm2050, %v5998, %v5956
      %v6025 = vsel %vm2050, %v6000, %v5958
      %v6026 = vsel %vm2050, %v6002, %v5960
      %v6027 = vmul.f32 %v6024, %v2062
      %v6028 = vmul.f32 %v6021, %v2066
      %v6029 = vmul.f32 %v6018, %v2070
      %v6030 = vmul.f32 %v6015, %v2074
      %v6031 = vmul.f32 %v6012, %v2078
      %v6032 = vmul.f32 %v6009, %v2082
      %v6033 = vmul.f32 %v6006, %v2086
      %v6034 = vmul.f32 %v6003, %v2090
      %v6035 = vmul.f32 %v6025, %v2062
      %v6036 = vmul.f32 %v6022, %v2066
      %v6037 = vmul.f32 %v6019, %v2070
      %v6038 = vmul.f32 %v6016, %v2074
      %v6039 = vmul.f32 %v6013, %v2078
      %v6040 = vmul.f32 %v6010, %v2082
      %v6041 = vmul.f32 %v6007, %v2086
      %v6042 = vmul.f32 %v6004, %v2090
      %v6043 = vmul.f32 %v6026, %v2062
      %v6044 = vmul.f32 %v6023, %v2066
      %v6045 = vmul.f32 %v6020, %v2070
      %v6046 = vmul.f32 %v6017, %v2074
      %v6047 = vmul.f32 %v6014, %v2078
      %v6048 = vmul.f32 %v6011, %v2082
      %v6049 = vmul.f32 %v6008, %v2086
      %v6050 = vmul.f32 %v6005, %v2090
      %6051 = vrot.lane.b32.xlu0 %v5594, 31
      %v6052 = vpop.permute.xlu0 %6051
      %6053 = vrot.lane.b32.xlu0 %v5600, 31
      %v6054 = vpop.permute.xlu0 %6053
      %6055 = vrot.lane.b32.xlu0 %v5606, 31
      %v6056 = vpop.permute.xlu0 %6055
      %6057 = vrot.lane.b32.xlu0 %v5596, 31
      %v6058 = vpop.permute.xlu0 %6057
      %6059 = vrot.lane.b32.xlu0 %v5602, 31
      %v6060 = vpop.permute.xlu0 %6059
      %6061 = vrot.lane.b32.xlu0 %v5608, 31
      %v6062 = vpop.permute.xlu0 %6061
      %6063 = vrot.lane.b32.xlu0 %v5677, 31
      %v6064 = vpop.permute.xlu0 %6063
      %6065 = vrot.lane.b32.xlu0 %v5683, 31
      %v6066 = vpop.permute.xlu0 %6065
      %6067 = vrot.lane.b32.xlu0 %v5689, 31
      %v6068 = vpop.permute.xlu0 %6067
      %6069 = vrot.lane.b32.xlu0 %v5679, 31
      %v6070 = vpop.permute.xlu0 %6069
      %6071 = vrot.lane.b32.xlu0 %v5685, 31
      %v6072 = vpop.permute.xlu0 %6071
      %6073 = vrot.lane.b32.xlu0 %v5691, 31
      %v6074 = vpop.permute.xlu0 %6073
      %6075 = vrot.lane.b32.xlu0 %v5760, 31
      %v6076 = vpop.permute.xlu0 %6075
      %6077 = vrot.lane.b32.xlu0 %v5766, 31
      %v6078 = vpop.permute.xlu0 %6077
      %6079 = vrot.lane.b32.xlu0 %v5772, 31
      %v6080 = vpop.permute.xlu0 %6079
      %6081 = vrot.lane.b32.xlu0 %v5762, 31
      %v6082 = vpop.permute.xlu0 %6081
      %6083 = vrot.lane.b32.xlu0 %v5768, 31
      %v6084 = vpop.permute.xlu0 %6083
      %6085 = vrot.lane.b32.xlu0 %v5774, 31
      %v6086 = vpop.permute.xlu0 %6085
      %6087 = vrot.lane.b32.xlu0 %v5843, 31
      %v6088 = vpop.permute.xlu0 %6087
      %6089 = vrot.lane.b32.xlu0 %v5849, 31
      %v6090 = vpop.permute.xlu0 %6089
      %6091 = vrot.lane.b32.xlu0 %v5855, 31
      %v6092 = vpop.permute.xlu0 %6091
      %6093 = vrot.lane.b32.xlu0 %v5845, 31
      %v6094 = vpop.permute.xlu0 %6093
      %6095 = vrot.lane.b32.xlu0 %v5851, 31
      %v6096 = vpop.permute.xlu0 %6095
      %6097 = vrot.lane.b32.xlu0 %v5857, 31
      %v6098 = vpop.permute.xlu0 %6097
      %v6099 = vsel %vm2115, %v6088, %v6094
      %v6100 = vsel %vm2115, %v6090, %v6096
      %v6101 = vsel %vm2115, %v6092, %v6098
      %v6102 = vsel %vm2115, %v6082, %v6088
      %v6103 = vsel %vm2115, %v6084, %v6090
      %v6104 = vsel %vm2115, %v6086, %v6092
      %v6105 = vsel %vm2115, %v6076, %v6082
      %v6106 = vsel %vm2115, %v6078, %v6084
      %v6107 = vsel %vm2115, %v6080, %v6086
      %v6108 = vsel %vm2115, %v6070, %v6076
      %v6109 = vsel %vm2115, %v6072, %v6078
      %v6110 = vsel %vm2115, %v6074, %v6080
      %v6111 = vsel %vm2115, %v6064, %v6070
      %v6112 = vsel %vm2115, %v6066, %v6072
      %v6113 = vsel %vm2115, %v6068, %v6074
      %v6114 = vsel %vm2115, %v6058, %v6064
      %v6115 = vsel %vm2115, %v6060, %v6066
      %v6116 = vsel %vm2115, %v6062, %v6068
      %v6117 = vsel %vm2115, %v6052, %v6058
      %v6118 = vsel %vm2115, %v6054, %v6060
      %v6119 = vsel %vm2115, %v6056, %v6062
      %v6120 = vsel %vm2115, %v6094, %v6052
      %v6121 = vsel %vm2115, %v6096, %v6054
      %v6122 = vsel %vm2115, %v6098, %v6056
      %v6123 = vmul.f32 %v6120, %v2127
      %v6124 = vmul.f32 %v6117, %v2131
      %v6125 = vmul.f32 %v6114, %v2135
      %v6126 = vmul.f32 %v6111, %v2139
      %v6127 = vmul.f32 %v6108, %v2143
      %v6128 = vmul.f32 %v6105, %v2147
      %v6129 = vmul.f32 %v6102, %v2151
      %v6130 = vmul.f32 %v6099, %v2155
      %v6131 = vmul.f32 %v6121, %v2127
      %v6132 = vmul.f32 %v6118, %v2131
      %v6133 = vmul.f32 %v6115, %v2135
      %v6134 = vmul.f32 %v6112, %v2139
      %v6135 = vmul.f32 %v6109, %v2143
      %v6136 = vmul.f32 %v6106, %v2147
      %v6137 = vmul.f32 %v6103, %v2151
      %v6138 = vmul.f32 %v6100, %v2155
      %v6139 = vmul.f32 %v6122, %v2127
      %v6140 = vmul.f32 %v6119, %v2131
      %v6141 = vmul.f32 %v6116, %v2135
      %v6142 = vmul.f32 %v6113, %v2139
      %v6143 = vmul.f32 %v6110, %v2143
      %v6144 = vmul.f32 %v6107, %v2147
      %v6145 = vmul.f32 %v6104, %v2151
      %v6146 = vmul.f32 %v6101, %v2155
      %6147 = vrot.lane.b32.xlu0 %v5594, 1
      %v6148 = vpop.permute.xlu0 %6147
      %6149 = vrot.lane.b32.xlu0 %v5600, 1
      %v6150 = vpop.permute.xlu0 %6149
      %6151 = vrot.lane.b32.xlu0 %v5606, 1
      %v6152 = vpop.permute.xlu0 %6151
      %6153 = vrot.lane.b32.xlu0 %v5596, 1
      %v6154 = vpop.permute.xlu0 %6153
      %6155 = vrot.lane.b32.xlu0 %v5602, 1
      %v6156 = vpop.permute.xlu0 %6155
      %6157 = vrot.lane.b32.xlu0 %v5608, 1
      %v6158 = vpop.permute.xlu0 %6157
      %6159 = vrot.lane.b32.xlu0 %v5677, 1
      %v6160 = vpop.permute.xlu0 %6159
      %6161 = vrot.lane.b32.xlu0 %v5683, 1
      %v6162 = vpop.permute.xlu0 %6161
      %6163 = vrot.lane.b32.xlu0 %v5689, 1
      %v6164 = vpop.permute.xlu0 %6163
      %6165 = vrot.lane.b32.xlu0 %v5679, 1
      %v6166 = vpop.permute.xlu0 %6165
      %6167 = vrot.lane.b32.xlu0 %v5685, 1
      %v6168 = vpop.permute.xlu0 %6167
      %6169 = vrot.lane.b32.xlu0 %v5691, 1
      %v6170 = vpop.permute.xlu0 %6169
      %6171 = vrot.lane.b32.xlu0 %v5760, 1
      %v6172 = vpop.permute.xlu0 %6171
      %6173 = vrot.lane.b32.xlu0 %v5766, 1
      %v6174 = vpop.permute.xlu0 %6173
      %6175 = vrot.lane.b32.xlu0 %v5772, 1
      %v6176 = vpop.permute.xlu0 %6175
      %6177 = vrot.lane.b32.xlu0 %v5762, 1
      %v6178 = vpop.permute.xlu0 %6177
      %6179 = vrot.lane.b32.xlu0 %v5768, 1
      %v6180 = vpop.permute.xlu0 %6179
      %6181 = vrot.lane.b32.xlu0 %v5774, 1
      %v6182 = vpop.permute.xlu0 %6181
      %6183 = vrot.lane.b32.xlu0 %v5843, 1
      %v6184 = vpop.permute.xlu0 %6183
      %6185 = vrot.lane.b32.xlu0 %v5849, 1
      %v6186 = vpop.permute.xlu0 %6185
      %6187 = vrot.lane.b32.xlu0 %v5855, 1
      %v6188 = vpop.permute.xlu0 %6187
      %6189 = vrot.lane.b32.xlu0 %v5845, 1
      %v6190 = vpop.permute.xlu0 %6189
      %6191 = vrot.lane.b32.xlu0 %v5851, 1
      %v6192 = vpop.permute.xlu0 %6191
      %6193 = vrot.lane.b32.xlu0 %v5857, 1
      %v6194 = vpop.permute.xlu0 %6193
      %v6195 = vsel %vm1788, %v6184, %v6190
      %v6196 = vsel %vm1788, %v6186, %v6192
      %v6197 = vsel %vm1788, %v6188, %v6194
      %v6198 = vsel %vm1788, %v6178, %v6184
      %v6199 = vsel %vm1788, %v6180, %v6186
      %v6200 = vsel %vm1788, %v6182, %v6188
      %v6201 = vsel %vm1788, %v6172, %v6178
      %v6202 = vsel %vm1788, %v6174, %v6180
      %v6203 = vsel %vm1788, %v6176, %v6182
      %v6204 = vsel %vm1788, %v6166, %v6172
      %v6205 = vsel %vm1788, %v6168, %v6174
      %v6206 = vsel %vm1788, %v6170, %v6176
      %v6207 = vsel %vm1788, %v6160, %v6166
      %v6208 = vsel %vm1788, %v6162, %v6168
      %v6209 = vsel %vm1788, %v6164, %v6170
      %v6210 = vsel %vm1788, %v6154, %v6160
      %v6211 = vsel %vm1788, %v6156, %v6162
      %v6212 = vsel %vm1788, %v6158, %v6164
      %v6213 = vsel %vm1788, %v6148, %v6154
      %v6214 = vsel %vm1788, %v6150, %v6156
      %v6215 = vsel %vm1788, %v6152, %v6158
      %v6216 = vsel %vm1788, %v6190, %v6148
      %v6217 = vsel %vm1788, %v6192, %v6150
      %v6218 = vsel %vm1788, %v6194, %v6152
      %v6219 = vmul.f32 %v6216, %v2191
      %v6220 = vmul.f32 %v6213, %v2195
      %v6221 = vmul.f32 %v6210, %v2199
      %v6222 = vmul.f32 %v6207, %v2203
      %v6223 = vmul.f32 %v6204, %v2207
      %v6224 = vmul.f32 %v6201, %v2211
      %v6225 = vmul.f32 %v6198, %v2215
      %v6226 = vmul.f32 %v6195, %v2219
      %v6227 = vmul.f32 %v6217, %v2191
      %v6228 = vmul.f32 %v6214, %v2195
      %v6229 = vmul.f32 %v6211, %v2199
      %v6230 = vmul.f32 %v6208, %v2203
      %v6231 = vmul.f32 %v6205, %v2207
      %v6232 = vmul.f32 %v6202, %v2211
      %v6233 = vmul.f32 %v6199, %v2215
      %v6234 = vmul.f32 %v6196, %v2219
      %v6235 = vmul.f32 %v6218, %v2191
      %v6236 = vmul.f32 %v6215, %v2195
      %v6237 = vmul.f32 %v6212, %v2199
      %v6238 = vmul.f32 %v6209, %v2203
      %v6239 = vmul.f32 %v6206, %v2207
      %v6240 = vmul.f32 %v6203, %v2211
      %v6241 = vmul.f32 %v6200, %v2215
      %v6242 = vmul.f32 %v6197, %v2219
      %6243 = vrot.lane.b32.xlu0 %v5594, 127
      %v6244 = vpop.permute.xlu0 %6243
      %6245 = vrot.lane.b32.xlu0 %v5600, 127
      %v6246 = vpop.permute.xlu0 %6245
      %6247 = vrot.lane.b32.xlu0 %v5606, 127
      %v6248 = vpop.permute.xlu0 %6247
      %6249 = vrot.lane.b32.xlu0 %v5596, 127
      %v6250 = vpop.permute.xlu0 %6249
      %6251 = vrot.lane.b32.xlu0 %v5602, 127
      %v6252 = vpop.permute.xlu0 %6251
      %6253 = vrot.lane.b32.xlu0 %v5608, 127
      %v6254 = vpop.permute.xlu0 %6253
      %6255 = vrot.lane.b32.xlu0 %v5677, 127
      %v6256 = vpop.permute.xlu0 %6255
      %6257 = vrot.lane.b32.xlu0 %v5683, 127
      %v6258 = vpop.permute.xlu0 %6257
      %6259 = vrot.lane.b32.xlu0 %v5689, 127
      %v6260 = vpop.permute.xlu0 %6259
      %6261 = vrot.lane.b32.xlu0 %v5679, 127
      %v6262 = vpop.permute.xlu0 %6261
      %6263 = vrot.lane.b32.xlu0 %v5685, 127
      %v6264 = vpop.permute.xlu0 %6263
      %6265 = vrot.lane.b32.xlu0 %v5691, 127
      %v6266 = vpop.permute.xlu0 %6265
      %6267 = vrot.lane.b32.xlu0 %v5760, 127
      %v6268 = vpop.permute.xlu0 %6267
      %6269 = vrot.lane.b32.xlu0 %v5766, 127
      %v6270 = vpop.permute.xlu0 %6269
      %6271 = vrot.lane.b32.xlu0 %v5772, 127
      %v6272 = vpop.permute.xlu0 %6271
      %6273 = vrot.lane.b32.xlu0 %v5762, 127
      %v6274 = vpop.permute.xlu0 %6273
      %6275 = vrot.lane.b32.xlu0 %v5768, 127
      %v6276 = vpop.permute.xlu0 %6275
      %6277 = vrot.lane.b32.xlu0 %v5774, 127
      %v6278 = vpop.permute.xlu0 %6277
      %6279 = vrot.lane.b32.xlu0 %v5843, 127
      %v6280 = vpop.permute.xlu0 %6279
      %6281 = vrot.lane.b32.xlu0 %v5849, 127
      %v6282 = vpop.permute.xlu0 %6281
      %6283 = vrot.lane.b32.xlu0 %v5855, 127
      %v6284 = vpop.permute.xlu0 %6283
      %6285 = vrot.lane.b32.xlu0 %v5845, 127
      %v6286 = vpop.permute.xlu0 %6285
      %6287 = vrot.lane.b32.xlu0 %v5851, 127
      %v6288 = vpop.permute.xlu0 %6287
      %6289 = vrot.lane.b32.xlu0 %v5857, 127
      %v6290 = vpop.permute.xlu0 %6289
      %v6291 = vsel %vm1805, %v6280, %v6286
      %v6292 = vsel %vm1805, %v6282, %v6288
      %v6293 = vsel %vm1805, %v6284, %v6290
      %v6294 = vsel %vm1805, %v6274, %v6280
      %v6295 = vsel %vm1805, %v6276, %v6282
      %v6296 = vsel %vm1805, %v6278, %v6284
      %v6297 = vsel %vm1805, %v6268, %v6274
      %v6298 = vsel %vm1805, %v6270, %v6276
      %v6299 = vsel %vm1805, %v6272, %v6278
      %v6300 = vsel %vm1805, %v6262, %v6268
      %v6301 = vsel %vm1805, %v6264, %v6270
      %v6302 = vsel %vm1805, %v6266, %v6272
      %v6303 = vsel %vm1805, %v6256, %v6262
      %v6304 = vsel %vm1805, %v6258, %v6264
      %v6305 = vsel %vm1805, %v6260, %v6266
      %v6306 = vsel %vm1805, %v6250, %v6256
      %v6307 = vsel %vm1805, %v6252, %v6258
      %v6308 = vsel %vm1805, %v6254, %v6260
      %v6309 = vsel %vm1805, %v6244, %v6250
      %v6310 = vsel %vm1805, %v6246, %v6252
      %v6311 = vsel %vm1805, %v6248, %v6254
      %v6312 = vsel %vm1805, %v6286, %v6244
      %v6313 = vsel %vm1805, %v6288, %v6246
      %v6314 = vsel %vm1805, %v6290, %v6248
      %v6315 = vmul.f32 %v6309, %v2255
      %v6316 = vmul.f32 %v6306, %v2259
      %v6317 = vmul.f32 %v6303, %v2263
      %v6318 = vmul.f32 %v6300, %v2267
      %v6319 = vmul.f32 %v6297, %v2271
      %v6320 = vmul.f32 %v6294, %v2275
      %v6321 = vmul.f32 %v6291, %v2279
      %v6322 = vmul.f32 %v6312, %v2283
      %v6323 = vmul.f32 %v6310, %v2255
      %v6324 = vmul.f32 %v6307, %v2259
      %v6325 = vmul.f32 %v6304, %v2263
      %v6326 = vmul.f32 %v6301, %v2267
      %v6327 = vmul.f32 %v6298, %v2271
      %v6328 = vmul.f32 %v6295, %v2275
      %v6329 = vmul.f32 %v6292, %v2279
      %v6330 = vmul.f32 %v6313, %v2283
      %v6331 = vmul.f32 %v6311, %v2255
      %v6332 = vmul.f32 %v6308, %v2259
      %v6333 = vmul.f32 %v6305, %v2263
      %v6334 = vmul.f32 %v6302, %v2267
      %v6335 = vmul.f32 %v6299, %v2271
      %v6336 = vmul.f32 %v6296, %v2275
      %v6337 = vmul.f32 %v6293, %v2279
      %v6338 = vmul.f32 %v6314, %v2283
      %6339 = vrot.lane.b32.xlu0 %v5594, 97
      %v6340 = vpop.permute.xlu0 %6339
      %6341 = vrot.lane.b32.xlu0 %v5600, 97
      %v6342 = vpop.permute.xlu0 %6341
      %6343 = vrot.lane.b32.xlu0 %v5606, 97
      %v6344 = vpop.permute.xlu0 %6343
      %6345 = vrot.lane.b32.xlu0 %v5596, 97
      %v6346 = vpop.permute.xlu0 %6345
      %6347 = vrot.lane.b32.xlu0 %v5602, 97
      %v6348 = vpop.permute.xlu0 %6347
      %6349 = vrot.lane.b32.xlu0 %v5608, 97
      %v6350 = vpop.permute.xlu0 %6349
      %6351 = vrot.lane.b32.xlu0 %v5677, 97
      %v6352 = vpop.permute.xlu0 %6351
      %6353 = vrot.lane.b32.xlu0 %v5683, 97
      %v6354 = vpop.permute.xlu0 %6353
      %6355 = vrot.lane.b32.xlu0 %v5689, 97
      %v6356 = vpop.permute.xlu0 %6355
      %6357 = vrot.lane.b32.xlu0 %v5679, 97
      %v6358 = vpop.permute.xlu0 %6357
      %6359 = vrot.lane.b32.xlu0 %v5685, 97
      %v6360 = vpop.permute.xlu0 %6359
      %6361 = vrot.lane.b32.xlu0 %v5691, 97
      %v6362 = vpop.permute.xlu0 %6361
      %6363 = vrot.lane.b32.xlu0 %v5760, 97
      %v6364 = vpop.permute.xlu0 %6363
      %6365 = vrot.lane.b32.xlu0 %v5766, 97
      %v6366 = vpop.permute.xlu0 %6365
      %6367 = vrot.lane.b32.xlu0 %v5772, 97
      %v6368 = vpop.permute.xlu0 %6367
      %6369 = vrot.lane.b32.xlu0 %v5762, 97
      %v6370 = vpop.permute.xlu0 %6369
      %6371 = vrot.lane.b32.xlu0 %v5768, 97
      %v6372 = vpop.permute.xlu0 %6371
      %6373 = vrot.lane.b32.xlu0 %v5774, 97
      %v6374 = vpop.permute.xlu0 %6373
      %6375 = vrot.lane.b32.xlu0 %v5843, 97
      %v6376 = vpop.permute.xlu0 %6375
      %6377 = vrot.lane.b32.xlu0 %v5849, 97
      %v6378 = vpop.permute.xlu0 %6377
      %6379 = vrot.lane.b32.xlu0 %v5855, 97
      %v6380 = vpop.permute.xlu0 %6379
      %6381 = vrot.lane.b32.xlu0 %v5845, 97
      %v6382 = vpop.permute.xlu0 %6381
      %6383 = vrot.lane.b32.xlu0 %v5851, 97
      %v6384 = vpop.permute.xlu0 %6383
      %6385 = vrot.lane.b32.xlu0 %v5857, 97
      %v6386 = vpop.permute.xlu0 %6385
      %v6387 = vsel %vm2308, %v6376, %v6382
      %v6388 = vsel %vm2308, %v6378, %v6384
      %v6389 = vsel %vm2308, %v6380, %v6386
      %v6390 = vsel %vm2308, %v6370, %v6376
      %v6391 = vsel %vm2308, %v6372, %v6378
      %v6392 = vsel %vm2308, %v6374, %v6380
      %v6393 = vsel %vm2308, %v6364, %v6370
      %v6394 = vsel %vm2308, %v6366, %v6372
      %v6395 = vsel %vm2308, %v6368, %v6374
      %v6396 = vsel %vm2308, %v6358, %v6364
      %v6397 = vsel %vm2308, %v6360, %v6366
      %v6398 = vsel %vm2308, %v6362, %v6368
      %v6399 = vsel %vm2308, %v6352, %v6358
      %v6400 = vsel %vm2308, %v6354, %v6360
      %v6401 = vsel %vm2308, %v6356, %v6362
      %v6402 = vsel %vm2308, %v6346, %v6352
      %v6403 = vsel %vm2308, %v6348, %v6354
      %v6404 = vsel %vm2308, %v6350, %v6356
      %v6405 = vsel %vm2308, %v6340, %v6346
      %v6406 = vsel %vm2308, %v6342, %v6348
      %v6407 = vsel %vm2308, %v6344, %v6350
      %v6408 = vsel %vm2308, %v6382, %v6340
      %v6409 = vsel %vm2308, %v6384, %v6342
      %v6410 = vsel %vm2308, %v6386, %v6344
      %v6411 = vmul.f32 %v6405, %v2320
      %v6412 = vmul.f32 %v6402, %v2324
      %v6413 = vmul.f32 %v6399, %v2328
      %v6414 = vmul.f32 %v6396, %v2332
      %v6415 = vmul.f32 %v6393, %v2336
      %v6416 = vmul.f32 %v6390, %v2340
      %v6417 = vmul.f32 %v6387, %v2344
      %v6418 = vmul.f32 %v6408, %v2348
      %v6419 = vmul.f32 %v6406, %v2320
      %v6420 = vmul.f32 %v6403, %v2324
      %v6421 = vmul.f32 %v6400, %v2328
      %v6422 = vmul.f32 %v6397, %v2332
      %v6423 = vmul.f32 %v6394, %v2336
      %v6424 = vmul.f32 %v6391, %v2340
      %v6425 = vmul.f32 %v6388, %v2344
      %v6426 = vmul.f32 %v6409, %v2348
      %v6427 = vmul.f32 %v6407, %v2320
      %v6428 = vmul.f32 %v6404, %v2324
      %v6429 = vmul.f32 %v6401, %v2328
      %v6430 = vmul.f32 %v6398, %v2332
      %v6431 = vmul.f32 %v6395, %v2336
      %v6432 = vmul.f32 %v6392, %v2340
      %v6433 = vmul.f32 %v6389, %v2344
      %v6434 = vmul.f32 %v6410, %v2348
      %6435 = vrot.lane.b32.xlu0 %v5594, 96
      %v6436 = vpop.permute.xlu0 %6435
      %6437 = vrot.lane.b32.xlu0 %v5600, 96
      %v6438 = vpop.permute.xlu0 %6437
      %6439 = vrot.lane.b32.xlu0 %v5606, 96
      %v6440 = vpop.permute.xlu0 %6439
      %6441 = vrot.lane.b32.xlu0 %v5596, 96
      %v6442 = vpop.permute.xlu0 %6441
      %6443 = vrot.lane.b32.xlu0 %v5602, 96
      %v6444 = vpop.permute.xlu0 %6443
      %6445 = vrot.lane.b32.xlu0 %v5608, 96
      %v6446 = vpop.permute.xlu0 %6445
      %6447 = vrot.lane.b32.xlu0 %v5677, 96
      %v6448 = vpop.permute.xlu0 %6447
      %6449 = vrot.lane.b32.xlu0 %v5683, 96
      %v6450 = vpop.permute.xlu0 %6449
      %6451 = vrot.lane.b32.xlu0 %v5689, 96
      %v6452 = vpop.permute.xlu0 %6451
      %6453 = vrot.lane.b32.xlu0 %v5679, 96
      %v6454 = vpop.permute.xlu0 %6453
      %6455 = vrot.lane.b32.xlu0 %v5685, 96
      %v6456 = vpop.permute.xlu0 %6455
      %6457 = vrot.lane.b32.xlu0 %v5691, 96
      %v6458 = vpop.permute.xlu0 %6457
      %6459 = vrot.lane.b32.xlu0 %v5760, 96
      %v6460 = vpop.permute.xlu0 %6459
      %6461 = vrot.lane.b32.xlu0 %v5766, 96
      %v6462 = vpop.permute.xlu0 %6461
      %6463 = vrot.lane.b32.xlu0 %v5772, 96
      %v6464 = vpop.permute.xlu0 %6463
      %6465 = vrot.lane.b32.xlu0 %v5762, 96
      %v6466 = vpop.permute.xlu0 %6465
      %6467 = vrot.lane.b32.xlu0 %v5768, 96
      %v6468 = vpop.permute.xlu0 %6467
      %6469 = vrot.lane.b32.xlu0 %v5774, 96
      %v6470 = vpop.permute.xlu0 %6469
      %6471 = vrot.lane.b32.xlu0 %v5843, 96
      %v6472 = vpop.permute.xlu0 %6471
      %6473 = vrot.lane.b32.xlu0 %v5849, 96
      %v6474 = vpop.permute.xlu0 %6473
      %6475 = vrot.lane.b32.xlu0 %v5855, 96
      %v6476 = vpop.permute.xlu0 %6475
      %6477 = vrot.lane.b32.xlu0 %v5845, 96
      %v6478 = vpop.permute.xlu0 %6477
      %6479 = vrot.lane.b32.xlu0 %v5851, 96
      %v6480 = vpop.permute.xlu0 %6479
      %6481 = vrot.lane.b32.xlu0 %v5857, 96
      %v6482 = vpop.permute.xlu0 %6481
      %v6483 = vsel %vm2373, %v6472, %v6478
      %v6484 = vsel %vm2373, %v6474, %v6480
      %v6485 = vsel %vm2373, %v6476, %v6482
      %v6486 = vsel %vm2373, %v6466, %v6472
      %v6487 = vsel %vm2373, %v6468, %v6474
      %v6488 = vsel %vm2373, %v6470, %v6476
      %v6489 = vsel %vm2373, %v6460, %v6466
      %v6490 = vsel %vm2373, %v6462, %v6468
      %v6491 = vsel %vm2373, %v6464, %v6470
      %v6492 = vsel %vm2373, %v6454, %v6460
      %v6493 = vsel %vm2373, %v6456, %v6462
      %v6494 = vsel %vm2373, %v6458, %v6464
      %v6495 = vsel %vm2373, %v6448, %v6454
      %v6496 = vsel %vm2373, %v6450, %v6456
      %v6497 = vsel %vm2373, %v6452, %v6458
      %v6498 = vsel %vm2373, %v6442, %v6448
      %v6499 = vsel %vm2373, %v6444, %v6450
      %v6500 = vsel %vm2373, %v6446, %v6452
      %v6501 = vsel %vm2373, %v6436, %v6442
      %v6502 = vsel %vm2373, %v6438, %v6444
      %v6503 = vsel %vm2373, %v6440, %v6446
      %v6504 = vsel %vm2373, %v6478, %v6436
      %v6505 = vsel %vm2373, %v6480, %v6438
      %v6506 = vsel %vm2373, %v6482, %v6440
      %v6507 = vmul.f32 %v6501, %v2385
      %v6508 = vmul.f32 %v6498, %v2389
      %v6509 = vmul.f32 %v6495, %v2393
      %v6510 = vmul.f32 %v6492, %v2397
      %v6511 = vmul.f32 %v6489, %v2401
      %v6512 = vmul.f32 %v6486, %v2405
      %v6513 = vmul.f32 %v6483, %v2409
      %v6514 = vmul.f32 %v6504, %v2413
      %v6515 = vmul.f32 %v6502, %v2385
      %v6516 = vmul.f32 %v6499, %v2389
      %v6517 = vmul.f32 %v6496, %v2393
      %v6518 = vmul.f32 %v6493, %v2397
      %v6519 = vmul.f32 %v6490, %v2401
      %v6520 = vmul.f32 %v6487, %v2405
      %v6521 = vmul.f32 %v6484, %v2409
      %v6522 = vmul.f32 %v6505, %v2413
      %v6523 = vmul.f32 %v6503, %v2385
      %v6524 = vmul.f32 %v6500, %v2389
      %v6525 = vmul.f32 %v6497, %v2393
      %v6526 = vmul.f32 %v6494, %v2397
      %v6527 = vmul.f32 %v6491, %v2401
      %v6528 = vmul.f32 %v6488, %v2405
      %v6529 = vmul.f32 %v6485, %v2409
      %v6530 = vmul.f32 %v6506, %v2413
      %6531 = vrot.lane.b32.xlu0 %v5594, 95
      %v6532 = vpop.permute.xlu0 %6531
      %6533 = vrot.lane.b32.xlu0 %v5600, 95
      %v6534 = vpop.permute.xlu0 %6533
      %6535 = vrot.lane.b32.xlu0 %v5606, 95
      %v6536 = vpop.permute.xlu0 %6535
      %6537 = vrot.lane.b32.xlu0 %v5596, 95
      %v6538 = vpop.permute.xlu0 %6537
      %6539 = vrot.lane.b32.xlu0 %v5602, 95
      %v6540 = vpop.permute.xlu0 %6539
      %6541 = vrot.lane.b32.xlu0 %v5608, 95
      %v6542 = vpop.permute.xlu0 %6541
      %6543 = vrot.lane.b32.xlu0 %v5677, 95
      %v6544 = vpop.permute.xlu0 %6543
      %6545 = vrot.lane.b32.xlu0 %v5683, 95
      %v6546 = vpop.permute.xlu0 %6545
      %6547 = vrot.lane.b32.xlu0 %v5689, 95
      %v6548 = vpop.permute.xlu0 %6547
      %6549 = vrot.lane.b32.xlu0 %v5679, 95
      %v6550 = vpop.permute.xlu0 %6549
      %6551 = vrot.lane.b32.xlu0 %v5685, 95
      %v6552 = vpop.permute.xlu0 %6551
      %6553 = vrot.lane.b32.xlu0 %v5691, 95
      %v6554 = vpop.permute.xlu0 %6553
      %6555 = vrot.lane.b32.xlu0 %v5760, 95
      %v6556 = vpop.permute.xlu0 %6555
      %6557 = vrot.lane.b32.xlu0 %v5766, 95
      %v6558 = vpop.permute.xlu0 %6557
      %6559 = vrot.lane.b32.xlu0 %v5772, 95
      %v6560 = vpop.permute.xlu0 %6559
      %6561 = vrot.lane.b32.xlu0 %v5762, 95
      %v6562 = vpop.permute.xlu0 %6561
      %6563 = vrot.lane.b32.xlu0 %v5768, 95
      %v6564 = vpop.permute.xlu0 %6563
      %6565 = vrot.lane.b32.xlu0 %v5774, 95
      %v6566 = vpop.permute.xlu0 %6565
      %6567 = vrot.lane.b32.xlu0 %v5843, 95
      %v6568 = vpop.permute.xlu0 %6567
      %6569 = vrot.lane.b32.xlu0 %v5849, 95
      %v6570 = vpop.permute.xlu0 %6569
      %6571 = vrot.lane.b32.xlu0 %v5855, 95
      %v6572 = vpop.permute.xlu0 %6571
      %6573 = vrot.lane.b32.xlu0 %v5845, 95
      %v6574 = vpop.permute.xlu0 %6573
      %6575 = vrot.lane.b32.xlu0 %v5851, 95
      %v6576 = vpop.permute.xlu0 %6575
      %6577 = vrot.lane.b32.xlu0 %v5857, 95
      %v6578 = vpop.permute.xlu0 %6577
      %v6579 = vsel %vm2438, %v6568, %v6574
      %v6580 = vsel %vm2438, %v6570, %v6576
      %v6581 = vsel %vm2438, %v6572, %v6578
      %v6582 = vsel %vm2438, %v6562, %v6568
      %v6583 = vsel %vm2438, %v6564, %v6570
      %v6584 = vsel %vm2438, %v6566, %v6572
      %v6585 = vsel %vm2438, %v6556, %v6562
      %v6586 = vsel %vm2438, %v6558, %v6564
      %v6587 = vsel %vm2438, %v6560, %v6566
      %v6588 = vsel %vm2438, %v6550, %v6556
      %v6589 = vsel %vm2438, %v6552, %v6558
      %v6590 = vsel %vm2438, %v6554, %v6560
      %v6591 = vsel %vm2438, %v6544, %v6550
      %v6592 = vsel %vm2438, %v6546, %v6552
      %v6593 = vsel %vm2438, %v6548, %v6554
      %v6594 = vsel %vm2438, %v6538, %v6544
      %v6595 = vsel %vm2438, %v6540, %v6546
      %v6596 = vsel %vm2438, %v6542, %v6548
      %v6597 = vsel %vm2438, %v6532, %v6538
      %v6598 = vsel %vm2438, %v6534, %v6540
      %v6599 = vsel %vm2438, %v6536, %v6542
      %v6600 = vsel %vm2438, %v6574, %v6532
      %v6601 = vsel %vm2438, %v6576, %v6534
      %v6602 = vsel %vm2438, %v6578, %v6536
      %v6603 = vmul.f32 %v6597, %v2450
      %v6604 = vmul.f32 %v6594, %v2454
      %v6605 = vmul.f32 %v6591, %v2458
      %v6606 = vmul.f32 %v6588, %v2462
      %v6607 = vmul.f32 %v6585, %v2466
      %v6608 = vmul.f32 %v6582, %v2470
      %v6609 = vmul.f32 %v6579, %v2474
      %v6610 = vmul.f32 %v6600, %v2478
      %v6611 = vmul.f32 %v6598, %v2450
      %v6612 = vmul.f32 %v6595, %v2454
      %v6613 = vmul.f32 %v6592, %v2458
      %v6614 = vmul.f32 %v6589, %v2462
      %v6615 = vmul.f32 %v6586, %v2466
      %v6616 = vmul.f32 %v6583, %v2470
      %v6617 = vmul.f32 %v6580, %v2474
      %v6618 = vmul.f32 %v6601, %v2478
      %v6619 = vmul.f32 %v6599, %v2450
      %v6620 = vmul.f32 %v6596, %v2454
      %v6621 = vmul.f32 %v6593, %v2458
      %v6622 = vmul.f32 %v6590, %v2462
      %v6623 = vmul.f32 %v6587, %v2466
      %v6624 = vmul.f32 %v6584, %v2470
      %v6625 = vmul.f32 %v6581, %v2474
      %v6626 = vmul.f32 %v6602, %v2478
      %v6627 = vld [vmem:[%s20] sm:$0xff]
      %v6628 = vld [vmem:[%s21] sm:$0xf]
      %6630 = vset.pattern.permute.xlu0 0
      %6631 = vperm.xlu0 %6630, %v6628
      %v6632 = vpop.permute.xlu0 %6631
      %v6635 = vcombine.high %v6627, %v6627
      %v6636 = vsel %vm5517, %v6635, 0
      %6638 = vmatprep.subr.mxu0 %v5932
      %6639 = vmatpush1.msra.mxu0 %v5931
      %6640 = vmatprep.subr.mxu0 %v5940
      %6641 = vmatpush1.msra.mxu0 %v5939
      %6642 = vmatprep.subr.mxu0 %v5948
      %6643 = vmatpush1.msra.mxu0 %v5947
      %6644 = vmatprep.subr.mxu0 %v6028
      %6645 = vmatpush1.msra.mxu0 %v6027
      %6646 = vmatprep.subr.mxu0 %v6036
      %6647 = vmatpush1.msra.mxu0 %v6035
      %6648 = vmatprep.subr.mxu0 %v6044
      %6649 = vmatpush1.msra.mxu0 %v6043
      %6650 = vmatprep.subr.mxu0 %v6124
      %6651 = vmatpush1.msra.mxu0 %v6123
      %6652 = vmatprep.subr.mxu0 %v6132
      %6653 = vmatpush1.msra.mxu0 %v6131
      %6654 = vmatprep.subr.mxu0 %v6140
      %6655 = vmatpush1.msra.mxu0 %v6139
      %6656 = vmatprep.subr.mxu0 %v6220
      %6657 = vmatpush1.msra.mxu0 %v6219
      %6658 = vmatprep.subr.mxu0 %v6228
      %6659 = vmatpush1.msra.mxu0 %v6227
      %6660 = vmatprep.subr.mxu0 %v6236
      %6661 = vmatpush1.msra.mxu0 %v6235
      %6662 = vmatprep.subr.mxu0 %v5596
      %6663 = vmatpush1.msra.mxu0 %v5594
      %6664 = vmatprep.subr.mxu0 %v5602
      %6665 = vmatpush1.msra.mxu0 %v5600
      %6666 = vmatprep.subr.mxu0 %v5608
      %6667 = vmatpush1.msra.mxu0 %v5606
      %6668 = vmatprep.subr.mxu0 %v6316
      %6669 = vmatpush1.msra.mxu0 %v6315
      %6670 = vmatprep.subr.mxu0 %v6324
      %6671 = vmatpush1.msra.mxu0 %v6323
      %6672 = vmatprep.subr.mxu0 %v6332
      %6673 = vmatpush1.msra.mxu0 %v6331
      %6674 = vmatprep.subr.mxu0 %v6412
      %6675 = vmatpush1.msra.mxu0 %v6411
      %6676 = vmatprep.subr.mxu0 %v6420
      %6677 = vmatpush1.msra.mxu0 %v6419
      %6678 = vmatprep.subr.mxu0 %v6428
      %6679 = vmatpush1.msra.mxu0 %v6427
      %6680 = vmatprep.subr.mxu0 %v6508
      %6681 = vmatpush1.msra.mxu0 %v6507
      %6682 = vmatprep.subr.mxu0 %v6516
      %6683 = vmatpush1.msra.mxu0 %v6515
      %6684 = vmatprep.subr.mxu0 %v6524
      %6685 = vmatpush1.msra.mxu0 %v6523
      %6686 = vmatprep.subr.mxu0 %v6604
      %6687 = vmatpush1.msra.mxu0 %v6603
      %6688 = vmatprep.subr.mxu0 %v6612
      %6689 = vmatpush1.msra.mxu0 %v6611
      %6690 = vmatprep.subr.mxu0 %v6620
      %6691 = vmatpush1.msra.mxu0 %v6619
      %6692 = vmatprep.subr.mxu0 0.0
      %6693 = vmatpush1.msra.mxu0 0.0
      %6694 = vmatprep.subr.mxu0 0.0
      %6695 = vmatpush1.msra.mxu0 0.0
      %6696 = vmatprep.subr.mxu0 0.0
      %6697 = vmatpush1.msra.mxu0 0.0
      %6698 = vmatprep.subr.mxu0 0.0
      %6699 = vmatpush1.msra.mxu0 0.0
      %6700 = vmatprep.subr.mxu0 0.0
      %6701 = vmatpush1.msra.mxu0 0.0
      %6702 = vmatprep.mubr.f32.mxu0 %v6636
      %6703 = vmatmul.mubr.f32.gmra.mrb[0].mxu0 %v6627
      %v6704 = vpop.f32.mrb[0].mxu0
      %v6705 = vadd.f32 %v6632, %v6704
      %v6706 = vpop.f32.mrb[0].mxu0
      %v6707 = vadd.f32 %v6632, %v6706
      %6708 = vdwg.mxu0
      %6709 = vmatprep.subr.mxu0 %v5934
      %6710 = vmatpush1.msra.mxu0 %v5933
      %6711 = vmatprep.subr.mxu0 %v5942
      %6712 = vmatpush1.msra.mxu0 %v5941
      %6713 = vmatprep.subr.mxu0 %v5950
      %6714 = vmatpush1.msra.mxu0 %v5949
      %6715 = vmatprep.subr.mxu0 %v6030
      %6716 = vmatpush1.msra.mxu0 %v6029
      %6717 = vmatprep.subr.mxu0 %v6038
      %6718 = vmatpush1.msra.mxu0 %v6037
      %6719 = vmatprep.subr.mxu0 %v6046
      %6720 = vmatpush1.msra.mxu0 %v6045
      %6721 = vmatprep.subr.mxu0 %v6126
      %6722 = vmatpush1.msra.mxu0 %v6125
      %6723 = vmatprep.subr.mxu0 %v6134
      %6724 = vmatpush1.msra.mxu0 %v6133
      %6725 = vmatprep.subr.mxu0 %v6142
      %6726 = vmatpush1.msra.mxu0 %v6141
      %6727 = vmatprep.subr.mxu0 %v6222
      %6728 = vmatpush1.msra.mxu0 %v6221
      %6729 = vmatprep.subr.mxu0 %v6230
      %6730 = vmatpush1.msra.mxu0 %v6229
      %6731 = vmatprep.subr.mxu0 %v6238
      %6732 = vmatpush1.msra.mxu0 %v6237
      %6733 = vmatprep.subr.mxu0 %v5679
      %6734 = vmatpush1.msra.mxu0 %v5677
      %6735 = vmatprep.subr.mxu0 %v5685
      %6736 = vmatpush1.msra.mxu0 %v5683
      %6737 = vmatprep.subr.mxu0 %v5691
      %6738 = vmatpush1.msra.mxu0 %v5689
      %6739 = vmatprep.subr.mxu0 %v6318
      %6740 = vmatpush1.msra.mxu0 %v6317
      %6741 = vmatprep.subr.mxu0 %v6326
      %6742 = vmatpush1.msra.mxu0 %v6325
      %6743 = vmatprep.subr.mxu0 %v6334
      %6744 = vmatpush1.msra.mxu0 %v6333
      %6745 = vmatprep.subr.mxu0 %v6414
      %6746 = vmatpush1.msra.mxu0 %v6413
      %6747 = vmatprep.subr.mxu0 %v6422
      %6748 = vmatpush1.msra.mxu0 %v6421
      %6749 = vmatprep.subr.mxu0 %v6430
      %6750 = vmatpush1.msra.mxu0 %v6429
      %6751 = vmatprep.subr.mxu0 %v6510
      %6752 = vmatpush1.msra.mxu0 %v6509
      %6753 = vmatprep.subr.mxu0 %v6518
      %6754 = vmatpush1.msra.mxu0 %v6517
      %6755 = vmatprep.subr.mxu0 %v6526
      %6756 = vmatpush1.msra.mxu0 %v6525
      %6757 = vmatprep.subr.mxu0 %v6606
      %6758 = vmatpush1.msra.mxu0 %v6605
      %6759 = vmatprep.subr.mxu0 %v6614
      %6760 = vmatpush1.msra.mxu0 %v6613
      %6761 = vmatprep.subr.mxu0 %v6622
      %6762 = vmatpush1.msra.mxu0 %v6621
      %6763 = vmatprep.subr.mxu0 0.0
      %6764 = vmatpush1.msra.mxu0 0.0
      %6765 = vmatprep.subr.mxu0 0.0
      %6766 = vmatpush1.msra.mxu0 0.0
      %6767 = vmatprep.subr.mxu0 0.0
      %6768 = vmatpush1.msra.mxu0 0.0
      %6769 = vmatprep.subr.mxu0 0.0
      %6770 = vmatpush1.msra.mxu0 0.0
      %6771 = vmatprep.subr.mxu0 0.0
      %6772 = vmatpush1.msra.mxu0 0.0
      %6773 = vmatprep.mubr.f32.mxu0 %v6636
      %6774 = vmatmul.mubr.f32.gmra.mrb[0].mxu0 %v6627
      %v6775 = vpop.f32.mrb[0].mxu0
      %v6776 = vadd.f32 %v6632, %v6775
      %v6777 = vpop.f32.mrb[0].mxu0
      %v6778 = vadd.f32 %v6632, %v6777
      %6779 = vdwg.mxu0
      %6780 = vmatprep.subr.mxu0 %v5936
      %6781 = vmatpush1.msra.mxu0 %v5935
      %6782 = vmatprep.subr.mxu0 %v5944
      %6783 = vmatpush1.msra.mxu0 %v5943
      %6784 = vmatprep.subr.mxu0 %v5952
      %6785 = vmatpush1.msra.mxu0 %v5951
      %6786 = vmatprep.subr.mxu0 %v6032
      %6787 = vmatpush1.msra.mxu0 %v6031
      %6788 = vmatprep.subr.mxu0 %v6040
      %6789 = vmatpush1.msra.mxu0 %v6039
      %6790 = vmatprep.subr.mxu0 %v6048
      %6791 = vmatpush1.msra.mxu0 %v6047
      %6792 = vmatprep.subr.mxu0 %v6128
      %6793 = vmatpush1.msra.mxu0 %v6127
      %6794 = vmatprep.subr.mxu0 %v6136
      %6795 = vmatpush1.msra.mxu0 %v6135
      %6796 = vmatprep.subr.mxu0 %v6144
      %6797 = vmatpush1.msra.mxu0 %v6143
      %6798 = vmatprep.subr.mxu0 %v6224
      %6799 = vmatpush1.msra.mxu0 %v6223
      %6800 = vmatprep.subr.mxu0 %v6232
      %6801 = vmatpush1.msra.mxu0 %v6231
      %6802 = vmatprep.subr.mxu0 %v6240
      %6803 = vmatpush1.msra.mxu0 %v6239
      %6804 = vmatprep.subr.mxu0 %v5762
      %6805 = vmatpush1.msra.mxu0 %v5760
      %6806 = vmatprep.subr.mxu0 %v5768
      %6807 = vmatpush1.msra.mxu0 %v5766
      %6808 = vmatprep.subr.mxu0 %v5774
      %6809 = vmatpush1.msra.mxu0 %v5772
      %6810 = vmatprep.subr.mxu0 %v6320
      %6811 = vmatpush1.msra.mxu0 %v6319
      %6812 = vmatprep.subr.mxu0 %v6328
      %6813 = vmatpush1.msra.mxu0 %v6327
      %6814 = vmatprep.subr.mxu0 %v6336
      %6815 = vmatpush1.msra.mxu0 %v6335
      %6816 = vmatprep.subr.mxu0 %v6416
      %6817 = vmatpush1.msra.mxu0 %v6415
      %6818 = vmatprep.subr.mxu0 %v6424
      %6819 = vmatpush1.msra.mxu0 %v6423
      %6820 = vmatprep.subr.mxu0 %v6432
      %6821 = vmatpush1.msra.mxu0 %v6431
      %6822 = vmatprep.subr.mxu0 %v6512
      %6823 = vmatpush1.msra.mxu0 %v6511
      %6824 = vmatprep.subr.mxu0 %v6520
      %6825 = vmatpush1.msra.mxu0 %v6519
      %6826 = vmatprep.subr.mxu0 %v6528
      %6827 = vmatpush1.msra.mxu0 %v6527
      %6828 = vmatprep.subr.mxu0 %v6608
      %6829 = vmatpush1.msra.mxu0 %v6607
      %6830 = vmatprep.subr.mxu0 %v6616
      %6831 = vmatpush1.msra.mxu0 %v6615
      %6832 = vmatprep.subr.mxu0 %v6624
      %6833 = vmatpush1.msra.mxu0 %v6623
      %6834 = vmatprep.subr.mxu0 0.0
      %6835 = vmatpush1.msra.mxu0 0.0
      %6836 = vmatprep.subr.mxu0 0.0
      %6837 = vmatpush1.msra.mxu0 0.0
      %6838 = vmatprep.subr.mxu0 0.0
      %6839 = vmatpush1.msra.mxu0 0.0
      %6840 = vmatprep.subr.mxu0 0.0
      %6841 = vmatpush1.msra.mxu0 0.0
      %6842 = vmatprep.subr.mxu0 0.0
      %6843 = vmatpush1.msra.mxu0 0.0
      %6844 = vmatprep.mubr.f32.mxu0 %v6636
      %6845 = vmatmul.mubr.f32.gmra.mrb[0].mxu0 %v6627
      %v6846 = vpop.f32.mrb[0].mxu0
      %v6847 = vadd.f32 %v6632, %v6846
      %v6848 = vpop.f32.mrb[0].mxu0
      %v6849 = vadd.f32 %v6632, %v6848
      %6850 = vdwg.mxu0
      %6851 = vmatprep.subr.mxu0 %v5938
      %6852 = vmatpush1.msra.mxu0 %v5937
      %6853 = vmatprep.subr.mxu0 %v5946
      %6854 = vmatpush1.msra.mxu0 %v5945
      %6855 = vmatprep.subr.mxu0 %v5954
      %6856 = vmatpush1.msra.mxu0 %v5953
      %6857 = vmatprep.subr.mxu0 %v6034
      %6858 = vmatpush1.msra.mxu0 %v6033
      %6859 = vmatprep.subr.mxu0 %v6042
      %6860 = vmatpush1.msra.mxu0 %v6041
      %6861 = vmatprep.subr.mxu0 %v6050
      %6862 = vmatpush1.msra.mxu0 %v6049
      %6863 = vmatprep.subr.mxu0 %v6130
      %6864 = vmatpush1.msra.mxu0 %v6129
      %6865 = vmatprep.subr.mxu0 %v6138
      %6866 = vmatpush1.msra.mxu0 %v6137
      %6867 = vmatprep.subr.mxu0 %v6146
      %6868 = vmatpush1.msra.mxu0 %v6145
      %6869 = vmatprep.subr.mxu0 %v6226
      %6870 = vmatpush1.msra.mxu0 %v6225
      %6871 = vmatprep.subr.mxu0 %v6234
      %6872 = vmatpush1.msra.mxu0 %v6233
      %6873 = vmatprep.subr.mxu0 %v6242
      %6874 = vmatpush1.msra.mxu0 %v6241
      %6875 = vmatprep.subr.mxu0 %v5845
      %6876 = vmatpush1.msra.mxu0 %v5843
      %6877 = vmatprep.subr.mxu0 %v5851
      %6878 = vmatpush1.msra.mxu0 %v5849
      %6879 = vmatprep.subr.mxu0 %v5857
      %6880 = vmatpush1.msra.mxu0 %v5855
      %6881 = vmatprep.subr.mxu0 %v6322
      %6882 = vmatpush1.msra.mxu0 %v6321
      %6883 = vmatprep.subr.mxu0 %v6330
      %6884 = vmatpush1.msra.mxu0 %v6329
      %6885 = vmatprep.subr.mxu0 %v6338
      %6886 = vmatpush1.msra.mxu0 %v6337
      %6887 = vmatprep.subr.mxu0 %v6418
      %6888 = vmatpush1.msra.mxu0 %v6417
      %6889 = vmatprep.subr.mxu0 %v6426
      %6890 = vmatpush1.msra.mxu0 %v6425
      %6891 = vmatprep.subr.mxu0 %v6434
      %6892 = vmatpush1.msra.mxu0 %v6433
      %6893 = vmatprep.subr.mxu0 %v6514
      %6894 = vmatpush1.msra.mxu0 %v6513
      %6895 = vmatprep.subr.mxu0 %v6522
      %6896 = vmatpush1.msra.mxu0 %v6521
      %6897 = vmatprep.subr.mxu0 %v6530
      %6898 = vmatpush1.msra.mxu0 %v6529
      %6899 = vmatprep.subr.mxu0 %v6610
      %6900 = vmatpush1.msra.mxu0 %v6609
      %6901 = vmatprep.subr.mxu0 %v6618
      %6902 = vmatpush1.msra.mxu0 %v6617
      %6903 = vmatprep.subr.mxu0 %v6626
      %6904 = vmatpush1.msra.mxu0 %v6625
      %6905 = vmatprep.subr.mxu0 0.0
      %6906 = vmatpush1.msra.mxu0 0.0
      %6907 = vmatprep.subr.mxu0 0.0
      %6908 = vmatpush1.msra.mxu0 0.0
      %6909 = vmatprep.subr.mxu0 0.0
      %6910 = vmatpush1.msra.mxu0 0.0
      %6911 = vmatprep.subr.mxu0 0.0
      %6912 = vmatpush1.msra.mxu0 0.0
      %6913 = vmatprep.subr.mxu0 0.0
      %6914 = vmatpush1.msra.mxu0 0.0
      %6915 = vmatprep.mubr.f32.mxu0 %v6636
      %6916 = vmatmul.mubr.f32.gmra.mrb[0].mxu0 %v6627
      %v6917 = vpop.f32.mrb[0].mxu0
      %v6918 = vadd.f32 %v6632, %v6917
      %v6919 = vpop.f32.mrb[0].mxu0
      %v6920 = vadd.f32 %v6632, %v6919
      %6921 = vdwg.mxu0
      %v6930 = vcombine.low %v6705, %v6707
      %v6931 = vcombine.low %v6776, %v6778
      %v6932 = vcombine.low %v6847, %v6849
      %v6933 = vcombine.low %v6918, %v6920
      %6938 = vst [vmem:[%s720] sm:$0xff] %v6930
      %6939 = vst [vmem:[%s720 + $0x8] sm:$0xff] %v6931
      %6940 = vst [vmem:[%s720 + $0x10] sm:$0xff] %v6932
      %6941 = vst [vmem:[%s720 + $0x18] sm:$0xff] %v6933
      %p6942 = scmp.lt.s32.totalorder %s33, 1
      %s6943 = scalar_select %p6942, %s33, 1
      %s6944 = smul.addr %s6943, 8
      %s6945 = smul.addr %s6944, 4
      %s6946 = scalar_lea.vmem %s22, %s6945
      // Predicated region
      $region109: #{aggregation_forward.1} parent=107 // pred_check
        %p6947 = pneg %p528
      $region110: #{aggregation_forward.1} parent=107 // pred_check_branch
        %6949 = sbr.rel (%p6947) target = $region112
      $region111: #{aggregation_forward.1} parent=107 // pred_region
        _
      $region112: #{aggregation_forward.1} parent=107 // pred_fallthru
        _
    $region108: #{aggregation_forward.1} parent=5 // pred_fallthru
      _
    %p6950 = scmp.le.s32.totalorder 2, %s28
    // Predicated region
    $region113: #{aggregation_forward.1} parent=5 // pred_check
      %p6951 = pneg %p6950
    $region114: #{aggregation_forward.1} parent=5 // pred_check_branch
      %6953 = sbr.rel (%p6951) target = $region116
    $region115: #{aggregation_forward.1} parent=5 // pred_region
      %s6954 = ssub.s32 %s28, 2
      // Predicated region
      $region117: #{aggregation_forward.1} parent=115 // pred_check
        %p6955 = pneg %p534
      $region118: #{aggregation_forward.1} parent=115 // pred_check_branch
        %6957 = sbr.rel (%p6955) target = $region120
      $region119: #{aggregation_forward.1} parent=115 // pred_region
        %p6958 = scmp.lt.s32.totalorder %s34, 1
        %s6959 = scalar_select %p6958, %s34, 1
        %s6960 = smul.addr %s6959, 8
        %s6961 = smul.addr %s6960, 4
        %s6962 = scalar_lea.vmem %s22, %s6961
      $region120: #{aggregation_forward.1} parent=115 // pred_fallthru
        _
    $region116: #{aggregation_forward.1} parent=5 // pred_fallthru
      _
  $region6: #{aggregation_forward.1} parent=0 // loop_footer
    %s32 = sadd.s32 1, %s28
  $region7: #{aggregation_forward.1} parent=0 // loop_footer_branch
    %27 = sbr.rel target = $region3
  $region8: #{aggregation_forward.1} parent=0 // loop_exit
    _

</llo_original>
